<compile_context>
chip_gen: v5e
topology: v5e:2x2
jax: 0.10.0
libtpu: 0.0.40
codegen_flags: <defaults>
</compile_context>

<pallas_src>
import math
import functools

import jax
import jax.numpy as jnp
from jax.experimental import pallas as pl
from jax.experimental.pallas import tpu as pltpu

EPS = 1e-5  # nn.LayerNorm default eps


# -------------------- packed bias / LayerNorm-param layout --------------------

def _vec_fields(d, f):
    return (
        ("sa_bqkv", 3 * d), ("sa_bo", d), ("ln1_g", d), ("ln1_b", d),
        ("ca_bq", d), ("ca_bkv", 2 * d), ("ca_bo", d),
        ("gate_b", d), ("ln2_g", d), ("ln2_b", d),
        ("fc1_b", f), ("fc2_b", d), ("ln3_g", d), ("ln3_b", d),
    )


def _vec_offsets(d, f):
    offs, o = {}, 0
    for name, n in _vec_fields(d, f):
        offs[name] = (o, n)
        o += n
    return offs, o


# ----------------------------- in-kernel helpers -----------------------------

def _layer_norm(y, g, b):
    mu = jnp.mean(y, axis=-1, keepdims=True)
    var = jnp.mean((y - mu) ** 2, axis=-1, keepdims=True)
    return (y - mu) * jax.lax.rsqrt(var + EPS) * g + b


def _mha(q, k, v, wo, bo, *, batch, num_heads):
    """Head-batched multi-head attention.

    q: [B*Lq, D] f32, k/v: [B*Lk, D] f32, wo: [D, D] bf16, bo: [1, D] f32.
    Heads are moved off the lane axis into a [B*H, L, hd] stack, scores and
    context use one batched einsum pair, and a single [N, D] @ [D, D] dot does
    the output projection (algebraically identical to concat + final_linear).
    """
    nq, D = q.shape
    nk = k.shape[0]
    lq, lk = nq // batch, nk // batch
    hd = D // num_heads

    def split_heads(x, length):
        # [B*L, D] -> [B*H, L, hd] via static slices + stack (no >2-D transpose).
        slabs = []
        for b in range(batch):
            xb = x[b * length:(b + 1) * length, :]
            for h in range(num_heads):
                slabs.append(xb[:, h * hd:(h + 1) * hd])
        return jnp.stack(slabs, axis=0)

    qh = split_heads(q * (1.0 / math.sqrt(hd)), lq).astype(jnp.bfloat16)  # [BH,Lq,hd]
    kh = split_heads(k, lk).astype(jnp.bfloat16)                          # [BH,Lk,hd]
    vh = split_heads(v, lk).astype(jnp.bfloat16)                          # [BH,Lk,hd]

    s = jnp.einsum("bqd,bkd->bqk", qh, kh,
                   preferred_element_type=jnp.float32)                    # [BH,Lq,Lk]
    s = s - jnp.max(s, axis=-1, keepdims=True)
    e = jnp.exp(s)
    p = e / jnp.sum(e, axis=-1, keepdims=True)        # exact divide (parity)
    ctx = jnp.einsum("bqk,bkd->bqd", p.astype(jnp.bfloat16), vh,
                     preferred_element_type=jnp.float32)                  # [BH,Lq,hd]

    # [B*H, Lq, hd] -> [B*Lq, D]: heads back onto lanes, batches onto rows.
    rows = []
    for b in range(batch):
        rows.append(jnp.concatenate(
            [ctx[b * num_heads + h] for h in range(num_heads)], axis=-1))  # [Lq, D]
    ctx2d = jnp.concatenate(rows, axis=0)                                  # [N, D]

    out = jnp.dot(ctx2d.astype(jnp.bfloat16), wo,
                  preferred_element_type=jnp.float32)
    return out + bo


# ----------------------------- fused layer kernel -----------------------------

def _gate_extra_layer_kernel(
    x_ref, kv_ref,
    sa_wqkv_ref, sa_wo_ref, ca_wq_ref, ca_wkv_ref, ca_wo_ref,
    gate_w_ref, fc1_w_ref, fc2_w_ref, vec_ref,
    o_ref, *, batch, num_heads, d_model, ffn_dim):
    D = d_model
    offs, _ = _vec_offsets(D, ffn_dim)

    def vec(name):                       # [1, n] f32 static slice of packed params
        o, n = offs[name]
        return vec_ref[:, o:o + n]

    x = x_ref[...]                       # [B*Lq, D] f32
    kv = kv_ref[...]                     # [B*Lk, D] f32

    # ---- self-attention (fused QKV) + residual + LN1 ----
    qkv = jnp.dot(x.astype(jnp.bfloat16), sa_wqkv_ref[...],
                  preferred_element_type=jnp.float32) + vec("sa_bqkv")     # [N, 3D]
    attn = _mha(qkv[:, :D], qkv[:, D:2 * D], qkv[:, 2 * D:],
                sa_wo_ref[...], vec("sa_bo"), batch=batch, num_heads=num_heads)
    h1 = _layer_norm(x + attn, vec("ln1_g"), vec("ln1_b"))

    # ---- cross-attention (fused KV) + fused gate + residual + LN2 ----
    h1_bf = h1.astype(jnp.bfloat16)                        # cast once, reused
    q = jnp.dot(h1_bf, ca_wq_ref[...],
                preferred_element_type=jnp.float32) + vec("ca_bq")         # [N, D]
    kvp = jnp.dot(kv.astype(jnp.bfloat16), ca_wkv_ref[...],
                  preferred_element_type=jnp.float32) + vec("ca_bkv")      # [Nk, 2D]
    cattn = _mha(q, kvp[:, :D], kvp[:, D:],
                 ca_wo_ref[...], vec("ca_bo"), batch=batch, num_heads=num_heads)
    cattn_bf = cattn.astype(jnp.bfloat16)                  # cast once, reused
    gate_in = jnp.concatenate([h1_bf, cattn_bf], axis=-1)                  # [N, 2D]
    gate = jax.nn.sigmoid(
        jnp.dot(gate_in, gate_w_ref[...], preferred_element_type=jnp.float32)
        + vec("gate_b"))
    h2 = _layer_norm(h1 + gate * cattn, vec("ln2_g"), vec("ln2_b"))

    # ---- FFN: fc1 + exact (erf) GELU + fc2 + residual + LN3 ----
    ff = jnp.dot(h2.astype(jnp.bfloat16), fc1_w_ref[...],
                 preferred_element_type=jnp.float32) + vec("fc1_b")        # [N, F]
    ff = 0.5 * ff * (1.0 + jax.lax.erf(ff * (1.0 / math.sqrt(2.0))))
    ff = jnp.dot(ff.astype(jnp.bfloat16), fc2_w_ref[...],
                 preferred_element_type=jnp.float32) + vec("fc2_b")        # [N, D]
    o_ref[...] = _layer_norm(h2 + ff, vec("ln3_g"), vec("ln3_b"))


# ----------------------------- wrapper -----------------------------

def gate_extra_layer(hidden_states, key_value_states, params, num_heads):
    B, Lq, D = hidden_states.shape
    Lk = key_value_states.shape[1]
    F = params["fc1_w"].shape[1]
    Nq, Nk = B * Lq, B * Lk
    hd = D // num_heads

    # Fold batch into the row (sublane) axis; attention un-folds it in-kernel.
    x_flat = hidden_states.reshape(Nq, D)
    kv_flat = key_value_states.reshape(Nk, D)

    mats = (params["sa_wqkv"], params["sa_wo"], params["ca_wq"], params["ca_wkv"],
            params["ca_wo"], params["gate_w"], params["fc1_w"], params["fc2_w"])
    vec = params["vec"]

    kernel = functools.partial(
        _gate_extra_layer_kernel,
        batch=B, num_heads=num_heads, d_model=D, ffn_dim=F)

    mm_flops = 2 * Nq * D * 3 * D                 # self qkv
    mm_flops += 4 * B * num_heads * Lq * Lq * hd  # self scores + context
    mm_flops += 2 * Nq * D * D                    # self out-proj
    mm_flops += 2 * Nq * D * D                    # cross q
    mm_flops += 2 * Nk * D * 2 * D                # cross kv
    mm_flops += 4 * B * num_heads * Lq * Lk * hd  # cross scores + context
    mm_flops += 2 * Nq * D * D                    # cross out-proj
    mm_flops += 2 * Nq * 2 * D * D                # gate
    mm_flops += 4 * Nq * D * F                    # fc1 + fc2
    transcendentals = (B * num_heads * Lq * (Lq + Lk)   # softmax exp
                       + Nq * D                         # sigmoid
                       + Nq * F                         # erf (gelu)
                       + 6 * Nq)                        # layernorm rsqrt
    bytes_accessed = (4 * (int(x_flat.size) + int(kv_flat.size) + Nq * D)  # f32 act
                      + 2 * sum(int(m.size) for m in mats)                 # bf16 weights
                      + 4 * int(vec.size))                                 # f32 params

    vmem_spec = pl.BlockSpec(memory_space=pltpu.MemorySpace.VMEM)
    out_flat = pl.pallas_call(
        kernel,
        out_shape=jax.ShapeDtypeStruct((Nq, D), jnp.float32),
        in_specs=[vmem_spec] * (2 + len(mats) + 1),
        out_specs=vmem_spec,
        cost_estimate=pl.CostEstimate(flops=int(mm_flops),
                                      transcendentals=int(transcendentals),
                                      bytes_accessed=int(bytes_accessed)),
        compiler_params=pltpu.CompilerParams(
            # Weight-resident fused layer: raise the scoped-VMEM ceiling above
            # the 16/32 MiB defaults (v5e / v6e+v7x) while staying well under
            # v7x's 64 MiB physical VMEM.
            # TODO(synk): at production D/F, stream fc1_w/fc2_w through a
            # K-tiled reduction grid instead of keeping them VMEM-resident.
            vmem_limit_bytes=48 * 1024 * 1024,
        ),
    )(x_flat, kv_flat, *mats, vec)
    return out_flat.reshape(B, Lq, D)


# ----------------------------- parameter init -----------------------------

def init_params(key, d_model, ffn_dim):
    def dense(k, din, dout, scale=0.02):
        kw, kb = jax.random.split(k)
        return (scale * jax.random.normal(kw, (din, dout), jnp.float32),
                scale * jax.random.normal(kb, (dout,), jnp.float32))

    keys = jax.random.split(key, 11)
    wq, bq = dense(keys[0], d_model, d_model)
    wk, bk = dense(keys[1], d_model, d_model)
    wv, bv = dense(keys[2], d_model, d_model)
    wo, bo = dense(keys[3], d_model, d_model)
    cwq, cbq = dense(keys[4], d_model, d_model)
    cwk, cbk = dense(keys[5], d_model, d_model)
    cwv, cbv = dense(keys[6], d_model, d_model)
    cwo, cbo = dense(keys[7], d_model, d_model)
    gate_w, gate_b = dense(keys[8], 2 * d_model, d_model)
    fc1_w, fc1_b = dense(keys[9], d_model, ffn_dim)
    fc2_w, fc2_b = dense(keys[10], ffn_dim, d_model)

    ones = jnp.ones((d_model,), jnp.float32)
    zeros = jnp.zeros((d_model,), jnp.float32)
    vec_values = dict(
        sa_bqkv=jnp.concatenate([bq, bk, bv]), sa_bo=bo, ln1_g=ones, ln1_b=zeros,
        ca_bq=cbq, ca_bkv=jnp.concatenate([cbk, cbv]), ca_bo=cbo,
        gate_b=gate_b, ln2_g=ones, ln2_b=zeros,
        fc1_b=fc1_b, fc2_b=fc2_b, ln3_g=ones, ln3_b=zeros,
    )
    _, total = _vec_offsets(d_model, ffn_dim)
    vec = jnp.concatenate(
        [vec_values[name] for name, _ in _vec_fields(d_model, ffn_dim)]
    ).reshape(1, total)

    bf16 = lambda a: a.astype(jnp.bfloat16)   # matmul weights: bf16 (f32 accumulation)
    return dict(
        sa_wqkv=bf16(jnp.concatenate([wq, wk, wv], axis=1)),   # [D, 3D]
        sa_wo=bf16(wo),                                        # [D, D]
        ca_wq=bf16(cwq),                                       # [D, D]
        ca_wkv=bf16(jnp.concatenate([cwk, cwv], axis=1)),      # [D, 2D]
        ca_wo=bf16(cwo),                                       # [D, D]
        gate_w=bf16(gate_w),                                   # [2D, D]
        fc1_w=bf16(fc1_w),                                     # [D, F]
        fc2_w=bf16(fc2_w),                                     # [F, D]
        vec=vec,                                               # [1, 16D+F] f32
    )


# ----------------------------- main -----------------------------

if __name__ == "__main__":
    B, Lq, Lkv = 2, 8, 16
    D_MODEL, NUM_HEADS, FFN = 32, 4, 3072  # fc1/fc2 hidden fixed at 3072 in the module

    key = jax.random.PRNGKey(0)
    k_h, k_kv, k_p = jax.random.split(key, 3)
    hidden_states = jax.random.normal(k_h, (B, Lq, D_MODEL), jnp.float32)
    key_value_states = jax.random.normal(k_kv, (B, Lkv, D_MODEL), jnp.float32)
    params = init_params(k_p, D_MODEL, FFN)

    out = gate_extra_layer(hidden_states, key_value_states, params, NUM_HEADS)
    out = jax.block_until_ready(out)

    assert out.shape == (B, Lq, D_MODEL)
    assert bool(jnp.all(jnp.isfinite(out)))
    print("KERNEL_OK")
</pallas_src>

<mosaic_0001>
module attributes {stable_mosaic.version = 11 : i64} {
  func.func @_gate_extra_layer_kernel(%arg0: memref<16x32xf32, #tpu.memory_space<vmem>>, %arg1: memref<32x32xf32, #tpu.memory_space<vmem>>, %arg2: memref<32x96xbf16, #tpu.memory_space<vmem>>, %arg3: memref<32x32xbf16, #tpu.memory_space<vmem>>, %arg4: memref<32x32xbf16, #tpu.memory_space<vmem>>, %arg5: memref<32x64xbf16, #tpu.memory_space<vmem>>, %arg6: memref<32x32xbf16, #tpu.memory_space<vmem>>, %arg7: memref<64x32xbf16, #tpu.memory_space<vmem>>, %arg8: memref<32x3072xbf16, #tpu.memory_space<vmem>>, %arg9: memref<3072x32xbf16, #tpu.memory_space<vmem>>, %arg10: memref<1x3584xf32, #tpu.memory_space<vmem>>, %arg11: memref<16x32xf32, #tpu.memory_space<vmem>>) attributes {dimension_semantics = [], scalar_prefetch = 0 : i64, scratch_operands = 0 : i64, tpu.core_type = #tpu.core_type<tc>} {
    %c0 = arith.constant 0 : index
    %c0_0 = arith.constant 0 : index
    %0 = vector.load %arg0[%c0, %c0_0] : memref<16x32xf32, #tpu.memory_space<vmem>>, vector<16x32xf32>
    %c0_1 = arith.constant 0 : index
    %c0_2 = arith.constant 0 : index
    %1 = vector.load %arg1[%c0_1, %c0_2] : memref<32x32xf32, #tpu.memory_space<vmem>>, vector<32x32xf32>
    %2 = arith.truncf %0 : vector<16x32xf32> to vector<16x32xbf16>
    %c0_3 = arith.constant 0 : index
    %c0_4 = arith.constant 0 : index
    %3 = vector.load %arg2[%c0_3, %c0_4] : memref<32x96xbf16, #tpu.memory_space<vmem>>, vector<32x96xbf16>
    %cst = arith.constant dense<0.000000e+00> : vector<16x96xf32>
    %4 = tpu.matmul %2, %3, %cst {dimension_numbers = #tpu.dot_dimension_numbers<[1], [0], [0], [1], [0, 0, 1, 1], [], []>} : vector<16x32xbf16>, vector<32x96xbf16>, vector<16x96xf32> -> vector<16x96xf32>
    %c0_5 = arith.constant 0 : index
    %c0_6 = arith.constant 0 : index
    %5 = vector.load %arg10[%c0_5, %c0_6] : memref<1x3584xf32, #tpu.memory_space<vmem>>, vector<1x96xf32>
    %6 = vector.broadcast %5 : vector<1x96xf32> to vector<16x96xf32>
    %7 = arith.addf %4, %6 : vector<16x96xf32>
    %8 = vector.extract_strided_slice %7 {offsets = [0, 0], sizes = [16, 32], strides = [1, 1]} : vector<16x96xf32> to vector<16x32xf32>
    %9 = vector.extract_strided_slice %7 {offsets = [0, 32], sizes = [16, 32], strides = [1, 1]} : vector<16x96xf32> to vector<16x32xf32>
    %10 = vector.extract_strided_slice %7 {offsets = [0, 64], sizes = [16, 32], strides = [1, 1]} : vector<16x96xf32> to vector<16x32xf32>
    %c0_7 = arith.constant 0 : index
    %c0_8 = arith.constant 0 : index
    %11 = vector.load %arg3[%c0_7, %c0_8] : memref<32x32xbf16, #tpu.memory_space<vmem>>, vector<32x32xbf16>
    %c0_9 = arith.constant 0 : index
    %c96 = arith.constant 96 : index
    %12 = vector.load %arg10[%c0_9, %c96] : memref<1x3584xf32, #tpu.memory_space<vmem>>, vector<1x32xf32>
    %cst_10 = arith.constant 0.353553385 : f32
    %13 = vector.broadcast %cst_10 : f32 to vector<16x32xf32>
    %14 = arith.mulf %8, %13 : vector<16x32xf32>
    %15 = vector.extract_strided_slice %14 {offsets = [0, 0], sizes = [8, 32], strides = [1, 1]} : vector<16x32xf32> to vector<8x32xf32>
    %16 = vector.extract_strided_slice %15 {offsets = [0, 0], sizes = [8, 8], strides = [1, 1]} : vector<8x32xf32> to vector<8x8xf32>
    %17 = vector.extract_strided_slice %15 {offsets = [0, 8], sizes = [8, 8], strides = [1, 1]} : vector<8x32xf32> to vector<8x8xf32>
    %18 = vector.extract_strided_slice %15 {offsets = [0, 16], sizes = [8, 8], strides = [1, 1]} : vector<8x32xf32> to vector<8x8xf32>
    %19 = vector.extract_strided_slice %15 {offsets = [0, 24], sizes = [8, 8], strides = [1, 1]} : vector<8x32xf32> to vector<8x8xf32>
    %20 = vector.extract_strided_slice %14 {offsets = [8, 0], sizes = [8, 32], strides = [1, 1]} : vector<16x32xf32> to vector<8x32xf32>
    %21 = vector.extract_strided_slice %20 {offsets = [0, 0], sizes = [8, 8], strides = [1, 1]} : vector<8x32xf32> to vector<8x8xf32>
    %22 = vector.extract_strided_slice %20 {offsets = [0, 8], sizes = [8, 8], strides = [1, 1]} : vector<8x32xf32> to vector<8x8xf32>
    %23 = vector.extract_strided_slice %20 {offsets = [0, 16], sizes = [8, 8], strides = [1, 1]} : vector<8x32xf32> to vector<8x8xf32>
    %24 = vector.extract_strided_slice %20 {offsets = [0, 24], sizes = [8, 8], strides = [1, 1]} : vector<8x32xf32> to vector<8x8xf32>
    %25 = vector.shape_cast %16 : vector<8x8xf32> to vector<1x8x8xf32>
    %26 = vector.shape_cast %17 : vector<8x8xf32> to vector<1x8x8xf32>
    %27 = vector.shape_cast %18 : vector<8x8xf32> to vector<1x8x8xf32>
    %28 = vector.shape_cast %19 : vector<8x8xf32> to vector<1x8x8xf32>
    %29 = vector.shape_cast %21 : vector<8x8xf32> to vector<1x8x8xf32>
    %30 = vector.shape_cast %22 : vector<8x8xf32> to vector<1x8x8xf32>
    %31 = vector.shape_cast %23 : vector<8x8xf32> to vector<1x8x8xf32>
    %32 = vector.shape_cast %24 : vector<8x8xf32> to vector<1x8x8xf32>
    %33 = tpu.concatenate %25, %26, %27, %28, %29, %30, %31, %32 in 0 : vector<1x8x8xf32>, vector<1x8x8xf32>, vector<1x8x8xf32>, vector<1x8x8xf32>, vector<1x8x8xf32>, vector<1x8x8xf32>, vector<1x8x8xf32>, vector<1x8x8xf32> -> vector<8x8x8xf32>
    %34 = arith.truncf %33 : vector<8x8x8xf32> to vector<8x8x8xbf16>
    %35 = vector.extract_strided_slice %9 {offsets = [0, 0], sizes = [8, 32], strides = [1, 1]} : vector<16x32xf32> to vector<8x32xf32>
    %36 = vector.extract_strided_slice %35 {offsets = [0, 0], sizes = [8, 8], strides = [1, 1]} : vector<8x32xf32> to vector<8x8xf32>
    %37 = vector.extract_strided_slice %35 {offsets = [0, 8], sizes = [8, 8], strides = [1, 1]} : vector<8x32xf32> to vector<8x8xf32>
    %38 = vector.extract_strided_slice %35 {offsets = [0, 16], sizes = [8, 8], strides = [1, 1]} : vector<8x32xf32> to vector<8x8xf32>
    %39 = vector.extract_strided_slice %35 {offsets = [0, 24], sizes = [8, 8], strides = [1, 1]} : vector<8x32xf32> to vector<8x8xf32>
    %40 = vector.extract_strided_slice %9 {offsets = [8, 0], sizes = [8, 32], strides = [1, 1]} : vector<16x32xf32> to vector<8x32xf32>
    %41 = vector.extract_strided_slice %40 {offsets = [0, 0], sizes = [8, 8], strides = [1, 1]} : vector<8x32xf32> to vector<8x8xf32>
    %42 = vector.extract_strided_slice %40 {offsets = [0, 8], sizes = [8, 8], strides = [1, 1]} : vector<8x32xf32> to vector<8x8xf32>
    %43 = vector.extract_strided_slice %40 {offsets = [0, 16], sizes = [8, 8], strides = [1, 1]} : vector<8x32xf32> to vector<8x8xf32>
    %44 = vector.extract_strided_slice %40 {offsets = [0, 24], sizes = [8, 8], strides = [1, 1]} : vector<8x32xf32> to vector<8x8xf32>
    %45 = vector.shape_cast %36 : vector<8x8xf32> to vector<1x8x8xf32>
    %46 = vector.shape_cast %37 : vector<8x8xf32> to vector<1x8x8xf32>
    %47 = vector.shape_cast %38 : vector<8x8xf32> to vector<1x8x8xf32>
    %48 = vector.shape_cast %39 : vector<8x8xf32> to vector<1x8x8xf32>
    %49 = vector.shape_cast %41 : vector<8x8xf32> to vector<1x8x8xf32>
    %50 = vector.shape_cast %42 : vector<8x8xf32> to vector<1x8x8xf32>
    %51 = vector.shape_cast %43 : vector<8x8xf32> to vector<1x8x8xf32>
    %52 = vector.shape_cast %44 : vector<8x8xf32> to vector<1x8x8xf32>
    %53 = tpu.concatenate %45, %46, %47, %48, %49, %50, %51, %52 in 0 : vector<1x8x8xf32>, vector<1x8x8xf32>, vector<1x8x8xf32>, vector<1x8x8xf32>, vector<1x8x8xf32>, vector<1x8x8xf32>, vector<1x8x8xf32>, vector<1x8x8xf32> -> vector<8x8x8xf32>
    %54 = arith.truncf %53 : vector<8x8x8xf32> to vector<8x8x8xbf16>
    %55 = vector.extract_strided_slice %10 {offsets = [0, 0], sizes = [8, 32], strides = [1, 1]} : vector<16x32xf32> to vector<8x32xf32>
    %56 = vector.extract_strided_slice %55 {offsets = [0, 0], sizes = [8, 8], strides = [1, 1]} : vector<8x32xf32> to vector<8x8xf32>
    %57 = vector.extract_strided_slice %55 {offsets = [0, 8], sizes = [8, 8], strides = [1, 1]} : vector<8x32xf32> to vector<8x8xf32>
    %58 = vector.extract_strided_slice %55 {offsets = [0, 16], sizes = [8, 8], strides = [1, 1]} : vector<8x32xf32> to vector<8x8xf32>
    %59 = vector.extract_strided_slice %55 {offsets = [0, 24], sizes = [8, 8], strides = [1, 1]} : vector<8x32xf32> to vector<8x8xf32>
    %60 = vector.extract_strided_slice %10 {offsets = [8, 0], sizes = [8, 32], strides = [1, 1]} : vector<16x32xf32> to vector<8x32xf32>
    %61 = vector.extract_strided_slice %60 {offsets = [0, 0], sizes = [8, 8], strides = [1, 1]} : vector<8x32xf32> to vector<8x8xf32>
    %62 = vector.extract_strided_slice %60 {offsets = [0, 8], sizes = [8, 8], strides = [1, 1]} : vector<8x32xf32> to vector<8x8xf32>
    %63 = vector.extract_strided_slice %60 {offsets = [0, 16], sizes = [8, 8], strides = [1, 1]} : vector<8x32xf32> to vector<8x8xf32>
    %64 = vector.extract_strided_slice %60 {offsets = [0, 24], sizes = [8, 8], strides = [1, 1]} : vector<8x32xf32> to vector<8x8xf32>
    %65 = vector.shape_cast %56 : vector<8x8xf32> to vector<1x8x8xf32>
    %66 = vector.shape_cast %57 : vector<8x8xf32> to vector<1x8x8xf32>
    %67 = vector.shape_cast %58 : vector<8x8xf32> to vector<1x8x8xf32>
    %68 = vector.shape_cast %59 : vector<8x8xf32> to vector<1x8x8xf32>
    %69 = vector.shape_cast %61 : vector<8x8xf32> to vector<1x8x8xf32>
    %70 = vector.shape_cast %62 : vector<8x8xf32> to vector<1x8x8xf32>
    %71 = vector.shape_cast %63 : vector<8x8xf32> to vector<1x8x8xf32>
    %72 = vector.shape_cast %64 : vector<8x8xf32> to vector<1x8x8xf32>
    %73 = tpu.concatenate %65, %66, %67, %68, %69, %70, %71, %72 in 0 : vector<1x8x8xf32>, vector<1x8x8xf32>, vector<1x8x8xf32>, vector<1x8x8xf32>, vector<1x8x8xf32>, vector<1x8x8xf32>, vector<1x8x8xf32>, vector<1x8x8xf32> -> vector<8x8x8xf32>
    %74 = arith.truncf %73 : vector<8x8x8xf32> to vector<8x8x8xbf16>
    "tpu.trace_start"() <{level = 10 : i32, message = "bqd,bkd->bqk"}> : () -> ()
    %cst_11 = arith.constant dense<0.000000e+00> : vector<8x8x8xf32>
    %75 = tpu.matmul %34, %54, %cst_11 {dimension_numbers = #tpu.dot_dimension_numbers<[2], [2], [1], [1], [0, 0, 0, 1, 1, 1], [0], [0]>} : vector<8x8x8xbf16>, vector<8x8x8xbf16>, vector<8x8x8xf32> -> vector<8x8x8xf32>
    "tpu.trace_stop"() : () -> ()
    %cst_12 = arith.constant dense<0xFF800000> : vector<8x8xf32>
    %76 = vector.multi_reduction <maximumf>, %75, %cst_12 [2] : vector<8x8x8xf32> to vector<8x8xf32>
    %77 = vector.shape_cast %76 : vector<8x8xf32> to vector<8x8x1xf32>
    %78 = vector.broadcast %77 : vector<8x8x1xf32> to vector<8x8x8xf32>
    %79 = arith.subf %75, %78 : vector<8x8x8xf32>
    %80 = math.exp %79 : vector<8x8x8xf32>
    %cst_13 = arith.constant dense<0.000000e+00> : vector<8x8xf32>
    %81 = vector.multi_reduction <add>, %80, %cst_13 [2] : vector<8x8x8xf32> to vector<8x8xf32>
    %82 = vector.shape_cast %81 : vector<8x8xf32> to vector<8x8x1xf32>
    %83 = vector.broadcast %82 : vector<8x8x1xf32> to vector<8x8x8xf32>
    %84 = arith.divf %80, %83 : vector<8x8x8xf32>
    %85 = arith.truncf %84 : vector<8x8x8xf32> to vector<8x8x8xbf16>
    "tpu.trace_start"() <{level = 10 : i32, message = "bqk,bkd->bqd"}> : () -> ()
    %cst_14 = arith.constant dense<0.000000e+00> : vector<8x8x8xf32>
    %86 = tpu.matmul %85, %74, %cst_14 {dimension_numbers = #tpu.dot_dimension_numbers<[2], [1], [1], [2], [0, 0, 0, 1, 1, 2], [0], [0]>} : vector<8x8x8xbf16>, vector<8x8x8xbf16>, vector<8x8x8xf32> -> vector<8x8x8xf32>
    "tpu.trace_stop"() : () -> ()
    %87 = vector.extract_strided_slice %86 {offsets = [0, 0, 0], sizes = [1, 8, 8], strides = [1, 1, 1]} : vector<8x8x8xf32> to vector<1x8x8xf32>
    %88 = vector.shape_cast %87 : vector<1x8x8xf32> to vector<8x8xf32>
    %89 = vector.extract_strided_slice %86 {offsets = [1, 0, 0], sizes = [1, 8, 8], strides = [1, 1, 1]} : vector<8x8x8xf32> to vector<1x8x8xf32>
    %90 = vector.shape_cast %89 : vector<1x8x8xf32> to vector<8x8xf32>
    %91 = vector.extract_strided_slice %86 {offsets = [2, 0, 0], sizes = [1, 8, 8], strides = [1, 1, 1]} : vector<8x8x8xf32> to vector<1x8x8xf32>
    %92 = vector.shape_cast %91 : vector<1x8x8xf32> to vector<8x8xf32>
    %93 = vector.extract_strided_slice %86 {offsets = [3, 0, 0], sizes = [1, 8, 8], strides = [1, 1, 1]} : vector<8x8x8xf32> to vector<1x8x8xf32>
    %94 = vector.shape_cast %93 : vector<1x8x8xf32> to vector<8x8xf32>
    %95 = tpu.concatenate %88, %90, %92, %94 in 1 : vector<8x8xf32>, vector<8x8xf32>, vector<8x8xf32>, vector<8x8xf32> -> vector<8x32xf32>
    %96 = vector.extract_strided_slice %86 {offsets = [4, 0, 0], sizes = [1, 8, 8], strides = [1, 1, 1]} : vector<8x8x8xf32> to vector<1x8x8xf32>
    %97 = vector.shape_cast %96 : vector<1x8x8xf32> to vector<8x8xf32>
    %98 = vector.extract_strided_slice %86 {offsets = [5, 0, 0], sizes = [1, 8, 8], strides = [1, 1, 1]} : vector<8x8x8xf32> to vector<1x8x8xf32>
    %99 = vector.shape_cast %98 : vector<1x8x8xf32> to vector<8x8xf32>
    %100 = vector.extract_strided_slice %86 {offsets = [6, 0, 0], sizes = [1, 8, 8], strides = [1, 1, 1]} : vector<8x8x8xf32> to vector<1x8x8xf32>
    %101 = vector.shape_cast %100 : vector<1x8x8xf32> to vector<8x8xf32>
    %102 = vector.extract_strided_slice %86 {offsets = [7, 0, 0], sizes = [1, 8, 8], strides = [1, 1, 1]} : vector<8x8x8xf32> to vector<1x8x8xf32>
    %103 = vector.shape_cast %102 : vector<1x8x8xf32> to vector<8x8xf32>
    %104 = tpu.concatenate %97, %99, %101, %103 in 1 : vector<8x8xf32>, vector<8x8xf32>, vector<8x8xf32>, vector<8x8xf32> -> vector<8x32xf32>
    %105 = tpu.concatenate %95, %104 in 0 : vector<8x32xf32>, vector<8x32xf32> -> vector<16x32xf32>
    %106 = arith.truncf %105 : vector<16x32xf32> to vector<16x32xbf16>
    %cst_15 = arith.constant dense<0.000000e+00> : vector<16x32xf32>
    %107 = tpu.matmul %106, %11, %cst_15 {dimension_numbers = #tpu.dot_dimension_numbers<[1], [0], [0], [1], [0, 0, 1, 1], [], []>} : vector<16x32xbf16>, vector<32x32xbf16>, vector<16x32xf32> -> vector<16x32xf32>
    %108 = vector.broadcast %12 : vector<1x32xf32> to vector<16x32xf32>
    %109 = arith.addf %107, %108 : vector<16x32xf32>
    %110 = arith.addf %0, %109 : vector<16x32xf32>
    %c0_16 = arith.constant 0 : index
    %c128 = arith.constant 128 : index
    %111 = vector.load %arg10[%c0_16, %c128] : memref<1x3584xf32, #tpu.memory_space<vmem>>, vector<1x32xf32>
    %c0_17 = arith.constant 0 : index
    %c160 = arith.constant 160 : index
    %112 = vector.load %arg10[%c0_17, %c160] : memref<1x3584xf32, #tpu.memory_space<vmem>>, vector<1x32xf32>
    %cst_18 = arith.constant dense<0.000000e+00> : vector<16xf32>
    %113 = vector.multi_reduction <add>, %110, %cst_18 [1] : vector<16x32xf32> to vector<16xf32>
    %114 = vector.shape_cast %113 : vector<16xf32> to vector<16x1xf32>
    %cst_19 = arith.constant 3.200000e+01 : f32
    %115 = vector.broadcast %cst_19 : f32 to vector<16x1xf32>
    %116 = arith.divf %114, %115 : vector<16x1xf32>
    %117 = vector.broadcast %116 : vector<16x1xf32> to vector<16x32xf32>
    %118 = arith.subf %110, %117 : vector<16x32xf32>
    %119 = arith.mulf %118, %118 : vector<16x32xf32>
    %cst_20 = arith.constant dense<0.000000e+00> : vector<16xf32>
    %120 = vector.multi_reduction <add>, %119, %cst_20 [1] : vector<16x32xf32> to vector<16xf32>
    %121 = vector.shape_cast %120 : vector<16xf32> to vector<16x1xf32>
    %cst_21 = arith.constant 3.200000e+01 : f32
    %122 = vector.broadcast %cst_21 : f32 to vector<16x1xf32>
    %123 = arith.divf %121, %122 : vector<16x1xf32>
    %124 = vector.broadcast %116 : vector<16x1xf32> to vector<16x32xf32>
    %125 = arith.subf %110, %124 : vector<16x32xf32>
    %cst_22 = arith.constant 9.99999974E-6 : f32
    %126 = vector.broadcast %cst_22 : f32 to vector<16x1xf32>
    %127 = arith.addf %123, %126 : vector<16x1xf32>
    %128 = math.rsqrt %127 : vector<16x1xf32>
    %129 = vector.broadcast %128 : vector<16x1xf32> to vector<16x32xf32>
    %130 = arith.mulf %125, %129 : vector<16x32xf32>
    %131 = vector.broadcast %111 : vector<1x32xf32> to vector<16x32xf32>
    %132 = arith.mulf %130, %131 : vector<16x32xf32>
    %133 = vector.broadcast %112 : vector<1x32xf32> to vector<16x32xf32>
    %134 = arith.addf %132, %133 : vector<16x32xf32>
    %135 = arith.truncf %134 : vector<16x32xf32> to vector<16x32xbf16>
    %c0_23 = arith.constant 0 : index
    %c0_24 = arith.constant 0 : index
    %136 = vector.load %arg4[%c0_23, %c0_24] : memref<32x32xbf16, #tpu.memory_space<vmem>>, vector<32x32xbf16>
    %cst_25 = arith.constant dense<0.000000e+00> : vector<16x32xf32>
    %137 = tpu.matmul %135, %136, %cst_25 {dimension_numbers = #tpu.dot_dimension_numbers<[1], [0], [0], [1], [0, 0, 1, 1], [], []>} : vector<16x32xbf16>, vector<32x32xbf16>, vector<16x32xf32> -> vector<16x32xf32>
    %c0_26 = arith.constant 0 : index
    %c192 = arith.constant 192 : index
    %138 = vector.load %arg10[%c0_26, %c192] : memref<1x3584xf32, #tpu.memory_space<vmem>>, vector<1x32xf32>
    %139 = vector.broadcast %138 : vector<1x32xf32> to vector<16x32xf32>
    %140 = arith.addf %137, %139 : vector<16x32xf32>
    %141 = arith.truncf %1 : vector<32x32xf32> to vector<32x32xbf16>
    %c0_27 = arith.constant 0 : index
    %c0_28 = arith.constant 0 : index
    %142 = vector.load %arg5[%c0_27, %c0_28] : memref<32x64xbf16, #tpu.memory_space<vmem>>, vector<32x64xbf16>
    %cst_29 = arith.constant dense<0.000000e+00> : vector<32x64xf32>
    %143 = tpu.matmul %141, %142, %cst_29 {dimension_numbers = #tpu.dot_dimension_numbers<[1], [0], [0], [1], [0, 0, 1, 1], [], []>} : vector<32x32xbf16>, vector<32x64xbf16>, vector<32x64xf32> -> vector<32x64xf32>
    %c0_30 = arith.constant 0 : index
    %c224 = arith.constant 224 : index
    %144 = vector.load %arg10[%c0_30, %c224] : memref<1x3584xf32, #tpu.memory_space<vmem>>, vector<1x64xf32>
    %145 = vector.broadcast %144 : vector<1x64xf32> to vector<32x64xf32>
    %146 = arith.addf %143, %145 : vector<32x64xf32>
    %147 = vector.extract_strided_slice %146 {offsets = [0, 0], sizes = [32, 32], strides = [1, 1]} : vector<32x64xf32> to vector<32x32xf32>
    %148 = vector.extract_strided_slice %146 {offsets = [0, 32], sizes = [32, 32], strides = [1, 1]} : vector<32x64xf32> to vector<32x32xf32>
    %c0_31 = arith.constant 0 : index
    %c0_32 = arith.constant 0 : index
    %149 = vector.load %arg6[%c0_31, %c0_32] : memref<32x32xbf16, #tpu.memory_space<vmem>>, vector<32x32xbf16>
    %c0_33 = arith.constant 0 : index
    %c288 = arith.constant 288 : index
    %150 = vector.load %arg10[%c0_33, %c288] : memref<1x3584xf32, #tpu.memory_space<vmem>>, vector<1x32xf32>
    %cst_34 = arith.constant 0.353553385 : f32
    %151 = vector.broadcast %cst_34 : f32 to vector<16x32xf32>
    %152 = arith.mulf %140, %151 : vector<16x32xf32>
    %153 = vector.extract_strided_slice %152 {offsets = [0, 0], sizes = [8, 32], strides = [1, 1]} : vector<16x32xf32> to vector<8x32xf32>
    %154 = vector.extract_strided_slice %153 {offsets = [0, 0], sizes = [8, 8], strides = [1, 1]} : vector<8x32xf32> to vector<8x8xf32>
    %155 = vector.extract_strided_slice %153 {offsets = [0, 8], sizes = [8, 8], strides = [1, 1]} : vector<8x32xf32> to vector<8x8xf32>
    %156 = vector.extract_strided_slice %153 {offsets = [0, 16], sizes = [8, 8], strides = [1, 1]} : vector<8x32xf32> to vector<8x8xf32>
    %157 = vector.extract_strided_slice %153 {offsets = [0, 24], sizes = [8, 8], strides = [1, 1]} : vector<8x32xf32> to vector<8x8xf32>
    %158 = vector.extract_strided_slice %152 {offsets = [8, 0], sizes = [8, 32], strides = [1, 1]} : vector<16x32xf32> to vector<8x32xf32>
    %159 = vector.extract_strided_slice %158 {offsets = [0, 0], sizes = [8, 8], strides = [1, 1]} : vector<8x32xf32> to vector<8x8xf32>
    %160 = vector.extract_strided_slice %158 {offsets = [0, 8], sizes = [8, 8], strides = [1, 1]} : vector<8x32xf32> to vector<8x8xf32>
    %161 = vector.extract_strided_slice %158 {offsets = [0, 16], sizes = [8, 8], strides = [1, 1]} : vector<8x32xf32> to vector<8x8xf32>
    %162 = vector.extract_strided_slice %158 {offsets = [0, 24], sizes = [8, 8], strides = [1, 1]} : vector<8x32xf32> to vector<8x8xf32>
    %163 = vector.shape_cast %154 : vector<8x8xf32> to vector<1x8x8xf32>
    %164 = vector.shape_cast %155 : vector<8x8xf32> to vector<1x8x8xf32>
    %165 = vector.shape_cast %156 : vector<8x8xf32> to vector<1x8x8xf32>
    %166 = vector.shape_cast %157 : vector<8x8xf32> to vector<1x8x8xf32>
    %167 = vector.shape_cast %159 : vector<8x8xf32> to vector<1x8x8xf32>
    %168 = vector.shape_cast %160 : vector<8x8xf32> to vector<1x8x8xf32>
    %169 = vector.shape_cast %161 : vector<8x8xf32> to vector<1x8x8xf32>
    %170 = vector.shape_cast %162 : vector<8x8xf32> to vector<1x8x8xf32>
    %171 = tpu.concatenate %163, %164, %165, %166, %167, %168, %169, %170 in 0 : vector<1x8x8xf32>, vector<1x8x8xf32>, vector<1x8x8xf32>, vector<1x8x8xf32>, vector<1x8x8xf32>, vector<1x8x8xf32>, vector<1x8x8xf32>, vector<1x8x8xf32> -> vector<8x8x8xf32>
    %172 = arith.truncf %171 : vector<8x8x8xf32> to vector<8x8x8xbf16>
    %173 = vector.extract_strided_slice %147 {offsets = [0, 0], sizes = [16, 32], strides = [1, 1]} : vector<32x32xf32> to vector<16x32xf32>
    %174 = vector.extract_strided_slice %173 {offsets = [0, 0], sizes = [16, 8], strides = [1, 1]} : vector<16x32xf32> to vector<16x8xf32>
    %175 = vector.extract_strided_slice %173 {offsets = [0, 8], sizes = [16, 8], strides = [1, 1]} : vector<16x32xf32> to vector<16x8xf32>
    %176 = vector.extract_strided_slice %173 {offsets = [0, 16], sizes = [16, 8], strides = [1, 1]} : vector<16x32xf32> to vector<16x8xf32>
    %177 = vector.extract_strided_slice %173 {offsets = [0, 24], sizes = [16, 8], strides = [1, 1]} : vector<16x32xf32> to vector<16x8xf32>
    %178 = vector.extract_strided_slice %147 {offsets = [16, 0], sizes = [16, 32], strides = [1, 1]} : vector<32x32xf32> to vector<16x32xf32>
    %179 = vector.extract_strided_slice %178 {offsets = [0, 0], sizes = [16, 8], strides = [1, 1]} : vector<16x32xf32> to vector<16x8xf32>
    %180 = vector.extract_strided_slice %178 {offsets = [0, 8], sizes = [16, 8], strides = [1, 1]} : vector<16x32xf32> to vector<16x8xf32>
    %181 = vector.extract_strided_slice %178 {offsets = [0, 16], sizes = [16, 8], strides = [1, 1]} : vector<16x32xf32> to vector<16x8xf32>
    %182 = vector.extract_strided_slice %178 {offsets = [0, 24], sizes = [16, 8], strides = [1, 1]} : vector<16x32xf32> to vector<16x8xf32>
    %183 = vector.shape_cast %174 : vector<16x8xf32> to vector<1x16x8xf32>
    %184 = vector.shape_cast %175 : vector<16x8xf32> to vector<1x16x8xf32>
    %185 = vector.shape_cast %176 : vector<16x8xf32> to vector<1x16x8xf32>
    %186 = vector.shape_cast %177 : vector<16x8xf32> to vector<1x16x8xf32>
    %187 = vector.shape_cast %179 : vector<16x8xf32> to vector<1x16x8xf32>
    %188 = vector.shape_cast %180 : vector<16x8xf32> to vector<1x16x8xf32>
    %189 = vector.shape_cast %181 : vector<16x8xf32> to vector<1x16x8xf32>
    %190 = vector.shape_cast %182 : vector<16x8xf32> to vector<1x16x8xf32>
    %191 = tpu.concatenate %183, %184, %185, %186, %187, %188, %189, %190 in 0 : vector<1x16x8xf32>, vector<1x16x8xf32>, vector<1x16x8xf32>, vector<1x16x8xf32>, vector<1x16x8xf32>, vector<1x16x8xf32>, vector<1x16x8xf32>, vector<1x16x8xf32> -> vector<8x16x8xf32>
    %192 = arith.truncf %191 : vector<8x16x8xf32> to vector<8x16x8xbf16>
    %193 = vector.extract_strided_slice %148 {offsets = [0, 0], sizes = [16, 32], strides = [1, 1]} : vector<32x32xf32> to vector<16x32xf32>
    %194 = vector.extract_strided_slice %193 {offsets = [0, 0], sizes = [16, 8], strides = [1, 1]} : vector<16x32xf32> to vector<16x8xf32>
    %195 = vector.extract_strided_slice %193 {offsets = [0, 8], sizes = [16, 8], strides = [1, 1]} : vector<16x32xf32> to vector<16x8xf32>
    %196 = vector.extract_strided_slice %193 {offsets = [0, 16], sizes = [16, 8], strides = [1, 1]} : vector<16x32xf32> to vector<16x8xf32>
    %197 = vector.extract_strided_slice %193 {offsets = [0, 24], sizes = [16, 8], strides = [1, 1]} : vector<16x32xf32> to vector<16x8xf32>
    %198 = vector.extract_strided_slice %148 {offsets = [16, 0], sizes = [16, 32], strides = [1, 1]} : vector<32x32xf32> to vector<16x32xf32>
    %199 = vector.extract_strided_slice %198 {offsets = [0, 0], sizes = [16, 8], strides = [1, 1]} : vector<16x32xf32> to vector<16x8xf32>
    %200 = vector.extract_strided_slice %198 {offsets = [0, 8], sizes = [16, 8], strides = [1, 1]} : vector<16x32xf32> to vector<16x8xf32>
    %201 = vector.extract_strided_slice %198 {offsets = [0, 16], sizes = [16, 8], strides = [1, 1]} : vector<16x32xf32> to vector<16x8xf32>
    %202 = vector.extract_strided_slice %198 {offsets = [0, 24], sizes = [16, 8], strides = [1, 1]} : vector<16x32xf32> to vector<16x8xf32>
    %203 = vector.shape_cast %194 : vector<16x8xf32> to vector<1x16x8xf32>
    %204 = vector.shape_cast %195 : vector<16x8xf32> to vector<1x16x8xf32>
    %205 = vector.shape_cast %196 : vector<16x8xf32> to vector<1x16x8xf32>
    %206 = vector.shape_cast %197 : vector<16x8xf32> to vector<1x16x8xf32>
    %207 = vector.shape_cast %199 : vector<16x8xf32> to vector<1x16x8xf32>
    %208 = vector.shape_cast %200 : vector<16x8xf32> to vector<1x16x8xf32>
    %209 = vector.shape_cast %201 : vector<16x8xf32> to vector<1x16x8xf32>
    %210 = vector.shape_cast %202 : vector<16x8xf32> to vector<1x16x8xf32>
    %211 = tpu.concatenate %203, %204, %205, %206, %207, %208, %209, %210 in 0 : vector<1x16x8xf32>, vector<1x16x8xf32>, vector<1x16x8xf32>, vector<1x16x8xf32>, vector<1x16x8xf32>, vector<1x16x8xf32>, vector<1x16x8xf32>, vector<1x16x8xf32> -> vector<8x16x8xf32>
    %212 = arith.truncf %211 : vector<8x16x8xf32> to vector<8x16x8xbf16>
    "tpu.trace_start"() <{level = 10 : i32, message = "bqd,bkd->bqk"}> : () -> ()
    %cst_35 = arith.constant dense<0.000000e+00> : vector<8x8x16xf32>
    %213 = tpu.matmul %172, %192, %cst_35 {dimension_numbers = #tpu.dot_dimension_numbers<[2], [2], [1], [1], [0, 0, 0, 1, 1, 1], [0], [0]>} : vector<8x8x8xbf16>, vector<8x16x8xbf16>, vector<8x8x16xf32> -> vector<8x8x16xf32>
    "tpu.trace_stop"() : () -> ()
    %cst_36 = arith.constant dense<0xFF800000> : vector<8x8xf32>
    %214 = vector.multi_reduction <maximumf>, %213, %cst_36 [2] : vector<8x8x16xf32> to vector<8x8xf32>
    %215 = vector.shape_cast %214 : vector<8x8xf32> to vector<8x8x1xf32>
    %216 = vector.broadcast %215 : vector<8x8x1xf32> to vector<8x8x16xf32>
    %217 = arith.subf %213, %216 : vector<8x8x16xf32>
    %218 = math.exp %217 : vector<8x8x16xf32>
    %cst_37 = arith.constant dense<0.000000e+00> : vector<8x8xf32>
    %219 = vector.multi_reduction <add>, %218, %cst_37 [2] : vector<8x8x16xf32> to vector<8x8xf32>
    %220 = vector.shape_cast %219 : vector<8x8xf32> to vector<8x8x1xf32>
    %221 = vector.broadcast %220 : vector<8x8x1xf32> to vector<8x8x16xf32>
    %222 = arith.divf %218, %221 : vector<8x8x16xf32>
    %223 = arith.truncf %222 : vector<8x8x16xf32> to vector<8x8x16xbf16>
    "tpu.trace_start"() <{level = 10 : i32, message = "bqk,bkd->bqd"}> : () -> ()
    %cst_38 = arith.constant dense<0.000000e+00> : vector<8x8x8xf32>
    %224 = tpu.matmul %223, %212, %cst_38 {dimension_numbers = #tpu.dot_dimension_numbers<[2], [1], [1], [2], [0, 0, 0, 1, 1, 2], [0], [0]>} : vector<8x8x16xbf16>, vector<8x16x8xbf16>, vector<8x8x8xf32> -> vector<8x8x8xf32>
    "tpu.trace_stop"() : () -> ()
    %225 = vector.extract_strided_slice %224 {offsets = [0, 0, 0], sizes = [1, 8, 8], strides = [1, 1, 1]} : vector<8x8x8xf32> to vector<1x8x8xf32>
    %226 = vector.shape_cast %225 : vector<1x8x8xf32> to vector<8x8xf32>
    %227 = vector.extract_strided_slice %224 {offsets = [1, 0, 0], sizes = [1, 8, 8], strides = [1, 1, 1]} : vector<8x8x8xf32> to vector<1x8x8xf32>
    %228 = vector.shape_cast %227 : vector<1x8x8xf32> to vector<8x8xf32>
    %229 = vector.extract_strided_slice %224 {offsets = [2, 0, 0], sizes = [1, 8, 8], strides = [1, 1, 1]} : vector<8x8x8xf32> to vector<1x8x8xf32>
    %230 = vector.shape_cast %229 : vector<1x8x8xf32> to vector<8x8xf32>
    %231 = vector.extract_strided_slice %224 {offsets = [3, 0, 0], sizes = [1, 8, 8], strides = [1, 1, 1]} : vector<8x8x8xf32> to vector<1x8x8xf32>
    %232 = vector.shape_cast %231 : vector<1x8x8xf32> to vector<8x8xf32>
    %233 = tpu.concatenate %226, %228, %230, %232 in 1 : vector<8x8xf32>, vector<8x8xf32>, vector<8x8xf32>, vector<8x8xf32> -> vector<8x32xf32>
    %234 = vector.extract_strided_slice %224 {offsets = [4, 0, 0], sizes = [1, 8, 8], strides = [1, 1, 1]} : vector<8x8x8xf32> to vector<1x8x8xf32>
    %235 = vector.shape_cast %234 : vector<1x8x8xf32> to vector<8x8xf32>
    %236 = vector.extract_strided_slice %224 {offsets = [5, 0, 0], sizes = [1, 8, 8], strides = [1, 1, 1]} : vector<8x8x8xf32> to vector<1x8x8xf32>
    %237 = vector.shape_cast %236 : vector<1x8x8xf32> to vector<8x8xf32>
    %238 = vector.extract_strided_slice %224 {offsets = [6, 0, 0], sizes = [1, 8, 8], strides = [1, 1, 1]} : vector<8x8x8xf32> to vector<1x8x8xf32>
    %239 = vector.shape_cast %238 : vector<1x8x8xf32> to vector<8x8xf32>
    %240 = vector.extract_strided_slice %224 {offsets = [7, 0, 0], sizes = [1, 8, 8], strides = [1, 1, 1]} : vector<8x8x8xf32> to vector<1x8x8xf32>
    %241 = vector.shape_cast %240 : vector<1x8x8xf32> to vector<8x8xf32>
    %242 = tpu.concatenate %235, %237, %239, %241 in 1 : vector<8x8xf32>, vector<8x8xf32>, vector<8x8xf32>, vector<8x8xf32> -> vector<8x32xf32>
    %243 = tpu.concatenate %233, %242 in 0 : vector<8x32xf32>, vector<8x32xf32> -> vector<16x32xf32>
    %244 = arith.truncf %243 : vector<16x32xf32> to vector<16x32xbf16>
    %cst_39 = arith.constant dense<0.000000e+00> : vector<16x32xf32>
    %245 = tpu.matmul %244, %149, %cst_39 {dimension_numbers = #tpu.dot_dimension_numbers<[1], [0], [0], [1], [0, 0, 1, 1], [], []>} : vector<16x32xbf16>, vector<32x32xbf16>, vector<16x32xf32> -> vector<16x32xf32>
    %246 = vector.broadcast %150 : vector<1x32xf32> to vector<16x32xf32>
    %247 = arith.addf %245, %246 : vector<16x32xf32>
    %248 = arith.truncf %247 : vector<16x32xf32> to vector<16x32xbf16>
    %249 = tpu.concatenate %135, %248 in 1 : vector<16x32xbf16>, vector<16x32xbf16> -> vector<16x64xbf16>
    %c0_40 = arith.constant 0 : index
    %c0_41 = arith.constant 0 : index
    %250 = vector.load %arg7[%c0_40, %c0_41] : memref<64x32xbf16, #tpu.memory_space<vmem>>, vector<64x32xbf16>
    %cst_42 = arith.constant dense<0.000000e+00> : vector<16x32xf32>
    %251 = tpu.matmul %249, %250, %cst_42 {dimension_numbers = #tpu.dot_dimension_numbers<[1], [0], [0], [1], [0, 0, 1, 1], [], []>} : vector<16x64xbf16>, vector<64x32xbf16>, vector<16x32xf32> -> vector<16x32xf32>
    %c0_43 = arith.constant 0 : index
    %c320 = arith.constant 320 : index
    %252 = vector.load %arg10[%c0_43, %c320] : memref<1x3584xf32, #tpu.memory_space<vmem>>, vector<1x32xf32>
    %253 = vector.broadcast %252 : vector<1x32xf32> to vector<16x32xf32>
    %254 = arith.addf %251, %253 : vector<16x32xf32>
    %255 = arith.negf %254 : vector<16x32xf32>
    %256 = math.exp %255 : vector<16x32xf32>
    %cst_44 = arith.constant 1.000000e+00 : f32
    %257 = vector.broadcast %cst_44 : f32 to vector<16x32xf32>
    %258 = arith.addf %257, %256 : vector<16x32xf32>
    %259 = arith.divf %257, %258 : vector<16x32xf32>
    %260 = arith.mulf %259, %247 : vector<16x32xf32>
    %261 = arith.addf %134, %260 : vector<16x32xf32>
    %c0_45 = arith.constant 0 : index
    %c352 = arith.constant 352 : index
    %262 = vector.load %arg10[%c0_45, %c352] : memref<1x3584xf32, #tpu.memory_space<vmem>>, vector<1x32xf32>
    %c0_46 = arith.constant 0 : index
    %c384 = arith.constant 384 : index
    %263 = vector.load %arg10[%c0_46, %c384] : memref<1x3584xf32, #tpu.memory_space<vmem>>, vector<1x32xf32>
    %cst_47 = arith.constant dense<0.000000e+00> : vector<16xf32>
    %264 = vector.multi_reduction <add>, %261, %cst_47 [1] : vector<16x32xf32> to vector<16xf32>
    %265 = vector.shape_cast %264 : vector<16xf32> to vector<16x1xf32>
    %cst_48 = arith.constant 3.200000e+01 : f32
    %266 = vector.broadcast %cst_48 : f32 to vector<16x1xf32>
    %267 = arith.divf %265, %266 : vector<16x1xf32>
    %268 = vector.broadcast %267 : vector<16x1xf32> to vector<16x32xf32>
    %269 = arith.subf %261, %268 : vector<16x32xf32>
    %270 = arith.mulf %269, %269 : vector<16x32xf32>
    %cst_49 = arith.constant dense<0.000000e+00> : vector<16xf32>
    %271 = vector.multi_reduction <add>, %270, %cst_49 [1] : vector<16x32xf32> to vector<16xf32>
    %272 = vector.shape_cast %271 : vector<16xf32> to vector<16x1xf32>
    %cst_50 = arith.constant 3.200000e+01 : f32
    %273 = vector.broadcast %cst_50 : f32 to vector<16x1xf32>
    %274 = arith.divf %272, %273 : vector<16x1xf32>
    %275 = vector.broadcast %267 : vector<16x1xf32> to vector<16x32xf32>
    %276 = arith.subf %261, %275 : vector<16x32xf32>
    %cst_51 = arith.constant 9.99999974E-6 : f32
    %277 = vector.broadcast %cst_51 : f32 to vector<16x1xf32>
    %278 = arith.addf %274, %277 : vector<16x1xf32>
    %279 = math.rsqrt %278 : vector<16x1xf32>
    %280 = vector.broadcast %279 : vector<16x1xf32> to vector<16x32xf32>
    %281 = arith.mulf %276, %280 : vector<16x32xf32>
    %282 = vector.broadcast %262 : vector<1x32xf32> to vector<16x32xf32>
    %283 = arith.mulf %281, %282 : vector<16x32xf32>
    %284 = vector.broadcast %263 : vector<1x32xf32> to vector<16x32xf32>
    %285 = arith.addf %283, %284 : vector<16x32xf32>
    %286 = arith.truncf %285 : vector<16x32xf32> to vector<16x32xbf16>
    %c0_52 = arith.constant 0 : index
    %c0_53 = arith.constant 0 : index
    %287 = vector.load %arg8[%c0_52, %c0_53] : memref<32x3072xbf16, #tpu.memory_space<vmem>>, vector<32x3072xbf16>
    %cst_54 = arith.constant dense<0.000000e+00> : vector<16x3072xf32>
    %288 = tpu.matmul %286, %287, %cst_54 {dimension_numbers = #tpu.dot_dimension_numbers<[1], [0], [0], [1], [0, 0, 1, 1], [], []>} : vector<16x32xbf16>, vector<32x3072xbf16>, vector<16x3072xf32> -> vector<16x3072xf32>
    %c0_55 = arith.constant 0 : index
    %c416 = arith.constant 416 : index
    %289 = vector.load %arg10[%c0_55, %c416] : memref<1x3584xf32, #tpu.memory_space<vmem>>, vector<1x3072xf32>
    %290 = vector.broadcast %289 : vector<1x3072xf32> to vector<16x3072xf32>
    %291 = arith.addf %288, %290 : vector<16x3072xf32>
    %cst_56 = arith.constant 5.000000e-01 : f32
    %292 = vector.broadcast %cst_56 : f32 to vector<16x3072xf32>
    %293 = arith.mulf %292, %291 : vector<16x3072xf32>
    %cst_57 = arith.constant 0.707106769 : f32
    %294 = vector.broadcast %cst_57 : f32 to vector<16x3072xf32>
    %295 = arith.mulf %291, %294 : vector<16x3072xf32>
    %296 = math.erf %295 : vector<16x3072xf32>
    %cst_58 = arith.constant 1.000000e+00 : f32
    %297 = vector.broadcast %cst_58 : f32 to vector<16x3072xf32>
    %298 = arith.addf %297, %296 : vector<16x3072xf32>
    %299 = arith.mulf %293, %298 : vector<16x3072xf32>
    %300 = arith.truncf %299 : vector<16x3072xf32> to vector<16x3072xbf16>
    %c0_59 = arith.constant 0 : index
    %c0_60 = arith.constant 0 : index
    %301 = vector.load %arg9[%c0_59, %c0_60] : memref<3072x32xbf16, #tpu.memory_space<vmem>>, vector<3072x32xbf16>
    %cst_61 = arith.constant dense<0.000000e+00> : vector<16x32xf32>
    %302 = tpu.matmul %300, %301, %cst_61 {dimension_numbers = #tpu.dot_dimension_numbers<[1], [0], [0], [1], [0, 0, 1, 1], [], []>} : vector<16x3072xbf16>, vector<3072x32xbf16>, vector<16x32xf32> -> vector<16x32xf32>
    %c0_62 = arith.constant 0 : index
    %c3488 = arith.constant 3488 : index
    %303 = vector.load %arg10[%c0_62, %c3488] : memref<1x3584xf32, #tpu.memory_space<vmem>>, vector<1x32xf32>
    %304 = vector.broadcast %303 : vector<1x32xf32> to vector<16x32xf32>
    %305 = arith.addf %302, %304 : vector<16x32xf32>
    %306 = arith.addf %285, %305 : vector<16x32xf32>
    %c0_63 = arith.constant 0 : index
    %c3520 = arith.constant 3520 : index
    %307 = vector.load %arg10[%c0_63, %c3520] : memref<1x3584xf32, #tpu.memory_space<vmem>>, vector<1x32xf32>
    %c0_64 = arith.constant 0 : index
    %c3552 = arith.constant 3552 : index
    %308 = vector.load %arg10[%c0_64, %c3552] : memref<1x3584xf32, #tpu.memory_space<vmem>>, vector<1x32xf32>
    %cst_65 = arith.constant dense<0.000000e+00> : vector<16xf32>
    %309 = vector.multi_reduction <add>, %306, %cst_65 [1] : vector<16x32xf32> to vector<16xf32>
    %310 = vector.shape_cast %309 : vector<16xf32> to vector<16x1xf32>
    %cst_66 = arith.constant 3.200000e+01 : f32
    %311 = vector.broadcast %cst_66 : f32 to vector<16x1xf32>
    %312 = arith.divf %310, %311 : vector<16x1xf32>
    %313 = vector.broadcast %312 : vector<16x1xf32> to vector<16x32xf32>
    %314 = arith.subf %306, %313 : vector<16x32xf32>
    %315 = arith.mulf %314, %314 : vector<16x32xf32>
    %cst_67 = arith.constant dense<0.000000e+00> : vector<16xf32>
    %316 = vector.multi_reduction <add>, %315, %cst_67 [1] : vector<16x32xf32> to vector<16xf32>
    %317 = vector.shape_cast %316 : vector<16xf32> to vector<16x1xf32>
    %cst_68 = arith.constant 3.200000e+01 : f32
    %318 = vector.broadcast %cst_68 : f32 to vector<16x1xf32>
    %319 = arith.divf %317, %318 : vector<16x1xf32>
    %320 = vector.broadcast %312 : vector<16x1xf32> to vector<16x32xf32>
    %321 = arith.subf %306, %320 : vector<16x32xf32>
    %cst_69 = arith.constant 9.99999974E-6 : f32
    %322 = vector.broadcast %cst_69 : f32 to vector<16x1xf32>
    %323 = arith.addf %319, %322 : vector<16x1xf32>
    %324 = math.rsqrt %323 : vector<16x1xf32>
    %325 = vector.broadcast %324 : vector<16x1xf32> to vector<16x32xf32>
    %326 = arith.mulf %321, %325 : vector<16x32xf32>
    %327 = vector.broadcast %307 : vector<1x32xf32> to vector<16x32xf32>
    %328 = arith.mulf %326, %327 : vector<16x32xf32>
    %329 = vector.broadcast %308 : vector<1x32xf32> to vector<16x32xf32>
    %330 = arith.addf %328, %329 : vector<16x32xf32>
    %c0_70 = arith.constant 0 : index
    %c0_71 = arith.constant 0 : index
    %331 = vector.load %arg11[%c0_70, %c0_71] : memref<16x32xf32, #tpu.memory_space<vmem>>, vector<16x32xf32>
    tpu.vector_store %arg11[%c0_70, %c0_71], %330 {strides = array<i32>} : memref<16x32xf32, #tpu.memory_space<vmem>>, vector<16x32xf32>,
    return
  }
}

</mosaic_0001>

<llo_original>
// kernel: tpu_custom_call.1
$region0: #{tpu_custom_call.1}
  #allocation0 [shape = 'u32[]', space=smem, size = 0x4, offset = 0x4, fixed_abs, tag = 'smem constant byte address 0x4 - core index']
  #allocation1 [shape = 'u32[72,128]{1,0:T(1,128)}', space=vmem, size = 0x9000, scoped, tag = 'internal scratch']
  %s0 = inlined_call_operand.vmem [shape: f32[16,32], index: 0, kind: input, shape index: {}]
  %s1 = inlined_call_operand.vmem [shape: f32[32,32], index: 1, kind: input, shape index: {}]
  %s2 = inlined_call_operand.vmem [shape: bf16[32,96], index: 2, kind: input, shape index: {}]
  %s3 = inlined_call_operand.vmem [shape: bf16[32,32], index: 3, kind: input, shape index: {}]
  %s4 = inlined_call_operand.vmem [shape: bf16[32,32], index: 4, kind: input, shape index: {}]
  %s5 = inlined_call_operand.vmem [shape: bf16[32,64], index: 5, kind: input, shape index: {}]
  %s6 = inlined_call_operand.vmem [shape: bf16[32,32], index: 6, kind: input, shape index: {}]
  %s7 = inlined_call_operand.vmem [shape: bf16[64,32], index: 7, kind: input, shape index: {}]
  %s8 = inlined_call_operand.vmem [shape: bf16[32,3072], index: 8, kind: input, shape index: {}]
  %s9 = inlined_call_operand.vmem [shape: bf16[3072,32], index: 9, kind: input, shape index: {}]
  %s10 = inlined_call_operand.vmem [shape: f32[1,3584], index: 10, kind: input, shape index: {}]
  %s11 = inlined_call_operand.hbm [shape: f32[16,32], index: 11, kind: output, shape index: {}]
  %s12 = sld [smem:[#allocation0]]
  $region54: #{tpu_custom_call.1} parent=0
    _
  %s14 = ssub.s32 1, %s12
  %s15 = scalar_select 0, %s14, %s12
  $region1: #{tpu_custom_call.1} parent=0
    #allocation2 [shape = 'u8[8192]{0}', space=vmem, size = 0x2000, scoped, tag = 'output window, operand 0, single buffered']
    #allocation3 [shape = 's32[1]{0}', space=sflag, size = 0x4, scoped, tag = 'scoped memory for tpu_custom_call.1']
    %16 = vsyncpa [#allocation3], 0
    // Predicated region
    $region2: #{tpu_custom_call.1} parent=1 // pred_check
      _
    $region3: #{tpu_custom_call.1} parent=1 // pred_check_branch
      %18 = sbr.rel (0) target = $region5
    $region4: #{tpu_custom_call.1} parent=1 // pred_region
      _
    $region5: #{tpu_custom_call.1} parent=1 // pred_fallthru
      _
    // Predicated region
    $region6: #{tpu_custom_call.1} parent=1 // pred_check
      _
    $region7: #{tpu_custom_call.1} parent=1 // pred_check_branch
      %20 = sbr.rel (0) target = $region9
    $region8: #{tpu_custom_call.1} parent=1 // pred_region
      _
    $region9: #{tpu_custom_call.1} parent=1 // pred_fallthru
      _
    // Predicated region
    $region10: #{tpu_custom_call.1} parent=1 // pred_check
      _
    $region11: #{tpu_custom_call.1} parent=1 // pred_check_branch
      %22 = sbr.rel (0) target = $region13
    $region12: #{tpu_custom_call.1} parent=1 // pred_region
      _
    $region13: #{tpu_custom_call.1} parent=1 // pred_fallthru
      _
    // Predicated region
    $region14: #{tpu_custom_call.1} parent=1 // pred_check
      _
    $region15: #{tpu_custom_call.1} parent=1 // pred_check_branch
      %24 = sbr.rel (0) target = $region17
    $region16: #{tpu_custom_call.1} parent=1 // pred_region
      _
    $region17: #{tpu_custom_call.1} parent=1 // pred_fallthru
      _
    // Predicated region
    $region18: #{tpu_custom_call.1} parent=1 // pred_check
      _
    $region19: #{tpu_custom_call.1} parent=1 // pred_check_branch
      %26 = sbr.rel (0) target = $region21
    $region20: #{tpu_custom_call.1} parent=1 // pred_region
      _
    $region21: #{tpu_custom_call.1} parent=1 // pred_fallthru
      _
    // Predicated region
    $region22: #{tpu_custom_call.1} parent=1 // pred_check
      _
    $region23: #{tpu_custom_call.1} parent=1 // pred_check_branch
      %28 = sbr.rel (0) target = $region25
    $region24: #{tpu_custom_call.1} parent=1 // pred_region
      _
    $region25: #{tpu_custom_call.1} parent=1 // pred_fallthru
      _
    // Predicated region
    $region26: #{tpu_custom_call.1} parent=1 // pred_check
      _
    $region27: #{tpu_custom_call.1} parent=1 // pred_check_branch
      %30 = sbr.rel (0) target = $region29
    $region28: #{tpu_custom_call.1} parent=1 // pred_region
      _
    $region29: #{tpu_custom_call.1} parent=1 // pred_fallthru
      _
    // Predicated region
    $region30: #{tpu_custom_call.1} parent=1 // pred_check
      _
    $region31: #{tpu_custom_call.1} parent=1 // pred_check_branch
      %32 = sbr.rel (0) target = $region33
    $region32: #{tpu_custom_call.1} parent=1 // pred_region
      _
    $region33: #{tpu_custom_call.1} parent=1 // pred_fallthru
      _
    // Predicated region
    $region34: #{tpu_custom_call.1} parent=1 // pred_check
      _
    $region35: #{tpu_custom_call.1} parent=1 // pred_check_branch
      %34 = sbr.rel (0) target = $region37
    $region36: #{tpu_custom_call.1} parent=1 // pred_region
      _
    $region37: #{tpu_custom_call.1} parent=1 // pred_fallthru
      _
    // Predicated region
    $region38: #{tpu_custom_call.1} parent=1 // pred_check
      _
    $region39: #{tpu_custom_call.1} parent=1 // pred_check_branch
      %36 = sbr.rel (0) target = $region41
    $region40: #{tpu_custom_call.1} parent=1 // pred_region
      _
    $region41: #{tpu_custom_call.1} parent=1 // pred_fallthru
      _
    // Predicated region
    $region42: #{tpu_custom_call.1} parent=1 // pred_check
      _
    $region43: #{tpu_custom_call.1} parent=1 // pred_check_branch
      %38 = sbr.rel (0) target = $region45
    $region44: #{tpu_custom_call.1} parent=1 // pred_region
      _
    $region45: #{tpu_custom_call.1} parent=1 // pred_fallthru
      _
    %v40 = vld [vmem:[%s0] sm:$0xff]
    %v41 = vld [vmem:[%s0 + $0x8] sm:$0xff]
    %v42 = vld [vmem:[%s1] sm:$0xff]
    %v43 = vld [vmem:[%s1 + $0x8] sm:$0xff]
    %v44 = vld [vmem:[%s1 + $0x10] sm:$0xff]
    %v45 = vld [vmem:[%s1 + $0x18] sm:$0xff]
    %v46 = vpack.c.bf16 %v41, %v40
    %v47 = vld [vmem:[%s2] sm:$0xf]
    %v48 = vld [vmem:[%s2 + $0x4] sm:$0xf]
    %v49 = vld [vmem:[%s2 + $0x8] sm:$0xf]
    %v50 = vld [vmem:[%s2 + $0xc] sm:$0xf]
    %v51 = vld [vmem:[%s10] sm:$0x1]
    %v53 = vperm.slane %v51, 0
    %v59 = vunpack.c.l.b16 %v47
    %v60 = vunpack.c.l.b16 %v48
    %v61 = vunpack.c.l.b16 %v49
    %v62 = vunpack.c.l.b16 %v50
    %v63 = vpack.c.b16 %v60, %v59
    %v64 = vpack.c.b16 %v62, %v61
    %vm67 = vcmask 261120
    %v69 = vsel %vm67, %v46, 0
    %71 = vmatpush.bf16.msra.mxu0 0
    %72 = vmatpush.bf16.msra.mxu0 0
    %73 = vmatpush.bf16.msra.mxu0 0
    %74 = vmatpush.bf16.msra.mxu0 0
    %75 = vmatpush.bf16.msra.mxu0 0
    %76 = vmatpush.bf16.msra.mxu0 0
    %77 = vmatpush.bf16.msra.mxu0 %v64
    %78 = vmatpush.bf16.msra.mxu0 %v63
    %79 = vmatmul.bf16.gmra.mxu0 %v69
    %v80 = vpop.f32.mrf.mxu0
    %v81 = vadd.f32 %v53, %v80
    %v82 = vpop.f32.mrf.mxu0
    %v83 = vadd.f32 %v53, %v82
    %84 = vdwg.mxu0
    %v85 = vld [vmem:[%s3] sm:$0xf]
    %v86 = vld [vmem:[%s3 + $0x4] sm:$0xf]
    %v87 = vld [vmem:[%s3 + $0x8] sm:$0xf]
    %v88 = vld [vmem:[%s3 + $0xc] sm:$0xf]
    %v89 = vmul.f32 %v81, 0.35355338
    %v90 = vmul.f32 %v83, 0.35355338
    %92 = vrot.lane.b32.xlu0 %v89, 120
    %v93 = vpop.permute.xlu0 %92
    %95 = vrot.lane.b32.xlu0 %v89, 112
    %v96 = vpop.permute.xlu0 %95
    %98 = vrot.lane.b32.xlu0 %v89, 104
    %v99 = vpop.permute.xlu0 %98
    %102 = vrot.lane.b32.xlu0 %v90, 120
    %v103 = vpop.permute.xlu0 %102
    %105 = vrot.lane.b32.xlu0 %v90, 112
    %v106 = vpop.permute.xlu0 %105
    %108 = vrot.lane.b32.xlu0 %v90, 104
    %v109 = vpop.permute.xlu0 %108
    %v111 = vpack.c.bf16 %v89, %v89
    %v112 = vpack.c.bf16 %v93, %v93
    %v113 = vpack.c.bf16 %v96, %v96
    %v114 = vpack.c.bf16 %v99, %v99
    %v115 = vpack.c.bf16 %v90, %v90
    %v116 = vpack.c.bf16 %v103, %v103
    %v117 = vpack.c.bf16 %v106, %v106
    %v118 = vpack.c.bf16 %v109, %v109
    %120 = vrot.lane.b32.xlu0 %v81, 120
    %v121 = vpop.permute.xlu0 %120
    %123 = vrot.lane.b32.xlu0 %v81, 112
    %v124 = vpop.permute.xlu0 %123
    %126 = vrot.lane.b32.xlu0 %v81, 104
    %v127 = vpop.permute.xlu0 %126
    %130 = vrot.lane.b32.xlu0 %v83, 120
    %v131 = vpop.permute.xlu0 %130
    %133 = vrot.lane.b32.xlu0 %v83, 112
    %v134 = vpop.permute.xlu0 %133
    %136 = vrot.lane.b32.xlu0 %v83, 104
    %v137 = vpop.permute.xlu0 %136
    %v139 = vpack.c.bf16 %v81, %v81
    %v140 = vpack.c.bf16 %v121, %v121
    %v141 = vpack.c.bf16 %v124, %v124
    %v142 = vpack.c.bf16 %v127, %v127
    %v143 = vpack.c.bf16 %v83, %v83
    %v144 = vpack.c.bf16 %v131, %v131
    %v145 = vpack.c.bf16 %v134, %v134
    %v146 = vpack.c.bf16 %v137, %v137
    %v148 = vunpack.c.l.b16 %v139
    %v149 = vpack.c.b16 %v148, %v148
    %150 = vrot.lane.b32.xlu0 %v149, 96
    %v151 = vpop.permute.xlu0 %150
    %vm152 = vcmask 64512
    %v154 = vsel %vm152, %v111, 0
    %v157 = vsel %vm152, %v151, 0
    %159 = vmatpush.bf16.xpose.msra.mxu0 0
    %160 = vmatpush.bf16.xpose.msra.mxu0 0
    %161 = vmatpush.bf16.xpose.msra.mxu0 0
    %162 = vmatpush.bf16.xpose.msra.mxu0 0
    %163 = vmatpush.bf16.xpose.msra.mxu0 0
    %164 = vmatpush.bf16.xpose.msra.mxu0 0
    %165 = vmatpush.bf16.xpose.msra.mxu0 0
    %166 = vmatpush.bf16.xpose.msra.mxu0 %v157
    %167 = vmatmul.bf16.gmra.mxu0 %v154
    %v168 = vpop.f32.mrf.mxu0
    %v169 = vadd.f32 0.0, %v168
    %v170 = vpop.f32.mrf.mxu0
    %171 = vdwg.mxu0
    %v173 = vunpack.c.l.b16 %v140
    %v174 = vpack.c.b16 %v173, %v173
    %175 = vrot.lane.b32.xlu0 %v174, 96
    %v176 = vpop.permute.xlu0 %175
    %v178 = vsel %vm152, %v112, 0
    %v181 = vsel %vm152, %v176, 0
    %183 = vmatpush.bf16.xpose.msra.mxu0 0
    %184 = vmatpush.bf16.xpose.msra.mxu0 0
    %185 = vmatpush.bf16.xpose.msra.mxu0 0
    %186 = vmatpush.bf16.xpose.msra.mxu0 0
    %187 = vmatpush.bf16.xpose.msra.mxu0 0
    %188 = vmatpush.bf16.xpose.msra.mxu0 0
    %189 = vmatpush.bf16.xpose.msra.mxu0 0
    %190 = vmatpush.bf16.xpose.msra.mxu0 %v181
    %191 = vmatmul.bf16.gmra.mxu0 %v178
    %v192 = vpop.f32.mrf.mxu0
    %v193 = vadd.f32 0.0, %v192
    %v194 = vpop.f32.mrf.mxu0
    %195 = vdwg.mxu0
    %v197 = vunpack.c.l.b16 %v141
    %v198 = vpack.c.b16 %v197, %v197
    %199 = vrot.lane.b32.xlu0 %v198, 96
    %v200 = vpop.permute.xlu0 %199
    %v202 = vsel %vm152, %v113, 0
    %v205 = vsel %vm152, %v200, 0
    %207 = vmatpush.bf16.xpose.msra.mxu0 0
    %208 = vmatpush.bf16.xpose.msra.mxu0 0
    %209 = vmatpush.bf16.xpose.msra.mxu0 0
    %210 = vmatpush.bf16.xpose.msra.mxu0 0
    %211 = vmatpush.bf16.xpose.msra.mxu0 0
    %212 = vmatpush.bf16.xpose.msra.mxu0 0
    %213 = vmatpush.bf16.xpose.msra.mxu0 0
    %214 = vmatpush.bf16.xpose.msra.mxu0 %v205
    %215 = vmatmul.bf16.gmra.mxu0 %v202
    %v216 = vpop.f32.mrf.mxu0
    %v217 = vadd.f32 0.0, %v216
    %v218 = vpop.f32.mrf.mxu0
    %219 = vdwg.mxu0
    %v221 = vunpack.c.l.b16 %v142
    %v222 = vpack.c.b16 %v221, %v221
    %223 = vrot.lane.b32.xlu0 %v222, 96
    %v224 = vpop.permute.xlu0 %223
    %v226 = vsel %vm152, %v114, 0
    %v229 = vsel %vm152, %v224, 0
    %231 = vmatpush.bf16.xpose.msra.mxu0 0
    %232 = vmatpush.bf16.xpose.msra.mxu0 0
    %233 = vmatpush.bf16.xpose.msra.mxu0 0
    %234 = vmatpush.bf16.xpose.msra.mxu0 0
    %235 = vmatpush.bf16.xpose.msra.mxu0 0
    %236 = vmatpush.bf16.xpose.msra.mxu0 0
    %237 = vmatpush.bf16.xpose.msra.mxu0 0
    %238 = vmatpush.bf16.xpose.msra.mxu0 %v229
    %239 = vmatmul.bf16.gmra.mxu0 %v226
    %v240 = vpop.f32.mrf.mxu0
    %v241 = vadd.f32 0.0, %v240
    %v242 = vpop.f32.mrf.mxu0
    %243 = vdwg.mxu0
    %v245 = vunpack.c.l.b16 %v143
    %v246 = vpack.c.b16 %v245, %v245
    %247 = vrot.lane.b32.xlu0 %v246, 96
    %v248 = vpop.permute.xlu0 %247
    %v250 = vsel %vm152, %v115, 0
    %v253 = vsel %vm152, %v248, 0
    %255 = vmatpush.bf16.xpose.msra.mxu0 0
    %256 = vmatpush.bf16.xpose.msra.mxu0 0
    %257 = vmatpush.bf16.xpose.msra.mxu0 0
    %258 = vmatpush.bf16.xpose.msra.mxu0 0
    %259 = vmatpush.bf16.xpose.msra.mxu0 0
    %260 = vmatpush.bf16.xpose.msra.mxu0 0
    %261 = vmatpush.bf16.xpose.msra.mxu0 0
    %262 = vmatpush.bf16.xpose.msra.mxu0 %v253
    %263 = vmatmul.bf16.gmra.mxu0 %v250
    %v264 = vpop.f32.mrf.mxu0
    %v265 = vadd.f32 0.0, %v264
    %v266 = vpop.f32.mrf.mxu0
    %267 = vdwg.mxu0
    %v269 = vunpack.c.l.b16 %v144
    %v270 = vpack.c.b16 %v269, %v269
    %271 = vrot.lane.b32.xlu0 %v270, 96
    %v272 = vpop.permute.xlu0 %271
    %v274 = vsel %vm152, %v116, 0
    %v277 = vsel %vm152, %v272, 0
    %279 = vmatpush.bf16.xpose.msra.mxu0 0
    %280 = vmatpush.bf16.xpose.msra.mxu0 0
    %281 = vmatpush.bf16.xpose.msra.mxu0 0
    %282 = vmatpush.bf16.xpose.msra.mxu0 0
    %283 = vmatpush.bf16.xpose.msra.mxu0 0
    %284 = vmatpush.bf16.xpose.msra.mxu0 0
    %285 = vmatpush.bf16.xpose.msra.mxu0 0
    %286 = vmatpush.bf16.xpose.msra.mxu0 %v277
    %287 = vmatmul.bf16.gmra.mxu0 %v274
    %v288 = vpop.f32.mrf.mxu0
    %v289 = vadd.f32 0.0, %v288
    %v290 = vpop.f32.mrf.mxu0
    %291 = vdwg.mxu0
    %v293 = vunpack.c.l.b16 %v145
    %v294 = vpack.c.b16 %v293, %v293
    %295 = vrot.lane.b32.xlu0 %v294, 96
    %v296 = vpop.permute.xlu0 %295
    %v298 = vsel %vm152, %v117, 0
    %v301 = vsel %vm152, %v296, 0
    %303 = vmatpush.bf16.xpose.msra.mxu0 0
    %304 = vmatpush.bf16.xpose.msra.mxu0 0
    %305 = vmatpush.bf16.xpose.msra.mxu0 0
    %306 = vmatpush.bf16.xpose.msra.mxu0 0
    %307 = vmatpush.bf16.xpose.msra.mxu0 0
    %308 = vmatpush.bf16.xpose.msra.mxu0 0
    %309 = vmatpush.bf16.xpose.msra.mxu0 0
    %310 = vmatpush.bf16.xpose.msra.mxu0 %v301
    %311 = vmatmul.bf16.gmra.mxu0 %v298
    %v312 = vpop.f32.mrf.mxu0
    %v313 = vadd.f32 0.0, %v312
    %v314 = vpop.f32.mrf.mxu0
    %315 = vdwg.mxu0
    %v317 = vunpack.c.l.b16 %v146
    %v318 = vpack.c.b16 %v317, %v317
    %319 = vrot.lane.b32.xlu0 %v318, 96
    %v320 = vpop.permute.xlu0 %319
    %v322 = vsel %vm152, %v118, 0
    %v325 = vsel %vm152, %v320, 0
    %327 = vmatpush.bf16.xpose.msra.mxu0 0
    %328 = vmatpush.bf16.xpose.msra.mxu0 0
    %329 = vmatpush.bf16.xpose.msra.mxu0 0
    %330 = vmatpush.bf16.xpose.msra.mxu0 0
    %331 = vmatpush.bf16.xpose.msra.mxu0 0
    %332 = vmatpush.bf16.xpose.msra.mxu0 0
    %333 = vmatpush.bf16.xpose.msra.mxu0 0
    %334 = vmatpush.bf16.xpose.msra.mxu0 %v325
    %335 = vmatmul.bf16.gmra.mxu0 %v322
    %v336 = vpop.f32.mrf.mxu0
    %v337 = vadd.f32 0.0, %v336
    %v338 = vpop.f32.mrf.mxu0
    %339 = vdwg.mxu0
    %v340 = vsel %vm152, %v169, -inf
    %341 = vmax.xlane.f32.xlu0 %v340
    %v342 = vpop.xlane.xlu0 %341
    %v343 = vsel %vm152, %v193, -inf
    %344 = vmax.xlane.f32.xlu0 %v343
    %v345 = vpop.xlane.xlu0 %344
    %v346 = vsel %vm152, %v217, -inf
    %347 = vmax.xlane.f32.xlu0 %v346
    %v348 = vpop.xlane.xlu0 %347
    %v349 = vsel %vm152, %v241, -inf
    %350 = vmax.xlane.f32.xlu0 %v349
    %v351 = vpop.xlane.xlu0 %350
    %v352 = vsel %vm152, %v265, -inf
    %353 = vmax.xlane.f32.xlu0 %v352
    %v354 = vpop.xlane.xlu0 %353
    %v355 = vsel %vm152, %v289, -inf
    %356 = vmax.xlane.f32.xlu0 %v355
    %v357 = vpop.xlane.xlu0 %356
    %v358 = vsel %vm152, %v313, -inf
    %359 = vmax.xlane.f32.xlu0 %v358
    %v360 = vpop.xlane.xlu0 %359
    %v361 = vsel %vm152, %v337, -inf
    %362 = vmax.xlane.f32.xlu0 %v361
    %v363 = vpop.xlane.xlu0 %362
    %v364 = vsub.f32 %v169, %v342
    %v365 = vsub.f32 %v193, %v345
    %v366 = vsub.f32 %v217, %v348
    %v367 = vsub.f32 %v241, %v351
    %v368 = vsub.f32 %v265, %v354
    %v369 = vsub.f32 %v289, %v357
    %v370 = vsub.f32 %v313, %v360
    %v371 = vsub.f32 %v337, %v363
    %v372 = vmul.f32 %v364, 1.442695
    %v373 = vpow.pop %v372
    %v374 = vmul.f32 %v365, 1.442695
    %v375 = vpow.pop %v374
    %v376 = vmul.f32 %v366, 1.442695
    %v377 = vpow.pop %v376
    %v378 = vmul.f32 %v367, 1.442695
    %v379 = vpow.pop %v378
    %v380 = vmul.f32 %v368, 1.442695
    %v381 = vpow.pop %v380
    %v382 = vmul.f32 %v369, 1.442695
    %v383 = vpow.pop %v382
    %v384 = vmul.f32 %v370, 1.442695
    %v385 = vpow.pop %v384
    %v386 = vmul.f32 %v371, 1.442695
    %v387 = vpow.pop %v386
    %v388 = vsel %vm152, %v373, 0.0
    %389 = vadd.xlane.f32.xlu0 %v388
    %v390 = vpop.xlane.xlu0 %389
    %v391 = vsel %vm152, %v375, 0.0
    %392 = vadd.xlane.f32.xlu0 %v391
    %v393 = vpop.xlane.xlu0 %392
    %v394 = vsel %vm152, %v377, 0.0
    %395 = vadd.xlane.f32.xlu0 %v394
    %v396 = vpop.xlane.xlu0 %395
    %v397 = vsel %vm152, %v379, 0.0
    %398 = vadd.xlane.f32.xlu0 %v397
    %v399 = vpop.xlane.xlu0 %398
    %v400 = vsel %vm152, %v381, 0.0
    %401 = vadd.xlane.f32.xlu0 %v400
    %v402 = vpop.xlane.xlu0 %401
    %v403 = vsel %vm152, %v383, 0.0
    %404 = vadd.xlane.f32.xlu0 %v403
    %v405 = vpop.xlane.xlu0 %404
    %v406 = vsel %vm152, %v385, 0.0
    %407 = vadd.xlane.f32.xlu0 %v406
    %v408 = vpop.xlane.xlu0 %407
    %v409 = vsel %vm152, %v387, 0.0
    %410 = vadd.xlane.f32.xlu0 %v409
    %v411 = vpop.xlane.xlu0 %410
    %v412 = vrcp.pop %v390
    %v413 = vmul.f32 %v390, %v412
    %v414 = vsub.f32 1.0, %v413
    %v415 = vmul.f32 %v412, %v414
    %v416 = vadd.f32 %v412, %v415
    %vm417 = vweird.f32 %v390
    %vm418 = vweird.f32 %v412
    %vm419 = vmor %vm417, %vm418
    %v420 = vsel %vm419, %v412, %v416
    %v421 = vand.u32 2147483647, %v390
    %vm422 = vcmp.eq.f32.partialorder %v421, 8.507059e+37
    %v423 = vand.u32 %v390, 2147483648
    %v424 = vor.u32 1.1754944e-38, %v423
    %v425 = vsel %vm422, %v424, %v420
    %v426 = vmul.f32 %v373, %v425
    %v427 = vrcp.pop %v393
    %v428 = vmul.f32 %v393, %v427
    %v429 = vsub.f32 1.0, %v428
    %v430 = vmul.f32 %v427, %v429
    %v431 = vadd.f32 %v427, %v430
    %vm432 = vweird.f32 %v393
    %vm433 = vweird.f32 %v427
    %vm434 = vmor %vm432, %vm433
    %v435 = vsel %vm434, %v427, %v431
    %v436 = vand.u32 2147483647, %v393
    %vm437 = vcmp.eq.f32.partialorder %v436, 8.507059e+37
    %v438 = vand.u32 %v393, 2147483648
    %v439 = vor.u32 1.1754944e-38, %v438
    %v440 = vsel %vm437, %v439, %v435
    %v441 = vmul.f32 %v375, %v440
    %v442 = vrcp.pop %v396
    %v443 = vmul.f32 %v396, %v442
    %v444 = vsub.f32 1.0, %v443
    %v445 = vmul.f32 %v442, %v444
    %v446 = vadd.f32 %v442, %v445
    %vm447 = vweird.f32 %v396
    %vm448 = vweird.f32 %v442
    %vm449 = vmor %vm447, %vm448
    %v450 = vsel %vm449, %v442, %v446
    %v451 = vand.u32 2147483647, %v396
    %vm452 = vcmp.eq.f32.partialorder %v451, 8.507059e+37
    %v453 = vand.u32 %v396, 2147483648
    %v454 = vor.u32 1.1754944e-38, %v453
    %v455 = vsel %vm452, %v454, %v450
    %v456 = vmul.f32 %v377, %v455
    %v457 = vrcp.pop %v399
    %v458 = vmul.f32 %v399, %v457
    %v459 = vsub.f32 1.0, %v458
    %v460 = vmul.f32 %v457, %v459
    %v461 = vadd.f32 %v457, %v460
    %vm462 = vweird.f32 %v399
    %vm463 = vweird.f32 %v457
    %vm464 = vmor %vm462, %vm463
    %v465 = vsel %vm464, %v457, %v461
    %v466 = vand.u32 2147483647, %v399
    %vm467 = vcmp.eq.f32.partialorder %v466, 8.507059e+37
    %v468 = vand.u32 %v399, 2147483648
    %v469 = vor.u32 1.1754944e-38, %v468
    %v470 = vsel %vm467, %v469, %v465
    %v471 = vmul.f32 %v379, %v470
    %v472 = vrcp.pop %v402
    %v473 = vmul.f32 %v402, %v472
    %v474 = vsub.f32 1.0, %v473
    %v475 = vmul.f32 %v472, %v474
    %v476 = vadd.f32 %v472, %v475
    %vm477 = vweird.f32 %v402
    %vm478 = vweird.f32 %v472
    %vm479 = vmor %vm477, %vm478
    %v480 = vsel %vm479, %v472, %v476
    %v481 = vand.u32 2147483647, %v402
    %vm482 = vcmp.eq.f32.partialorder %v481, 8.507059e+37
    %v483 = vand.u32 %v402, 2147483648
    %v484 = vor.u32 1.1754944e-38, %v483
    %v485 = vsel %vm482, %v484, %v480
    %v486 = vmul.f32 %v381, %v485
    %v487 = vrcp.pop %v405
    %v488 = vmul.f32 %v405, %v487
    %v489 = vsub.f32 1.0, %v488
    %v490 = vmul.f32 %v487, %v489
    %v491 = vadd.f32 %v487, %v490
    %vm492 = vweird.f32 %v405
    %vm493 = vweird.f32 %v487
    %vm494 = vmor %vm492, %vm493
    %v495 = vsel %vm494, %v487, %v491
    %v496 = vand.u32 2147483647, %v405
    %vm497 = vcmp.eq.f32.partialorder %v496, 8.507059e+37
    %v498 = vand.u32 %v405, 2147483648
    %v499 = vor.u32 1.1754944e-38, %v498
    %v500 = vsel %vm497, %v499, %v495
    %v501 = vmul.f32 %v383, %v500
    %v502 = vrcp.pop %v408
    %v503 = vmul.f32 %v408, %v502
    %v504 = vsub.f32 1.0, %v503
    %v505 = vmul.f32 %v502, %v504
    %v506 = vadd.f32 %v502, %v505
    %vm507 = vweird.f32 %v408
    %vm508 = vweird.f32 %v502
    %vm509 = vmor %vm507, %vm508
    %v510 = vsel %vm509, %v502, %v506
    %v511 = vand.u32 2147483647, %v408
    %vm512 = vcmp.eq.f32.partialorder %v511, 8.507059e+37
    %v513 = vand.u32 %v408, 2147483648
    %v514 = vor.u32 1.1754944e-38, %v513
    %v515 = vsel %vm512, %v514, %v510
    %v516 = vmul.f32 %v385, %v515
    %v517 = vrcp.pop %v411
    %v518 = vmul.f32 %v411, %v517
    %v519 = vsub.f32 1.0, %v518
    %v520 = vmul.f32 %v517, %v519
    %v521 = vadd.f32 %v517, %v520
    %vm522 = vweird.f32 %v411
    %vm523 = vweird.f32 %v517
    %vm524 = vmor %vm522, %vm523
    %v525 = vsel %vm524, %v517, %v521
    %v526 = vand.u32 2147483647, %v411
    %vm527 = vcmp.eq.f32.partialorder %v526, 8.507059e+37
    %v528 = vand.u32 %v411, 2147483648
    %v529 = vor.u32 1.1754944e-38, %v528
    %v530 = vsel %vm527, %v529, %v525
    %v531 = vmul.f32 %v387, %v530
    %v532 = vpack.c.bf16 %v426, %v426
    %v533 = vpack.c.bf16 %v441, %v441
    %v534 = vpack.c.bf16 %v456, %v456
    %v535 = vpack.c.bf16 %v471, %v471
    %v536 = vpack.c.bf16 %v486, %v486
    %v537 = vpack.c.bf16 %v501, %v501
    %v538 = vpack.c.bf16 %v516, %v516
    %v539 = vpack.c.bf16 %v531, %v531
    %540 = vrot.lane.b32.xlu0 %v149, 64
    %v541 = vpop.permute.xlu0 %540
    %v543 = vsel %vm152, %v532, 0
    %vm545 = vcmask 1043456
    %v547 = vsel %vm545, %v541, 0
    %549 = vmatpush.bf16.msra.mxu0 0
    %550 = vmatpush.bf16.msra.mxu0 0
    %551 = vmatpush.bf16.msra.mxu0 0
    %552 = vmatpush.bf16.msra.mxu0 0
    %553 = vmatpush.bf16.msra.mxu0 0
    %554 = vmatpush.bf16.msra.mxu0 0
    %555 = vmatpush.bf16.msra.mxu0 0
    %556 = vmatpush.bf16.msra.mxu0 %v547
    %557 = vmatmul.bf16.gmra.mxu0 %v543
    %v558 = vpop.f32.mrf.mxu0
    %v559 = vadd.f32 0.0, %v558
    %v560 = vpop.f32.mrf.mxu0
    %561 = vdwg.mxu0
    %562 = vrot.lane.b32.xlu0 %v174, 64
    %v563 = vpop.permute.xlu0 %562
    %v565 = vsel %vm152, %v533, 0
    %v568 = vsel %vm545, %v563, 0
    %570 = vmatpush.bf16.msra.mxu0 0
    %571 = vmatpush.bf16.msra.mxu0 0
    %572 = vmatpush.bf16.msra.mxu0 0
    %573 = vmatpush.bf16.msra.mxu0 0
    %574 = vmatpush.bf16.msra.mxu0 0
    %575 = vmatpush.bf16.msra.mxu0 0
    %576 = vmatpush.bf16.msra.mxu0 0
    %577 = vmatpush.bf16.msra.mxu0 %v568
    %578 = vmatmul.bf16.gmra.mxu0 %v565
    %v579 = vpop.f32.mrf.mxu0
    %v580 = vadd.f32 0.0, %v579
    %v581 = vpop.f32.mrf.mxu0
    %582 = vdwg.mxu0
    %583 = vrot.lane.b32.xlu0 %v198, 64
    %v584 = vpop.permute.xlu0 %583
    %v586 = vsel %vm152, %v534, 0
    %v589 = vsel %vm545, %v584, 0
    %591 = vmatpush.bf16.msra.mxu0 0
    %592 = vmatpush.bf16.msra.mxu0 0
    %593 = vmatpush.bf16.msra.mxu0 0
    %594 = vmatpush.bf16.msra.mxu0 0
    %595 = vmatpush.bf16.msra.mxu0 0
    %596 = vmatpush.bf16.msra.mxu0 0
    %597 = vmatpush.bf16.msra.mxu0 0
    %598 = vmatpush.bf16.msra.mxu0 %v589
    %599 = vmatmul.bf16.gmra.mxu0 %v586
    %v600 = vpop.f32.mrf.mxu0
    %v601 = vadd.f32 0.0, %v600
    %v602 = vpop.f32.mrf.mxu0
    %603 = vdwg.mxu0
    %604 = vrot.lane.b32.xlu0 %v222, 64
    %v605 = vpop.permute.xlu0 %604
    %v607 = vsel %vm152, %v535, 0
    %v610 = vsel %vm545, %v605, 0
    %612 = vmatpush.bf16.msra.mxu0 0
    %613 = vmatpush.bf16.msra.mxu0 0
    %614 = vmatpush.bf16.msra.mxu0 0
    %615 = vmatpush.bf16.msra.mxu0 0
    %616 = vmatpush.bf16.msra.mxu0 0
    %617 = vmatpush.bf16.msra.mxu0 0
    %618 = vmatpush.bf16.msra.mxu0 0
    %619 = vmatpush.bf16.msra.mxu0 %v610
    %620 = vmatmul.bf16.gmra.mxu0 %v607
    %v621 = vpop.f32.mrf.mxu0
    %v622 = vadd.f32 0.0, %v621
    %v623 = vpop.f32.mrf.mxu0
    %624 = vdwg.mxu0
    %625 = vrot.lane.b32.xlu0 %v246, 64
    %v626 = vpop.permute.xlu0 %625
    %v628 = vsel %vm152, %v536, 0
    %v631 = vsel %vm545, %v626, 0
    %633 = vmatpush.bf16.msra.mxu0 0
    %634 = vmatpush.bf16.msra.mxu0 0
    %635 = vmatpush.bf16.msra.mxu0 0
    %636 = vmatpush.bf16.msra.mxu0 0
    %637 = vmatpush.bf16.msra.mxu0 0
    %638 = vmatpush.bf16.msra.mxu0 0
    %639 = vmatpush.bf16.msra.mxu0 0
    %640 = vmatpush.bf16.msra.mxu0 %v631
    %641 = vmatmul.bf16.gmra.mxu0 %v628
    %v642 = vpop.f32.mrf.mxu0
    %v643 = vadd.f32 0.0, %v642
    %v644 = vpop.f32.mrf.mxu0
    %645 = vdwg.mxu0
    %646 = vrot.lane.b32.xlu0 %v270, 64
    %v647 = vpop.permute.xlu0 %646
    %v649 = vsel %vm152, %v537, 0
    %v652 = vsel %vm545, %v647, 0
    %654 = vmatpush.bf16.msra.mxu0 0
    %655 = vmatpush.bf16.msra.mxu0 0
    %656 = vmatpush.bf16.msra.mxu0 0
    %657 = vmatpush.bf16.msra.mxu0 0
    %658 = vmatpush.bf16.msra.mxu0 0
    %659 = vmatpush.bf16.msra.mxu0 0
    %660 = vmatpush.bf16.msra.mxu0 0
    %661 = vmatpush.bf16.msra.mxu0 %v652
    %662 = vmatmul.bf16.gmra.mxu0 %v649
    %v663 = vpop.f32.mrf.mxu0
    %v664 = vadd.f32 0.0, %v663
    %v665 = vpop.f32.mrf.mxu0
    %666 = vdwg.mxu0
    %667 = vrot.lane.b32.xlu0 %v294, 64
    %v668 = vpop.permute.xlu0 %667
    %v670 = vsel %vm152, %v538, 0
    %v673 = vsel %vm545, %v668, 0
    %675 = vmatpush.bf16.msra.mxu0 0
    %676 = vmatpush.bf16.msra.mxu0 0
    %677 = vmatpush.bf16.msra.mxu0 0
    %678 = vmatpush.bf16.msra.mxu0 0
    %679 = vmatpush.bf16.msra.mxu0 0
    %680 = vmatpush.bf16.msra.mxu0 0
    %681 = vmatpush.bf16.msra.mxu0 0
    %682 = vmatpush.bf16.msra.mxu0 %v673
    %683 = vmatmul.bf16.gmra.mxu0 %v670
    %v684 = vpop.f32.mrf.mxu0
    %v685 = vadd.f32 0.0, %v684
    %v686 = vpop.f32.mrf.mxu0
    %687 = vdwg.mxu0
    %688 = vrot.lane.b32.xlu0 %v318, 64
    %v689 = vpop.permute.xlu0 %688
    %v691 = vsel %vm152, %v539, 0
    %v694 = vsel %vm545, %v689, 0
    %696 = vmatpush.bf16.msra.mxu0 0
    %697 = vmatpush.bf16.msra.mxu0 0
    %698 = vmatpush.bf16.msra.mxu0 0
    %699 = vmatpush.bf16.msra.mxu0 0
    %700 = vmatpush.bf16.msra.mxu0 0
    %701 = vmatpush.bf16.msra.mxu0 0
    %702 = vmatpush.bf16.msra.mxu0 0
    %703 = vmatpush.bf16.msra.mxu0 %v694
    %704 = vmatmul.bf16.gmra.mxu0 %v691
    %v705 = vpop.f32.mrf.mxu0
    %v706 = vadd.f32 0.0, %v705
    %v707 = vpop.f32.mrf.mxu0
    %708 = vdwg.mxu0
    %710 = vrot.lane.b32.xlu0 %v580, 8
    %v711 = vpop.permute.xlu0 %710
    %714 = vrot.lane.b32.xlu0 %v601, 16
    %v715 = vpop.permute.xlu0 %714
    %718 = vrot.lane.b32.xlu0 %v622, 24
    %v719 = vpop.permute.xlu0 %718
    %v721 = vsel %vm152, %v559, %v711
    %vm722 = vcmask 130048
    %v723 = vsel %vm722, %v721, %v715
    %vm724 = vcmask 195584
    %v725 = vsel %vm724, %v723, %v719
    %727 = vrot.lane.b32.xlu0 %v664, 8
    %v728 = vpop.permute.xlu0 %727
    %731 = vrot.lane.b32.xlu0 %v685, 16
    %v732 = vpop.permute.xlu0 %731
    %735 = vrot.lane.b32.xlu0 %v706, 24
    %v736 = vpop.permute.xlu0 %735
    %v738 = vsel %vm152, %v643, %v728
    %v739 = vsel %vm722, %v738, %v732
    %v740 = vsel %vm724, %v739, %v736
    %v741 = vpack.c.bf16 %v740, %v725
    %v746 = vunpack.c.l.b16 %v85
    %v747 = vunpack.c.l.b16 %v86
    %v748 = vunpack.c.l.b16 %v87
    %v749 = vunpack.c.l.b16 %v88
    %v750 = vpack.c.b16 %v747, %v746
    %v751 = vpack.c.b16 %v749, %v748
    %754 = vrot.lane.b32.xlu0 %v53, 32
    %v755 = vpop.permute.xlu0 %754
    %v758 = vsel %vm67, %v741, 0
    %760 = vmatpush.bf16.msra.mxu0 0
    %761 = vmatpush.bf16.msra.mxu0 0
    %762 = vmatpush.bf16.msra.mxu0 0
    %763 = vmatpush.bf16.msra.mxu0 0
    %764 = vmatpush.bf16.msra.mxu0 0
    %765 = vmatpush.bf16.msra.mxu0 0
    %766 = vmatpush.bf16.msra.mxu0 %v751
    %767 = vmatpush.bf16.msra.mxu0 %v750
    %768 = vmatmul.bf16.gmra.mxu0 %v758
    %v769 = vpop.f32.mrf.mxu0
    %v770 = vadd.f32 %v755, %v769
    %v771 = vpop.f32.mrf.mxu0
    %v772 = vadd.f32 %v755, %v771
    %773 = vdwg.mxu0
    %v774 = vadd.f32 %v40, %v770
    %v775 = vadd.f32 %v41, %v772
    %v776 = vld [vmem:[%s10 + $0x1] sm:$0x1]
    %v777 = vsel %vm67, %v774, 0.0
    %778 = vadd.xlane.f32.xlu0 %v777
    %v779 = vpop.xlane.xlu0 %778
    %v780 = vsel %vm67, %v775, 0.0
    %781 = vadd.xlane.f32.xlu0 %v780
    %v782 = vpop.xlane.xlu0 %781
    %v783 = vrcp.pop 32.0
    %v784 = vmul.f32 32.0, %v783
    %v785 = vsub.f32 1.0, %v784
    %v786 = vmul.f32 %v783, %v785
    %v787 = vadd.f32 %v783, %v786
    %vm788 = vweird.f32 %v783
    %v789 = vsel %vm788, %v783, %v787
    %v790 = vmul.f32 %v779, %v789
    %v791 = vmul.f32 %v782, %v789
    %v792 = vsub.f32 %v774, %v790
    %v793 = vsub.f32 %v775, %v791
    %v794 = vmul.f32 %v792, %v792
    %v795 = vmul.f32 %v793, %v793
    %v796 = vsel %vm67, %v794, 0.0
    %797 = vadd.xlane.f32.xlu0 %v796
    %v798 = vpop.xlane.xlu0 %797
    %v799 = vsel %vm67, %v795, 0.0
    %800 = vadd.xlane.f32.xlu0 %v799
    %v801 = vpop.xlane.xlu0 %800
    %v802 = vmul.f32 %v798, %v789
    %v803 = vmul.f32 %v801, %v789
    %v804 = vadd.f32 %v802, 1e-05
    %v805 = vadd.f32 %v803, 1e-05
    %v806 = vrsqrt.pop %v804
    %v807 = vmul.f32 %v806, %v804
    %v808 = vmul.f32 %v807, %v806
    %v809 = vmul.f32 0.5, %v808
    %v810 = vsub.f32 1.5, %v809
    %v811 = vmul.f32 %v806, %v810
    %vm812 = vweird.f32 %v804
    %vm813 = vweird.f32 %v806
    %vm814 = vmor %vm812, %vm813
    %v815 = vsel %vm814, %v806, %v811
    %v816 = vrsqrt.pop %v805
    %v817 = vmul.f32 %v816, %v805
    %v818 = vmul.f32 %v817, %v816
    %v819 = vmul.f32 0.5, %v818
    %v820 = vsub.f32 1.5, %v819
    %v821 = vmul.f32 %v816, %v820
    %vm822 = vweird.f32 %v805
    %vm823 = vweird.f32 %v816
    %vm824 = vmor %vm822, %vm823
    %v825 = vsel %vm824, %v816, %v821
    %v826 = vmul.f32 %v792, %v815
    %v827 = vmul.f32 %v793, %v825
    %v829 = vperm.slane %v776, 0
    %v831 = vmul.f32 %v826, %v829
    %v832 = vmul.f32 %v827, %v829
    %833 = vrot.lane.b32.xlu0 %v829, 96
    %v834 = vpop.permute.xlu0 %833
    %v836 = vadd.f32 %v831, %v834
    %v837 = vadd.f32 %v832, %v834
    %v838 = vpack.c.bf16 %v836, %v836
    %v839 = vpack.c.bf16 %v837, %v837
    %v840 = vld [vmem:[%s4] sm:$0xf]
    %v841 = vld [vmem:[%s4 + $0x4] sm:$0xf]
    %v842 = vld [vmem:[%s4 + $0x8] sm:$0xf]
    %v843 = vld [vmem:[%s4 + $0xc] sm:$0xf]
    %v846 = vunpack.c.l.b16 %v838
    %v847 = vunpack.c.l.b16 %v839
    %v848 = vpack.c.b16 %v847, %v846
    %v853 = vunpack.c.l.b16 %v840
    %v854 = vunpack.c.l.b16 %v841
    %v855 = vunpack.c.l.b16 %v842
    %v856 = vunpack.c.l.b16 %v843
    %v857 = vpack.c.b16 %v854, %v853
    %v858 = vpack.c.b16 %v856, %v855
    %861 = vrot.lane.b32.xlu0 %v829, 64
    %v862 = vpop.permute.xlu0 %861
    %v865 = vsel %vm67, %v848, 0
    %867 = vmatpush.bf16.msra.mxu0 0
    %868 = vmatpush.bf16.msra.mxu0 0
    %869 = vmatpush.bf16.msra.mxu0 0
    %870 = vmatpush.bf16.msra.mxu0 0
    %871 = vmatpush.bf16.msra.mxu0 0
    %872 = vmatpush.bf16.msra.mxu0 0
    %873 = vmatpush.bf16.msra.mxu0 %v858
    %874 = vmatpush.bf16.msra.mxu0 %v857
    %875 = vmatmul.bf16.gmra.mxu0 %v865
    %v876 = vpop.f32.mrf.mxu0
    %v877 = vadd.f32 %v862, %v876
    %v878 = vpop.f32.mrf.mxu0
    %v879 = vadd.f32 %v862, %v878
    %880 = vdwg.mxu0
    %v881 = vpack.c.bf16 %v43, %v42
    %v882 = vpack.c.bf16 %v45, %v44
    %v883 = vld [vmem:[%s5] sm:$0xf]
    %v884 = vld [vmem:[%s5 + $0x4] sm:$0xf]
    %v885 = vld [vmem:[%s5 + $0x8] sm:$0xf]
    %v886 = vld [vmem:[%s5 + $0xc] sm:$0xf]
    %v887 = vld [vmem:[%s10 + $0x1] sm:$0x3]
    %v889 = vperm.slane %v887, 0
    %v890 = vperm.slane %v887, 1
    %v895 = vunpack.c.l.b16 %v883
    %v896 = vunpack.c.l.b16 %v884
    %v897 = vunpack.c.l.b16 %v885
    %v898 = vunpack.c.l.b16 %v886
    %v899 = vpack.c.b16 %v896, %v895
    %v900 = vpack.c.b16 %v898, %v897
    %903 = vrot.lane.b32.xlu0 %v889, 32
    %v904 = vpop.permute.xlu0 %903
    %905 = vrot.lane.b32.xlu0 %v890, 32
    %v906 = vpop.permute.xlu0 %905
    %v907 = vsel %vm67, %v904, %v906
    %v910 = vsel %vm67, %v881, 0
    %v913 = vsel %vm67, %v882, 0
    %915 = vmatpush.bf16.msra.mxu0 0
    %916 = vmatpush.bf16.msra.mxu0 0
    %917 = vmatpush.bf16.msra.mxu0 0
    %918 = vmatpush.bf16.msra.mxu0 0
    %919 = vmatpush.bf16.msra.mxu0 0
    %920 = vmatpush.bf16.msra.mxu0 0
    %921 = vmatpush.bf16.msra.mxu0 %v900
    %922 = vmatpush.bf16.msra.mxu0 %v899
    %923 = vmatmul.bf16.gmra.mxu0 %v910
    %v924 = vpop.f32.mrf.mxu0
    %v925 = vadd.f32 %v907, %v924
    %v926 = vpop.f32.mrf.mxu0
    %v927 = vadd.f32 %v907, %v926
    %928 = vmatmul.bf16.gmra.mxu0 %v913
    %v929 = vpop.f32.mrf.mxu0
    %v930 = vadd.f32 %v907, %v929
    %v931 = vpop.f32.mrf.mxu0
    %v932 = vadd.f32 %v907, %v931
    %933 = vdwg.mxu0
    %v934 = vld [vmem:[%s6] sm:$0xf]
    %v935 = vld [vmem:[%s6 + $0x4] sm:$0xf]
    %v936 = vld [vmem:[%s6 + $0x8] sm:$0xf]
    %v937 = vld [vmem:[%s6 + $0xc] sm:$0xf]
    %v938 = vld [vmem:[%s10 + $0x2] sm:$0x1]
    %v939 = vmul.f32 %v877, 0.35355338
    %v940 = vmul.f32 %v879, 0.35355338
    %942 = vrot.lane.b32.xlu0 %v939, 120
    %v943 = vpop.permute.xlu0 %942
    %945 = vrot.lane.b32.xlu0 %v939, 112
    %v946 = vpop.permute.xlu0 %945
    %948 = vrot.lane.b32.xlu0 %v939, 104
    %v949 = vpop.permute.xlu0 %948
    %952 = vrot.lane.b32.xlu0 %v940, 120
    %v953 = vpop.permute.xlu0 %952
    %955 = vrot.lane.b32.xlu0 %v940, 112
    %v956 = vpop.permute.xlu0 %955
    %958 = vrot.lane.b32.xlu0 %v940, 104
    %v959 = vpop.permute.xlu0 %958
    %v961 = vpack.c.bf16 %v939, %v939
    %v962 = vpack.c.bf16 %v943, %v943
    %v963 = vpack.c.bf16 %v946, %v946
    %v964 = vpack.c.bf16 %v949, %v949
    %v965 = vpack.c.bf16 %v940, %v940
    %v966 = vpack.c.bf16 %v953, %v953
    %v967 = vpack.c.bf16 %v956, %v956
    %v968 = vpack.c.bf16 %v959, %v959
    %971 = vrot.lane.b32.xlu0 %v925, 120
    %v972 = vpop.permute.xlu0 %971
    %973 = vrot.lane.b32.xlu0 %v927, 120
    %v974 = vpop.permute.xlu0 %973
    %977 = vrot.lane.b32.xlu0 %v925, 112
    %v978 = vpop.permute.xlu0 %977
    %979 = vrot.lane.b32.xlu0 %v927, 112
    %v980 = vpop.permute.xlu0 %979
    %983 = vrot.lane.b32.xlu0 %v925, 104
    %v984 = vpop.permute.xlu0 %983
    %985 = vrot.lane.b32.xlu0 %v927, 104
    %v986 = vpop.permute.xlu0 %985
    %991 = vrot.lane.b32.xlu0 %v930, 120
    %v992 = vpop.permute.xlu0 %991
    %993 = vrot.lane.b32.xlu0 %v932, 120
    %v994 = vpop.permute.xlu0 %993
    %997 = vrot.lane.b32.xlu0 %v930, 112
    %v998 = vpop.permute.xlu0 %997
    %999 = vrot.lane.b32.xlu0 %v932, 112
    %v1000 = vpop.permute.xlu0 %999
    %1003 = vrot.lane.b32.xlu0 %v930, 104
    %v1004 = vpop.permute.xlu0 %1003
    %1005 = vrot.lane.b32.xlu0 %v932, 104
    %v1006 = vpop.permute.xlu0 %1005
    %v1009 = vpack.c.bf16 %v925, %v925
    %v1010 = vpack.c.bf16 %v927, %v927
    %v1011 = vpack.c.bf16 %v972, %v972
    %v1012 = vpack.c.bf16 %v974, %v974
    %v1013 = vpack.c.bf16 %v978, %v978
    %v1014 = vpack.c.bf16 %v980, %v980
    %v1015 = vpack.c.bf16 %v984, %v984
    %v1016 = vpack.c.bf16 %v986, %v986
    %v1017 = vpack.c.bf16 %v930, %v930
    %v1018 = vpack.c.bf16 %v932, %v932
    %v1019 = vpack.c.bf16 %v992, %v992
    %v1020 = vpack.c.bf16 %v994, %v994
    %v1021 = vpack.c.bf16 %v998, %v998
    %v1022 = vpack.c.bf16 %v1000, %v1000
    %v1023 = vpack.c.bf16 %v1004, %v1004
    %v1024 = vpack.c.bf16 %v1006, %v1006
    %v1027 = vunpack.c.l.b16 %v1009
    %v1028 = vunpack.c.l.b16 %v1010
    %v1029 = vpack.c.b16 %v1028, %v1027
    %v1031 = vsel %vm152, %v961, 0
    %v1034 = vsel %vm152, %v1029, 0
    %1036 = vmatpush.bf16.xpose.msra.mxu0 0
    %1037 = vmatpush.bf16.xpose.msra.mxu0 0
    %1038 = vmatpush.bf16.xpose.msra.mxu0 0
    %1039 = vmatpush.bf16.xpose.msra.mxu0 0
    %1040 = vmatpush.bf16.xpose.msra.mxu0 0
    %1041 = vmatpush.bf16.xpose.msra.mxu0 0
    %1042 = vmatpush.bf16.xpose.msra.mxu0 0
    %1043 = vmatpush.bf16.xpose.msra.mxu0 %v1034
    %1044 = vmatmul.bf16.gmra.mxu0 %v1031
    %v1045 = vpop.f32.mrf.mxu0
    %v1046 = vadd.f32 0.0, %v1045
    %v1047 = vpop.f32.mrf.mxu0
    %1048 = vdwg.mxu0
    %v1051 = vunpack.c.l.b16 %v1011
    %v1052 = vunpack.c.l.b16 %v1012
    %v1053 = vpack.c.b16 %v1052, %v1051
    %v1055 = vsel %vm152, %v962, 0
    %v1058 = vsel %vm152, %v1053, 0
    %1060 = vmatpush.bf16.xpose.msra.mxu0 0
    %1061 = vmatpush.bf16.xpose.msra.mxu0 0
    %1062 = vmatpush.bf16.xpose.msra.mxu0 0
    %1063 = vmatpush.bf16.xpose.msra.mxu0 0
    %1064 = vmatpush.bf16.xpose.msra.mxu0 0
    %1065 = vmatpush.bf16.xpose.msra.mxu0 0
    %1066 = vmatpush.bf16.xpose.msra.mxu0 0
    %1067 = vmatpush.bf16.xpose.msra.mxu0 %v1058
    %1068 = vmatmul.bf16.gmra.mxu0 %v1055
    %v1069 = vpop.f32.mrf.mxu0
    %v1070 = vadd.f32 0.0, %v1069
    %v1071 = vpop.f32.mrf.mxu0
    %1072 = vdwg.mxu0
    %v1075 = vunpack.c.l.b16 %v1013
    %v1076 = vunpack.c.l.b16 %v1014
    %v1077 = vpack.c.b16 %v1076, %v1075
    %v1079 = vsel %vm152, %v963, 0
    %v1082 = vsel %vm152, %v1077, 0
    %1084 = vmatpush.bf16.xpose.msra.mxu0 0
    %1085 = vmatpush.bf16.xpose.msra.mxu0 0
    %1086 = vmatpush.bf16.xpose.msra.mxu0 0
    %1087 = vmatpush.bf16.xpose.msra.mxu0 0
    %1088 = vmatpush.bf16.xpose.msra.mxu0 0
    %1089 = vmatpush.bf16.xpose.msra.mxu0 0
    %1090 = vmatpush.bf16.xpose.msra.mxu0 0
    %1091 = vmatpush.bf16.xpose.msra.mxu0 %v1082
    %1092 = vmatmul.bf16.gmra.mxu0 %v1079
    %v1093 = vpop.f32.mrf.mxu0
    %v1094 = vadd.f32 0.0, %v1093
    %v1095 = vpop.f32.mrf.mxu0
    %1096 = vdwg.mxu0
    %v1099 = vunpack.c.l.b16 %v1015
    %v1100 = vunpack.c.l.b16 %v1016
    %v1101 = vpack.c.b16 %v1100, %v1099
    %v1103 = vsel %vm152, %v964, 0
    %v1106 = vsel %vm152, %v1101, 0
    %1108 = vmatpush.bf16.xpose.msra.mxu0 0
    %1109 = vmatpush.bf16.xpose.msra.mxu0 0
    %1110 = vmatpush.bf16.xpose.msra.mxu0 0
    %1111 = vmatpush.bf16.xpose.msra.mxu0 0
    %1112 = vmatpush.bf16.xpose.msra.mxu0 0
    %1113 = vmatpush.bf16.xpose.msra.mxu0 0
    %1114 = vmatpush.bf16.xpose.msra.mxu0 0
    %1115 = vmatpush.bf16.xpose.msra.mxu0 %v1106
    %1116 = vmatmul.bf16.gmra.mxu0 %v1103
    %v1117 = vpop.f32.mrf.mxu0
    %v1118 = vadd.f32 0.0, %v1117
    %v1119 = vpop.f32.mrf.mxu0
    %1120 = vdwg.mxu0
    %v1123 = vunpack.c.l.b16 %v1017
    %v1124 = vunpack.c.l.b16 %v1018
    %v1125 = vpack.c.b16 %v1124, %v1123
    %v1127 = vsel %vm152, %v965, 0
    %v1130 = vsel %vm152, %v1125, 0
    %1132 = vmatpush.bf16.xpose.msra.mxu0 0
    %1133 = vmatpush.bf16.xpose.msra.mxu0 0
    %1134 = vmatpush.bf16.xpose.msra.mxu0 0
    %1135 = vmatpush.bf16.xpose.msra.mxu0 0
    %1136 = vmatpush.bf16.xpose.msra.mxu0 0
    %1137 = vmatpush.bf16.xpose.msra.mxu0 0
    %1138 = vmatpush.bf16.xpose.msra.mxu0 0
    %1139 = vmatpush.bf16.xpose.msra.mxu0 %v1130
    %1140 = vmatmul.bf16.gmra.mxu0 %v1127
    %v1141 = vpop.f32.mrf.mxu0
    %v1142 = vadd.f32 0.0, %v1141
    %v1143 = vpop.f32.mrf.mxu0
    %1144 = vdwg.mxu0
    %v1147 = vunpack.c.l.b16 %v1019
    %v1148 = vunpack.c.l.b16 %v1020
    %v1149 = vpack.c.b16 %v1148, %v1147
    %v1151 = vsel %vm152, %v966, 0
    %v1154 = vsel %vm152, %v1149, 0
    %1156 = vmatpush.bf16.xpose.msra.mxu0 0
    %1157 = vmatpush.bf16.xpose.msra.mxu0 0
    %1158 = vmatpush.bf16.xpose.msra.mxu0 0
    %1159 = vmatpush.bf16.xpose.msra.mxu0 0
    %1160 = vmatpush.bf16.xpose.msra.mxu0 0
    %1161 = vmatpush.bf16.xpose.msra.mxu0 0
    %1162 = vmatpush.bf16.xpose.msra.mxu0 0
    %1163 = vmatpush.bf16.xpose.msra.mxu0 %v1154
    %1164 = vmatmul.bf16.gmra.mxu0 %v1151
    %v1165 = vpop.f32.mrf.mxu0
    %v1166 = vadd.f32 0.0, %v1165
    %v1167 = vpop.f32.mrf.mxu0
    %1168 = vdwg.mxu0
    %v1171 = vunpack.c.l.b16 %v1021
    %v1172 = vunpack.c.l.b16 %v1022
    %v1173 = vpack.c.b16 %v1172, %v1171
    %v1175 = vsel %vm152, %v967, 0
    %v1178 = vsel %vm152, %v1173, 0
    %1180 = vmatpush.bf16.xpose.msra.mxu0 0
    %1181 = vmatpush.bf16.xpose.msra.mxu0 0
    %1182 = vmatpush.bf16.xpose.msra.mxu0 0
    %1183 = vmatpush.bf16.xpose.msra.mxu0 0
    %1184 = vmatpush.bf16.xpose.msra.mxu0 0
    %1185 = vmatpush.bf16.xpose.msra.mxu0 0
    %1186 = vmatpush.bf16.xpose.msra.mxu0 0
    %1187 = vmatpush.bf16.xpose.msra.mxu0 %v1178
    %1188 = vmatmul.bf16.gmra.mxu0 %v1175
    %v1189 = vpop.f32.mrf.mxu0
    %v1190 = vadd.f32 0.0, %v1189
    %v1191 = vpop.f32.mrf.mxu0
    %1192 = vdwg.mxu0
    %v1195 = vunpack.c.l.b16 %v1023
    %v1196 = vunpack.c.l.b16 %v1024
    %v1197 = vpack.c.b16 %v1196, %v1195
    %v1199 = vsel %vm152, %v968, 0
    %v1202 = vsel %vm152, %v1197, 0
    %1204 = vmatpush.bf16.xpose.msra.mxu0 0
    %1205 = vmatpush.bf16.xpose.msra.mxu0 0
    %1206 = vmatpush.bf16.xpose.msra.mxu0 0
    %1207 = vmatpush.bf16.xpose.msra.mxu0 0
    %1208 = vmatpush.bf16.xpose.msra.mxu0 0
    %1209 = vmatpush.bf16.xpose.msra.mxu0 0
    %1210 = vmatpush.bf16.xpose.msra.mxu0 0
    %1211 = vmatpush.bf16.xpose.msra.mxu0 %v1202
    %1212 = vmatmul.bf16.gmra.mxu0 %v1199
    %v1213 = vpop.f32.mrf.mxu0
    %v1214 = vadd.f32 0.0, %v1213
    %v1215 = vpop.f32.mrf.mxu0
    %1216 = vdwg.mxu0
    %v1217 = vsel %vm722, %v1046, -inf
    %1218 = vmax.xlane.f32.xlu0 %v1217
    %v1219 = vpop.xlane.xlu0 %1218
    %v1220 = vsel %vm722, %v1070, -inf
    %1221 = vmax.xlane.f32.xlu0 %v1220
    %v1222 = vpop.xlane.xlu0 %1221
    %v1223 = vsel %vm722, %v1094, -inf
    %1224 = vmax.xlane.f32.xlu0 %v1223
    %v1225 = vpop.xlane.xlu0 %1224
    %v1226 = vsel %vm722, %v1118, -inf
    %1227 = vmax.xlane.f32.xlu0 %v1226
    %v1228 = vpop.xlane.xlu0 %1227
    %v1229 = vsel %vm722, %v1142, -inf
    %1230 = vmax.xlane.f32.xlu0 %v1229
    %v1231 = vpop.xlane.xlu0 %1230
    %v1232 = vsel %vm722, %v1166, -inf
    %1233 = vmax.xlane.f32.xlu0 %v1232
    %v1234 = vpop.xlane.xlu0 %1233
    %v1235 = vsel %vm722, %v1190, -inf
    %1236 = vmax.xlane.f32.xlu0 %v1235
    %v1237 = vpop.xlane.xlu0 %1236
    %v1238 = vsel %vm722, %v1214, -inf
    %1239 = vmax.xlane.f32.xlu0 %v1238
    %v1240 = vpop.xlane.xlu0 %1239
    %v1241 = vsub.f32 %v1046, %v1219
    %v1242 = vsub.f32 %v1070, %v1222
    %v1243 = vsub.f32 %v1094, %v1225
    %v1244 = vsub.f32 %v1118, %v1228
    %v1245 = vsub.f32 %v1142, %v1231
    %v1246 = vsub.f32 %v1166, %v1234
    %v1247 = vsub.f32 %v1190, %v1237
    %v1248 = vsub.f32 %v1214, %v1240
    %v1249 = vmul.f32 %v1241, 1.442695
    %v1250 = vpow.pop %v1249
    %v1251 = vmul.f32 %v1242, 1.442695
    %v1252 = vpow.pop %v1251
    %v1253 = vmul.f32 %v1243, 1.442695
    %v1254 = vpow.pop %v1253
    %v1255 = vmul.f32 %v1244, 1.442695
    %v1256 = vpow.pop %v1255
    %v1257 = vmul.f32 %v1245, 1.442695
    %v1258 = vpow.pop %v1257
    %v1259 = vmul.f32 %v1246, 1.442695
    %v1260 = vpow.pop %v1259
    %v1261 = vmul.f32 %v1247, 1.442695
    %v1262 = vpow.pop %v1261
    %v1263 = vmul.f32 %v1248, 1.442695
    %v1264 = vpow.pop %v1263
    %v1265 = vsel %vm722, %v1250, 0.0
    %1266 = vadd.xlane.f32.xlu0 %v1265
    %v1267 = vpop.xlane.xlu0 %1266
    %v1268 = vsel %vm722, %v1252, 0.0
    %1269 = vadd.xlane.f32.xlu0 %v1268
    %v1270 = vpop.xlane.xlu0 %1269
    %v1271 = vsel %vm722, %v1254, 0.0
    %1272 = vadd.xlane.f32.xlu0 %v1271
    %v1273 = vpop.xlane.xlu0 %1272
    %v1274 = vsel %vm722, %v1256, 0.0
    %1275 = vadd.xlane.f32.xlu0 %v1274
    %v1276 = vpop.xlane.xlu0 %1275
    %v1277 = vsel %vm722, %v1258, 0.0
    %1278 = vadd.xlane.f32.xlu0 %v1277
    %v1279 = vpop.xlane.xlu0 %1278
    %v1280 = vsel %vm722, %v1260, 0.0
    %1281 = vadd.xlane.f32.xlu0 %v1280
    %v1282 = vpop.xlane.xlu0 %1281
    %v1283 = vsel %vm722, %v1262, 0.0
    %1284 = vadd.xlane.f32.xlu0 %v1283
    %v1285 = vpop.xlane.xlu0 %1284
    %v1286 = vsel %vm722, %v1264, 0.0
    %1287 = vadd.xlane.f32.xlu0 %v1286
    %v1288 = vpop.xlane.xlu0 %1287
    %v1289 = vrcp.pop %v1267
    %v1290 = vmul.f32 %v1267, %v1289
    %v1291 = vsub.f32 1.0, %v1290
    %v1292 = vmul.f32 %v1289, %v1291
    %v1293 = vadd.f32 %v1289, %v1292
    %vm1294 = vweird.f32 %v1267
    %vm1295 = vweird.f32 %v1289
    %vm1296 = vmor %vm1294, %vm1295
    %v1297 = vsel %vm1296, %v1289, %v1293
    %v1298 = vand.u32 2147483647, %v1267
    %vm1299 = vcmp.eq.f32.partialorder %v1298, 8.507059e+37
    %v1300 = vand.u32 %v1267, 2147483648
    %v1301 = vor.u32 1.1754944e-38, %v1300
    %v1302 = vsel %vm1299, %v1301, %v1297
    %v1303 = vmul.f32 %v1250, %v1302
    %v1304 = vrcp.pop %v1270
    %v1305 = vmul.f32 %v1270, %v1304
    %v1306 = vsub.f32 1.0, %v1305
    %v1307 = vmul.f32 %v1304, %v1306
    %v1308 = vadd.f32 %v1304, %v1307
    %vm1309 = vweird.f32 %v1270
    %vm1310 = vweird.f32 %v1304
    %vm1311 = vmor %vm1309, %vm1310
    %v1312 = vsel %vm1311, %v1304, %v1308
    %v1313 = vand.u32 2147483647, %v1270
    %vm1314 = vcmp.eq.f32.partialorder %v1313, 8.507059e+37
    %v1315 = vand.u32 %v1270, 2147483648
    %v1316 = vor.u32 1.1754944e-38, %v1315
    %v1317 = vsel %vm1314, %v1316, %v1312
    %v1318 = vmul.f32 %v1252, %v1317
    %v1319 = vrcp.pop %v1273
    %v1320 = vmul.f32 %v1273, %v1319
    %v1321 = vsub.f32 1.0, %v1320
    %v1322 = vmul.f32 %v1319, %v1321
    %v1323 = vadd.f32 %v1319, %v1322
    %vm1324 = vweird.f32 %v1273
    %vm1325 = vweird.f32 %v1319
    %vm1326 = vmor %vm1324, %vm1325
    %v1327 = vsel %vm1326, %v1319, %v1323
    %v1328 = vand.u32 2147483647, %v1273
    %vm1329 = vcmp.eq.f32.partialorder %v1328, 8.507059e+37
    %v1330 = vand.u32 %v1273, 2147483648
    %v1331 = vor.u32 1.1754944e-38, %v1330
    %v1332 = vsel %vm1329, %v1331, %v1327
    %v1333 = vmul.f32 %v1254, %v1332
    %v1334 = vrcp.pop %v1276
    %v1335 = vmul.f32 %v1276, %v1334
    %v1336 = vsub.f32 1.0, %v1335
    %v1337 = vmul.f32 %v1334, %v1336
    %v1338 = vadd.f32 %v1334, %v1337
    %vm1339 = vweird.f32 %v1276
    %vm1340 = vweird.f32 %v1334
    %vm1341 = vmor %vm1339, %vm1340
    %v1342 = vsel %vm1341, %v1334, %v1338
    %v1343 = vand.u32 2147483647, %v1276
    %vm1344 = vcmp.eq.f32.partialorder %v1343, 8.507059e+37
    %v1345 = vand.u32 %v1276, 2147483648
    %v1346 = vor.u32 1.1754944e-38, %v1345
    %v1347 = vsel %vm1344, %v1346, %v1342
    %v1348 = vmul.f32 %v1256, %v1347
    %v1349 = vrcp.pop %v1279
    %v1350 = vmul.f32 %v1279, %v1349
    %v1351 = vsub.f32 1.0, %v1350
    %v1352 = vmul.f32 %v1349, %v1351
    %v1353 = vadd.f32 %v1349, %v1352
    %vm1354 = vweird.f32 %v1279
    %vm1355 = vweird.f32 %v1349
    %vm1356 = vmor %vm1354, %vm1355
    %v1357 = vsel %vm1356, %v1349, %v1353
    %v1358 = vand.u32 2147483647, %v1279
    %vm1359 = vcmp.eq.f32.partialorder %v1358, 8.507059e+37
    %v1360 = vand.u32 %v1279, 2147483648
    %v1361 = vor.u32 1.1754944e-38, %v1360
    %v1362 = vsel %vm1359, %v1361, %v1357
    %v1363 = vmul.f32 %v1258, %v1362
    %v1364 = vrcp.pop %v1282
    %v1365 = vmul.f32 %v1282, %v1364
    %v1366 = vsub.f32 1.0, %v1365
    %v1367 = vmul.f32 %v1364, %v1366
    %v1368 = vadd.f32 %v1364, %v1367
    %vm1369 = vweird.f32 %v1282
    %vm1370 = vweird.f32 %v1364
    %vm1371 = vmor %vm1369, %vm1370
    %v1372 = vsel %vm1371, %v1364, %v1368
    %v1373 = vand.u32 2147483647, %v1282
    %vm1374 = vcmp.eq.f32.partialorder %v1373, 8.507059e+37
    %v1375 = vand.u32 %v1282, 2147483648
    %v1376 = vor.u32 1.1754944e-38, %v1375
    %v1377 = vsel %vm1374, %v1376, %v1372
    %v1378 = vmul.f32 %v1260, %v1377
    %v1379 = vrcp.pop %v1285
    %v1380 = vmul.f32 %v1285, %v1379
    %v1381 = vsub.f32 1.0, %v1380
    %v1382 = vmul.f32 %v1379, %v1381
    %v1383 = vadd.f32 %v1379, %v1382
    %vm1384 = vweird.f32 %v1285
    %vm1385 = vweird.f32 %v1379
    %vm1386 = vmor %vm1384, %vm1385
    %v1387 = vsel %vm1386, %v1379, %v1383
    %v1388 = vand.u32 2147483647, %v1285
    %vm1389 = vcmp.eq.f32.partialorder %v1388, 8.507059e+37
    %v1390 = vand.u32 %v1285, 2147483648
    %v1391 = vor.u32 1.1754944e-38, %v1390
    %v1392 = vsel %vm1389, %v1391, %v1387
    %v1393 = vmul.f32 %v1262, %v1392
    %v1394 = vrcp.pop %v1288
    %v1395 = vmul.f32 %v1288, %v1394
    %v1396 = vsub.f32 1.0, %v1395
    %v1397 = vmul.f32 %v1394, %v1396
    %v1398 = vadd.f32 %v1394, %v1397
    %vm1399 = vweird.f32 %v1288
    %vm1400 = vweird.f32 %v1394
    %vm1401 = vmor %vm1399, %vm1400
    %v1402 = vsel %vm1401, %v1394, %v1398
    %v1403 = vand.u32 2147483647, %v1288
    %vm1404 = vcmp.eq.f32.partialorder %v1403, 8.507059e+37
    %v1405 = vand.u32 %v1288, 2147483648
    %v1406 = vor.u32 1.1754944e-38, %v1405
    %v1407 = vsel %vm1404, %v1406, %v1402
    %v1408 = vmul.f32 %v1264, %v1407
    %v1409 = vpack.c.bf16 %v1303, %v1303
    %v1410 = vpack.c.bf16 %v1318, %v1318
    %v1411 = vpack.c.bf16 %v1333, %v1333
    %v1412 = vpack.c.bf16 %v1348, %v1348
    %v1413 = vpack.c.bf16 %v1363, %v1363
    %v1414 = vpack.c.bf16 %v1378, %v1378
    %v1415 = vpack.c.bf16 %v1393, %v1393
    %v1416 = vpack.c.bf16 %v1408, %v1408
    %1417 = vrot.lane.b32.xlu0 %v1029, 96
    %v1418 = vpop.permute.xlu0 %1417
    %v1421 = vsel %vm722, %v1409, 0
    %1423 = vmatpush.bf16.msra.mxu0 0
    %1424 = vmatpush.bf16.msra.mxu0 0
    %1425 = vmatpush.bf16.msra.mxu0 0
    %1426 = vmatpush.bf16.msra.mxu0 0
    %1427 = vmatpush.bf16.msra.mxu0 0
    %1428 = vmatpush.bf16.msra.mxu0 0
    %1429 = vmatpush.bf16.msra.mxu0 0
    %1430 = vmatpush.bf16.msra.mxu0 %v1418
    %1431 = vmatmul.bf16.gmra.mxu0 %v1421
    %v1432 = vpop.f32.mrf.mxu0
    %v1433 = vadd.f32 0.0, %v1432
    %v1434 = vpop.f32.mrf.mxu0
    %1435 = vdwg.mxu0
    %1436 = vrot.lane.b32.xlu0 %v1053, 96
    %v1437 = vpop.permute.xlu0 %1436
    %v1440 = vsel %vm722, %v1410, 0
    %1442 = vmatpush.bf16.msra.mxu0 0
    %1443 = vmatpush.bf16.msra.mxu0 0
    %1444 = vmatpush.bf16.msra.mxu0 0
    %1445 = vmatpush.bf16.msra.mxu0 0
    %1446 = vmatpush.bf16.msra.mxu0 0
    %1447 = vmatpush.bf16.msra.mxu0 0
    %1448 = vmatpush.bf16.msra.mxu0 0
    %1449 = vmatpush.bf16.msra.mxu0 %v1437
    %1450 = vmatmul.bf16.gmra.mxu0 %v1440
    %v1451 = vpop.f32.mrf.mxu0
    %v1452 = vadd.f32 0.0, %v1451
    %v1453 = vpop.f32.mrf.mxu0
    %1454 = vdwg.mxu0
    %1455 = vrot.lane.b32.xlu0 %v1077, 96
    %v1456 = vpop.permute.xlu0 %1455
    %v1459 = vsel %vm722, %v1411, 0
    %1461 = vmatpush.bf16.msra.mxu0 0
    %1462 = vmatpush.bf16.msra.mxu0 0
    %1463 = vmatpush.bf16.msra.mxu0 0
    %1464 = vmatpush.bf16.msra.mxu0 0
    %1465 = vmatpush.bf16.msra.mxu0 0
    %1466 = vmatpush.bf16.msra.mxu0 0
    %1467 = vmatpush.bf16.msra.mxu0 0
    %1468 = vmatpush.bf16.msra.mxu0 %v1456
    %1469 = vmatmul.bf16.gmra.mxu0 %v1459
    %v1470 = vpop.f32.mrf.mxu0
    %v1471 = vadd.f32 0.0, %v1470
    %v1472 = vpop.f32.mrf.mxu0
    %1473 = vdwg.mxu0
    %1474 = vrot.lane.b32.xlu0 %v1101, 96
    %v1475 = vpop.permute.xlu0 %1474
    %v1478 = vsel %vm722, %v1412, 0
    %1480 = vmatpush.bf16.msra.mxu0 0
    %1481 = vmatpush.bf16.msra.mxu0 0
    %1482 = vmatpush.bf16.msra.mxu0 0
    %1483 = vmatpush.bf16.msra.mxu0 0
    %1484 = vmatpush.bf16.msra.mxu0 0
    %1485 = vmatpush.bf16.msra.mxu0 0
    %1486 = vmatpush.bf16.msra.mxu0 0
    %1487 = vmatpush.bf16.msra.mxu0 %v1475
    %1488 = vmatmul.bf16.gmra.mxu0 %v1478
    %v1489 = vpop.f32.mrf.mxu0
    %v1490 = vadd.f32 0.0, %v1489
    %v1491 = vpop.f32.mrf.mxu0
    %1492 = vdwg.mxu0
    %1493 = vrot.lane.b32.xlu0 %v1125, 96
    %v1494 = vpop.permute.xlu0 %1493
    %v1497 = vsel %vm722, %v1413, 0
    %1499 = vmatpush.bf16.msra.mxu0 0
    %1500 = vmatpush.bf16.msra.mxu0 0
    %1501 = vmatpush.bf16.msra.mxu0 0
    %1502 = vmatpush.bf16.msra.mxu0 0
    %1503 = vmatpush.bf16.msra.mxu0 0
    %1504 = vmatpush.bf16.msra.mxu0 0
    %1505 = vmatpush.bf16.msra.mxu0 0
    %1506 = vmatpush.bf16.msra.mxu0 %v1494
    %1507 = vmatmul.bf16.gmra.mxu0 %v1497
    %v1508 = vpop.f32.mrf.mxu0
    %v1509 = vadd.f32 0.0, %v1508
    %v1510 = vpop.f32.mrf.mxu0
    %1511 = vdwg.mxu0
    %1512 = vrot.lane.b32.xlu0 %v1149, 96
    %v1513 = vpop.permute.xlu0 %1512
    %v1516 = vsel %vm722, %v1414, 0
    %1518 = vmatpush.bf16.msra.mxu0 0
    %1519 = vmatpush.bf16.msra.mxu0 0
    %1520 = vmatpush.bf16.msra.mxu0 0
    %1521 = vmatpush.bf16.msra.mxu0 0
    %1522 = vmatpush.bf16.msra.mxu0 0
    %1523 = vmatpush.bf16.msra.mxu0 0
    %1524 = vmatpush.bf16.msra.mxu0 0
    %1525 = vmatpush.bf16.msra.mxu0 %v1513
    %1526 = vmatmul.bf16.gmra.mxu0 %v1516
    %v1527 = vpop.f32.mrf.mxu0
    %v1528 = vadd.f32 0.0, %v1527
    %v1529 = vpop.f32.mrf.mxu0
    %1530 = vdwg.mxu0
    %1531 = vrot.lane.b32.xlu0 %v1173, 96
    %v1532 = vpop.permute.xlu0 %1531
    %v1535 = vsel %vm722, %v1415, 0
    %1537 = vmatpush.bf16.msra.mxu0 0
    %1538 = vmatpush.bf16.msra.mxu0 0
    %1539 = vmatpush.bf16.msra.mxu0 0
    %1540 = vmatpush.bf16.msra.mxu0 0
    %1541 = vmatpush.bf16.msra.mxu0 0
    %1542 = vmatpush.bf16.msra.mxu0 0
    %1543 = vmatpush.bf16.msra.mxu0 0
    %1544 = vmatpush.bf16.msra.mxu0 %v1532
    %1545 = vmatmul.bf16.gmra.mxu0 %v1535
    %v1546 = vpop.f32.mrf.mxu0
    %v1547 = vadd.f32 0.0, %v1546
    %v1548 = vpop.f32.mrf.mxu0
    %1549 = vdwg.mxu0
    %1550 = vrot.lane.b32.xlu0 %v1197, 96
    %v1551 = vpop.permute.xlu0 %1550
    %v1554 = vsel %vm722, %v1416, 0
    %1556 = vmatpush.bf16.msra.mxu0 0
    %1557 = vmatpush.bf16.msra.mxu0 0
    %1558 = vmatpush.bf16.msra.mxu0 0
    %1559 = vmatpush.bf16.msra.mxu0 0
    %1560 = vmatpush.bf16.msra.mxu0 0
    %1561 = vmatpush.bf16.msra.mxu0 0
    %1562 = vmatpush.bf16.msra.mxu0 0
    %1563 = vmatpush.bf16.msra.mxu0 %v1551
    %1564 = vmatmul.bf16.gmra.mxu0 %v1554
    %v1565 = vpop.f32.mrf.mxu0
    %v1566 = vadd.f32 0.0, %v1565
    %v1567 = vpop.f32.mrf.mxu0
    %1568 = vdwg.mxu0
    %1570 = vrot.lane.b32.xlu0 %v1452, 8
    %v1571 = vpop.permute.xlu0 %1570
    %1574 = vrot.lane.b32.xlu0 %v1471, 16
    %v1575 = vpop.permute.xlu0 %1574
    %1578 = vrot.lane.b32.xlu0 %v1490, 24
    %v1579 = vpop.permute.xlu0 %1578
    %v1581 = vsel %vm152, %v1433, %v1571
    %v1582 = vsel %vm722, %v1581, %v1575
    %v1583 = vsel %vm724, %v1582, %v1579
    %1585 = vrot.lane.b32.xlu0 %v1528, 8
    %v1586 = vpop.permute.xlu0 %1585
    %1589 = vrot.lane.b32.xlu0 %v1547, 16
    %v1590 = vpop.permute.xlu0 %1589
    %1593 = vrot.lane.b32.xlu0 %v1566, 24
    %v1594 = vpop.permute.xlu0 %1593
    %v1596 = vsel %vm152, %v1509, %v1586
    %v1597 = vsel %vm722, %v1596, %v1590
    %v1598 = vsel %vm724, %v1597, %v1594
    %v1599 = vpack.c.bf16 %v1598, %v1583
    %v1601 = vperm.slane %v938, 0
    %v1606 = vunpack.c.l.b16 %v934
    %v1607 = vunpack.c.l.b16 %v935
    %v1608 = vunpack.c.l.b16 %v936
    %v1609 = vunpack.c.l.b16 %v937
    %v1610 = vpack.c.b16 %v1607, %v1606
    %v1611 = vpack.c.b16 %v1609, %v1608
    %1614 = vrot.lane.b32.xlu0 %v1601, 96
    %v1615 = vpop.permute.xlu0 %1614
    %v1618 = vsel %vm67, %v1599, 0
    %1620 = vmatpush.bf16.msra.mxu0 0
    %1621 = vmatpush.bf16.msra.mxu0 0
    %1622 = vmatpush.bf16.msra.mxu0 0
    %1623 = vmatpush.bf16.msra.mxu0 0
    %1624 = vmatpush.bf16.msra.mxu0 0
    %1625 = vmatpush.bf16.msra.mxu0 0
    %1626 = vmatpush.bf16.msra.mxu0 %v1611
    %1627 = vmatpush.bf16.msra.mxu0 %v1610
    %1628 = vmatmul.bf16.gmra.mxu0 %v1618
    %v1629 = vpop.f32.mrf.mxu0
    %v1630 = vadd.f32 %v1615, %v1629
    %v1631 = vpop.f32.mrf.mxu0
    %v1632 = vadd.f32 %v1615, %v1631
    %1633 = vdwg.mxu0
    %v1634 = vpack.c.bf16 %v1630, %v1630
    %v1635 = vpack.c.bf16 %v1632, %v1632
    %v1638 = vunpack.c.l.b16 %v1634
    %v1639 = vunpack.c.l.b16 %v1635
    %v1640 = vpack.c.b16 %v1639, %v1638
    %1641 = vrot.lane.b32.xlu0 %v1640, 32
    %v1642 = vpop.permute.xlu0 %1641
    %v1644 = vsel %vm67, %v848, %v1642
    %v1645 = vld [vmem:[%s7] sm:$0xf]
    %v1646 = vld [vmem:[%s7 + $0x4] sm:$0xf]
    %v1647 = vld [vmem:[%s7 + $0x8] sm:$0xf]
    %v1648 = vld [vmem:[%s7 + $0xc] sm:$0xf]
    %v1649 = vld [vmem:[%s7 + $0x10] sm:$0xf]
    %v1650 = vld [vmem:[%s7 + $0x14] sm:$0xf]
    %v1651 = vld [vmem:[%s7 + $0x18] sm:$0xf]
    %v1652 = vld [vmem:[%s7 + $0x1c] sm:$0xf]
    %v1653 = vld [vmem:[%s10 + $0x2] sm:$0x1]
    %v1655 = vperm.slane %v1653, 0
    %v1664 = vunpack.c.l.b16 %v1645
    %v1665 = vunpack.c.l.b16 %v1646
    %v1666 = vunpack.c.l.b16 %v1647
    %v1667 = vunpack.c.l.b16 %v1648
    %v1668 = vunpack.c.l.b16 %v1649
    %v1669 = vunpack.c.l.b16 %v1650
    %v1670 = vunpack.c.l.b16 %v1651
    %v1671 = vunpack.c.l.b16 %v1652
    %v1672 = vpack.c.b16 %v1665, %v1664
    %v1673 = vpack.c.b16 %v1667, %v1666
    %v1674 = vpack.c.b16 %v1669, %v1668
    %v1675 = vpack.c.b16 %v1671, %v1670
    %1680 = vrot.lane.b32.xlu0 %v1655, 64
    %v1681 = vpop.permute.xlu0 %1680
    %vm1683 = vcmask 523264
    %v1684 = vsel %vm1683, %v1644, 0
    %1686 = vmatpush.bf16.msra.mxu0 0
    %1687 = vmatpush.bf16.msra.mxu0 0
    %1688 = vmatpush.bf16.msra.mxu0 0
    %1689 = vmatpush.bf16.msra.mxu0 0
    %1690 = vmatpush.bf16.msra.mxu0 %v1675
    %1691 = vmatpush.bf16.msra.mxu0 %v1674
    %1692 = vmatpush.bf16.msra.mxu0 %v1673
    %1693 = vmatpush.bf16.msra.mxu0 %v1672
    %1694 = vmatmul.bf16.gmra.mxu0 %v1684
    %v1695 = vpop.f32.mrf.mxu0
    %v1696 = vadd.f32 %v1681, %v1695
    %v1697 = vpop.f32.mrf.mxu0
    %v1698 = vadd.f32 %v1681, %v1697
    %1699 = vdwg.mxu0
    %v1700 = vxor.u32 %v1696, 2147483648
    %v1701 = vxor.u32 %v1698, 2147483648
    %v1702 = vmul.f32 %v1700, 1.442695
    %v1703 = vpow.pop %v1702
    %v1704 = vmul.f32 %v1701, 1.442695
    %v1705 = vpow.pop %v1704
    %v1706 = vadd.f32 %v1703, 1.0
    %v1707 = vadd.f32 %v1705, 1.0
    %v1708 = vrcp.pop %v1706
    %v1709 = vmul.f32 %v1706, %v1708
    %v1710 = vsub.f32 1.0, %v1709
    %v1711 = vmul.f32 %v1708, %v1710
    %v1712 = vadd.f32 %v1708, %v1711
    %vm1713 = vweird.f32 %v1706
    %vm1714 = vweird.f32 %v1708
    %vm1715 = vmor %vm1713, %vm1714
    %v1716 = vsel %vm1715, %v1708, %v1712
    %v1717 = vand.u32 2147483647, %v1706
    %vm1718 = vcmp.eq.f32.partialorder %v1717, 8.507059e+37
    %v1719 = vand.u32 %v1706, 2147483648
    %v1720 = vor.u32 1.1754944e-38, %v1719
    %v1721 = vsel %vm1718, %v1720, %v1716
    %v1722 = vmul.f32 1.0, %v1721
    %v1723 = vrcp.pop %v1707
    %v1724 = vmul.f32 %v1707, %v1723
    %v1725 = vsub.f32 1.0, %v1724
    %v1726 = vmul.f32 %v1723, %v1725
    %v1727 = vadd.f32 %v1723, %v1726
    %vm1728 = vweird.f32 %v1707
    %vm1729 = vweird.f32 %v1723
    %vm1730 = vmor %vm1728, %vm1729
    %v1731 = vsel %vm1730, %v1723, %v1727
    %v1732 = vand.u32 2147483647, %v1707
    %vm1733 = vcmp.eq.f32.partialorder %v1732, 8.507059e+37
    %v1734 = vand.u32 %v1707, 2147483648
    %v1735 = vor.u32 1.1754944e-38, %v1734
    %v1736 = vsel %vm1733, %v1735, %v1731
    %v1737 = vmul.f32 1.0, %v1736
    %v1738 = vmul.f32 %v1722, %v1630
    %v1739 = vmul.f32 %v1737, %v1632
    %v1740 = vadd.f32 %v836, %v1738
    %v1741 = vadd.f32 %v837, %v1739
    %v1742 = vld [vmem:[%s10 + $0x3] sm:$0x1]
    %v1743 = vsel %vm67, %v1740, 0.0
    %1744 = vadd.xlane.f32.xlu0 %v1743
    %v1745 = vpop.xlane.xlu0 %1744
    %v1746 = vsel %vm67, %v1741, 0.0
    %1747 = vadd.xlane.f32.xlu0 %v1746
    %v1748 = vpop.xlane.xlu0 %1747
    %v1749 = vmul.f32 %v1745, %v789
    %v1750 = vmul.f32 %v1748, %v789
    %v1751 = vsub.f32 %v1740, %v1749
    %v1752 = vsub.f32 %v1741, %v1750
    %v1753 = vmul.f32 %v1751, %v1751
    %v1754 = vmul.f32 %v1752, %v1752
    %v1755 = vsel %vm67, %v1753, 0.0
    %1756 = vadd.xlane.f32.xlu0 %v1755
    %v1757 = vpop.xlane.xlu0 %1756
    %v1758 = vsel %vm67, %v1754, 0.0
    %1759 = vadd.xlane.f32.xlu0 %v1758
    %v1760 = vpop.xlane.xlu0 %1759
    %v1761 = vmul.f32 %v1757, %v789
    %v1762 = vmul.f32 %v1760, %v789
    %v1763 = vadd.f32 %v1761, 1e-05
    %v1764 = vadd.f32 %v1762, 1e-05
    %v1765 = vrsqrt.pop %v1763
    %v1766 = vmul.f32 %v1765, %v1763
    %v1767 = vmul.f32 %v1766, %v1765
    %v1768 = vmul.f32 0.5, %v1767
    %v1769 = vsub.f32 1.5, %v1768
    %v1770 = vmul.f32 %v1765, %v1769
    %vm1771 = vweird.f32 %v1763
    %vm1772 = vweird.f32 %v1765
    %vm1773 = vmor %vm1771, %vm1772
    %v1774 = vsel %vm1773, %v1765, %v1770
    %v1775 = vrsqrt.pop %v1764
    %v1776 = vmul.f32 %v1775, %v1764
    %v1777 = vmul.f32 %v1776, %v1775
    %v1778 = vmul.f32 0.5, %v1777
    %v1779 = vsub.f32 1.5, %v1778
    %v1780 = vmul.f32 %v1775, %v1779
    %vm1781 = vweird.f32 %v1764
    %vm1782 = vweird.f32 %v1775
    %vm1783 = vmor %vm1781, %vm1782
    %v1784 = vsel %vm1783, %v1775, %v1780
    %v1785 = vmul.f32 %v1751, %v1774
    %v1786 = vmul.f32 %v1752, %v1784
    %1787 = vrot.lane.b32.xlu0 %v1655, 32
    %v1788 = vpop.permute.xlu0 %1787
    %v1790 = vmul.f32 %v1785, %v1788
    %v1791 = vmul.f32 %v1786, %v1788
    %v1793 = vperm.slane %v1742, 0
    %v1795 = vadd.f32 %v1790, %v1793
    %v1796 = vadd.f32 %v1791, %v1793
    %v1797 = vpack.c.bf16 %v1796, %v1795
    %v1798 = vld [vmem:[%s8] sm:$0xff]
    %v1799 = vld [vmem:[%s8 + $0x8] sm:$0xff]
    %v1800 = vld [vmem:[%s8 + $0x10] sm:$0xff]
    %v1801 = vld [vmem:[%s8 + $0x18] sm:$0xff]
    %v1802 = vld [vmem:[%s8 + $0x20] sm:$0xff]
    %v1803 = vld [vmem:[%s8 + $0x28] sm:$0xff]
    %v1804 = vld [vmem:[%s8 + $0x30] sm:$0xff]
    %v1805 = vld [vmem:[%s8 + $0x38] sm:$0xff]
    %v1806 = vld [vmem:[%s8 + $0x40] sm:$0xff]
    %v1807 = vld [vmem:[%s8 + $0x48] sm:$0xff]
    %v1808 = vld [vmem:[%s8 + $0x50] sm:$0xff]
    %v1809 = vld [vmem:[%s8 + $0x58] sm:$0xff]
    %v1810 = vld [vmem:[%s8 + $0x60] sm:$0xff]
    %v1811 = vld [vmem:[%s8 + $0x68] sm:$0xff]
    %v1812 = vld [vmem:[%s8 + $0x70] sm:$0xff]
    %v1813 = vld [vmem:[%s8 + $0x78] sm:$0xff]
    %v1814 = vld [vmem:[%s8 + $0x80] sm:$0xff]
    %v1815 = vld [vmem:[%s8 + $0x88] sm:$0xff]
    %v1816 = vld [vmem:[%s8 + $0x90] sm:$0xff]
    %v1817 = vld [vmem:[%s8 + $0x98] sm:$0xff]
    %v1818 = vld [vmem:[%s8 + $0xa0] sm:$0xff]
    %v1819 = vld [vmem:[%s8 + $0xa8] sm:$0xff]
    %v1820 = vld [vmem:[%s8 + $0xb0] sm:$0xff]
    %v1821 = vld [vmem:[%s8 + $0xb8] sm:$0xff]
    %v1822 = vld [vmem:[%s8 + $0xc0] sm:$0xff]
    %v1823 = vld [vmem:[%s8 + $0xc8] sm:$0xff]
    %v1824 = vld [vmem:[%s8 + $0xd0] sm:$0xff]
    %v1825 = vld [vmem:[%s8 + $0xd8] sm:$0xff]
    %v1826 = vld [vmem:[%s8 + $0xe0] sm:$0xff]
    %v1827 = vld [vmem:[%s8 + $0xe8] sm:$0xff]
    %v1828 = vld [vmem:[%s8 + $0xf0] sm:$0xff]
    %v1829 = vld [vmem:[%s8 + $0xf8] sm:$0xff]
    %v1830 = vld [vmem:[%s8 + $0x100] sm:$0xff]
    %v1831 = vld [vmem:[%s8 + $0x108] sm:$0xff]
    %v1832 = vld [vmem:[%s8 + $0x110] sm:$0xff]
    %v1833 = vld [vmem:[%s8 + $0x118] sm:$0xff]
    %v1834 = vld [vmem:[%s8 + $0x120] sm:$0xff]
    %v1835 = vld [vmem:[%s8 + $0x128] sm:$0xff]
    %v1836 = vld [vmem:[%s8 + $0x130] sm:$0xff]
    %v1837 = vld [vmem:[%s8 + $0x138] sm:$0xff]
    %v1838 = vld [vmem:[%s8 + $0x140] sm:$0xff]
    %v1839 = vld [vmem:[%s8 + $0x148] sm:$0xff]
    %v1840 = vld [vmem:[%s8 + $0x150] sm:$0xff]
    %v1841 = vld [vmem:[%s8 + $0x158] sm:$0xff]
    %v1842 = vld [vmem:[%s8 + $0x160] sm:$0xff]
    %v1843 = vld [vmem:[%s8 + $0x168] sm:$0xff]
    %v1844 = vld [vmem:[%s8 + $0x170] sm:$0xff]
    %v1845 = vld [vmem:[%s8 + $0x178] sm:$0xff]
    %v1846 = vld [vmem:[%s10 + $0x3] sm:$0xff]
    %v1847 = vld [vmem:[%s10 + $0xb] sm:$0xff]
    %v1848 = vld [vmem:[%s10 + $0x13] sm:$0xff]
    %v1849 = vld [vmem:[%s10 + $0x1b] sm:$0x1]
    %v1854 = vperm.slane %v1846, 0
    %v1855 = vperm.slane %v1846, 1
    %v1856 = vperm.slane %v1846, 2
    %v1857 = vperm.slane %v1846, 3
    %v1858 = vperm.slane %v1846, 4
    %v1859 = vperm.slane %v1846, 5
    %v1860 = vperm.slane %v1846, 6
    %v1861 = vperm.slane %v1846, 7
    %v1862 = vperm.slane %v1847, 0
    %v1863 = vperm.slane %v1847, 1
    %v1864 = vperm.slane %v1847, 2
    %v1865 = vperm.slane %v1847, 3
    %v1866 = vperm.slane %v1847, 4
    %v1867 = vperm.slane %v1847, 5
    %v1868 = vperm.slane %v1847, 6
    %v1869 = vperm.slane %v1847, 7
    %v1870 = vperm.slane %v1848, 0
    %v1871 = vperm.slane %v1848, 1
    %v1872 = vperm.slane %v1848, 2
    %v1873 = vperm.slane %v1848, 3
    %v1874 = vperm.slane %v1848, 4
    %v1875 = vperm.slane %v1848, 5
    %v1876 = vperm.slane %v1848, 6
    %v1877 = vperm.slane %v1848, 7
    %v1878 = vperm.slane %v1849, 0
    %v1927 = vunpack.c.l.b16 %v1798
    %v1928 = vunpack.c.h.b16 %v1798
    %v1929 = vunpack.c.l.b16 %v1799
    %v1930 = vunpack.c.h.b16 %v1799
    %v1931 = vunpack.c.l.b16 %v1800
    %v1932 = vunpack.c.h.b16 %v1800
    %v1933 = vunpack.c.l.b16 %v1801
    %v1934 = vunpack.c.h.b16 %v1801
    %v1935 = vunpack.c.l.b16 %v1802
    %v1936 = vunpack.c.h.b16 %v1802
    %v1937 = vunpack.c.l.b16 %v1803
    %v1938 = vunpack.c.h.b16 %v1803
    %v1939 = vunpack.c.l.b16 %v1804
    %v1940 = vunpack.c.h.b16 %v1804
    %v1941 = vunpack.c.l.b16 %v1805
    %v1942 = vunpack.c.h.b16 %v1805
    %v1943 = vunpack.c.l.b16 %v1806
    %v1944 = vunpack.c.h.b16 %v1806
    %v1945 = vunpack.c.l.b16 %v1807
    %v1946 = vunpack.c.h.b16 %v1807
    %v1947 = vunpack.c.l.b16 %v1808
    %v1948 = vunpack.c.h.b16 %v1808
    %v1949 = vunpack.c.l.b16 %v1809
    %v1950 = vunpack.c.h.b16 %v1809
    %v1951 = vunpack.c.l.b16 %v1810
    %v1952 = vunpack.c.h.b16 %v1810
    %v1953 = vunpack.c.l.b16 %v1811
    %v1954 = vunpack.c.h.b16 %v1811
    %v1955 = vunpack.c.l.b16 %v1812
    %v1956 = vunpack.c.h.b16 %v1812
    %v1957 = vunpack.c.l.b16 %v1813
    %v1958 = vunpack.c.h.b16 %v1813
    %v1959 = vunpack.c.l.b16 %v1814
    %v1960 = vunpack.c.h.b16 %v1814
    %v1961 = vunpack.c.l.b16 %v1815
    %v1962 = vunpack.c.h.b16 %v1815
    %v1963 = vunpack.c.l.b16 %v1816
    %v1964 = vunpack.c.h.b16 %v1816
    %v1965 = vunpack.c.l.b16 %v1817
    %v1966 = vunpack.c.h.b16 %v1817
    %v1967 = vunpack.c.l.b16 %v1818
    %v1968 = vunpack.c.h.b16 %v1818
    %v1969 = vunpack.c.l.b16 %v1819
    %v1970 = vunpack.c.h.b16 %v1819
    %v1971 = vunpack.c.l.b16 %v1820
    %v1972 = vunpack.c.h.b16 %v1820
    %v1973 = vunpack.c.l.b16 %v1821
    %v1974 = vunpack.c.h.b16 %v1821
    %v1975 = vunpack.c.l.b16 %v1822
    %v1976 = vunpack.c.h.b16 %v1822
    %v1977 = vunpack.c.l.b16 %v1823
    %v1978 = vunpack.c.h.b16 %v1823
    %v1979 = vunpack.c.l.b16 %v1824
    %v1980 = vunpack.c.h.b16 %v1824
    %v1981 = vunpack.c.l.b16 %v1825
    %v1982 = vunpack.c.h.b16 %v1825
    %v1983 = vunpack.c.l.b16 %v1826
    %v1984 = vunpack.c.h.b16 %v1826
    %v1985 = vunpack.c.l.b16 %v1827
    %v1986 = vunpack.c.h.b16 %v1827
    %v1987 = vunpack.c.l.b16 %v1828
    %v1988 = vunpack.c.h.b16 %v1828
    %v1989 = vunpack.c.l.b16 %v1829
    %v1990 = vunpack.c.h.b16 %v1829
    %v1991 = vunpack.c.l.b16 %v1830
    %v1992 = vunpack.c.h.b16 %v1830
    %v1993 = vunpack.c.l.b16 %v1831
    %v1994 = vunpack.c.h.b16 %v1831
    %v1995 = vunpack.c.l.b16 %v1832
    %v1996 = vunpack.c.h.b16 %v1832
    %v1997 = vunpack.c.l.b16 %v1833
    %v1998 = vunpack.c.h.b16 %v1833
    %v1999 = vunpack.c.l.b16 %v1834
    %v2000 = vunpack.c.h.b16 %v1834
    %v2001 = vunpack.c.l.b16 %v1835
    %v2002 = vunpack.c.h.b16 %v1835
    %v2003 = vunpack.c.l.b16 %v1836
    %v2004 = vunpack.c.h.b16 %v1836
    %v2005 = vunpack.c.l.b16 %v1837
    %v2006 = vunpack.c.h.b16 %v1837
    %v2007 = vunpack.c.l.b16 %v1838
    %v2008 = vunpack.c.h.b16 %v1838
    %v2009 = vunpack.c.l.b16 %v1839
    %v2010 = vunpack.c.h.b16 %v1839
    %v2011 = vunpack.c.l.b16 %v1840
    %v2012 = vunpack.c.h.b16 %v1840
    %v2013 = vunpack.c.l.b16 %v1841
    %v2014 = vunpack.c.h.b16 %v1841
    %v2015 = vunpack.c.l.b16 %v1842
    %v2016 = vunpack.c.h.b16 %v1842
    %v2017 = vunpack.c.l.b16 %v1843
    %v2018 = vunpack.c.h.b16 %v1843
    %v2019 = vunpack.c.l.b16 %v1844
    %v2020 = vunpack.c.h.b16 %v1844
    %v2021 = vunpack.c.l.b16 %v1845
    %v2022 = vunpack.c.h.b16 %v1845
    %v2023 = vpack.c.b16 %v1951, %v1927
    %v2024 = vpack.c.b16 %v1952, %v1928
    %v2025 = vpack.c.b16 %v1953, %v1929
    %v2026 = vpack.c.b16 %v1954, %v1930
    %v2027 = vpack.c.b16 %v1955, %v1931
    %v2028 = vpack.c.b16 %v1956, %v1932
    %v2029 = vpack.c.b16 %v1957, %v1933
    %v2030 = vpack.c.b16 %v1958, %v1934
    %v2031 = vpack.c.b16 %v1959, %v1935
    %v2032 = vpack.c.b16 %v1960, %v1936
    %v2033 = vpack.c.b16 %v1961, %v1937
    %v2034 = vpack.c.b16 %v1962, %v1938
    %v2035 = vpack.c.b16 %v1963, %v1939
    %v2036 = vpack.c.b16 %v1964, %v1940
    %v2037 = vpack.c.b16 %v1965, %v1941
    %v2038 = vpack.c.b16 %v1966, %v1942
    %v2039 = vpack.c.b16 %v1967, %v1943
    %v2040 = vpack.c.b16 %v1968, %v1944
    %v2041 = vpack.c.b16 %v1969, %v1945
    %v2042 = vpack.c.b16 %v1970, %v1946
    %v2043 = vpack.c.b16 %v1971, %v1947
    %v2044 = vpack.c.b16 %v1972, %v1948
    %v2045 = vpack.c.b16 %v1973, %v1949
    %v2046 = vpack.c.b16 %v1974, %v1950
    %v2047 = vpack.c.b16 %v1999, %v1975
    %v2048 = vpack.c.b16 %v2000, %v1976
    %v2049 = vpack.c.b16 %v2001, %v1977
    %v2050 = vpack.c.b16 %v2002, %v1978
    %v2051 = vpack.c.b16 %v2003, %v1979
    %v2052 = vpack.c.b16 %v2004, %v1980
    %v2053 = vpack.c.b16 %v2005, %v1981
    %v2054 = vpack.c.b16 %v2006, %v1982
    %v2055 = vpack.c.b16 %v2007, %v1983
    %v2056 = vpack.c.b16 %v2008, %v1984
    %v2057 = vpack.c.b16 %v2009, %v1985
    %v2058 = vpack.c.b16 %v2010, %v1986
    %v2059 = vpack.c.b16 %v2011, %v1987
    %v2060 = vpack.c.b16 %v2012, %v1988
    %v2061 = vpack.c.b16 %v2013, %v1989
    %v2062 = vpack.c.b16 %v2014, %v1990
    %v2063 = vpack.c.b16 %v2015, %v1991
    %v2064 = vpack.c.b16 %v2016, %v1992
    %v2065 = vpack.c.b16 %v2017, %v1993
    %v2066 = vpack.c.b16 %v2018, %v1994
    %v2067 = vpack.c.b16 %v2019, %v1995
    %v2068 = vpack.c.b16 %v2020, %v1996
    %v2069 = vpack.c.b16 %v2021, %v1997
    %v2070 = vpack.c.b16 %v2022, %v1998
    %2119 = vrot.lane.b32.xlu0 %v1854, 96
    %v2120 = vpop.permute.xlu0 %2119
    %2121 = vrot.lane.b32.xlu0 %v1855, 96
    %v2122 = vpop.permute.xlu0 %2121
    %2123 = vrot.lane.b32.xlu0 %v1856, 96
    %v2124 = vpop.permute.xlu0 %2123
    %2125 = vrot.lane.b32.xlu0 %v1857, 96
    %v2126 = vpop.permute.xlu0 %2125
    %2127 = vrot.lane.b32.xlu0 %v1858, 96
    %v2128 = vpop.permute.xlu0 %2127
    %2129 = vrot.lane.b32.xlu0 %v1859, 96
    %v2130 = vpop.permute.xlu0 %2129
    %2131 = vrot.lane.b32.xlu0 %v1860, 96
    %v2132 = vpop.permute.xlu0 %2131
    %2133 = vrot.lane.b32.xlu0 %v1861, 96
    %v2134 = vpop.permute.xlu0 %2133
    %2135 = vrot.lane.b32.xlu0 %v1862, 96
    %v2136 = vpop.permute.xlu0 %2135
    %2137 = vrot.lane.b32.xlu0 %v1863, 96
    %v2138 = vpop.permute.xlu0 %2137
    %2139 = vrot.lane.b32.xlu0 %v1864, 96
    %v2140 = vpop.permute.xlu0 %2139
    %2141 = vrot.lane.b32.xlu0 %v1865, 96
    %v2142 = vpop.permute.xlu0 %2141
    %2143 = vrot.lane.b32.xlu0 %v1866, 96
    %v2144 = vpop.permute.xlu0 %2143
    %2145 = vrot.lane.b32.xlu0 %v1867, 96
    %v2146 = vpop.permute.xlu0 %2145
    %2147 = vrot.lane.b32.xlu0 %v1868, 96
    %v2148 = vpop.permute.xlu0 %2147
    %2149 = vrot.lane.b32.xlu0 %v1869, 96
    %v2150 = vpop.permute.xlu0 %2149
    %2151 = vrot.lane.b32.xlu0 %v1870, 96
    %v2152 = vpop.permute.xlu0 %2151
    %2153 = vrot.lane.b32.xlu0 %v1871, 96
    %v2154 = vpop.permute.xlu0 %2153
    %2155 = vrot.lane.b32.xlu0 %v1872, 96
    %v2156 = vpop.permute.xlu0 %2155
    %2157 = vrot.lane.b32.xlu0 %v1873, 96
    %v2158 = vpop.permute.xlu0 %2157
    %2159 = vrot.lane.b32.xlu0 %v1874, 96
    %v2160 = vpop.permute.xlu0 %2159
    %2161 = vrot.lane.b32.xlu0 %v1875, 96
    %v2162 = vpop.permute.xlu0 %2161
    %2163 = vrot.lane.b32.xlu0 %v1876, 96
    %v2164 = vpop.permute.xlu0 %2163
    %2165 = vrot.lane.b32.xlu0 %v1877, 96
    %v2166 = vpop.permute.xlu0 %2165
    %2167 = vrot.lane.b32.xlu0 %v1878, 96
    %v2168 = vpop.permute.xlu0 %2167
    %vm2169 = vcmask 785408
    %v2170 = vsel %vm2169, %v2120, %v2122
    %v2171 = vsel %vm2169, %v2122, %v2124
    %v2172 = vsel %vm2169, %v2124, %v2126
    %v2173 = vsel %vm2169, %v2126, %v2128
    %v2174 = vsel %vm2169, %v2128, %v2130
    %v2175 = vsel %vm2169, %v2130, %v2132
    %v2176 = vsel %vm2169, %v2132, %v2134
    %v2177 = vsel %vm2169, %v2134, %v2136
    %v2178 = vsel %vm2169, %v2136, %v2138
    %v2179 = vsel %vm2169, %v2138, %v2140
    %v2180 = vsel %vm2169, %v2140, %v2142
    %v2181 = vsel %vm2169, %v2142, %v2144
    %v2182 = vsel %vm2169, %v2144, %v2146
    %v2183 = vsel %vm2169, %v2146, %v2148
    %v2184 = vsel %vm2169, %v2148, %v2150
    %v2185 = vsel %vm2169, %v2150, %v2152
    %v2186 = vsel %vm2169, %v2152, %v2154
    %v2187 = vsel %vm2169, %v2154, %v2156
    %v2188 = vsel %vm2169, %v2156, %v2158
    %v2189 = vsel %vm2169, %v2158, %v2160
    %v2190 = vsel %vm2169, %v2160, %v2162
    %v2191 = vsel %vm2169, %v2162, %v2164
    %v2192 = vsel %vm2169, %v2164, %v2166
    %v2193 = vsel %vm2169, %v2166, %v2168
    %v2219 = vsel %vm67, %v1797, 0
    %2221 = vmatpush.bf16.msra.mxu0 0
    %2222 = vmatpush.bf16.msra.mxu0 0
    %2223 = vmatpush.bf16.msra.mxu0 0
    %2224 = vmatpush.bf16.msra.mxu0 0
    %2225 = vmatpush.bf16.msra.mxu0 0
    %2226 = vmatpush.bf16.msra.mxu0 0
    %2227 = vmatpush.bf16.msra.mxu0 %v2047
    %2228 = vmatpush.bf16.msra.mxu0 %v2023
    %2229 = vmatmul.bf16.gmra.mxu0 %v2219
    %v2230 = vpop.f32.mrf.mxu0
    %v2231 = vadd.f32 %v2170, %v2230
    %v2232 = vpop.f32.mrf.mxu0
    %v2233 = vadd.f32 %v2170, %v2232
    %2234 = vdwg.mxu0
    %2235 = vmatpush.bf16.msra.mxu0 0
    %2236 = vmatpush.bf16.msra.mxu0 0
    %2237 = vmatpush.bf16.msra.mxu0 0
    %2238 = vmatpush.bf16.msra.mxu0 0
    %2239 = vmatpush.bf16.msra.mxu0 0
    %2240 = vmatpush.bf16.msra.mxu0 0
    %2241 = vmatpush.bf16.msra.mxu0 %v2048
    %2242 = vmatpush.bf16.msra.mxu0 %v2024
    %2243 = vmatmul.bf16.gmra.mxu0 %v2219
    %v2244 = vpop.f32.mrf.mxu0
    %v2245 = vadd.f32 %v2171, %v2244
    %v2246 = vpop.f32.mrf.mxu0
    %v2247 = vadd.f32 %v2171, %v2246
    %2248 = vdwg.mxu0
    %2249 = vmatpush.bf16.msra.mxu0 0
    %2250 = vmatpush.bf16.msra.mxu0 0
    %2251 = vmatpush.bf16.msra.mxu0 0
    %2252 = vmatpush.bf16.msra.mxu0 0
    %2253 = vmatpush.bf16.msra.mxu0 0
    %2254 = vmatpush.bf16.msra.mxu0 0
    %2255 = vmatpush.bf16.msra.mxu0 %v2049
    %2256 = vmatpush.bf16.msra.mxu0 %v2025
    %2257 = vmatmul.bf16.gmra.mxu0 %v2219
    %v2258 = vpop.f32.mrf.mxu0
    %v2259 = vadd.f32 %v2172, %v2258
    %v2260 = vpop.f32.mrf.mxu0
    %v2261 = vadd.f32 %v2172, %v2260
    %2262 = vdwg.mxu0
    %2263 = vmatpush.bf16.msra.mxu0 0
    %2264 = vmatpush.bf16.msra.mxu0 0
    %2265 = vmatpush.bf16.msra.mxu0 0
    %2266 = vmatpush.bf16.msra.mxu0 0
    %2267 = vmatpush.bf16.msra.mxu0 0
    %2268 = vmatpush.bf16.msra.mxu0 0
    %2269 = vmatpush.bf16.msra.mxu0 %v2050
    %2270 = vmatpush.bf16.msra.mxu0 %v2026
    %2271 = vmatmul.bf16.gmra.mxu0 %v2219
    %v2272 = vpop.f32.mrf.mxu0
    %v2273 = vadd.f32 %v2173, %v2272
    %v2274 = vpop.f32.mrf.mxu0
    %v2275 = vadd.f32 %v2173, %v2274
    %2276 = vdwg.mxu0
    %2277 = vmatpush.bf16.msra.mxu0 0
    %2278 = vmatpush.bf16.msra.mxu0 0
    %2279 = vmatpush.bf16.msra.mxu0 0
    %2280 = vmatpush.bf16.msra.mxu0 0
    %2281 = vmatpush.bf16.msra.mxu0 0
    %2282 = vmatpush.bf16.msra.mxu0 0
    %2283 = vmatpush.bf16.msra.mxu0 %v2051
    %2284 = vmatpush.bf16.msra.mxu0 %v2027
    %2285 = vmatmul.bf16.gmra.mxu0 %v2219
    %v2286 = vpop.f32.mrf.mxu0
    %v2287 = vadd.f32 %v2174, %v2286
    %v2288 = vpop.f32.mrf.mxu0
    %v2289 = vadd.f32 %v2174, %v2288
    %2290 = vdwg.mxu0
    %2291 = vmatpush.bf16.msra.mxu0 0
    %2292 = vmatpush.bf16.msra.mxu0 0
    %2293 = vmatpush.bf16.msra.mxu0 0
    %2294 = vmatpush.bf16.msra.mxu0 0
    %2295 = vmatpush.bf16.msra.mxu0 0
    %2296 = vmatpush.bf16.msra.mxu0 0
    %2297 = vmatpush.bf16.msra.mxu0 %v2052
    %2298 = vmatpush.bf16.msra.mxu0 %v2028
    %2299 = vmatmul.bf16.gmra.mxu0 %v2219
    %v2300 = vpop.f32.mrf.mxu0
    %v2301 = vadd.f32 %v2175, %v2300
    %v2302 = vpop.f32.mrf.mxu0
    %v2303 = vadd.f32 %v2175, %v2302
    %2304 = vdwg.mxu0
    %2305 = vmatpush.bf16.msra.mxu0 0
    %2306 = vmatpush.bf16.msra.mxu0 0
    %2307 = vmatpush.bf16.msra.mxu0 0
    %2308 = vmatpush.bf16.msra.mxu0 0
    %2309 = vmatpush.bf16.msra.mxu0 0
    %2310 = vmatpush.bf16.msra.mxu0 0
    %2311 = vmatpush.bf16.msra.mxu0 %v2053
    %2312 = vmatpush.bf16.msra.mxu0 %v2029
    %2313 = vmatmul.bf16.gmra.mxu0 %v2219
    %v2314 = vpop.f32.mrf.mxu0
    %v2315 = vadd.f32 %v2176, %v2314
    %v2316 = vpop.f32.mrf.mxu0
    %v2317 = vadd.f32 %v2176, %v2316
    %2318 = vdwg.mxu0
    %2319 = vmatpush.bf16.msra.mxu0 0
    %2320 = vmatpush.bf16.msra.mxu0 0
    %2321 = vmatpush.bf16.msra.mxu0 0
    %2322 = vmatpush.bf16.msra.mxu0 0
    %2323 = vmatpush.bf16.msra.mxu0 0
    %2324 = vmatpush.bf16.msra.mxu0 0
    %2325 = vmatpush.bf16.msra.mxu0 %v2054
    %2326 = vmatpush.bf16.msra.mxu0 %v2030
    %2327 = vmatmul.bf16.gmra.mxu0 %v2219
    %v2328 = vpop.f32.mrf.mxu0
    %v2329 = vadd.f32 %v2177, %v2328
    %v2330 = vpop.f32.mrf.mxu0
    %v2331 = vadd.f32 %v2177, %v2330
    %2332 = vdwg.mxu0
    %2333 = vmatpush.bf16.msra.mxu0 0
    %2334 = vmatpush.bf16.msra.mxu0 0
    %2335 = vmatpush.bf16.msra.mxu0 0
    %2336 = vmatpush.bf16.msra.mxu0 0
    %2337 = vmatpush.bf16.msra.mxu0 0
    %2338 = vmatpush.bf16.msra.mxu0 0
    %2339 = vmatpush.bf16.msra.mxu0 %v2055
    %2340 = vmatpush.bf16.msra.mxu0 %v2031
    %2341 = vmatmul.bf16.gmra.mxu0 %v2219
    %v2342 = vpop.f32.mrf.mxu0
    %v2343 = vadd.f32 %v2178, %v2342
    %v2344 = vpop.f32.mrf.mxu0
    %v2345 = vadd.f32 %v2178, %v2344
    %2346 = vdwg.mxu0
    %2347 = vmatpush.bf16.msra.mxu0 0
    %2348 = vmatpush.bf16.msra.mxu0 0
    %2349 = vmatpush.bf16.msra.mxu0 0
    %2350 = vmatpush.bf16.msra.mxu0 0
    %2351 = vmatpush.bf16.msra.mxu0 0
    %2352 = vmatpush.bf16.msra.mxu0 0
    %2353 = vmatpush.bf16.msra.mxu0 %v2056
    %2354 = vmatpush.bf16.msra.mxu0 %v2032
    %2355 = vmatmul.bf16.gmra.mxu0 %v2219
    %v2356 = vpop.f32.mrf.mxu0
    %v2357 = vadd.f32 %v2179, %v2356
    %v2358 = vpop.f32.mrf.mxu0
    %v2359 = vadd.f32 %v2179, %v2358
    %2360 = vdwg.mxu0
    %2361 = vmatpush.bf16.msra.mxu0 0
    %2362 = vmatpush.bf16.msra.mxu0 0
    %2363 = vmatpush.bf16.msra.mxu0 0
    %2364 = vmatpush.bf16.msra.mxu0 0
    %2365 = vmatpush.bf16.msra.mxu0 0
    %2366 = vmatpush.bf16.msra.mxu0 0
    %2367 = vmatpush.bf16.msra.mxu0 %v2057
    %2368 = vmatpush.bf16.msra.mxu0 %v2033
    %2369 = vmatmul.bf16.gmra.mxu0 %v2219
    %v2370 = vpop.f32.mrf.mxu0
    %v2371 = vadd.f32 %v2180, %v2370
    %v2372 = vpop.f32.mrf.mxu0
    %v2373 = vadd.f32 %v2180, %v2372
    %2374 = vdwg.mxu0
    %2375 = vmatpush.bf16.msra.mxu0 0
    %2376 = vmatpush.bf16.msra.mxu0 0
    %2377 = vmatpush.bf16.msra.mxu0 0
    %2378 = vmatpush.bf16.msra.mxu0 0
    %2379 = vmatpush.bf16.msra.mxu0 0
    %2380 = vmatpush.bf16.msra.mxu0 0
    %2381 = vmatpush.bf16.msra.mxu0 %v2058
    %2382 = vmatpush.bf16.msra.mxu0 %v2034
    %2383 = vmatmul.bf16.gmra.mxu0 %v2219
    %v2384 = vpop.f32.mrf.mxu0
    %v2385 = vadd.f32 %v2181, %v2384
    %v2386 = vpop.f32.mrf.mxu0
    %v2387 = vadd.f32 %v2181, %v2386
    %2388 = vdwg.mxu0
    %2389 = vmatpush.bf16.msra.mxu0 0
    %2390 = vmatpush.bf16.msra.mxu0 0
    %2391 = vmatpush.bf16.msra.mxu0 0
    %2392 = vmatpush.bf16.msra.mxu0 0
    %2393 = vmatpush.bf16.msra.mxu0 0
    %2394 = vmatpush.bf16.msra.mxu0 0
    %2395 = vmatpush.bf16.msra.mxu0 %v2059
    %2396 = vmatpush.bf16.msra.mxu0 %v2035
    %2397 = vmatmul.bf16.gmra.mxu0 %v2219
    %v2398 = vpop.f32.mrf.mxu0
    %v2399 = vadd.f32 %v2182, %v2398
    %v2400 = vpop.f32.mrf.mxu0
    %v2401 = vadd.f32 %v2182, %v2400
    %2402 = vdwg.mxu0
    %2403 = vmatpush.bf16.msra.mxu0 0
    %2404 = vmatpush.bf16.msra.mxu0 0
    %2405 = vmatpush.bf16.msra.mxu0 0
    %2406 = vmatpush.bf16.msra.mxu0 0
    %2407 = vmatpush.bf16.msra.mxu0 0
    %2408 = vmatpush.bf16.msra.mxu0 0
    %2409 = vmatpush.bf16.msra.mxu0 %v2060
    %2410 = vmatpush.bf16.msra.mxu0 %v2036
    %2411 = vmatmul.bf16.gmra.mxu0 %v2219
    %v2412 = vpop.f32.mrf.mxu0
    %v2413 = vadd.f32 %v2183, %v2412
    %v2414 = vpop.f32.mrf.mxu0
    %v2415 = vadd.f32 %v2183, %v2414
    %2416 = vdwg.mxu0
    %2417 = vmatpush.bf16.msra.mxu0 0
    %2418 = vmatpush.bf16.msra.mxu0 0
    %2419 = vmatpush.bf16.msra.mxu0 0
    %2420 = vmatpush.bf16.msra.mxu0 0
    %2421 = vmatpush.bf16.msra.mxu0 0
    %2422 = vmatpush.bf16.msra.mxu0 0
    %2423 = vmatpush.bf16.msra.mxu0 %v2061
    %2424 = vmatpush.bf16.msra.mxu0 %v2037
    %2425 = vmatmul.bf16.gmra.mxu0 %v2219
    %v2426 = vpop.f32.mrf.mxu0
    %v2427 = vadd.f32 %v2184, %v2426
    %v2428 = vpop.f32.mrf.mxu0
    %v2429 = vadd.f32 %v2184, %v2428
    %2430 = vdwg.mxu0
    %2431 = vmatpush.bf16.msra.mxu0 0
    %2432 = vmatpush.bf16.msra.mxu0 0
    %2433 = vmatpush.bf16.msra.mxu0 0
    %2434 = vmatpush.bf16.msra.mxu0 0
    %2435 = vmatpush.bf16.msra.mxu0 0
    %2436 = vmatpush.bf16.msra.mxu0 0
    %2437 = vmatpush.bf16.msra.mxu0 %v2062
    %2438 = vmatpush.bf16.msra.mxu0 %v2038
    %2439 = vmatmul.bf16.gmra.mxu0 %v2219
    %v2440 = vpop.f32.mrf.mxu0
    %v2441 = vadd.f32 %v2185, %v2440
    %v2442 = vpop.f32.mrf.mxu0
    %v2443 = vadd.f32 %v2185, %v2442
    %2444 = vdwg.mxu0
    %2445 = vmatpush.bf16.msra.mxu0 0
    %2446 = vmatpush.bf16.msra.mxu0 0
    %2447 = vmatpush.bf16.msra.mxu0 0
    %2448 = vmatpush.bf16.msra.mxu0 0
    %2449 = vmatpush.bf16.msra.mxu0 0
    %2450 = vmatpush.bf16.msra.mxu0 0
    %2451 = vmatpush.bf16.msra.mxu0 %v2063
    %2452 = vmatpush.bf16.msra.mxu0 %v2039
    %2453 = vmatmul.bf16.gmra.mxu0 %v2219
    %v2454 = vpop.f32.mrf.mxu0
    %v2455 = vadd.f32 %v2186, %v2454
    %v2456 = vpop.f32.mrf.mxu0
    %v2457 = vadd.f32 %v2186, %v2456
    %2458 = vdwg.mxu0
    %2459 = vmatpush.bf16.msra.mxu0 0
    %2460 = vmatpush.bf16.msra.mxu0 0
    %2461 = vmatpush.bf16.msra.mxu0 0
    %2462 = vmatpush.bf16.msra.mxu0 0
    %2463 = vmatpush.bf16.msra.mxu0 0
    %2464 = vmatpush.bf16.msra.mxu0 0
    %2465 = vmatpush.bf16.msra.mxu0 %v2064
    %2466 = vmatpush.bf16.msra.mxu0 %v2040
    %2467 = vmatmul.bf16.gmra.mxu0 %v2219
    %v2468 = vpop.f32.mrf.mxu0
    %v2469 = vadd.f32 %v2187, %v2468
    %v2470 = vpop.f32.mrf.mxu0
    %v2471 = vadd.f32 %v2187, %v2470
    %2472 = vdwg.mxu0
    %2473 = vmatpush.bf16.msra.mxu0 0
    %2474 = vmatpush.bf16.msra.mxu0 0
    %2475 = vmatpush.bf16.msra.mxu0 0
    %2476 = vmatpush.bf16.msra.mxu0 0
    %2477 = vmatpush.bf16.msra.mxu0 0
    %2478 = vmatpush.bf16.msra.mxu0 0
    %2479 = vmatpush.bf16.msra.mxu0 %v2065
    %2480 = vmatpush.bf16.msra.mxu0 %v2041
    %2481 = vmatmul.bf16.gmra.mxu0 %v2219
    %v2482 = vpop.f32.mrf.mxu0
    %v2483 = vadd.f32 %v2188, %v2482
    %v2484 = vpop.f32.mrf.mxu0
    %v2485 = vadd.f32 %v2188, %v2484
    %2486 = vdwg.mxu0
    %2487 = vmatpush.bf16.msra.mxu0 0
    %2488 = vmatpush.bf16.msra.mxu0 0
    %2489 = vmatpush.bf16.msra.mxu0 0
    %2490 = vmatpush.bf16.msra.mxu0 0
    %2491 = vmatpush.bf16.msra.mxu0 0
    %2492 = vmatpush.bf16.msra.mxu0 0
    %2493 = vmatpush.bf16.msra.mxu0 %v2066
    %2494 = vmatpush.bf16.msra.mxu0 %v2042
    %2495 = vmatmul.bf16.gmra.mxu0 %v2219
    %v2496 = vpop.f32.mrf.mxu0
    %v2497 = vadd.f32 %v2189, %v2496
    %v2498 = vpop.f32.mrf.mxu0
    %v2499 = vadd.f32 %v2189, %v2498
    %2500 = vdwg.mxu0
    %2501 = vmatpush.bf16.msra.mxu0 0
    %2502 = vmatpush.bf16.msra.mxu0 0
    %2503 = vmatpush.bf16.msra.mxu0 0
    %2504 = vmatpush.bf16.msra.mxu0 0
    %2505 = vmatpush.bf16.msra.mxu0 0
    %2506 = vmatpush.bf16.msra.mxu0 0
    %2507 = vmatpush.bf16.msra.mxu0 %v2067
    %2508 = vmatpush.bf16.msra.mxu0 %v2043
    %2509 = vmatmul.bf16.gmra.mxu0 %v2219
    %v2510 = vpop.f32.mrf.mxu0
    %v2511 = vadd.f32 %v2190, %v2510
    %v2512 = vpop.f32.mrf.mxu0
    %v2513 = vadd.f32 %v2190, %v2512
    %2514 = vdwg.mxu0
    %2515 = vmatpush.bf16.msra.mxu0 0
    %2516 = vmatpush.bf16.msra.mxu0 0
    %2517 = vmatpush.bf16.msra.mxu0 0
    %2518 = vmatpush.bf16.msra.mxu0 0
    %2519 = vmatpush.bf16.msra.mxu0 0
    %2520 = vmatpush.bf16.msra.mxu0 0
    %2521 = vmatpush.bf16.msra.mxu0 %v2068
    %2522 = vmatpush.bf16.msra.mxu0 %v2044
    %2523 = vmatmul.bf16.gmra.mxu0 %v2219
    %v2524 = vpop.f32.mrf.mxu0
    %v2525 = vadd.f32 %v2191, %v2524
    %v2526 = vpop.f32.mrf.mxu0
    %v2527 = vadd.f32 %v2191, %v2526
    %2528 = vdwg.mxu0
    %2529 = vmatpush.bf16.msra.mxu0 0
    %2530 = vmatpush.bf16.msra.mxu0 0
    %2531 = vmatpush.bf16.msra.mxu0 0
    %2532 = vmatpush.bf16.msra.mxu0 0
    %2533 = vmatpush.bf16.msra.mxu0 0
    %2534 = vmatpush.bf16.msra.mxu0 0
    %2535 = vmatpush.bf16.msra.mxu0 %v2069
    %2536 = vmatpush.bf16.msra.mxu0 %v2045
    %2537 = vmatmul.bf16.gmra.mxu0 %v2219
    %v2538 = vpop.f32.mrf.mxu0
    %v2539 = vadd.f32 %v2192, %v2538
    %v2540 = vpop.f32.mrf.mxu0
    %v2541 = vadd.f32 %v2192, %v2540
    %2542 = vdwg.mxu0
    %2543 = vmatpush.bf16.msra.mxu0 0
    %2544 = vmatpush.bf16.msra.mxu0 0
    %2545 = vmatpush.bf16.msra.mxu0 0
    %2546 = vmatpush.bf16.msra.mxu0 0
    %2547 = vmatpush.bf16.msra.mxu0 0
    %2548 = vmatpush.bf16.msra.mxu0 0
    %2549 = vmatpush.bf16.msra.mxu0 %v2070
    %2550 = vmatpush.bf16.msra.mxu0 %v2046
    %2551 = vmatmul.bf16.gmra.mxu0 %v2219
    %v2552 = vpop.f32.mrf.mxu0
    %v2553 = vadd.f32 %v2193, %v2552
    %v2554 = vpop.f32.mrf.mxu0
    %v2555 = vadd.f32 %v2193, %v2554
    %2556 = vdwg.mxu0
    %v2557 = vmul.f32 %v2231, 0.5
    %v2558 = vmul.f32 %v2245, 0.5
    %v2559 = vmul.f32 %v2259, 0.5
    %v2560 = vmul.f32 %v2273, 0.5
    %v2561 = vmul.f32 %v2287, 0.5
    %v2562 = vmul.f32 %v2301, 0.5
    %v2563 = vmul.f32 %v2315, 0.5
    %v2564 = vmul.f32 %v2329, 0.5
    %v2565 = vmul.f32 %v2343, 0.5
    %v2566 = vmul.f32 %v2357, 0.5
    %v2567 = vmul.f32 %v2371, 0.5
    %v2568 = vmul.f32 %v2385, 0.5
    %v2569 = vmul.f32 %v2399, 0.5
    %v2570 = vmul.f32 %v2413, 0.5
    %v2571 = vmul.f32 %v2427, 0.5
    %v2572 = vmul.f32 %v2441, 0.5
    %v2573 = vmul.f32 %v2455, 0.5
    %v2574 = vmul.f32 %v2469, 0.5
    %v2575 = vmul.f32 %v2483, 0.5
    %v2576 = vmul.f32 %v2497, 0.5
    %v2577 = vmul.f32 %v2511, 0.5
    %v2578 = vmul.f32 %v2525, 0.5
    %v2579 = vmul.f32 %v2539, 0.5
    %v2580 = vmul.f32 %v2553, 0.5
    %v2581 = vmul.f32 %v2233, 0.5
    %v2582 = vmul.f32 %v2247, 0.5
    %v2583 = vmul.f32 %v2261, 0.5
    %v2584 = vmul.f32 %v2275, 0.5
    %v2585 = vmul.f32 %v2289, 0.5
    %v2586 = vmul.f32 %v2303, 0.5
    %v2587 = vmul.f32 %v2317, 0.5
    %v2588 = vmul.f32 %v2331, 0.5
    %v2589 = vmul.f32 %v2345, 0.5
    %v2590 = vmul.f32 %v2359, 0.5
    %v2591 = vmul.f32 %v2373, 0.5
    %v2592 = vmul.f32 %v2387, 0.5
    %v2593 = vmul.f32 %v2401, 0.5
    %v2594 = vmul.f32 %v2415, 0.5
    %v2595 = vmul.f32 %v2429, 0.5
    %v2596 = vmul.f32 %v2443, 0.5
    %v2597 = vmul.f32 %v2457, 0.5
    %v2598 = vmul.f32 %v2471, 0.5
    %v2599 = vmul.f32 %v2485, 0.5
    %v2600 = vmul.f32 %v2499, 0.5
    %v2601 = vmul.f32 %v2513, 0.5
    %v2602 = vmul.f32 %v2527, 0.5
    %v2603 = vmul.f32 %v2541, 0.5
    %v2604 = vmul.f32 %v2555, 0.5
    %v2605 = vmul.f32 %v2231, 0.70710677
    %v2606 = vmul.f32 %v2245, 0.70710677
    %v2607 = vmul.f32 %v2259, 0.70710677
    %v2608 = vmul.f32 %v2273, 0.70710677
    %v2609 = vmul.f32 %v2287, 0.70710677
    %v2610 = vmul.f32 %v2301, 0.70710677
    %v2611 = vmul.f32 %v2315, 0.70710677
    %v2612 = vmul.f32 %v2329, 0.70710677
    %v2613 = vmul.f32 %v2343, 0.70710677
    %v2614 = vmul.f32 %v2357, 0.70710677
    %v2615 = vmul.f32 %v2371, 0.70710677
    %v2616 = vmul.f32 %v2385, 0.70710677
    %v2617 = vmul.f32 %v2399, 0.70710677
    %v2618 = vmul.f32 %v2413, 0.70710677
    %v2619 = vmul.f32 %v2427, 0.70710677
    %v2620 = vmul.f32 %v2441, 0.70710677
    %v2621 = vmul.f32 %v2455, 0.70710677
    %v2622 = vmul.f32 %v2469, 0.70710677
    %v2623 = vmul.f32 %v2483, 0.70710677
    %v2624 = vmul.f32 %v2497, 0.70710677
    %v2625 = vmul.f32 %v2511, 0.70710677
    %v2626 = vmul.f32 %v2525, 0.70710677
    %v2627 = vmul.f32 %v2539, 0.70710677
    %v2628 = vmul.f32 %v2553, 0.70710677
    %v2629 = vmul.f32 %v2233, 0.70710677
    %v2630 = vmul.f32 %v2247, 0.70710677
    %v2631 = vmul.f32 %v2261, 0.70710677
    %v2632 = vmul.f32 %v2275, 0.70710677
    %v2633 = vmul.f32 %v2289, 0.70710677
    %v2634 = vmul.f32 %v2303, 0.70710677
    %v2635 = vmul.f32 %v2317, 0.70710677
    %v2636 = vmul.f32 %v2331, 0.70710677
    %v2637 = vmul.f32 %v2345, 0.70710677
    %v2638 = vmul.f32 %v2359, 0.70710677
    %v2639 = vmul.f32 %v2373, 0.70710677
    %v2640 = vmul.f32 %v2387, 0.70710677
    %v2641 = vmul.f32 %v2401, 0.70710677
    %v2642 = vmul.f32 %v2415, 0.70710677
    %v2643 = vmul.f32 %v2429, 0.70710677
    %v2644 = vmul.f32 %v2443, 0.70710677
    %v2645 = vmul.f32 %v2457, 0.70710677
    %v2646 = vmul.f32 %v2471, 0.70710677
    %v2647 = vmul.f32 %v2485, 0.70710677
    %v2648 = vmul.f32 %v2499, 0.70710677
    %v2649 = vmul.f32 %v2513, 0.70710677
    %v2650 = vmul.f32 %v2527, 0.70710677
    %v2651 = vmul.f32 %v2541, 0.70710677
    %v2652 = vmul.f32 %v2555, 0.70710677
    %v2653 = vmul.f32 %v2605, %v2605
    %v2654 = vmin.f32 16.0, %v2653
    %v2655 = vmul.f32 %v2654, 2.1237322e-06
    %v2656 = vadd.f32 %v2655, 0.00028619796
    %v2657 = vmul.f32 %v2654, %v2656
    %v2658 = vadd.f32 %v2657, 0.0036580483
    %v2659 = vmul.f32 %v2654, %v2658
    %v2660 = vadd.f32 %v2659, 0.05243302
    %v2661 = vmul.f32 %v2654, %v2660
    %v2662 = vadd.f32 %v2661, 0.18741608
    %v2663 = vmul.f32 %v2654, %v2662
    %v2664 = vadd.f32 %v2663, 1.1283791
    %v2665 = vmul.f32 %v2605, %v2664
    %v2666 = vmul.f32 %v2654, 3.8918573e-05
    %v2667 = vadd.f32 %v2666, 0.001143296
    %v2668 = vmul.f32 %v2654, %v2667
    %v2669 = vadd.f32 %v2668, 0.014752088
    %v2670 = vmul.f32 %v2654, %v2669
    %v2671 = vadd.f32 %v2670, 0.112945676
    %v2672 = vmul.f32 %v2654, %v2671
    %v2673 = vadd.f32 %v2672, 0.4994258
    %v2674 = vmul.f32 %v2654, %v2673
    %v2675 = vadd.f32 %v2674, 1.0
    %v2676 = vrcp.pop %v2675
    %v2677 = vmul.f32 %v2675, %v2676
    %v2678 = vsub.f32 1.0, %v2677
    %v2679 = vmul.f32 %v2676, %v2678
    %v2680 = vadd.f32 %v2676, %v2679
    %vm2681 = vweird.f32 %v2675
    %vm2682 = vweird.f32 %v2676
    %vm2683 = vmor %vm2681, %vm2682
    %v2684 = vsel %vm2683, %v2676, %v2680
    %v2685 = vand.u32 2147483647, %v2675
    %vm2686 = vcmp.eq.f32.partialorder %v2685, 8.507059e+37
    %v2687 = vand.u32 %v2675, 2147483648
    %v2688 = vor.u32 1.1754944e-38, %v2687
    %v2689 = vsel %vm2686, %v2688, %v2684
    %v2690 = vmul.f32 %v2665, %v2689
    %v2691 = vmin.f32 %v2690, 1.0
    %v2692 = vmax.f32 %v2691, -1.0
    %v2693 = vmul.f32 %v2606, %v2606
    %v2694 = vmin.f32 16.0, %v2693
    %v2695 = vmul.f32 %v2694, 2.1237322e-06
    %v2696 = vadd.f32 %v2695, 0.00028619796
    %v2697 = vmul.f32 %v2694, %v2696
    %v2698 = vadd.f32 %v2697, 0.0036580483
    %v2699 = vmul.f32 %v2694, %v2698
    %v2700 = vadd.f32 %v2699, 0.05243302
    %v2701 = vmul.f32 %v2694, %v2700
    %v2702 = vadd.f32 %v2701, 0.18741608
    %v2703 = vmul.f32 %v2694, %v2702
    %v2704 = vadd.f32 %v2703, 1.1283791
    %v2705 = vmul.f32 %v2606, %v2704
    %v2706 = vmul.f32 %v2694, 3.8918573e-05
    %v2707 = vadd.f32 %v2706, 0.001143296
    %v2708 = vmul.f32 %v2694, %v2707
    %v2709 = vadd.f32 %v2708, 0.014752088
    %v2710 = vmul.f32 %v2694, %v2709
    %v2711 = vadd.f32 %v2710, 0.112945676
    %v2712 = vmul.f32 %v2694, %v2711
    %v2713 = vadd.f32 %v2712, 0.4994258
    %v2714 = vmul.f32 %v2694, %v2713
    %v2715 = vadd.f32 %v2714, 1.0
    %v2716 = vrcp.pop %v2715
    %v2717 = vmul.f32 %v2715, %v2716
    %v2718 = vsub.f32 1.0, %v2717
    %v2719 = vmul.f32 %v2716, %v2718
    %v2720 = vadd.f32 %v2716, %v2719
    %vm2721 = vweird.f32 %v2715
    %vm2722 = vweird.f32 %v2716
    %vm2723 = vmor %vm2721, %vm2722
    %v2724 = vsel %vm2723, %v2716, %v2720
    %v2725 = vand.u32 2147483647, %v2715
    %vm2726 = vcmp.eq.f32.partialorder %v2725, 8.507059e+37
    %v2727 = vand.u32 %v2715, 2147483648
    %v2728 = vor.u32 1.1754944e-38, %v2727
    %v2729 = vsel %vm2726, %v2728, %v2724
    %v2730 = vmul.f32 %v2705, %v2729
    %v2731 = vmin.f32 %v2730, 1.0
    %v2732 = vmax.f32 %v2731, -1.0
    %v2733 = vmul.f32 %v2607, %v2607
    %v2734 = vmin.f32 16.0, %v2733
    %v2735 = vmul.f32 %v2734, 2.1237322e-06
    %v2736 = vadd.f32 %v2735, 0.00028619796
    %v2737 = vmul.f32 %v2734, %v2736
    %v2738 = vadd.f32 %v2737, 0.0036580483
    %v2739 = vmul.f32 %v2734, %v2738
    %v2740 = vadd.f32 %v2739, 0.05243302
    %v2741 = vmul.f32 %v2734, %v2740
    %v2742 = vadd.f32 %v2741, 0.18741608
    %v2743 = vmul.f32 %v2734, %v2742
    %v2744 = vadd.f32 %v2743, 1.1283791
    %v2745 = vmul.f32 %v2607, %v2744
    %v2746 = vmul.f32 %v2734, 3.8918573e-05
    %v2747 = vadd.f32 %v2746, 0.001143296
    %v2748 = vmul.f32 %v2734, %v2747
    %v2749 = vadd.f32 %v2748, 0.014752088
    %v2750 = vmul.f32 %v2734, %v2749
    %v2751 = vadd.f32 %v2750, 0.112945676
    %v2752 = vmul.f32 %v2734, %v2751
    %v2753 = vadd.f32 %v2752, 0.4994258
    %v2754 = vmul.f32 %v2734, %v2753
    %v2755 = vadd.f32 %v2754, 1.0
    %v2756 = vrcp.pop %v2755
    %v2757 = vmul.f32 %v2755, %v2756
    %v2758 = vsub.f32 1.0, %v2757
    %v2759 = vmul.f32 %v2756, %v2758
    %v2760 = vadd.f32 %v2756, %v2759
    %vm2761 = vweird.f32 %v2755
    %vm2762 = vweird.f32 %v2756
    %vm2763 = vmor %vm2761, %vm2762
    %v2764 = vsel %vm2763, %v2756, %v2760
    %v2765 = vand.u32 2147483647, %v2755
    %vm2766 = vcmp.eq.f32.partialorder %v2765, 8.507059e+37
    %v2767 = vand.u32 %v2755, 2147483648
    %v2768 = vor.u32 1.1754944e-38, %v2767
    %v2769 = vsel %vm2766, %v2768, %v2764
    %v2770 = vmul.f32 %v2745, %v2769
    %v2771 = vmin.f32 %v2770, 1.0
    %v2772 = vmax.f32 %v2771, -1.0
    %v2773 = vmul.f32 %v2608, %v2608
    %v2774 = vmin.f32 16.0, %v2773
    %v2775 = vmul.f32 %v2774, 2.1237322e-06
    %v2776 = vadd.f32 %v2775, 0.00028619796
    %v2777 = vmul.f32 %v2774, %v2776
    %v2778 = vadd.f32 %v2777, 0.0036580483
    %v2779 = vmul.f32 %v2774, %v2778
    %v2780 = vadd.f32 %v2779, 0.05243302
    %v2781 = vmul.f32 %v2774, %v2780
    %v2782 = vadd.f32 %v2781, 0.18741608
    %v2783 = vmul.f32 %v2774, %v2782
    %v2784 = vadd.f32 %v2783, 1.1283791
    %v2785 = vmul.f32 %v2608, %v2784
    %v2786 = vmul.f32 %v2774, 3.8918573e-05
    %v2787 = vadd.f32 %v2786, 0.001143296
    %v2788 = vmul.f32 %v2774, %v2787
    %v2789 = vadd.f32 %v2788, 0.014752088
    %v2790 = vmul.f32 %v2774, %v2789
    %v2791 = vadd.f32 %v2790, 0.112945676
    %v2792 = vmul.f32 %v2774, %v2791
    %v2793 = vadd.f32 %v2792, 0.4994258
    %v2794 = vmul.f32 %v2774, %v2793
    %v2795 = vadd.f32 %v2794, 1.0
    %v2796 = vrcp.pop %v2795
    %v2797 = vmul.f32 %v2795, %v2796
    %v2798 = vsub.f32 1.0, %v2797
    %v2799 = vmul.f32 %v2796, %v2798
    %v2800 = vadd.f32 %v2796, %v2799
    %vm2801 = vweird.f32 %v2795
    %vm2802 = vweird.f32 %v2796
    %vm2803 = vmor %vm2801, %vm2802
    %v2804 = vsel %vm2803, %v2796, %v2800
    %v2805 = vand.u32 2147483647, %v2795
    %vm2806 = vcmp.eq.f32.partialorder %v2805, 8.507059e+37
    %v2807 = vand.u32 %v2795, 2147483648
    %v2808 = vor.u32 1.1754944e-38, %v2807
    %v2809 = vsel %vm2806, %v2808, %v2804
    %v2810 = vmul.f32 %v2785, %v2809
    %v2811 = vmin.f32 %v2810, 1.0
    %v2812 = vmax.f32 %v2811, -1.0
    %v2813 = vmul.f32 %v2609, %v2609
    %v2814 = vmin.f32 16.0, %v2813
    %v2815 = vmul.f32 %v2814, 2.1237322e-06
    %v2816 = vadd.f32 %v2815, 0.00028619796
    %v2817 = vmul.f32 %v2814, %v2816
    %v2818 = vadd.f32 %v2817, 0.0036580483
    %v2819 = vmul.f32 %v2814, %v2818
    %v2820 = vadd.f32 %v2819, 0.05243302
    %v2821 = vmul.f32 %v2814, %v2820
    %v2822 = vadd.f32 %v2821, 0.18741608
    %v2823 = vmul.f32 %v2814, %v2822
    %v2824 = vadd.f32 %v2823, 1.1283791
    %v2825 = vmul.f32 %v2609, %v2824
    %v2826 = vmul.f32 %v2814, 3.8918573e-05
    %v2827 = vadd.f32 %v2826, 0.001143296
    %v2828 = vmul.f32 %v2814, %v2827
    %v2829 = vadd.f32 %v2828, 0.014752088
    %v2830 = vmul.f32 %v2814, %v2829
    %v2831 = vadd.f32 %v2830, 0.112945676
    %v2832 = vmul.f32 %v2814, %v2831
    %v2833 = vadd.f32 %v2832, 0.4994258
    %v2834 = vmul.f32 %v2814, %v2833
    %v2835 = vadd.f32 %v2834, 1.0
    %v2836 = vrcp.pop %v2835
    %v2837 = vmul.f32 %v2835, %v2836
    %v2838 = vsub.f32 1.0, %v2837
    %v2839 = vmul.f32 %v2836, %v2838
    %v2840 = vadd.f32 %v2836, %v2839
    %vm2841 = vweird.f32 %v2835
    %vm2842 = vweird.f32 %v2836
    %vm2843 = vmor %vm2841, %vm2842
    %v2844 = vsel %vm2843, %v2836, %v2840
    %v2845 = vand.u32 2147483647, %v2835
    %vm2846 = vcmp.eq.f32.partialorder %v2845, 8.507059e+37
    %v2847 = vand.u32 %v2835, 2147483648
    %v2848 = vor.u32 1.1754944e-38, %v2847
    %v2849 = vsel %vm2846, %v2848, %v2844
    %v2850 = vmul.f32 %v2825, %v2849
    %v2851 = vmin.f32 %v2850, 1.0
    %v2852 = vmax.f32 %v2851, -1.0
    %v2853 = vmul.f32 %v2610, %v2610
    %v2854 = vmin.f32 16.0, %v2853
    %v2855 = vmul.f32 %v2854, 2.1237322e-06
    %v2856 = vadd.f32 %v2855, 0.00028619796
    %v2857 = vmul.f32 %v2854, %v2856
    %v2858 = vadd.f32 %v2857, 0.0036580483
    %v2859 = vmul.f32 %v2854, %v2858
    %v2860 = vadd.f32 %v2859, 0.05243302
    %v2861 = vmul.f32 %v2854, %v2860
    %v2862 = vadd.f32 %v2861, 0.18741608
    %v2863 = vmul.f32 %v2854, %v2862
    %v2864 = vadd.f32 %v2863, 1.1283791
    %v2865 = vmul.f32 %v2610, %v2864
    %v2866 = vmul.f32 %v2854, 3.8918573e-05
    %v2867 = vadd.f32 %v2866, 0.001143296
    %v2868 = vmul.f32 %v2854, %v2867
    %v2869 = vadd.f32 %v2868, 0.014752088
    %v2870 = vmul.f32 %v2854, %v2869
    %v2871 = vadd.f32 %v2870, 0.112945676
    %v2872 = vmul.f32 %v2854, %v2871
    %v2873 = vadd.f32 %v2872, 0.4994258
    %v2874 = vmul.f32 %v2854, %v2873
    %v2875 = vadd.f32 %v2874, 1.0
    %v2876 = vrcp.pop %v2875
    %v2877 = vmul.f32 %v2875, %v2876
    %v2878 = vsub.f32 1.0, %v2877
    %v2879 = vmul.f32 %v2876, %v2878
    %v2880 = vadd.f32 %v2876, %v2879
    %vm2881 = vweird.f32 %v2875
    %vm2882 = vweird.f32 %v2876
    %vm2883 = vmor %vm2881, %vm2882
    %v2884 = vsel %vm2883, %v2876, %v2880
    %v2885 = vand.u32 2147483647, %v2875
    %vm2886 = vcmp.eq.f32.partialorder %v2885, 8.507059e+37
    %v2887 = vand.u32 %v2875, 2147483648
    %v2888 = vor.u32 1.1754944e-38, %v2887
    %v2889 = vsel %vm2886, %v2888, %v2884
    %v2890 = vmul.f32 %v2865, %v2889
    %v2891 = vmin.f32 %v2890, 1.0
    %v2892 = vmax.f32 %v2891, -1.0
    %v2893 = vmul.f32 %v2611, %v2611
    %v2894 = vmin.f32 16.0, %v2893
    %v2895 = vmul.f32 %v2894, 2.1237322e-06
    %v2896 = vadd.f32 %v2895, 0.00028619796
    %v2897 = vmul.f32 %v2894, %v2896
    %v2898 = vadd.f32 %v2897, 0.0036580483
    %v2899 = vmul.f32 %v2894, %v2898
    %v2900 = vadd.f32 %v2899, 0.05243302
    %v2901 = vmul.f32 %v2894, %v2900
    %v2902 = vadd.f32 %v2901, 0.18741608
    %v2903 = vmul.f32 %v2894, %v2902
    %v2904 = vadd.f32 %v2903, 1.1283791
    %v2905 = vmul.f32 %v2611, %v2904
    %v2906 = vmul.f32 %v2894, 3.8918573e-05
    %v2907 = vadd.f32 %v2906, 0.001143296
    %v2908 = vmul.f32 %v2894, %v2907
    %v2909 = vadd.f32 %v2908, 0.014752088
    %v2910 = vmul.f32 %v2894, %v2909
    %v2911 = vadd.f32 %v2910, 0.112945676
    %v2912 = vmul.f32 %v2894, %v2911
    %v2913 = vadd.f32 %v2912, 0.4994258
    %v2914 = vmul.f32 %v2894, %v2913
    %v2915 = vadd.f32 %v2914, 1.0
    %v2916 = vrcp.pop %v2915
    %v2917 = vmul.f32 %v2915, %v2916
    %v2918 = vsub.f32 1.0, %v2917
    %v2919 = vmul.f32 %v2916, %v2918
    %v2920 = vadd.f32 %v2916, %v2919
    %vm2921 = vweird.f32 %v2915
    %vm2922 = vweird.f32 %v2916
    %vm2923 = vmor %vm2921, %vm2922
    %v2924 = vsel %vm2923, %v2916, %v2920
    %v2925 = vand.u32 2147483647, %v2915
    %vm2926 = vcmp.eq.f32.partialorder %v2925, 8.507059e+37
    %v2927 = vand.u32 %v2915, 2147483648
    %v2928 = vor.u32 1.1754944e-38, %v2927
    %v2929 = vsel %vm2926, %v2928, %v2924
    %v2930 = vmul.f32 %v2905, %v2929
    %v2931 = vmin.f32 %v2930, 1.0
    %v2932 = vmax.f32 %v2931, -1.0
    %v2933 = vmul.f32 %v2612, %v2612
    %v2934 = vmin.f32 16.0, %v2933
    %v2935 = vmul.f32 %v2934, 2.1237322e-06
    %v2936 = vadd.f32 %v2935, 0.00028619796
    %v2937 = vmul.f32 %v2934, %v2936
    %v2938 = vadd.f32 %v2937, 0.0036580483
    %v2939 = vmul.f32 %v2934, %v2938
    %v2940 = vadd.f32 %v2939, 0.05243302
    %v2941 = vmul.f32 %v2934, %v2940
    %v2942 = vadd.f32 %v2941, 0.18741608
    %v2943 = vmul.f32 %v2934, %v2942
    %v2944 = vadd.f32 %v2943, 1.1283791
    %v2945 = vmul.f32 %v2612, %v2944
    %v2946 = vmul.f32 %v2934, 3.8918573e-05
    %v2947 = vadd.f32 %v2946, 0.001143296
    %v2948 = vmul.f32 %v2934, %v2947
    %v2949 = vadd.f32 %v2948, 0.014752088
    %v2950 = vmul.f32 %v2934, %v2949
    %v2951 = vadd.f32 %v2950, 0.112945676
    %v2952 = vmul.f32 %v2934, %v2951
    %v2953 = vadd.f32 %v2952, 0.4994258
    %v2954 = vmul.f32 %v2934, %v2953
    %v2955 = vadd.f32 %v2954, 1.0
    %v2956 = vrcp.pop %v2955
    %v2957 = vmul.f32 %v2955, %v2956
    %v2958 = vsub.f32 1.0, %v2957
    %v2959 = vmul.f32 %v2956, %v2958
    %v2960 = vadd.f32 %v2956, %v2959
    %vm2961 = vweird.f32 %v2955
    %vm2962 = vweird.f32 %v2956
    %vm2963 = vmor %vm2961, %vm2962
    %v2964 = vsel %vm2963, %v2956, %v2960
    %v2965 = vand.u32 2147483647, %v2955
    %vm2966 = vcmp.eq.f32.partialorder %v2965, 8.507059e+37
    %v2967 = vand.u32 %v2955, 2147483648
    %v2968 = vor.u32 1.1754944e-38, %v2967
    %v2969 = vsel %vm2966, %v2968, %v2964
    %v2970 = vmul.f32 %v2945, %v2969
    %v2971 = vmin.f32 %v2970, 1.0
    %v2972 = vmax.f32 %v2971, -1.0
    %v2973 = vmul.f32 %v2613, %v2613
    %v2974 = vmin.f32 16.0, %v2973
    %v2975 = vmul.f32 %v2974, 2.1237322e-06
    %v2976 = vadd.f32 %v2975, 0.00028619796
    %v2977 = vmul.f32 %v2974, %v2976
    %v2978 = vadd.f32 %v2977, 0.0036580483
    %v2979 = vmul.f32 %v2974, %v2978
    %v2980 = vadd.f32 %v2979, 0.05243302
    %v2981 = vmul.f32 %v2974, %v2980
    %v2982 = vadd.f32 %v2981, 0.18741608
    %v2983 = vmul.f32 %v2974, %v2982
    %v2984 = vadd.f32 %v2983, 1.1283791
    %v2985 = vmul.f32 %v2613, %v2984
    %v2986 = vmul.f32 %v2974, 3.8918573e-05
    %v2987 = vadd.f32 %v2986, 0.001143296
    %v2988 = vmul.f32 %v2974, %v2987
    %v2989 = vadd.f32 %v2988, 0.014752088
    %v2990 = vmul.f32 %v2974, %v2989
    %v2991 = vadd.f32 %v2990, 0.112945676
    %v2992 = vmul.f32 %v2974, %v2991
    %v2993 = vadd.f32 %v2992, 0.4994258
    %v2994 = vmul.f32 %v2974, %v2993
    %v2995 = vadd.f32 %v2994, 1.0
    %v2996 = vrcp.pop %v2995
    %v2997 = vmul.f32 %v2995, %v2996
    %v2998 = vsub.f32 1.0, %v2997
    %v2999 = vmul.f32 %v2996, %v2998
    %v3000 = vadd.f32 %v2996, %v2999
    %vm3001 = vweird.f32 %v2995
    %vm3002 = vweird.f32 %v2996
    %vm3003 = vmor %vm3001, %vm3002
    %v3004 = vsel %vm3003, %v2996, %v3000
    %v3005 = vand.u32 2147483647, %v2995
    %vm3006 = vcmp.eq.f32.partialorder %v3005, 8.507059e+37
    %v3007 = vand.u32 %v2995, 2147483648
    %v3008 = vor.u32 1.1754944e-38, %v3007
    %v3009 = vsel %vm3006, %v3008, %v3004
    %v3010 = vmul.f32 %v2985, %v3009
    %v3011 = vmin.f32 %v3010, 1.0
    %v3012 = vmax.f32 %v3011, -1.0
    %v3013 = vmul.f32 %v2614, %v2614
    %v3014 = vmin.f32 16.0, %v3013
    %v3015 = vmul.f32 %v3014, 2.1237322e-06
    %v3016 = vadd.f32 %v3015, 0.00028619796
    %v3017 = vmul.f32 %v3014, %v3016
    %v3018 = vadd.f32 %v3017, 0.0036580483
    %v3019 = vmul.f32 %v3014, %v3018
    %v3020 = vadd.f32 %v3019, 0.05243302
    %v3021 = vmul.f32 %v3014, %v3020
    %v3022 = vadd.f32 %v3021, 0.18741608
    %v3023 = vmul.f32 %v3014, %v3022
    %v3024 = vadd.f32 %v3023, 1.1283791
    %v3025 = vmul.f32 %v2614, %v3024
    %v3026 = vmul.f32 %v3014, 3.8918573e-05
    %v3027 = vadd.f32 %v3026, 0.001143296
    %v3028 = vmul.f32 %v3014, %v3027
    %v3029 = vadd.f32 %v3028, 0.014752088
    %v3030 = vmul.f32 %v3014, %v3029
    %v3031 = vadd.f32 %v3030, 0.112945676
    %v3032 = vmul.f32 %v3014, %v3031
    %v3033 = vadd.f32 %v3032, 0.4994258
    %v3034 = vmul.f32 %v3014, %v3033
    %v3035 = vadd.f32 %v3034, 1.0
    %v3036 = vrcp.pop %v3035
    %v3037 = vmul.f32 %v3035, %v3036
    %v3038 = vsub.f32 1.0, %v3037
    %v3039 = vmul.f32 %v3036, %v3038
    %v3040 = vadd.f32 %v3036, %v3039
    %vm3041 = vweird.f32 %v3035
    %vm3042 = vweird.f32 %v3036
    %vm3043 = vmor %vm3041, %vm3042
    %v3044 = vsel %vm3043, %v3036, %v3040
    %v3045 = vand.u32 2147483647, %v3035
    %vm3046 = vcmp.eq.f32.partialorder %v3045, 8.507059e+37
    %v3047 = vand.u32 %v3035, 2147483648
    %v3048 = vor.u32 1.1754944e-38, %v3047
    %v3049 = vsel %vm3046, %v3048, %v3044
    %v3050 = vmul.f32 %v3025, %v3049
    %v3051 = vmin.f32 %v3050, 1.0
    %v3052 = vmax.f32 %v3051, -1.0
    %v3053 = vmul.f32 %v2615, %v2615
    %v3054 = vmin.f32 16.0, %v3053
    %v3055 = vmul.f32 %v3054, 2.1237322e-06
    %v3056 = vadd.f32 %v3055, 0.00028619796
    %v3057 = vmul.f32 %v3054, %v3056
    %v3058 = vadd.f32 %v3057, 0.0036580483
    %v3059 = vmul.f32 %v3054, %v3058
    %v3060 = vadd.f32 %v3059, 0.05243302
    %v3061 = vmul.f32 %v3054, %v3060
    %v3062 = vadd.f32 %v3061, 0.18741608
    %v3063 = vmul.f32 %v3054, %v3062
    %v3064 = vadd.f32 %v3063, 1.1283791
    %v3065 = vmul.f32 %v2615, %v3064
    %v3066 = vmul.f32 %v3054, 3.8918573e-05
    %v3067 = vadd.f32 %v3066, 0.001143296
    %v3068 = vmul.f32 %v3054, %v3067
    %v3069 = vadd.f32 %v3068, 0.014752088
    %v3070 = vmul.f32 %v3054, %v3069
    %v3071 = vadd.f32 %v3070, 0.112945676
    %v3072 = vmul.f32 %v3054, %v3071
    %v3073 = vadd.f32 %v3072, 0.4994258
    %v3074 = vmul.f32 %v3054, %v3073
    %v3075 = vadd.f32 %v3074, 1.0
    %v3076 = vrcp.pop %v3075
    %v3077 = vmul.f32 %v3075, %v3076
    %v3078 = vsub.f32 1.0, %v3077
    %v3079 = vmul.f32 %v3076, %v3078
    %v3080 = vadd.f32 %v3076, %v3079
    %vm3081 = vweird.f32 %v3075
    %vm3082 = vweird.f32 %v3076
    %vm3083 = vmor %vm3081, %vm3082
    %v3084 = vsel %vm3083, %v3076, %v3080
    %v3085 = vand.u32 2147483647, %v3075
    %vm3086 = vcmp.eq.f32.partialorder %v3085, 8.507059e+37
    %v3087 = vand.u32 %v3075, 2147483648
    %v3088 = vor.u32 1.1754944e-38, %v3087
    %v3089 = vsel %vm3086, %v3088, %v3084
    %v3090 = vmul.f32 %v3065, %v3089
    %v3091 = vmin.f32 %v3090, 1.0
    %v3092 = vmax.f32 %v3091, -1.0
    %v3093 = vmul.f32 %v2616, %v2616
    %v3094 = vmin.f32 16.0, %v3093
    %v3095 = vmul.f32 %v3094, 2.1237322e-06
    %v3096 = vadd.f32 %v3095, 0.00028619796
    %v3097 = vmul.f32 %v3094, %v3096
    %v3098 = vadd.f32 %v3097, 0.0036580483
    %v3099 = vmul.f32 %v3094, %v3098
    %v3100 = vadd.f32 %v3099, 0.05243302
    %v3101 = vmul.f32 %v3094, %v3100
    %v3102 = vadd.f32 %v3101, 0.18741608
    %v3103 = vmul.f32 %v3094, %v3102
    %v3104 = vadd.f32 %v3103, 1.1283791
    %v3105 = vmul.f32 %v2616, %v3104
    %v3106 = vmul.f32 %v3094, 3.8918573e-05
    %v3107 = vadd.f32 %v3106, 0.001143296
    %v3108 = vmul.f32 %v3094, %v3107
    %v3109 = vadd.f32 %v3108, 0.014752088
    %v3110 = vmul.f32 %v3094, %v3109
    %v3111 = vadd.f32 %v3110, 0.112945676
    %v3112 = vmul.f32 %v3094, %v3111
    %v3113 = vadd.f32 %v3112, 0.4994258
    %v3114 = vmul.f32 %v3094, %v3113
    %v3115 = vadd.f32 %v3114, 1.0
    %v3116 = vrcp.pop %v3115
    %v3117 = vmul.f32 %v3115, %v3116
    %v3118 = vsub.f32 1.0, %v3117
    %v3119 = vmul.f32 %v3116, %v3118
    %v3120 = vadd.f32 %v3116, %v3119
    %vm3121 = vweird.f32 %v3115
    %vm3122 = vweird.f32 %v3116
    %vm3123 = vmor %vm3121, %vm3122
    %v3124 = vsel %vm3123, %v3116, %v3120
    %v3125 = vand.u32 2147483647, %v3115
    %vm3126 = vcmp.eq.f32.partialorder %v3125, 8.507059e+37
    %v3127 = vand.u32 %v3115, 2147483648
    %v3128 = vor.u32 1.1754944e-38, %v3127
    %v3129 = vsel %vm3126, %v3128, %v3124
    %v3130 = vmul.f32 %v3105, %v3129
    %v3131 = vmin.f32 %v3130, 1.0
    %v3132 = vmax.f32 %v3131, -1.0
    %v3133 = vmul.f32 %v2617, %v2617
    %v3134 = vmin.f32 16.0, %v3133
    %v3135 = vmul.f32 %v3134, 2.1237322e-06
    %v3136 = vadd.f32 %v3135, 0.00028619796
    %v3137 = vmul.f32 %v3134, %v3136
    %v3138 = vadd.f32 %v3137, 0.0036580483
    %v3139 = vmul.f32 %v3134, %v3138
    %v3140 = vadd.f32 %v3139, 0.05243302
    %v3141 = vmul.f32 %v3134, %v3140
    %v3142 = vadd.f32 %v3141, 0.18741608
    %v3143 = vmul.f32 %v3134, %v3142
    %v3144 = vadd.f32 %v3143, 1.1283791
    %v3145 = vmul.f32 %v2617, %v3144
    %v3146 = vmul.f32 %v3134, 3.8918573e-05
    %v3147 = vadd.f32 %v3146, 0.001143296
    %v3148 = vmul.f32 %v3134, %v3147
    %v3149 = vadd.f32 %v3148, 0.014752088
    %v3150 = vmul.f32 %v3134, %v3149
    %v3151 = vadd.f32 %v3150, 0.112945676
    %v3152 = vmul.f32 %v3134, %v3151
    %v3153 = vadd.f32 %v3152, 0.4994258
    %v3154 = vmul.f32 %v3134, %v3153
    %v3155 = vadd.f32 %v3154, 1.0
    %v3156 = vrcp.pop %v3155
    %v3157 = vmul.f32 %v3155, %v3156
    %v3158 = vsub.f32 1.0, %v3157
    %v3159 = vmul.f32 %v3156, %v3158
    %v3160 = vadd.f32 %v3156, %v3159
    %vm3161 = vweird.f32 %v3155
    %vm3162 = vweird.f32 %v3156
    %vm3163 = vmor %vm3161, %vm3162
    %v3164 = vsel %vm3163, %v3156, %v3160
    %v3165 = vand.u32 2147483647, %v3155
    %vm3166 = vcmp.eq.f32.partialorder %v3165, 8.507059e+37
    %v3167 = vand.u32 %v3155, 2147483648
    %v3168 = vor.u32 1.1754944e-38, %v3167
    %v3169 = vsel %vm3166, %v3168, %v3164
    %v3170 = vmul.f32 %v3145, %v3169
    %v3171 = vmin.f32 %v3170, 1.0
    %v3172 = vmax.f32 %v3171, -1.0
    %v3173 = vmul.f32 %v2618, %v2618
    %v3174 = vmin.f32 16.0, %v3173
    %v3175 = vmul.f32 %v3174, 2.1237322e-06
    %v3176 = vadd.f32 %v3175, 0.00028619796
    %v3177 = vmul.f32 %v3174, %v3176
    %v3178 = vadd.f32 %v3177, 0.0036580483
    %v3179 = vmul.f32 %v3174, %v3178
    %v3180 = vadd.f32 %v3179, 0.05243302
    %v3181 = vmul.f32 %v3174, %v3180
    %v3182 = vadd.f32 %v3181, 0.18741608
    %v3183 = vmul.f32 %v3174, %v3182
    %v3184 = vadd.f32 %v3183, 1.1283791
    %v3185 = vmul.f32 %v2618, %v3184
    %v3186 = vmul.f32 %v3174, 3.8918573e-05
    %v3187 = vadd.f32 %v3186, 0.001143296
    %v3188 = vmul.f32 %v3174, %v3187
    %v3189 = vadd.f32 %v3188, 0.014752088
    %v3190 = vmul.f32 %v3174, %v3189
    %v3191 = vadd.f32 %v3190, 0.112945676
    %v3192 = vmul.f32 %v3174, %v3191
    %v3193 = vadd.f32 %v3192, 0.4994258
    %v3194 = vmul.f32 %v3174, %v3193
    %v3195 = vadd.f32 %v3194, 1.0
    %v3196 = vrcp.pop %v3195
    %v3197 = vmul.f32 %v3195, %v3196
    %v3198 = vsub.f32 1.0, %v3197
    %v3199 = vmul.f32 %v3196, %v3198
    %v3200 = vadd.f32 %v3196, %v3199
    %vm3201 = vweird.f32 %v3195
    %vm3202 = vweird.f32 %v3196
    %vm3203 = vmor %vm3201, %vm3202
    %v3204 = vsel %vm3203, %v3196, %v3200
    %v3205 = vand.u32 2147483647, %v3195
    %vm3206 = vcmp.eq.f32.partialorder %v3205, 8.507059e+37
    %v3207 = vand.u32 %v3195, 2147483648
    %v3208 = vor.u32 1.1754944e-38, %v3207
    %v3209 = vsel %vm3206, %v3208, %v3204
    %v3210 = vmul.f32 %v3185, %v3209
    %v3211 = vmin.f32 %v3210, 1.0
    %v3212 = vmax.f32 %v3211, -1.0
    %v3213 = vmul.f32 %v2619, %v2619
    %v3214 = vmin.f32 16.0, %v3213
    %v3215 = vmul.f32 %v3214, 2.1237322e-06
    %v3216 = vadd.f32 %v3215, 0.00028619796
    %v3217 = vmul.f32 %v3214, %v3216
    %v3218 = vadd.f32 %v3217, 0.0036580483
    %v3219 = vmul.f32 %v3214, %v3218
    %v3220 = vadd.f32 %v3219, 0.05243302
    %v3221 = vmul.f32 %v3214, %v3220
    %v3222 = vadd.f32 %v3221, 0.18741608
    %v3223 = vmul.f32 %v3214, %v3222
    %v3224 = vadd.f32 %v3223, 1.1283791
    %v3225 = vmul.f32 %v2619, %v3224
    %v3226 = vmul.f32 %v3214, 3.8918573e-05
    %v3227 = vadd.f32 %v3226, 0.001143296
    %v3228 = vmul.f32 %v3214, %v3227
    %v3229 = vadd.f32 %v3228, 0.014752088
    %v3230 = vmul.f32 %v3214, %v3229
    %v3231 = vadd.f32 %v3230, 0.112945676
    %v3232 = vmul.f32 %v3214, %v3231
    %v3233 = vadd.f32 %v3232, 0.4994258
    %v3234 = vmul.f32 %v3214, %v3233
    %v3235 = vadd.f32 %v3234, 1.0
    %v3236 = vrcp.pop %v3235
    %v3237 = vmul.f32 %v3235, %v3236
    %v3238 = vsub.f32 1.0, %v3237
    %v3239 = vmul.f32 %v3236, %v3238
    %v3240 = vadd.f32 %v3236, %v3239
    %vm3241 = vweird.f32 %v3235
    %vm3242 = vweird.f32 %v3236
    %vm3243 = vmor %vm3241, %vm3242
    %v3244 = vsel %vm3243, %v3236, %v3240
    %v3245 = vand.u32 2147483647, %v3235
    %vm3246 = vcmp.eq.f32.partialorder %v3245, 8.507059e+37
    %v3247 = vand.u32 %v3235, 2147483648
    %v3248 = vor.u32 1.1754944e-38, %v3247
    %v3249 = vsel %vm3246, %v3248, %v3244
    %v3250 = vmul.f32 %v3225, %v3249
    %v3251 = vmin.f32 %v3250, 1.0
    %v3252 = vmax.f32 %v3251, -1.0
    %v3253 = vmul.f32 %v2620, %v2620
    %v3254 = vmin.f32 16.0, %v3253
    %v3255 = vmul.f32 %v3254, 2.1237322e-06
    %v3256 = vadd.f32 %v3255, 0.00028619796
    %v3257 = vmul.f32 %v3254, %v3256
    %v3258 = vadd.f32 %v3257, 0.0036580483
    %v3259 = vmul.f32 %v3254, %v3258
    %v3260 = vadd.f32 %v3259, 0.05243302
    %v3261 = vmul.f32 %v3254, %v3260
    %v3262 = vadd.f32 %v3261, 0.18741608
    %v3263 = vmul.f32 %v3254, %v3262
    %v3264 = vadd.f32 %v3263, 1.1283791
    %v3265 = vmul.f32 %v2620, %v3264
    %v3266 = vmul.f32 %v3254, 3.8918573e-05
    %v3267 = vadd.f32 %v3266, 0.001143296
    %v3268 = vmul.f32 %v3254, %v3267
    %v3269 = vadd.f32 %v3268, 0.014752088
    %v3270 = vmul.f32 %v3254, %v3269
    %v3271 = vadd.f32 %v3270, 0.112945676
    %v3272 = vmul.f32 %v3254, %v3271
    %v3273 = vadd.f32 %v3272, 0.4994258
    %v3274 = vmul.f32 %v3254, %v3273
    %v3275 = vadd.f32 %v3274, 1.0
    %v3276 = vrcp.pop %v3275
    %v3277 = vmul.f32 %v3275, %v3276
    %v3278 = vsub.f32 1.0, %v3277
    %v3279 = vmul.f32 %v3276, %v3278
    %v3280 = vadd.f32 %v3276, %v3279
    %vm3281 = vweird.f32 %v3275
    %vm3282 = vweird.f32 %v3276
    %vm3283 = vmor %vm3281, %vm3282
    %v3284 = vsel %vm3283, %v3276, %v3280
    %v3285 = vand.u32 2147483647, %v3275
    %vm3286 = vcmp.eq.f32.partialorder %v3285, 8.507059e+37
    %v3287 = vand.u32 %v3275, 2147483648
    %v3288 = vor.u32 1.1754944e-38, %v3287
    %v3289 = vsel %vm3286, %v3288, %v3284
    %v3290 = vmul.f32 %v3265, %v3289
    %v3291 = vmin.f32 %v3290, 1.0
    %v3292 = vmax.f32 %v3291, -1.0
    %v3293 = vmul.f32 %v2621, %v2621
    %v3294 = vmin.f32 16.0, %v3293
    %v3295 = vmul.f32 %v3294, 2.1237322e-06
    %v3296 = vadd.f32 %v3295, 0.00028619796
    %v3297 = vmul.f32 %v3294, %v3296
    %v3298 = vadd.f32 %v3297, 0.0036580483
    %v3299 = vmul.f32 %v3294, %v3298
    %v3300 = vadd.f32 %v3299, 0.05243302
    %v3301 = vmul.f32 %v3294, %v3300
    %v3302 = vadd.f32 %v3301, 0.18741608
    %v3303 = vmul.f32 %v3294, %v3302
    %v3304 = vadd.f32 %v3303, 1.1283791
    %v3305 = vmul.f32 %v2621, %v3304
    %v3306 = vmul.f32 %v3294, 3.8918573e-05
    %v3307 = vadd.f32 %v3306, 0.001143296
    %v3308 = vmul.f32 %v3294, %v3307
    %v3309 = vadd.f32 %v3308, 0.014752088
    %v3310 = vmul.f32 %v3294, %v3309
    %v3311 = vadd.f32 %v3310, 0.112945676
    %v3312 = vmul.f32 %v3294, %v3311
    %v3313 = vadd.f32 %v3312, 0.4994258
    %v3314 = vmul.f32 %v3294, %v3313
    %v3315 = vadd.f32 %v3314, 1.0
    %v3316 = vrcp.pop %v3315
    %v3317 = vmul.f32 %v3315, %v3316
    %v3318 = vsub.f32 1.0, %v3317
    %v3319 = vmul.f32 %v3316, %v3318
    %v3320 = vadd.f32 %v3316, %v3319
    %vm3321 = vweird.f32 %v3315
    %vm3322 = vweird.f32 %v3316
    %vm3323 = vmor %vm3321, %vm3322
    %v3324 = vsel %vm3323, %v3316, %v3320
    %v3325 = vand.u32 2147483647, %v3315
    %vm3326 = vcmp.eq.f32.partialorder %v3325, 8.507059e+37
    %v3327 = vand.u32 %v3315, 2147483648
    %v3328 = vor.u32 1.1754944e-38, %v3327
    %v3329 = vsel %vm3326, %v3328, %v3324
    %v3330 = vmul.f32 %v3305, %v3329
    %v3331 = vmin.f32 %v3330, 1.0
    %v3332 = vmax.f32 %v3331, -1.0
    %v3333 = vmul.f32 %v2622, %v2622
    %v3334 = vmin.f32 16.0, %v3333
    %v3335 = vmul.f32 %v3334, 2.1237322e-06
    %v3336 = vadd.f32 %v3335, 0.00028619796
    %v3337 = vmul.f32 %v3334, %v3336
    %v3338 = vadd.f32 %v3337, 0.0036580483
    %v3339 = vmul.f32 %v3334, %v3338
    %v3340 = vadd.f32 %v3339, 0.05243302
    %v3341 = vmul.f32 %v3334, %v3340
    %v3342 = vadd.f32 %v3341, 0.18741608
    %v3343 = vmul.f32 %v3334, %v3342
    %v3344 = vadd.f32 %v3343, 1.1283791
    %v3345 = vmul.f32 %v2622, %v3344
    %v3346 = vmul.f32 %v3334, 3.8918573e-05
    %v3347 = vadd.f32 %v3346, 0.001143296
    %v3348 = vmul.f32 %v3334, %v3347
    %v3349 = vadd.f32 %v3348, 0.014752088
    %v3350 = vmul.f32 %v3334, %v3349
    %v3351 = vadd.f32 %v3350, 0.112945676
    %v3352 = vmul.f32 %v3334, %v3351
    %v3353 = vadd.f32 %v3352, 0.4994258
    %v3354 = vmul.f32 %v3334, %v3353
    %v3355 = vadd.f32 %v3354, 1.0
    %v3356 = vrcp.pop %v3355
    %v3357 = vmul.f32 %v3355, %v3356
    %v3358 = vsub.f32 1.0, %v3357
    %v3359 = vmul.f32 %v3356, %v3358
    %v3360 = vadd.f32 %v3356, %v3359
    %vm3361 = vweird.f32 %v3355
    %vm3362 = vweird.f32 %v3356
    %vm3363 = vmor %vm3361, %vm3362
    %v3364 = vsel %vm3363, %v3356, %v3360
    %v3365 = vand.u32 2147483647, %v3355
    %vm3366 = vcmp.eq.f32.partialorder %v3365, 8.507059e+37
    %v3367 = vand.u32 %v3355, 2147483648
    %v3368 = vor.u32 1.1754944e-38, %v3367
    %v3369 = vsel %vm3366, %v3368, %v3364
    %v3370 = vmul.f32 %v3345, %v3369
    %v3371 = vmin.f32 %v3370, 1.0
    %v3372 = vmax.f32 %v3371, -1.0
    %v3373 = vmul.f32 %v2623, %v2623
    %v3374 = vmin.f32 16.0, %v3373
    %v3375 = vmul.f32 %v3374, 2.1237322e-06
    %v3376 = vadd.f32 %v3375, 0.00028619796
    %v3377 = vmul.f32 %v3374, %v3376
    %v3378 = vadd.f32 %v3377, 0.0036580483
    %v3379 = vmul.f32 %v3374, %v3378
    %v3380 = vadd.f32 %v3379, 0.05243302
    %v3381 = vmul.f32 %v3374, %v3380
    %v3382 = vadd.f32 %v3381, 0.18741608
    %v3383 = vmul.f32 %v3374, %v3382
    %v3384 = vadd.f32 %v3383, 1.1283791
    %v3385 = vmul.f32 %v2623, %v3384
    %v3386 = vmul.f32 %v3374, 3.8918573e-05
    %v3387 = vadd.f32 %v3386, 0.001143296
    %v3388 = vmul.f32 %v3374, %v3387
    %v3389 = vadd.f32 %v3388, 0.014752088
    %v3390 = vmul.f32 %v3374, %v3389
    %v3391 = vadd.f32 %v3390, 0.112945676
    %v3392 = vmul.f32 %v3374, %v3391
    %v3393 = vadd.f32 %v3392, 0.4994258
    %v3394 = vmul.f32 %v3374, %v3393
    %v3395 = vadd.f32 %v3394, 1.0
    %v3396 = vrcp.pop %v3395
    %v3397 = vmul.f32 %v3395, %v3396
    %v3398 = vsub.f32 1.0, %v3397
    %v3399 = vmul.f32 %v3396, %v3398
    %v3400 = vadd.f32 %v3396, %v3399
    %vm3401 = vweird.f32 %v3395
    %vm3402 = vweird.f32 %v3396
    %vm3403 = vmor %vm3401, %vm3402
    %v3404 = vsel %vm3403, %v3396, %v3400
    %v3405 = vand.u32 2147483647, %v3395
    %vm3406 = vcmp.eq.f32.partialorder %v3405, 8.507059e+37
    %v3407 = vand.u32 %v3395, 2147483648
    %v3408 = vor.u32 1.1754944e-38, %v3407
    %v3409 = vsel %vm3406, %v3408, %v3404
    %v3410 = vmul.f32 %v3385, %v3409
    %v3411 = vmin.f32 %v3410, 1.0
    %v3412 = vmax.f32 %v3411, -1.0
    %v3413 = vmul.f32 %v2624, %v2624
    %v3414 = vmin.f32 16.0, %v3413
    %v3415 = vmul.f32 %v3414, 2.1237322e-06
    %v3416 = vadd.f32 %v3415, 0.00028619796
    %v3417 = vmul.f32 %v3414, %v3416
    %v3418 = vadd.f32 %v3417, 0.0036580483
    %v3419 = vmul.f32 %v3414, %v3418
    %v3420 = vadd.f32 %v3419, 0.05243302
    %v3421 = vmul.f32 %v3414, %v3420
    %v3422 = vadd.f32 %v3421, 0.18741608
    %v3423 = vmul.f32 %v3414, %v3422
    %v3424 = vadd.f32 %v3423, 1.1283791
    %v3425 = vmul.f32 %v2624, %v3424
    %v3426 = vmul.f32 %v3414, 3.8918573e-05
    %v3427 = vadd.f32 %v3426, 0.001143296
    %v3428 = vmul.f32 %v3414, %v3427
    %v3429 = vadd.f32 %v3428, 0.014752088
    %v3430 = vmul.f32 %v3414, %v3429
    %v3431 = vadd.f32 %v3430, 0.112945676
    %v3432 = vmul.f32 %v3414, %v3431
    %v3433 = vadd.f32 %v3432, 0.4994258
    %v3434 = vmul.f32 %v3414, %v3433
    %v3435 = vadd.f32 %v3434, 1.0
    %v3436 = vrcp.pop %v3435
    %v3437 = vmul.f32 %v3435, %v3436
    %v3438 = vsub.f32 1.0, %v3437
    %v3439 = vmul.f32 %v3436, %v3438
    %v3440 = vadd.f32 %v3436, %v3439
    %vm3441 = vweird.f32 %v3435
    %vm3442 = vweird.f32 %v3436
    %vm3443 = vmor %vm3441, %vm3442
    %v3444 = vsel %vm3443, %v3436, %v3440
    %v3445 = vand.u32 2147483647, %v3435
    %vm3446 = vcmp.eq.f32.partialorder %v3445, 8.507059e+37
    %v3447 = vand.u32 %v3435, 2147483648
    %v3448 = vor.u32 1.1754944e-38, %v3447
    %v3449 = vsel %vm3446, %v3448, %v3444
    %v3450 = vmul.f32 %v3425, %v3449
    %v3451 = vmin.f32 %v3450, 1.0
    %v3452 = vmax.f32 %v3451, -1.0
    %v3453 = vmul.f32 %v2625, %v2625
    %v3454 = vmin.f32 16.0, %v3453
    %v3455 = vmul.f32 %v3454, 2.1237322e-06
    %v3456 = vadd.f32 %v3455, 0.00028619796
    %v3457 = vmul.f32 %v3454, %v3456
    %v3458 = vadd.f32 %v3457, 0.0036580483
    %v3459 = vmul.f32 %v3454, %v3458
    %v3460 = vadd.f32 %v3459, 0.05243302
    %v3461 = vmul.f32 %v3454, %v3460
    %v3462 = vadd.f32 %v3461, 0.18741608
    %v3463 = vmul.f32 %v3454, %v3462
    %v3464 = vadd.f32 %v3463, 1.1283791
    %v3465 = vmul.f32 %v2625, %v3464
    %v3466 = vmul.f32 %v3454, 3.8918573e-05
    %v3467 = vadd.f32 %v3466, 0.001143296
    %v3468 = vmul.f32 %v3454, %v3467
    %v3469 = vadd.f32 %v3468, 0.014752088
    %v3470 = vmul.f32 %v3454, %v3469
    %v3471 = vadd.f32 %v3470, 0.112945676
    %v3472 = vmul.f32 %v3454, %v3471
    %v3473 = vadd.f32 %v3472, 0.4994258
    %v3474 = vmul.f32 %v3454, %v3473
    %v3475 = vadd.f32 %v3474, 1.0
    %v3476 = vrcp.pop %v3475
    %v3477 = vmul.f32 %v3475, %v3476
    %v3478 = vsub.f32 1.0, %v3477
    %v3479 = vmul.f32 %v3476, %v3478
    %v3480 = vadd.f32 %v3476, %v3479
    %vm3481 = vweird.f32 %v3475
    %vm3482 = vweird.f32 %v3476
    %vm3483 = vmor %vm3481, %vm3482
    %v3484 = vsel %vm3483, %v3476, %v3480
    %v3485 = vand.u32 2147483647, %v3475
    %vm3486 = vcmp.eq.f32.partialorder %v3485, 8.507059e+37
    %v3487 = vand.u32 %v3475, 2147483648
    %v3488 = vor.u32 1.1754944e-38, %v3487
    %v3489 = vsel %vm3486, %v3488, %v3484
    %v3490 = vmul.f32 %v3465, %v3489
    %v3491 = vmin.f32 %v3490, 1.0
    %v3492 = vmax.f32 %v3491, -1.0
    %v3493 = vmul.f32 %v2626, %v2626
    %v3494 = vmin.f32 16.0, %v3493
    %v3495 = vmul.f32 %v3494, 2.1237322e-06
    %v3496 = vadd.f32 %v3495, 0.00028619796
    %v3497 = vmul.f32 %v3494, %v3496
    %v3498 = vadd.f32 %v3497, 0.0036580483
    %v3499 = vmul.f32 %v3494, %v3498
    %v3500 = vadd.f32 %v3499, 0.05243302
    %v3501 = vmul.f32 %v3494, %v3500
    %v3502 = vadd.f32 %v3501, 0.18741608
    %v3503 = vmul.f32 %v3494, %v3502
    %v3504 = vadd.f32 %v3503, 1.1283791
    %v3505 = vmul.f32 %v2626, %v3504
    %v3506 = vmul.f32 %v3494, 3.8918573e-05
    %v3507 = vadd.f32 %v3506, 0.001143296
    %v3508 = vmul.f32 %v3494, %v3507
    %v3509 = vadd.f32 %v3508, 0.014752088
    %v3510 = vmul.f32 %v3494, %v3509
    %v3511 = vadd.f32 %v3510, 0.112945676
    %v3512 = vmul.f32 %v3494, %v3511
    %v3513 = vadd.f32 %v3512, 0.4994258
    %v3514 = vmul.f32 %v3494, %v3513
    %v3515 = vadd.f32 %v3514, 1.0
    %v3516 = vrcp.pop %v3515
    %v3517 = vmul.f32 %v3515, %v3516
    %v3518 = vsub.f32 1.0, %v3517
    %v3519 = vmul.f32 %v3516, %v3518
    %v3520 = vadd.f32 %v3516, %v3519
    %vm3521 = vweird.f32 %v3515
    %vm3522 = vweird.f32 %v3516
    %vm3523 = vmor %vm3521, %vm3522
    %v3524 = vsel %vm3523, %v3516, %v3520
    %v3525 = vand.u32 2147483647, %v3515
    %vm3526 = vcmp.eq.f32.partialorder %v3525, 8.507059e+37
    %v3527 = vand.u32 %v3515, 2147483648
    %v3528 = vor.u32 1.1754944e-38, %v3527
    %v3529 = vsel %vm3526, %v3528, %v3524
    %v3530 = vmul.f32 %v3505, %v3529
    %v3531 = vmin.f32 %v3530, 1.0
    %v3532 = vmax.f32 %v3531, -1.0
    %v3533 = vmul.f32 %v2627, %v2627
    %v3534 = vmin.f32 16.0, %v3533
    %v3535 = vmul.f32 %v3534, 2.1237322e-06
    %v3536 = vadd.f32 %v3535, 0.00028619796
    %v3537 = vmul.f32 %v3534, %v3536
    %v3538 = vadd.f32 %v3537, 0.0036580483
    %v3539 = vmul.f32 %v3534, %v3538
    %v3540 = vadd.f32 %v3539, 0.05243302
    %v3541 = vmul.f32 %v3534, %v3540
    %v3542 = vadd.f32 %v3541, 0.18741608
    %v3543 = vmul.f32 %v3534, %v3542
    %v3544 = vadd.f32 %v3543, 1.1283791
    %v3545 = vmul.f32 %v2627, %v3544
    %v3546 = vmul.f32 %v3534, 3.8918573e-05
    %v3547 = vadd.f32 %v3546, 0.001143296
    %v3548 = vmul.f32 %v3534, %v3547
    %v3549 = vadd.f32 %v3548, 0.014752088
    %v3550 = vmul.f32 %v3534, %v3549
    %v3551 = vadd.f32 %v3550, 0.112945676
    %v3552 = vmul.f32 %v3534, %v3551
    %v3553 = vadd.f32 %v3552, 0.4994258
    %v3554 = vmul.f32 %v3534, %v3553
    %v3555 = vadd.f32 %v3554, 1.0
    %v3556 = vrcp.pop %v3555
    %v3557 = vmul.f32 %v3555, %v3556
    %v3558 = vsub.f32 1.0, %v3557
    %v3559 = vmul.f32 %v3556, %v3558
    %v3560 = vadd.f32 %v3556, %v3559
    %vm3561 = vweird.f32 %v3555
    %vm3562 = vweird.f32 %v3556
    %vm3563 = vmor %vm3561, %vm3562
    %v3564 = vsel %vm3563, %v3556, %v3560
    %v3565 = vand.u32 2147483647, %v3555
    %vm3566 = vcmp.eq.f32.partialorder %v3565, 8.507059e+37
    %v3567 = vand.u32 %v3555, 2147483648
    %v3568 = vor.u32 1.1754944e-38, %v3567
    %v3569 = vsel %vm3566, %v3568, %v3564
    %v3570 = vmul.f32 %v3545, %v3569
    %v3571 = vmin.f32 %v3570, 1.0
    %v3572 = vmax.f32 %v3571, -1.0
    %v3573 = vmul.f32 %v2628, %v2628
    %v3574 = vmin.f32 16.0, %v3573
    %v3575 = vmul.f32 %v3574, 2.1237322e-06
    %v3576 = vadd.f32 %v3575, 0.00028619796
    %v3577 = vmul.f32 %v3574, %v3576
    %v3578 = vadd.f32 %v3577, 0.0036580483
    %v3579 = vmul.f32 %v3574, %v3578
    %v3580 = vadd.f32 %v3579, 0.05243302
    %v3581 = vmul.f32 %v3574, %v3580
    %v3582 = vadd.f32 %v3581, 0.18741608
    %v3583 = vmul.f32 %v3574, %v3582
    %v3584 = vadd.f32 %v3583, 1.1283791
    %v3585 = vmul.f32 %v2628, %v3584
    %v3586 = vmul.f32 %v3574, 3.8918573e-05
    %v3587 = vadd.f32 %v3586, 0.001143296
    %v3588 = vmul.f32 %v3574, %v3587
    %v3589 = vadd.f32 %v3588, 0.014752088
    %v3590 = vmul.f32 %v3574, %v3589
    %v3591 = vadd.f32 %v3590, 0.112945676
    %v3592 = vmul.f32 %v3574, %v3591
    %v3593 = vadd.f32 %v3592, 0.4994258
    %v3594 = vmul.f32 %v3574, %v3593
    %v3595 = vadd.f32 %v3594, 1.0
    %v3596 = vrcp.pop %v3595
    %v3597 = vmul.f32 %v3595, %v3596
    %v3598 = vsub.f32 1.0, %v3597
    %v3599 = vmul.f32 %v3596, %v3598
    %v3600 = vadd.f32 %v3596, %v3599
    %vm3601 = vweird.f32 %v3595
    %vm3602 = vweird.f32 %v3596
    %vm3603 = vmor %vm3601, %vm3602
    %v3604 = vsel %vm3603, %v3596, %v3600
    %v3605 = vand.u32 2147483647, %v3595
    %vm3606 = vcmp.eq.f32.partialorder %v3605, 8.507059e+37
    %v3607 = vand.u32 %v3595, 2147483648
    %v3608 = vor.u32 1.1754944e-38, %v3607
    %v3609 = vsel %vm3606, %v3608, %v3604
    %v3610 = vmul.f32 %v3585, %v3609
    %v3611 = vmin.f32 %v3610, 1.0
    %v3612 = vmax.f32 %v3611, -1.0
    %v3613 = vmul.f32 %v2629, %v2629
    %v3614 = vmin.f32 16.0, %v3613
    %v3615 = vmul.f32 %v3614, 2.1237322e-06
    %v3616 = vadd.f32 %v3615, 0.00028619796
    %v3617 = vmul.f32 %v3614, %v3616
    %v3618 = vadd.f32 %v3617, 0.0036580483
    %v3619 = vmul.f32 %v3614, %v3618
    %v3620 = vadd.f32 %v3619, 0.05243302
    %v3621 = vmul.f32 %v3614, %v3620
    %v3622 = vadd.f32 %v3621, 0.18741608
    %v3623 = vmul.f32 %v3614, %v3622
    %v3624 = vadd.f32 %v3623, 1.1283791
    %v3625 = vmul.f32 %v2629, %v3624
    %v3626 = vmul.f32 %v3614, 3.8918573e-05
    %v3627 = vadd.f32 %v3626, 0.001143296
    %v3628 = vmul.f32 %v3614, %v3627
    %v3629 = vadd.f32 %v3628, 0.014752088
    %v3630 = vmul.f32 %v3614, %v3629
    %v3631 = vadd.f32 %v3630, 0.112945676
    %v3632 = vmul.f32 %v3614, %v3631
    %v3633 = vadd.f32 %v3632, 0.4994258
    %v3634 = vmul.f32 %v3614, %v3633
    %v3635 = vadd.f32 %v3634, 1.0
    %v3636 = vrcp.pop %v3635
    %v3637 = vmul.f32 %v3635, %v3636
    %v3638 = vsub.f32 1.0, %v3637
    %v3639 = vmul.f32 %v3636, %v3638
    %v3640 = vadd.f32 %v3636, %v3639
    %vm3641 = vweird.f32 %v3635
    %vm3642 = vweird.f32 %v3636
    %vm3643 = vmor %vm3641, %vm3642
    %v3644 = vsel %vm3643, %v3636, %v3640
    %v3645 = vand.u32 2147483647, %v3635
    %vm3646 = vcmp.eq.f32.partialorder %v3645, 8.507059e+37
    %v3647 = vand.u32 %v3635, 2147483648
    %v3648 = vor.u32 1.1754944e-38, %v3647
    %v3649 = vsel %vm3646, %v3648, %v3644
    %v3650 = vmul.f32 %v3625, %v3649
    %v3651 = vmin.f32 %v3650, 1.0
    %v3652 = vmax.f32 %v3651, -1.0
    %v3653 = vmul.f32 %v2630, %v2630
    %v3654 = vmin.f32 16.0, %v3653
    %v3655 = vmul.f32 %v3654, 2.1237322e-06
    %v3656 = vadd.f32 %v3655, 0.00028619796
    %v3657 = vmul.f32 %v3654, %v3656
    %v3658 = vadd.f32 %v3657, 0.0036580483
    %v3659 = vmul.f32 %v3654, %v3658
    %v3660 = vadd.f32 %v3659, 0.05243302
    %v3661 = vmul.f32 %v3654, %v3660
    %v3662 = vadd.f32 %v3661, 0.18741608
    %v3663 = vmul.f32 %v3654, %v3662
    %v3664 = vadd.f32 %v3663, 1.1283791
    %v3665 = vmul.f32 %v2630, %v3664
    %v3666 = vmul.f32 %v3654, 3.8918573e-05
    %v3667 = vadd.f32 %v3666, 0.001143296
    %v3668 = vmul.f32 %v3654, %v3667
    %v3669 = vadd.f32 %v3668, 0.014752088
    %v3670 = vmul.f32 %v3654, %v3669
    %v3671 = vadd.f32 %v3670, 0.112945676
    %v3672 = vmul.f32 %v3654, %v3671
    %v3673 = vadd.f32 %v3672, 0.4994258
    %v3674 = vmul.f32 %v3654, %v3673
    %v3675 = vadd.f32 %v3674, 1.0
    %v3676 = vrcp.pop %v3675
    %v3677 = vmul.f32 %v3675, %v3676
    %v3678 = vsub.f32 1.0, %v3677
    %v3679 = vmul.f32 %v3676, %v3678
    %v3680 = vadd.f32 %v3676, %v3679
    %vm3681 = vweird.f32 %v3675
    %vm3682 = vweird.f32 %v3676
    %vm3683 = vmor %vm3681, %vm3682
    %v3684 = vsel %vm3683, %v3676, %v3680
    %v3685 = vand.u32 2147483647, %v3675
    %vm3686 = vcmp.eq.f32.partialorder %v3685, 8.507059e+37
    %v3687 = vand.u32 %v3675, 2147483648
    %v3688 = vor.u32 1.1754944e-38, %v3687
    %v3689 = vsel %vm3686, %v3688, %v3684
    %v3690 = vmul.f32 %v3665, %v3689
    %v3691 = vmin.f32 %v3690, 1.0
    %v3692 = vmax.f32 %v3691, -1.0
    %v3693 = vmul.f32 %v2631, %v2631
    %v3694 = vmin.f32 16.0, %v3693
    %v3695 = vmul.f32 %v3694, 2.1237322e-06
    %v3696 = vadd.f32 %v3695, 0.00028619796
    %v3697 = vmul.f32 %v3694, %v3696
    %v3698 = vadd.f32 %v3697, 0.0036580483
    %v3699 = vmul.f32 %v3694, %v3698
    %v3700 = vadd.f32 %v3699, 0.05243302
    %v3701 = vmul.f32 %v3694, %v3700
    %v3702 = vadd.f32 %v3701, 0.18741608
    %v3703 = vmul.f32 %v3694, %v3702
    %v3704 = vadd.f32 %v3703, 1.1283791
    %v3705 = vmul.f32 %v2631, %v3704
    %v3706 = vmul.f32 %v3694, 3.8918573e-05
    %v3707 = vadd.f32 %v3706, 0.001143296
    %v3708 = vmul.f32 %v3694, %v3707
    %v3709 = vadd.f32 %v3708, 0.014752088
    %v3710 = vmul.f32 %v3694, %v3709
    %v3711 = vadd.f32 %v3710, 0.112945676
    %v3712 = vmul.f32 %v3694, %v3711
    %v3713 = vadd.f32 %v3712, 0.4994258
    %v3714 = vmul.f32 %v3694, %v3713
    %v3715 = vadd.f32 %v3714, 1.0
    %v3716 = vrcp.pop %v3715
    %v3717 = vmul.f32 %v3715, %v3716
    %v3718 = vsub.f32 1.0, %v3717
    %v3719 = vmul.f32 %v3716, %v3718
    %v3720 = vadd.f32 %v3716, %v3719
    %vm3721 = vweird.f32 %v3715
    %vm3722 = vweird.f32 %v3716
    %vm3723 = vmor %vm3721, %vm3722
    %v3724 = vsel %vm3723, %v3716, %v3720
    %v3725 = vand.u32 2147483647, %v3715
    %vm3726 = vcmp.eq.f32.partialorder %v3725, 8.507059e+37
    %v3727 = vand.u32 %v3715, 2147483648
    %v3728 = vor.u32 1.1754944e-38, %v3727
    %v3729 = vsel %vm3726, %v3728, %v3724
    %v3730 = vmul.f32 %v3705, %v3729
    %v3731 = vmin.f32 %v3730, 1.0
    %v3732 = vmax.f32 %v3731, -1.0
    %v3733 = vmul.f32 %v2632, %v2632
    %v3734 = vmin.f32 16.0, %v3733
    %v3735 = vmul.f32 %v3734, 2.1237322e-06
    %v3736 = vadd.f32 %v3735, 0.00028619796
    %v3737 = vmul.f32 %v3734, %v3736
    %v3738 = vadd.f32 %v3737, 0.0036580483
    %v3739 = vmul.f32 %v3734, %v3738
    %v3740 = vadd.f32 %v3739, 0.05243302
    %v3741 = vmul.f32 %v3734, %v3740
    %v3742 = vadd.f32 %v3741, 0.18741608
    %v3743 = vmul.f32 %v3734, %v3742
    %v3744 = vadd.f32 %v3743, 1.1283791
    %v3745 = vmul.f32 %v2632, %v3744
    %v3746 = vmul.f32 %v3734, 3.8918573e-05
    %v3747 = vadd.f32 %v3746, 0.001143296
    %v3748 = vmul.f32 %v3734, %v3747
    %v3749 = vadd.f32 %v3748, 0.014752088
    %v3750 = vmul.f32 %v3734, %v3749
    %v3751 = vadd.f32 %v3750, 0.112945676
    %v3752 = vmul.f32 %v3734, %v3751
    %v3753 = vadd.f32 %v3752, 0.4994258
    %v3754 = vmul.f32 %v3734, %v3753
    %v3755 = vadd.f32 %v3754, 1.0
    %v3756 = vrcp.pop %v3755
    %v3757 = vmul.f32 %v3755, %v3756
    %v3758 = vsub.f32 1.0, %v3757
    %v3759 = vmul.f32 %v3756, %v3758
    %v3760 = vadd.f32 %v3756, %v3759
    %vm3761 = vweird.f32 %v3755
    %vm3762 = vweird.f32 %v3756
    %vm3763 = vmor %vm3761, %vm3762
    %v3764 = vsel %vm3763, %v3756, %v3760
    %v3765 = vand.u32 2147483647, %v3755
    %vm3766 = vcmp.eq.f32.partialorder %v3765, 8.507059e+37
    %v3767 = vand.u32 %v3755, 2147483648
    %v3768 = vor.u32 1.1754944e-38, %v3767
    %v3769 = vsel %vm3766, %v3768, %v3764
    %v3770 = vmul.f32 %v3745, %v3769
    %v3771 = vmin.f32 %v3770, 1.0
    %v3772 = vmax.f32 %v3771, -1.0
    %v3773 = vmul.f32 %v2633, %v2633
    %v3774 = vmin.f32 16.0, %v3773
    %v3775 = vmul.f32 %v3774, 2.1237322e-06
    %v3776 = vadd.f32 %v3775, 0.00028619796
    %v3777 = vmul.f32 %v3774, %v3776
    %v3778 = vadd.f32 %v3777, 0.0036580483
    %v3779 = vmul.f32 %v3774, %v3778
    %v3780 = vadd.f32 %v3779, 0.05243302
    %v3781 = vmul.f32 %v3774, %v3780
    %v3782 = vadd.f32 %v3781, 0.18741608
    %v3783 = vmul.f32 %v3774, %v3782
    %v3784 = vadd.f32 %v3783, 1.1283791
    %v3785 = vmul.f32 %v2633, %v3784
    %v3786 = vmul.f32 %v3774, 3.8918573e-05
    %v3787 = vadd.f32 %v3786, 0.001143296
    %v3788 = vmul.f32 %v3774, %v3787
    %v3789 = vadd.f32 %v3788, 0.014752088
    %v3790 = vmul.f32 %v3774, %v3789
    %v3791 = vadd.f32 %v3790, 0.112945676
    %v3792 = vmul.f32 %v3774, %v3791
    %v3793 = vadd.f32 %v3792, 0.4994258
    %v3794 = vmul.f32 %v3774, %v3793
    %v3795 = vadd.f32 %v3794, 1.0
    %v3796 = vrcp.pop %v3795
    %v3797 = vmul.f32 %v3795, %v3796
    %v3798 = vsub.f32 1.0, %v3797
    %v3799 = vmul.f32 %v3796, %v3798
    %v3800 = vadd.f32 %v3796, %v3799
    %vm3801 = vweird.f32 %v3795
    %vm3802 = vweird.f32 %v3796
    %vm3803 = vmor %vm3801, %vm3802
    %v3804 = vsel %vm3803, %v3796, %v3800
    %v3805 = vand.u32 2147483647, %v3795
    %vm3806 = vcmp.eq.f32.partialorder %v3805, 8.507059e+37
    %v3807 = vand.u32 %v3795, 2147483648
    %v3808 = vor.u32 1.1754944e-38, %v3807
    %v3809 = vsel %vm3806, %v3808, %v3804
    %v3810 = vmul.f32 %v3785, %v3809
    %v3811 = vmin.f32 %v3810, 1.0
    %v3812 = vmax.f32 %v3811, -1.0
    %v3813 = vmul.f32 %v2634, %v2634
    %v3814 = vmin.f32 16.0, %v3813
    %v3815 = vmul.f32 %v3814, 2.1237322e-06
    %v3816 = vadd.f32 %v3815, 0.00028619796
    %v3817 = vmul.f32 %v3814, %v3816
    %v3818 = vadd.f32 %v3817, 0.0036580483
    %v3819 = vmul.f32 %v3814, %v3818
    %v3820 = vadd.f32 %v3819, 0.05243302
    %v3821 = vmul.f32 %v3814, %v3820
    %v3822 = vadd.f32 %v3821, 0.18741608
    %v3823 = vmul.f32 %v3814, %v3822
    %v3824 = vadd.f32 %v3823, 1.1283791
    %v3825 = vmul.f32 %v2634, %v3824
    %v3826 = vmul.f32 %v3814, 3.8918573e-05
    %v3827 = vadd.f32 %v3826, 0.001143296
    %v3828 = vmul.f32 %v3814, %v3827
    %v3829 = vadd.f32 %v3828, 0.014752088
    %v3830 = vmul.f32 %v3814, %v3829
    %v3831 = vadd.f32 %v3830, 0.112945676
    %v3832 = vmul.f32 %v3814, %v3831
    %v3833 = vadd.f32 %v3832, 0.4994258
    %v3834 = vmul.f32 %v3814, %v3833
    %v3835 = vadd.f32 %v3834, 1.0
    %v3836 = vrcp.pop %v3835
    %v3837 = vmul.f32 %v3835, %v3836
    %v3838 = vsub.f32 1.0, %v3837
    %v3839 = vmul.f32 %v3836, %v3838
    %v3840 = vadd.f32 %v3836, %v3839
    %vm3841 = vweird.f32 %v3835
    %vm3842 = vweird.f32 %v3836
    %vm3843 = vmor %vm3841, %vm3842
    %v3844 = vsel %vm3843, %v3836, %v3840
    %v3845 = vand.u32 2147483647, %v3835
    %vm3846 = vcmp.eq.f32.partialorder %v3845, 8.507059e+37
    %v3847 = vand.u32 %v3835, 2147483648
    %v3848 = vor.u32 1.1754944e-38, %v3847
    %v3849 = vsel %vm3846, %v3848, %v3844
    %v3850 = vmul.f32 %v3825, %v3849
    %v3851 = vmin.f32 %v3850, 1.0
    %v3852 = vmax.f32 %v3851, -1.0
    %v3853 = vmul.f32 %v2635, %v2635
    %v3854 = vmin.f32 16.0, %v3853
    %v3855 = vmul.f32 %v3854, 2.1237322e-06
    %v3856 = vadd.f32 %v3855, 0.00028619796
    %v3857 = vmul.f32 %v3854, %v3856
    %v3858 = vadd.f32 %v3857, 0.0036580483
    %v3859 = vmul.f32 %v3854, %v3858
    %v3860 = vadd.f32 %v3859, 0.05243302
    %v3861 = vmul.f32 %v3854, %v3860
    %v3862 = vadd.f32 %v3861, 0.18741608
    %v3863 = vmul.f32 %v3854, %v3862
    %v3864 = vadd.f32 %v3863, 1.1283791
    %v3865 = vmul.f32 %v2635, %v3864
    %v3866 = vmul.f32 %v3854, 3.8918573e-05
    %v3867 = vadd.f32 %v3866, 0.001143296
    %v3868 = vmul.f32 %v3854, %v3867
    %v3869 = vadd.f32 %v3868, 0.014752088
    %v3870 = vmul.f32 %v3854, %v3869
    %v3871 = vadd.f32 %v3870, 0.112945676
    %v3872 = vmul.f32 %v3854, %v3871
    %v3873 = vadd.f32 %v3872, 0.4994258
    %v3874 = vmul.f32 %v3854, %v3873
    %v3875 = vadd.f32 %v3874, 1.0
    %v3876 = vrcp.pop %v3875
    %v3877 = vmul.f32 %v3875, %v3876
    %v3878 = vsub.f32 1.0, %v3877
    %v3879 = vmul.f32 %v3876, %v3878
    %v3880 = vadd.f32 %v3876, %v3879
    %vm3881 = vweird.f32 %v3875
    %vm3882 = vweird.f32 %v3876
    %vm3883 = vmor %vm3881, %vm3882
    %v3884 = vsel %vm3883, %v3876, %v3880
    %v3885 = vand.u32 2147483647, %v3875
    %vm3886 = vcmp.eq.f32.partialorder %v3885, 8.507059e+37
    %v3887 = vand.u32 %v3875, 2147483648
    %v3888 = vor.u32 1.1754944e-38, %v3887
    %v3889 = vsel %vm3886, %v3888, %v3884
    %v3890 = vmul.f32 %v3865, %v3889
    %v3891 = vmin.f32 %v3890, 1.0
    %v3892 = vmax.f32 %v3891, -1.0
    %v3893 = vmul.f32 %v2636, %v2636
    %v3894 = vmin.f32 16.0, %v3893
    %v3895 = vmul.f32 %v3894, 2.1237322e-06
    %v3896 = vadd.f32 %v3895, 0.00028619796
    %v3897 = vmul.f32 %v3894, %v3896
    %v3898 = vadd.f32 %v3897, 0.0036580483
    %v3899 = vmul.f32 %v3894, %v3898
    %v3900 = vadd.f32 %v3899, 0.05243302
    %v3901 = vmul.f32 %v3894, %v3900
    %v3902 = vadd.f32 %v3901, 0.18741608
    %v3903 = vmul.f32 %v3894, %v3902
    %v3904 = vadd.f32 %v3903, 1.1283791
    %v3905 = vmul.f32 %v2636, %v3904
    %v3906 = vmul.f32 %v3894, 3.8918573e-05
    %v3907 = vadd.f32 %v3906, 0.001143296
    %v3908 = vmul.f32 %v3894, %v3907
    %v3909 = vadd.f32 %v3908, 0.014752088
    %v3910 = vmul.f32 %v3894, %v3909
    %v3911 = vadd.f32 %v3910, 0.112945676
    %v3912 = vmul.f32 %v3894, %v3911
    %v3913 = vadd.f32 %v3912, 0.4994258
    %v3914 = vmul.f32 %v3894, %v3913
    %v3915 = vadd.f32 %v3914, 1.0
    %v3916 = vrcp.pop %v3915
    %v3917 = vmul.f32 %v3915, %v3916
    %v3918 = vsub.f32 1.0, %v3917
    %v3919 = vmul.f32 %v3916, %v3918
    %v3920 = vadd.f32 %v3916, %v3919
    %vm3921 = vweird.f32 %v3915
    %vm3922 = vweird.f32 %v3916
    %vm3923 = vmor %vm3921, %vm3922
    %v3924 = vsel %vm3923, %v3916, %v3920
    %v3925 = vand.u32 2147483647, %v3915
    %vm3926 = vcmp.eq.f32.partialorder %v3925, 8.507059e+37
    %v3927 = vand.u32 %v3915, 2147483648
    %v3928 = vor.u32 1.1754944e-38, %v3927
    %v3929 = vsel %vm3926, %v3928, %v3924
    %v3930 = vmul.f32 %v3905, %v3929
    %v3931 = vmin.f32 %v3930, 1.0
    %v3932 = vmax.f32 %v3931, -1.0
    %v3933 = vmul.f32 %v2637, %v2637
    %v3934 = vmin.f32 16.0, %v3933
    %v3935 = vmul.f32 %v3934, 2.1237322e-06
    %v3936 = vadd.f32 %v3935, 0.00028619796
    %v3937 = vmul.f32 %v3934, %v3936
    %v3938 = vadd.f32 %v3937, 0.0036580483
    %v3939 = vmul.f32 %v3934, %v3938
    %v3940 = vadd.f32 %v3939, 0.05243302
    %v3941 = vmul.f32 %v3934, %v3940
    %v3942 = vadd.f32 %v3941, 0.18741608
    %v3943 = vmul.f32 %v3934, %v3942
    %v3944 = vadd.f32 %v3943, 1.1283791
    %v3945 = vmul.f32 %v2637, %v3944
    %v3946 = vmul.f32 %v3934, 3.8918573e-05
    %v3947 = vadd.f32 %v3946, 0.001143296
    %v3948 = vmul.f32 %v3934, %v3947
    %v3949 = vadd.f32 %v3948, 0.014752088
    %v3950 = vmul.f32 %v3934, %v3949
    %v3951 = vadd.f32 %v3950, 0.112945676
    %v3952 = vmul.f32 %v3934, %v3951
    %v3953 = vadd.f32 %v3952, 0.4994258
    %v3954 = vmul.f32 %v3934, %v3953
    %v3955 = vadd.f32 %v3954, 1.0
    %v3956 = vrcp.pop %v3955
    %v3957 = vmul.f32 %v3955, %v3956
    %v3958 = vsub.f32 1.0, %v3957
    %v3959 = vmul.f32 %v3956, %v3958
    %v3960 = vadd.f32 %v3956, %v3959
    %vm3961 = vweird.f32 %v3955
    %vm3962 = vweird.f32 %v3956
    %vm3963 = vmor %vm3961, %vm3962
    %v3964 = vsel %vm3963, %v3956, %v3960
    %v3965 = vand.u32 2147483647, %v3955
    %vm3966 = vcmp.eq.f32.partialorder %v3965, 8.507059e+37
    %v3967 = vand.u32 %v3955, 2147483648
    %v3968 = vor.u32 1.1754944e-38, %v3967
    %v3969 = vsel %vm3966, %v3968, %v3964
    %v3970 = vmul.f32 %v3945, %v3969
    %v3971 = vmin.f32 %v3970, 1.0
    %v3972 = vmax.f32 %v3971, -1.0
    %v3973 = vmul.f32 %v2638, %v2638
    %v3974 = vmin.f32 16.0, %v3973
    %v3975 = vmul.f32 %v3974, 2.1237322e-06
    %v3976 = vadd.f32 %v3975, 0.00028619796
    %v3977 = vmul.f32 %v3974, %v3976
    %v3978 = vadd.f32 %v3977, 0.0036580483
    %v3979 = vmul.f32 %v3974, %v3978
    %v3980 = vadd.f32 %v3979, 0.05243302
    %v3981 = vmul.f32 %v3974, %v3980
    %v3982 = vadd.f32 %v3981, 0.18741608
    %v3983 = vmul.f32 %v3974, %v3982
    %v3984 = vadd.f32 %v3983, 1.1283791
    %v3985 = vmul.f32 %v2638, %v3984
    %v3986 = vmul.f32 %v3974, 3.8918573e-05
    %v3987 = vadd.f32 %v3986, 0.001143296
    %v3988 = vmul.f32 %v3974, %v3987
    %v3989 = vadd.f32 %v3988, 0.014752088
    %v3990 = vmul.f32 %v3974, %v3989
    %v3991 = vadd.f32 %v3990, 0.112945676
    %v3992 = vmul.f32 %v3974, %v3991
    %v3993 = vadd.f32 %v3992, 0.4994258
    %v3994 = vmul.f32 %v3974, %v3993
    %v3995 = vadd.f32 %v3994, 1.0
    %v3996 = vrcp.pop %v3995
    %v3997 = vmul.f32 %v3995, %v3996
    %v3998 = vsub.f32 1.0, %v3997
    %v3999 = vmul.f32 %v3996, %v3998
    %v4000 = vadd.f32 %v3996, %v3999
    %vm4001 = vweird.f32 %v3995
    %vm4002 = vweird.f32 %v3996
    %vm4003 = vmor %vm4001, %vm4002
    %v4004 = vsel %vm4003, %v3996, %v4000
    %v4005 = vand.u32 2147483647, %v3995
    %vm4006 = vcmp.eq.f32.partialorder %v4005, 8.507059e+37
    %v4007 = vand.u32 %v3995, 2147483648
    %v4008 = vor.u32 1.1754944e-38, %v4007
    %v4009 = vsel %vm4006, %v4008, %v4004
    %v4010 = vmul.f32 %v3985, %v4009
    %v4011 = vmin.f32 %v4010, 1.0
    %v4012 = vmax.f32 %v4011, -1.0
    %v4013 = vmul.f32 %v2639, %v2639
    %v4014 = vmin.f32 16.0, %v4013
    %v4015 = vmul.f32 %v4014, 2.1237322e-06
    %v4016 = vadd.f32 %v4015, 0.00028619796
    %v4017 = vmul.f32 %v4014, %v4016
    %v4018 = vadd.f32 %v4017, 0.0036580483
    %v4019 = vmul.f32 %v4014, %v4018
    %v4020 = vadd.f32 %v4019, 0.05243302
    %v4021 = vmul.f32 %v4014, %v4020
    %v4022 = vadd.f32 %v4021, 0.18741608
    %v4023 = vmul.f32 %v4014, %v4022
    %v4024 = vadd.f32 %v4023, 1.1283791
    %v4025 = vmul.f32 %v2639, %v4024
    %v4026 = vmul.f32 %v4014, 3.8918573e-05
    %v4027 = vadd.f32 %v4026, 0.001143296
    %v4028 = vmul.f32 %v4014, %v4027
    %v4029 = vadd.f32 %v4028, 0.014752088
    %v4030 = vmul.f32 %v4014, %v4029
    %v4031 = vadd.f32 %v4030, 0.112945676
    %v4032 = vmul.f32 %v4014, %v4031
    %v4033 = vadd.f32 %v4032, 0.4994258
    %v4034 = vmul.f32 %v4014, %v4033
    %v4035 = vadd.f32 %v4034, 1.0
    %v4036 = vrcp.pop %v4035
    %v4037 = vmul.f32 %v4035, %v4036
    %v4038 = vsub.f32 1.0, %v4037
    %v4039 = vmul.f32 %v4036, %v4038
    %v4040 = vadd.f32 %v4036, %v4039
    %vm4041 = vweird.f32 %v4035
    %vm4042 = vweird.f32 %v4036
    %vm4043 = vmor %vm4041, %vm4042
    %v4044 = vsel %vm4043, %v4036, %v4040
    %v4045 = vand.u32 2147483647, %v4035
    %vm4046 = vcmp.eq.f32.partialorder %v4045, 8.507059e+37
    %v4047 = vand.u32 %v4035, 2147483648
    %v4048 = vor.u32 1.1754944e-38, %v4047
    %v4049 = vsel %vm4046, %v4048, %v4044
    %v4050 = vmul.f32 %v4025, %v4049
    %v4051 = vmin.f32 %v4050, 1.0
    %v4052 = vmax.f32 %v4051, -1.0
    %v4053 = vmul.f32 %v2640, %v2640
    %v4054 = vmin.f32 16.0, %v4053
    %v4055 = vmul.f32 %v4054, 2.1237322e-06
    %v4056 = vadd.f32 %v4055, 0.00028619796
    %v4057 = vmul.f32 %v4054, %v4056
    %v4058 = vadd.f32 %v4057, 0.0036580483
    %v4059 = vmul.f32 %v4054, %v4058
    %v4060 = vadd.f32 %v4059, 0.05243302
    %v4061 = vmul.f32 %v4054, %v4060
    %v4062 = vadd.f32 %v4061, 0.18741608
    %v4063 = vmul.f32 %v4054, %v4062
    %v4064 = vadd.f32 %v4063, 1.1283791
    %v4065 = vmul.f32 %v2640, %v4064
    %v4066 = vmul.f32 %v4054, 3.8918573e-05
    %v4067 = vadd.f32 %v4066, 0.001143296
    %v4068 = vmul.f32 %v4054, %v4067
    %v4069 = vadd.f32 %v4068, 0.014752088
    %v4070 = vmul.f32 %v4054, %v4069
    %v4071 = vadd.f32 %v4070, 0.112945676
    %v4072 = vmul.f32 %v4054, %v4071
    %v4073 = vadd.f32 %v4072, 0.4994258
    %v4074 = vmul.f32 %v4054, %v4073
    %v4075 = vadd.f32 %v4074, 1.0
    %v4076 = vrcp.pop %v4075
    %v4077 = vmul.f32 %v4075, %v4076
    %v4078 = vsub.f32 1.0, %v4077
    %v4079 = vmul.f32 %v4076, %v4078
    %v4080 = vadd.f32 %v4076, %v4079
    %vm4081 = vweird.f32 %v4075
    %vm4082 = vweird.f32 %v4076
    %vm4083 = vmor %vm4081, %vm4082
    %v4084 = vsel %vm4083, %v4076, %v4080
    %v4085 = vand.u32 2147483647, %v4075
    %vm4086 = vcmp.eq.f32.partialorder %v4085, 8.507059e+37
    %v4087 = vand.u32 %v4075, 2147483648
    %v4088 = vor.u32 1.1754944e-38, %v4087
    %v4089 = vsel %vm4086, %v4088, %v4084
    %v4090 = vmul.f32 %v4065, %v4089
    %v4091 = vmin.f32 %v4090, 1.0
    %v4092 = vmax.f32 %v4091, -1.0
    %v4093 = vmul.f32 %v2641, %v2641
    %v4094 = vmin.f32 16.0, %v4093
    %v4095 = vmul.f32 %v4094, 2.1237322e-06
    %v4096 = vadd.f32 %v4095, 0.00028619796
    %v4097 = vmul.f32 %v4094, %v4096
    %v4098 = vadd.f32 %v4097, 0.0036580483
    %v4099 = vmul.f32 %v4094, %v4098
    %v4100 = vadd.f32 %v4099, 0.05243302
    %v4101 = vmul.f32 %v4094, %v4100
    %v4102 = vadd.f32 %v4101, 0.18741608
    %v4103 = vmul.f32 %v4094, %v4102
    %v4104 = vadd.f32 %v4103, 1.1283791
    %v4105 = vmul.f32 %v2641, %v4104
    %v4106 = vmul.f32 %v4094, 3.8918573e-05
    %v4107 = vadd.f32 %v4106, 0.001143296
    %v4108 = vmul.f32 %v4094, %v4107
    %v4109 = vadd.f32 %v4108, 0.014752088
    %v4110 = vmul.f32 %v4094, %v4109
    %v4111 = vadd.f32 %v4110, 0.112945676
    %v4112 = vmul.f32 %v4094, %v4111
    %v4113 = vadd.f32 %v4112, 0.4994258
    %v4114 = vmul.f32 %v4094, %v4113
    %v4115 = vadd.f32 %v4114, 1.0
    %v4116 = vrcp.pop %v4115
    %v4117 = vmul.f32 %v4115, %v4116
    %v4118 = vsub.f32 1.0, %v4117
    %v4119 = vmul.f32 %v4116, %v4118
    %v4120 = vadd.f32 %v4116, %v4119
    %vm4121 = vweird.f32 %v4115
    %vm4122 = vweird.f32 %v4116
    %vm4123 = vmor %vm4121, %vm4122
    %v4124 = vsel %vm4123, %v4116, %v4120
    %v4125 = vand.u32 2147483647, %v4115
    %vm4126 = vcmp.eq.f32.partialorder %v4125, 8.507059e+37
    %v4127 = vand.u32 %v4115, 2147483648
    %v4128 = vor.u32 1.1754944e-38, %v4127
    %v4129 = vsel %vm4126, %v4128, %v4124
    %v4130 = vmul.f32 %v4105, %v4129
    %v4131 = vmin.f32 %v4130, 1.0
    %v4132 = vmax.f32 %v4131, -1.0
    %v4133 = vmul.f32 %v2642, %v2642
    %v4134 = vmin.f32 16.0, %v4133
    %v4135 = vmul.f32 %v4134, 2.1237322e-06
    %v4136 = vadd.f32 %v4135, 0.00028619796
    %v4137 = vmul.f32 %v4134, %v4136
    %v4138 = vadd.f32 %v4137, 0.0036580483
    %v4139 = vmul.f32 %v4134, %v4138
    %v4140 = vadd.f32 %v4139, 0.05243302
    %v4141 = vmul.f32 %v4134, %v4140
    %v4142 = vadd.f32 %v4141, 0.18741608
    %v4143 = vmul.f32 %v4134, %v4142
    %v4144 = vadd.f32 %v4143, 1.1283791
    %v4145 = vmul.f32 %v2642, %v4144
    %v4146 = vmul.f32 %v4134, 3.8918573e-05
    %v4147 = vadd.f32 %v4146, 0.001143296
    %v4148 = vmul.f32 %v4134, %v4147
    %v4149 = vadd.f32 %v4148, 0.014752088
    %v4150 = vmul.f32 %v4134, %v4149
    %v4151 = vadd.f32 %v4150, 0.112945676
    %v4152 = vmul.f32 %v4134, %v4151
    %v4153 = vadd.f32 %v4152, 0.4994258
    %v4154 = vmul.f32 %v4134, %v4153
    %v4155 = vadd.f32 %v4154, 1.0
    %v4156 = vrcp.pop %v4155
    %v4157 = vmul.f32 %v4155, %v4156
    %v4158 = vsub.f32 1.0, %v4157
    %v4159 = vmul.f32 %v4156, %v4158
    %v4160 = vadd.f32 %v4156, %v4159
    %vm4161 = vweird.f32 %v4155
    %vm4162 = vweird.f32 %v4156
    %vm4163 = vmor %vm4161, %vm4162
    %v4164 = vsel %vm4163, %v4156, %v4160
    %v4165 = vand.u32 2147483647, %v4155
    %vm4166 = vcmp.eq.f32.partialorder %v4165, 8.507059e+37
    %v4167 = vand.u32 %v4155, 2147483648
    %v4168 = vor.u32 1.1754944e-38, %v4167
    %v4169 = vsel %vm4166, %v4168, %v4164
    %v4170 = vmul.f32 %v4145, %v4169
    %v4171 = vmin.f32 %v4170, 1.0
    %v4172 = vmax.f32 %v4171, -1.0
    %v4173 = vmul.f32 %v2643, %v2643
    %v4174 = vmin.f32 16.0, %v4173
    %v4175 = vmul.f32 %v4174, 2.1237322e-06
    %v4176 = vadd.f32 %v4175, 0.00028619796
    %v4177 = vmul.f32 %v4174, %v4176
    %v4178 = vadd.f32 %v4177, 0.0036580483
    %v4179 = vmul.f32 %v4174, %v4178
    %v4180 = vadd.f32 %v4179, 0.05243302
    %v4181 = vmul.f32 %v4174, %v4180
    %v4182 = vadd.f32 %v4181, 0.18741608
    %v4183 = vmul.f32 %v4174, %v4182
    %v4184 = vadd.f32 %v4183, 1.1283791
    %v4185 = vmul.f32 %v2643, %v4184
    %v4186 = vmul.f32 %v4174, 3.8918573e-05
    %v4187 = vadd.f32 %v4186, 0.001143296
    %v4188 = vmul.f32 %v4174, %v4187
    %v4189 = vadd.f32 %v4188, 0.014752088
    %v4190 = vmul.f32 %v4174, %v4189
    %v4191 = vadd.f32 %v4190, 0.112945676
    %v4192 = vmul.f32 %v4174, %v4191
    %v4193 = vadd.f32 %v4192, 0.4994258
    %v4194 = vmul.f32 %v4174, %v4193
    %v4195 = vadd.f32 %v4194, 1.0
    %v4196 = vrcp.pop %v4195
    %v4197 = vmul.f32 %v4195, %v4196
    %v4198 = vsub.f32 1.0, %v4197
    %v4199 = vmul.f32 %v4196, %v4198
    %v4200 = vadd.f32 %v4196, %v4199
    %vm4201 = vweird.f32 %v4195
    %vm4202 = vweird.f32 %v4196
    %vm4203 = vmor %vm4201, %vm4202
    %v4204 = vsel %vm4203, %v4196, %v4200
    %v4205 = vand.u32 2147483647, %v4195
    %vm4206 = vcmp.eq.f32.partialorder %v4205, 8.507059e+37
    %v4207 = vand.u32 %v4195, 2147483648
    %v4208 = vor.u32 1.1754944e-38, %v4207
    %v4209 = vsel %vm4206, %v4208, %v4204
    %v4210 = vmul.f32 %v4185, %v4209
    %v4211 = vmin.f32 %v4210, 1.0
    %v4212 = vmax.f32 %v4211, -1.0
    %v4213 = vmul.f32 %v2644, %v2644
    %v4214 = vmin.f32 16.0, %v4213
    %v4215 = vmul.f32 %v4214, 2.1237322e-06
    %v4216 = vadd.f32 %v4215, 0.00028619796
    %v4217 = vmul.f32 %v4214, %v4216
    %v4218 = vadd.f32 %v4217, 0.0036580483
    %v4219 = vmul.f32 %v4214, %v4218
    %v4220 = vadd.f32 %v4219, 0.05243302
    %v4221 = vmul.f32 %v4214, %v4220
    %v4222 = vadd.f32 %v4221, 0.18741608
    %v4223 = vmul.f32 %v4214, %v4222
    %v4224 = vadd.f32 %v4223, 1.1283791
    %v4225 = vmul.f32 %v2644, %v4224
    %v4226 = vmul.f32 %v4214, 3.8918573e-05
    %v4227 = vadd.f32 %v4226, 0.001143296
    %v4228 = vmul.f32 %v4214, %v4227
    %v4229 = vadd.f32 %v4228, 0.014752088
    %v4230 = vmul.f32 %v4214, %v4229
    %v4231 = vadd.f32 %v4230, 0.112945676
    %v4232 = vmul.f32 %v4214, %v4231
    %v4233 = vadd.f32 %v4232, 0.4994258
    %v4234 = vmul.f32 %v4214, %v4233
    %v4235 = vadd.f32 %v4234, 1.0
    %v4236 = vrcp.pop %v4235
    %v4237 = vmul.f32 %v4235, %v4236
    %v4238 = vsub.f32 1.0, %v4237
    %v4239 = vmul.f32 %v4236, %v4238
    %v4240 = vadd.f32 %v4236, %v4239
    %vm4241 = vweird.f32 %v4235
    %vm4242 = vweird.f32 %v4236
    %vm4243 = vmor %vm4241, %vm4242
    %v4244 = vsel %vm4243, %v4236, %v4240
    %v4245 = vand.u32 2147483647, %v4235
    %vm4246 = vcmp.eq.f32.partialorder %v4245, 8.507059e+37
    %v4247 = vand.u32 %v4235, 2147483648
    %v4248 = vor.u32 1.1754944e-38, %v4247
    %v4249 = vsel %vm4246, %v4248, %v4244
    %v4250 = vmul.f32 %v4225, %v4249
    %v4251 = vmin.f32 %v4250, 1.0
    %v4252 = vmax.f32 %v4251, -1.0
    %v4253 = vmul.f32 %v2645, %v2645
    %v4254 = vmin.f32 16.0, %v4253
    %v4255 = vmul.f32 %v4254, 2.1237322e-06
    %v4256 = vadd.f32 %v4255, 0.00028619796
    %v4257 = vmul.f32 %v4254, %v4256
    %v4258 = vadd.f32 %v4257, 0.0036580483
    %v4259 = vmul.f32 %v4254, %v4258
    %v4260 = vadd.f32 %v4259, 0.05243302
    %v4261 = vmul.f32 %v4254, %v4260
    %v4262 = vadd.f32 %v4261, 0.18741608
    %v4263 = vmul.f32 %v4254, %v4262
    %v4264 = vadd.f32 %v4263, 1.1283791
    %v4265 = vmul.f32 %v2645, %v4264
    %v4266 = vmul.f32 %v4254, 3.8918573e-05
    %v4267 = vadd.f32 %v4266, 0.001143296
    %v4268 = vmul.f32 %v4254, %v4267
    %v4269 = vadd.f32 %v4268, 0.014752088
    %v4270 = vmul.f32 %v4254, %v4269
    %v4271 = vadd.f32 %v4270, 0.112945676
    %v4272 = vmul.f32 %v4254, %v4271
    %v4273 = vadd.f32 %v4272, 0.4994258
    %v4274 = vmul.f32 %v4254, %v4273
    %v4275 = vadd.f32 %v4274, 1.0
    %v4276 = vrcp.pop %v4275
    %v4277 = vmul.f32 %v4275, %v4276
    %v4278 = vsub.f32 1.0, %v4277
    %v4279 = vmul.f32 %v4276, %v4278
    %v4280 = vadd.f32 %v4276, %v4279
    %vm4281 = vweird.f32 %v4275
    %vm4282 = vweird.f32 %v4276
    %vm4283 = vmor %vm4281, %vm4282
    %v4284 = vsel %vm4283, %v4276, %v4280
    %v4285 = vand.u32 2147483647, %v4275
    %vm4286 = vcmp.eq.f32.partialorder %v4285, 8.507059e+37
    %v4287 = vand.u32 %v4275, 2147483648
    %v4288 = vor.u32 1.1754944e-38, %v4287
    %v4289 = vsel %vm4286, %v4288, %v4284
    %v4290 = vmul.f32 %v4265, %v4289
    %v4291 = vmin.f32 %v4290, 1.0
    %v4292 = vmax.f32 %v4291, -1.0
    %v4293 = vmul.f32 %v2646, %v2646
    %v4294 = vmin.f32 16.0, %v4293
    %v4295 = vmul.f32 %v4294, 2.1237322e-06
    %v4296 = vadd.f32 %v4295, 0.00028619796
    %v4297 = vmul.f32 %v4294, %v4296
    %v4298 = vadd.f32 %v4297, 0.0036580483
    %v4299 = vmul.f32 %v4294, %v4298
    %v4300 = vadd.f32 %v4299, 0.05243302
    %v4301 = vmul.f32 %v4294, %v4300
    %v4302 = vadd.f32 %v4301, 0.18741608
    %v4303 = vmul.f32 %v4294, %v4302
    %v4304 = vadd.f32 %v4303, 1.1283791
    %v4305 = vmul.f32 %v2646, %v4304
    %v4306 = vmul.f32 %v4294, 3.8918573e-05
    %v4307 = vadd.f32 %v4306, 0.001143296
    %v4308 = vmul.f32 %v4294, %v4307
    %v4309 = vadd.f32 %v4308, 0.014752088
    %v4310 = vmul.f32 %v4294, %v4309
    %v4311 = vadd.f32 %v4310, 0.112945676
    %v4312 = vmul.f32 %v4294, %v4311
    %v4313 = vadd.f32 %v4312, 0.4994258
    %v4314 = vmul.f32 %v4294, %v4313
    %v4315 = vadd.f32 %v4314, 1.0
    %v4316 = vrcp.pop %v4315
    %v4317 = vmul.f32 %v4315, %v4316
    %v4318 = vsub.f32 1.0, %v4317
    %v4319 = vmul.f32 %v4316, %v4318
    %v4320 = vadd.f32 %v4316, %v4319
    %vm4321 = vweird.f32 %v4315
    %vm4322 = vweird.f32 %v4316
    %vm4323 = vmor %vm4321, %vm4322
    %v4324 = vsel %vm4323, %v4316, %v4320
    %v4325 = vand.u32 2147483647, %v4315
    %vm4326 = vcmp.eq.f32.partialorder %v4325, 8.507059e+37
    %v4327 = vand.u32 %v4315, 2147483648
    %v4328 = vor.u32 1.1754944e-38, %v4327
    %v4329 = vsel %vm4326, %v4328, %v4324
    %v4330 = vmul.f32 %v4305, %v4329
    %v4331 = vmin.f32 %v4330, 1.0
    %v4332 = vmax.f32 %v4331, -1.0
    %v4333 = vmul.f32 %v2647, %v2647
    %v4334 = vmin.f32 16.0, %v4333
    %v4335 = vmul.f32 %v4334, 2.1237322e-06
    %v4336 = vadd.f32 %v4335, 0.00028619796
    %v4337 = vmul.f32 %v4334, %v4336
    %v4338 = vadd.f32 %v4337, 0.0036580483
    %v4339 = vmul.f32 %v4334, %v4338
    %v4340 = vadd.f32 %v4339, 0.05243302
    %v4341 = vmul.f32 %v4334, %v4340
    %v4342 = vadd.f32 %v4341, 0.18741608
    %v4343 = vmul.f32 %v4334, %v4342
    %v4344 = vadd.f32 %v4343, 1.1283791
    %v4345 = vmul.f32 %v2647, %v4344
    %v4346 = vmul.f32 %v4334, 3.8918573e-05
    %v4347 = vadd.f32 %v4346, 0.001143296
    %v4348 = vmul.f32 %v4334, %v4347
    %v4349 = vadd.f32 %v4348, 0.014752088
    %v4350 = vmul.f32 %v4334, %v4349
    %v4351 = vadd.f32 %v4350, 0.112945676
    %v4352 = vmul.f32 %v4334, %v4351
    %v4353 = vadd.f32 %v4352, 0.4994258
    %v4354 = vmul.f32 %v4334, %v4353
    %v4355 = vadd.f32 %v4354, 1.0
    %v4356 = vrcp.pop %v4355
    %v4357 = vmul.f32 %v4355, %v4356
    %v4358 = vsub.f32 1.0, %v4357
    %v4359 = vmul.f32 %v4356, %v4358
    %v4360 = vadd.f32 %v4356, %v4359
    %vm4361 = vweird.f32 %v4355
    %vm4362 = vweird.f32 %v4356
    %vm4363 = vmor %vm4361, %vm4362
    %v4364 = vsel %vm4363, %v4356, %v4360
    %v4365 = vand.u32 2147483647, %v4355
    %vm4366 = vcmp.eq.f32.partialorder %v4365, 8.507059e+37
    %v4367 = vand.u32 %v4355, 2147483648
    %v4368 = vor.u32 1.1754944e-38, %v4367
    %v4369 = vsel %vm4366, %v4368, %v4364
    %v4370 = vmul.f32 %v4345, %v4369
    %v4371 = vmin.f32 %v4370, 1.0
    %v4372 = vmax.f32 %v4371, -1.0
    %v4373 = vmul.f32 %v2648, %v2648
    %v4374 = vmin.f32 16.0, %v4373
    %v4375 = vmul.f32 %v4374, 2.1237322e-06
    %v4376 = vadd.f32 %v4375, 0.00028619796
    %v4377 = vmul.f32 %v4374, %v4376
    %v4378 = vadd.f32 %v4377, 0.0036580483
    %v4379 = vmul.f32 %v4374, %v4378
    %v4380 = vadd.f32 %v4379, 0.05243302
    %v4381 = vmul.f32 %v4374, %v4380
    %v4382 = vadd.f32 %v4381, 0.18741608
    %v4383 = vmul.f32 %v4374, %v4382
    %v4384 = vadd.f32 %v4383, 1.1283791
    %v4385 = vmul.f32 %v2648, %v4384
    %v4386 = vmul.f32 %v4374, 3.8918573e-05
    %v4387 = vadd.f32 %v4386, 0.001143296
    %v4388 = vmul.f32 %v4374, %v4387
    %v4389 = vadd.f32 %v4388, 0.014752088
    %v4390 = vmul.f32 %v4374, %v4389
    %v4391 = vadd.f32 %v4390, 0.112945676
    %v4392 = vmul.f32 %v4374, %v4391
    %v4393 = vadd.f32 %v4392, 0.4994258
    %v4394 = vmul.f32 %v4374, %v4393
    %v4395 = vadd.f32 %v4394, 1.0
    %v4396 = vrcp.pop %v4395
    %v4397 = vmul.f32 %v4395, %v4396
    %v4398 = vsub.f32 1.0, %v4397
    %v4399 = vmul.f32 %v4396, %v4398
    %v4400 = vadd.f32 %v4396, %v4399
    %vm4401 = vweird.f32 %v4395
    %vm4402 = vweird.f32 %v4396
    %vm4403 = vmor %vm4401, %vm4402
    %v4404 = vsel %vm4403, %v4396, %v4400
    %v4405 = vand.u32 2147483647, %v4395
    %vm4406 = vcmp.eq.f32.partialorder %v4405, 8.507059e+37
    %v4407 = vand.u32 %v4395, 2147483648
    %v4408 = vor.u32 1.1754944e-38, %v4407
    %v4409 = vsel %vm4406, %v4408, %v4404
    %v4410 = vmul.f32 %v4385, %v4409
    %v4411 = vmin.f32 %v4410, 1.0
    %v4412 = vmax.f32 %v4411, -1.0
    %v4413 = vmul.f32 %v2649, %v2649
    %v4414 = vmin.f32 16.0, %v4413
    %v4415 = vmul.f32 %v4414, 2.1237322e-06
    %v4416 = vadd.f32 %v4415, 0.00028619796
    %v4417 = vmul.f32 %v4414, %v4416
    %v4418 = vadd.f32 %v4417, 0.0036580483
    %v4419 = vmul.f32 %v4414, %v4418
    %v4420 = vadd.f32 %v4419, 0.05243302
    %v4421 = vmul.f32 %v4414, %v4420
    %v4422 = vadd.f32 %v4421, 0.18741608
    %v4423 = vmul.f32 %v4414, %v4422
    %v4424 = vadd.f32 %v4423, 1.1283791
    %v4425 = vmul.f32 %v2649, %v4424
    %v4426 = vmul.f32 %v4414, 3.8918573e-05
    %v4427 = vadd.f32 %v4426, 0.001143296
    %v4428 = vmul.f32 %v4414, %v4427
    %v4429 = vadd.f32 %v4428, 0.014752088
    %v4430 = vmul.f32 %v4414, %v4429
    %v4431 = vadd.f32 %v4430, 0.112945676
    %v4432 = vmul.f32 %v4414, %v4431
    %v4433 = vadd.f32 %v4432, 0.4994258
    %v4434 = vmul.f32 %v4414, %v4433
    %v4435 = vadd.f32 %v4434, 1.0
    %v4436 = vrcp.pop %v4435
    %v4437 = vmul.f32 %v4435, %v4436
    %v4438 = vsub.f32 1.0, %v4437
    %v4439 = vmul.f32 %v4436, %v4438
    %v4440 = vadd.f32 %v4436, %v4439
    %vm4441 = vweird.f32 %v4435
    %vm4442 = vweird.f32 %v4436
    %vm4443 = vmor %vm4441, %vm4442
    %v4444 = vsel %vm4443, %v4436, %v4440
    %v4445 = vand.u32 2147483647, %v4435
    %vm4446 = vcmp.eq.f32.partialorder %v4445, 8.507059e+37
    %v4447 = vand.u32 %v4435, 2147483648
    %v4448 = vor.u32 1.1754944e-38, %v4447
    %v4449 = vsel %vm4446, %v4448, %v4444
    %v4450 = vmul.f32 %v4425, %v4449
    %v4451 = vmin.f32 %v4450, 1.0
    %v4452 = vmax.f32 %v4451, -1.0
    %v4453 = vmul.f32 %v2650, %v2650
    %v4454 = vmin.f32 16.0, %v4453
    %v4455 = vmul.f32 %v4454, 2.1237322e-06
    %v4456 = vadd.f32 %v4455, 0.00028619796
    %v4457 = vmul.f32 %v4454, %v4456
    %v4458 = vadd.f32 %v4457, 0.0036580483
    %v4459 = vmul.f32 %v4454, %v4458
    %v4460 = vadd.f32 %v4459, 0.05243302
    %v4461 = vmul.f32 %v4454, %v4460
    %v4462 = vadd.f32 %v4461, 0.18741608
    %v4463 = vmul.f32 %v4454, %v4462
    %v4464 = vadd.f32 %v4463, 1.1283791
    %v4465 = vmul.f32 %v2650, %v4464
    %v4466 = vmul.f32 %v4454, 3.8918573e-05
    %v4467 = vadd.f32 %v4466, 0.001143296
    %v4468 = vmul.f32 %v4454, %v4467
    %v4469 = vadd.f32 %v4468, 0.014752088
    %v4470 = vmul.f32 %v4454, %v4469
    %v4471 = vadd.f32 %v4470, 0.112945676
    %v4472 = vmul.f32 %v4454, %v4471
    %v4473 = vadd.f32 %v4472, 0.4994258
    %v4474 = vmul.f32 %v4454, %v4473
    %v4475 = vadd.f32 %v4474, 1.0
    %v4476 = vrcp.pop %v4475
    %v4477 = vmul.f32 %v4475, %v4476
    %v4478 = vsub.f32 1.0, %v4477
    %v4479 = vmul.f32 %v4476, %v4478
    %v4480 = vadd.f32 %v4476, %v4479
    %vm4481 = vweird.f32 %v4475
    %vm4482 = vweird.f32 %v4476
    %vm4483 = vmor %vm4481, %vm4482
    %v4484 = vsel %vm4483, %v4476, %v4480
    %v4485 = vand.u32 2147483647, %v4475
    %vm4486 = vcmp.eq.f32.partialorder %v4485, 8.507059e+37
    %v4487 = vand.u32 %v4475, 2147483648
    %v4488 = vor.u32 1.1754944e-38, %v4487
    %v4489 = vsel %vm4486, %v4488, %v4484
    %v4490 = vmul.f32 %v4465, %v4489
    %v4491 = vmin.f32 %v4490, 1.0
    %v4492 = vmax.f32 %v4491, -1.0
    %v4493 = vmul.f32 %v2651, %v2651
    %v4494 = vmin.f32 16.0, %v4493
    %v4495 = vmul.f32 %v4494, 2.1237322e-06
    %v4496 = vadd.f32 %v4495, 0.00028619796
    %v4497 = vmul.f32 %v4494, %v4496
    %v4498 = vadd.f32 %v4497, 0.0036580483
    %v4499 = vmul.f32 %v4494, %v4498
    %v4500 = vadd.f32 %v4499, 0.05243302
    %v4501 = vmul.f32 %v4494, %v4500
    %v4502 = vadd.f32 %v4501, 0.18741608
    %v4503 = vmul.f32 %v4494, %v4502
    %v4504 = vadd.f32 %v4503, 1.1283791
    %v4505 = vmul.f32 %v2651, %v4504
    %v4506 = vmul.f32 %v4494, 3.8918573e-05
    %v4507 = vadd.f32 %v4506, 0.001143296
    %v4508 = vmul.f32 %v4494, %v4507
    %v4509 = vadd.f32 %v4508, 0.014752088
    %v4510 = vmul.f32 %v4494, %v4509
    %v4511 = vadd.f32 %v4510, 0.112945676
    %v4512 = vmul.f32 %v4494, %v4511
    %v4513 = vadd.f32 %v4512, 0.4994258
    %v4514 = vmul.f32 %v4494, %v4513
    %v4515 = vadd.f32 %v4514, 1.0
    %v4516 = vrcp.pop %v4515
    %v4517 = vmul.f32 %v4515, %v4516
    %v4518 = vsub.f32 1.0, %v4517
    %v4519 = vmul.f32 %v4516, %v4518
    %v4520 = vadd.f32 %v4516, %v4519
    %vm4521 = vweird.f32 %v4515
    %vm4522 = vweird.f32 %v4516
    %vm4523 = vmor %vm4521, %vm4522
    %v4524 = vsel %vm4523, %v4516, %v4520
    %v4525 = vand.u32 2147483647, %v4515
    %vm4526 = vcmp.eq.f32.partialorder %v4525, 8.507059e+37
    %v4527 = vand.u32 %v4515, 2147483648
    %v4528 = vor.u32 1.1754944e-38, %v4527
    %v4529 = vsel %vm4526, %v4528, %v4524
    %v4530 = vmul.f32 %v4505, %v4529
    %v4531 = vmin.f32 %v4530, 1.0
    %v4532 = vmax.f32 %v4531, -1.0
    %v4533 = vmul.f32 %v2652, %v2652
    %v4534 = vmin.f32 16.0, %v4533
    %v4535 = vmul.f32 %v4534, 2.1237322e-06
    %v4536 = vadd.f32 %v4535, 0.00028619796
    %v4537 = vmul.f32 %v4534, %v4536
    %v4538 = vadd.f32 %v4537, 0.0036580483
    %v4539 = vmul.f32 %v4534, %v4538
    %v4540 = vadd.f32 %v4539, 0.05243302
    %v4541 = vmul.f32 %v4534, %v4540
    %v4542 = vadd.f32 %v4541, 0.18741608
    %v4543 = vmul.f32 %v4534, %v4542
    %v4544 = vadd.f32 %v4543, 1.1283791
    %v4545 = vmul.f32 %v2652, %v4544
    %v4546 = vmul.f32 %v4534, 3.8918573e-05
    %v4547 = vadd.f32 %v4546, 0.001143296
    %v4548 = vmul.f32 %v4534, %v4547
    %v4549 = vadd.f32 %v4548, 0.014752088
    %v4550 = vmul.f32 %v4534, %v4549
    %v4551 = vadd.f32 %v4550, 0.112945676
    %v4552 = vmul.f32 %v4534, %v4551
    %v4553 = vadd.f32 %v4552, 0.4994258
    %v4554 = vmul.f32 %v4534, %v4553
    %v4555 = vadd.f32 %v4554, 1.0
    %v4556 = vrcp.pop %v4555
    %v4557 = vmul.f32 %v4555, %v4556
    %v4558 = vsub.f32 1.0, %v4557
    %v4559 = vmul.f32 %v4556, %v4558
    %v4560 = vadd.f32 %v4556, %v4559
    %vm4561 = vweird.f32 %v4555
    %vm4562 = vweird.f32 %v4556
    %vm4563 = vmor %vm4561, %vm4562
    %v4564 = vsel %vm4563, %v4556, %v4560
    %v4565 = vand.u32 2147483647, %v4555
    %vm4566 = vcmp.eq.f32.partialorder %v4565, 8.507059e+37
    %v4567 = vand.u32 %v4555, 2147483648
    %v4568 = vor.u32 1.1754944e-38, %v4567
    %v4569 = vsel %vm4566, %v4568, %v4564
    %v4570 = vmul.f32 %v4545, %v4569
    %v4571 = vmin.f32 %v4570, 1.0
    %v4572 = vmax.f32 %v4571, -1.0
    %v4573 = vadd.f32 %v2692, 1.0
    %v4574 = vadd.f32 %v2732, 1.0
    %v4575 = vadd.f32 %v2772, 1.0
    %v4576 = vadd.f32 %v2812, 1.0
    %v4577 = vadd.f32 %v2852, 1.0
    %v4578 = vadd.f32 %v2892, 1.0
    %v4579 = vadd.f32 %v2932, 1.0
    %v4580 = vadd.f32 %v2972, 1.0
    %v4581 = vadd.f32 %v3012, 1.0
    %v4582 = vadd.f32 %v3052, 1.0
    %v4583 = vadd.f32 %v3092, 1.0
    %v4584 = vadd.f32 %v3132, 1.0
    %v4585 = vadd.f32 %v3172, 1.0
    %v4586 = vadd.f32 %v3212, 1.0
    %v4587 = vadd.f32 %v3252, 1.0
    %v4588 = vadd.f32 %v3292, 1.0
    %v4589 = vadd.f32 %v3332, 1.0
    %v4590 = vadd.f32 %v3372, 1.0
    %v4591 = vadd.f32 %v3412, 1.0
    %v4592 = vadd.f32 %v3452, 1.0
    %v4593 = vadd.f32 %v3492, 1.0
    %v4594 = vadd.f32 %v3532, 1.0
    %v4595 = vadd.f32 %v3572, 1.0
    %v4596 = vadd.f32 %v3612, 1.0
    %v4597 = vadd.f32 %v3652, 1.0
    %v4598 = vadd.f32 %v3692, 1.0
    %v4599 = vadd.f32 %v3732, 1.0
    %v4600 = vadd.f32 %v3772, 1.0
    %v4601 = vadd.f32 %v3812, 1.0
    %v4602 = vadd.f32 %v3852, 1.0
    %v4603 = vadd.f32 %v3892, 1.0
    %v4604 = vadd.f32 %v3932, 1.0
    %v4605 = vadd.f32 %v3972, 1.0
    %v4606 = vadd.f32 %v4012, 1.0
    %v4607 = vadd.f32 %v4052, 1.0
    %v4608 = vadd.f32 %v4092, 1.0
    %v4609 = vadd.f32 %v4132, 1.0
    %v4610 = vadd.f32 %v4172, 1.0
    %v4611 = vadd.f32 %v4212, 1.0
    %v4612 = vadd.f32 %v4252, 1.0
    %v4613 = vadd.f32 %v4292, 1.0
    %v4614 = vadd.f32 %v4332, 1.0
    %v4615 = vadd.f32 %v4372, 1.0
    %v4616 = vadd.f32 %v4412, 1.0
    %v4617 = vadd.f32 %v4452, 1.0
    %v4618 = vadd.f32 %v4492, 1.0
    %v4619 = vadd.f32 %v4532, 1.0
    %v4620 = vadd.f32 %v4572, 1.0
    %v4621 = vmul.f32 %v2557, %v4573
    %v4622 = vmul.f32 %v2558, %v4574
    %v4623 = vmul.f32 %v2559, %v4575
    %v4624 = vmul.f32 %v2560, %v4576
    %v4625 = vmul.f32 %v2561, %v4577
    %v4626 = vmul.f32 %v2562, %v4578
    %v4627 = vmul.f32 %v2563, %v4579
    %v4628 = vmul.f32 %v2564, %v4580
    %v4629 = vmul.f32 %v2565, %v4581
    %v4630 = vmul.f32 %v2566, %v4582
    %v4631 = vmul.f32 %v2567, %v4583
    %v4632 = vmul.f32 %v2568, %v4584
    %v4633 = vmul.f32 %v2569, %v4585
    %v4634 = vmul.f32 %v2570, %v4586
    %v4635 = vmul.f32 %v2571, %v4587
    %v4636 = vmul.f32 %v2572, %v4588
    %v4637 = vmul.f32 %v2573, %v4589
    %v4638 = vmul.f32 %v2574, %v4590
    %v4639 = vmul.f32 %v2575, %v4591
    %v4640 = vmul.f32 %v2576, %v4592
    %v4641 = vmul.f32 %v2577, %v4593
    %v4642 = vmul.f32 %v2578, %v4594
    %v4643 = vmul.f32 %v2579, %v4595
    %v4644 = vmul.f32 %v2580, %v4596
    %v4645 = vmul.f32 %v2581, %v4597
    %v4646 = vmul.f32 %v2582, %v4598
    %v4647 = vmul.f32 %v2583, %v4599
    %v4648 = vmul.f32 %v2584, %v4600
    %v4649 = vmul.f32 %v2585, %v4601
    %v4650 = vmul.f32 %v2586, %v4602
    %v4651 = vmul.f32 %v2587, %v4603
    %v4652 = vmul.f32 %v2588, %v4604
    %v4653 = vmul.f32 %v2589, %v4605
    %v4654 = vmul.f32 %v2590, %v4606
    %v4655 = vmul.f32 %v2591, %v4607
    %v4656 = vmul.f32 %v2592, %v4608
    %v4657 = vmul.f32 %v2593, %v4609
    %v4658 = vmul.f32 %v2594, %v4610
    %v4659 = vmul.f32 %v2595, %v4611
    %v4660 = vmul.f32 %v2596, %v4612
    %v4661 = vmul.f32 %v2597, %v4613
    %v4662 = vmul.f32 %v2598, %v4614
    %v4663 = vmul.f32 %v2599, %v4615
    %v4664 = vmul.f32 %v2600, %v4616
    %v4665 = vmul.f32 %v2601, %v4617
    %v4666 = vmul.f32 %v2602, %v4618
    %v4667 = vmul.f32 %v2603, %v4619
    %v4668 = vmul.f32 %v2604, %v4620
    %v4669 = vpack.c.bf16 %v4645, %v4621
    %v4670 = vpack.c.bf16 %v4646, %v4622
    %v4671 = vpack.c.bf16 %v4647, %v4623
    %v4672 = vpack.c.bf16 %v4648, %v4624
    %v4673 = vpack.c.bf16 %v4649, %v4625
    %v4674 = vpack.c.bf16 %v4650, %v4626
    %v4675 = vpack.c.bf16 %v4651, %v4627
    %v4676 = vpack.c.bf16 %v4652, %v4628
    %v4677 = vpack.c.bf16 %v4653, %v4629
    %v4678 = vpack.c.bf16 %v4654, %v4630
    %v4679 = vpack.c.bf16 %v4655, %v4631
    %v4680 = vpack.c.bf16 %v4656, %v4632
    %v4681 = vpack.c.bf16 %v4657, %v4633
    %v4682 = vpack.c.bf16 %v4658, %v4634
    %v4683 = vpack.c.bf16 %v4659, %v4635
    %v4684 = vpack.c.bf16 %v4660, %v4636
    %v4685 = vpack.c.bf16 %v4661, %v4637
    %v4686 = vpack.c.bf16 %v4662, %v4638
    %v4687 = vpack.c.bf16 %v4663, %v4639
    %v4688 = vpack.c.bf16 %v4664, %v4640
    %v4689 = vpack.c.bf16 %v4665, %v4641
    %v4690 = vpack.c.bf16 %v4666, %v4642
    %v4691 = vpack.c.bf16 %v4667, %v4643
    %v4692 = vpack.c.bf16 %v4668, %v4644
    %v4693 = vld [vmem:[%s9] sm:$0xf]
    %v4694 = vld [vmem:[%s9 + $0x4] sm:$0xf]
    %v4695 = vld [vmem:[%s9 + $0x8] sm:$0xf]
    %v4696 = vld [vmem:[%s9 + $0xc] sm:$0xf]
    %v4697 = vld [vmem:[%s9 + $0x10] sm:$0xf]
    %v4698 = vld [vmem:[%s9 + $0x14] sm:$0xf]
    %v4699 = vld [vmem:[%s9 + $0x18] sm:$0xf]
    %v4700 = vld [vmem:[%s9 + $0x1c] sm:$0xf]
    %v4701 = vld [vmem:[%s9 + $0x20] sm:$0xf]
    %v4702 = vld [vmem:[%s9 + $0x24] sm:$0xf]
    %v4703 = vld [vmem:[%s9 + $0x28] sm:$0xf]
    %v4704 = vld [vmem:[%s9 + $0x2c] sm:$0xf]
    %v4705 = vld [vmem:[%s9 + $0x30] sm:$0xf]
    %v4706 = vld [vmem:[%s9 + $0x34] sm:$0xf]
    %v4707 = vld [vmem:[%s9 + $0x38] sm:$0xf]
    %v4708 = vld [vmem:[%s9 + $0x3c] sm:$0xf]
    %v4709 = vld [vmem:[%s9 + $0x40] sm:$0xf]
    %v4710 = vld [vmem:[%s9 + $0x44] sm:$0xf]
    %v4711 = vld [vmem:[%s9 + $0x48] sm:$0xf]
    %v4712 = vld [vmem:[%s9 + $0x4c] sm:$0xf]
    %v4713 = vld [vmem:[%s9 + $0x50] sm:$0xf]
    %v4714 = vld [vmem:[%s9 + $0x54] sm:$0xf]
    %v4715 = vld [vmem:[%s9 + $0x58] sm:$0xf]
    %v4716 = vld [vmem:[%s9 + $0x5c] sm:$0xf]
    %v4717 = vld [vmem:[%s9 + $0x60] sm:$0xf]
    %v4718 = vld [vmem:[%s9 + $0x64] sm:$0xf]
    %v4719 = vld [vmem:[%s9 + $0x68] sm:$0xf]
    %v4720 = vld [vmem:[%s9 + $0x6c] sm:$0xf]
    %v4721 = vld [vmem:[%s9 + $0x70] sm:$0xf]
    %v4722 = vld [vmem:[%s9 + $0x74] sm:$0xf]
    %v4723 = vld [vmem:[%s9 + $0x78] sm:$0xf]
    %v4724 = vld [vmem:[%s9 + $0x7c] sm:$0xf]
    %v4725 = vld [vmem:[%s9 + $0x80] sm:$0xf]
    %v4726 = vld [vmem:[%s9 + $0x84] sm:$0xf]
    %v4727 = vld [vmem:[%s9 + $0x88] sm:$0xf]
    %v4728 = vld [vmem:[%s9 + $0x8c] sm:$0xf]
    %v4729 = vld [vmem:[%s9 + $0x90] sm:$0xf]
    %v4730 = vld [vmem:[%s9 + $0x94] sm:$0xf]
    %v4731 = vld [vmem:[%s9 + $0x98] sm:$0xf]
    %v4732 = vld [vmem:[%s9 + $0x9c] sm:$0xf]
    %v4733 = vld [vmem:[%s9 + $0xa0] sm:$0xf]
    %v4734 = vld [vmem:[%s9 + $0xa4] sm:$0xf]
    %v4735 = vld [vmem:[%s9 + $0xa8] sm:$0xf]
    %v4736 = vld [vmem:[%s9 + $0xac] sm:$0xf]
    %v4737 = vld [vmem:[%s9 + $0xb0] sm:$0xf]
    %v4738 = vld [vmem:[%s9 + $0xb4] sm:$0xf]
    %v4739 = vld [vmem:[%s9 + $0xb8] sm:$0xf]
    %v4740 = vld [vmem:[%s9 + $0xbc] sm:$0xf]
    %v4741 = vld [vmem:[%s9 + $0xc0] sm:$0xf]
    %v4742 = vld [vmem:[%s9 + $0xc4] sm:$0xf]
    %v4743 = vld [vmem:[%s9 + $0xc8] sm:$0xf]
    %v4744 = vld [vmem:[%s9 + $0xcc] sm:$0xf]
    %v4745 = vld [vmem:[%s9 + $0xd0] sm:$0xf]
    %v4746 = vld [vmem:[%s9 + $0xd4] sm:$0xf]
    %v4747 = vld [vmem:[%s9 + $0xd8] sm:$0xf]
    %v4748 = vld [vmem:[%s9 + $0xdc] sm:$0xf]
    %v4749 = vld [vmem:[%s9 + $0xe0] sm:$0xf]
    %v4750 = vld [vmem:[%s9 + $0xe4] sm:$0xf]
    %v4751 = vld [vmem:[%s9 + $0xe8] sm:$0xf]
    %v4752 = vld [vmem:[%s9 + $0xec] sm:$0xf]
    %v4753 = vld [vmem:[%s9 + $0xf0] sm:$0xf]
    %v4754 = vld [vmem:[%s9 + $0xf4] sm:$0xf]
    %v4755 = vld [vmem:[%s9 + $0xf8] sm:$0xf]
    %v4756 = vld [vmem:[%s9 + $0xfc] sm:$0xf]
    %v4757 = vld [vmem:[%s9 + $0x100] sm:$0xf]
    %v4758 = vld [vmem:[%s9 + $0x104] sm:$0xf]
    %v4759 = vld [vmem:[%s9 + $0x108] sm:$0xf]
    %v4760 = vld [vmem:[%s9 + $0x10c] sm:$0xf]
    %v4761 = vld [vmem:[%s9 + $0x110] sm:$0xf]
    %v4762 = vld [vmem:[%s9 + $0x114] sm:$0xf]
    %v4763 = vld [vmem:[%s9 + $0x118] sm:$0xf]
    %v4764 = vld [vmem:[%s9 + $0x11c] sm:$0xf]
    %v4765 = vld [vmem:[%s9 + $0x120] sm:$0xf]
    %v4766 = vld [vmem:[%s9 + $0x124] sm:$0xf]
    %v4767 = vld [vmem:[%s9 + $0x128] sm:$0xf]
    %v4768 = vld [vmem:[%s9 + $0x12c] sm:$0xf]
    %v4769 = vld [vmem:[%s9 + $0x130] sm:$0xf]
    %v4770 = vld [vmem:[%s9 + $0x134] sm:$0xf]
    %v4771 = vld [vmem:[%s9 + $0x138] sm:$0xf]
    %v4772 = vld [vmem:[%s9 + $0x13c] sm:$0xf]
    %v4773 = vld [vmem:[%s9 + $0x140] sm:$0xf]
    %v4774 = vld [vmem:[%s9 + $0x144] sm:$0xf]
    %v4775 = vld [vmem:[%s9 + $0x148] sm:$0xf]
    %v4776 = vld [vmem:[%s9 + $0x14c] sm:$0xf]
    %v4777 = vld [vmem:[%s9 + $0x150] sm:$0xf]
    %v4778 = vld [vmem:[%s9 + $0x154] sm:$0xf]
    %v4779 = vld [vmem:[%s9 + $0x158] sm:$0xf]
    %v4780 = vld [vmem:[%s9 + $0x15c] sm:$0xf]
    %v4781 = vld [vmem:[%s9 + $0x160] sm:$0xf]
    %v4782 = vld [vmem:[%s9 + $0x164] sm:$0xf]
    %v4783 = vld [vmem:[%s9 + $0x168] sm:$0xf]
    %v4784 = vld [vmem:[%s9 + $0x16c] sm:$0xf]
    %v4785 = vld [vmem:[%s9 + $0x170] sm:$0xf]
    %v4786 = vld [vmem:[%s9 + $0x174] sm:$0xf]
    %v4787 = vld [vmem:[%s9 + $0x178] sm:$0xf]
    %v4788 = vld [vmem:[%s9 + $0x17c] sm:$0xf]
    %v4789 = vld [vmem:[%s9 + $0x180] sm:$0xf]
    %v4790 = vld [vmem:[%s9 + $0x184] sm:$0xf]
    %v4791 = vld [vmem:[%s9 + $0x188] sm:$0xf]
    %v4792 = vld [vmem:[%s9 + $0x18c] sm:$0xf]
    %v4793 = vld [vmem:[%s9 + $0x190] sm:$0xf]
    %v4794 = vld [vmem:[%s9 + $0x194] sm:$0xf]
    %v4795 = vld [vmem:[%s9 + $0x198] sm:$0xf]
    %v4796 = vld [vmem:[%s9 + $0x19c] sm:$0xf]
    %v4797 = vld [vmem:[%s9 + $0x1a0] sm:$0xf]
    %v4798 = vld [vmem:[%s9 + $0x1a4] sm:$0xf]
    %v4799 = vld [vmem:[%s9 + $0x1a8] sm:$0xf]
    %v4800 = vld [vmem:[%s9 + $0x1ac] sm:$0xf]
    %v4801 = vld [vmem:[%s9 + $0x1b0] sm:$0xf]
    %v4802 = vld [vmem:[%s9 + $0x1b4] sm:$0xf]
    %v4803 = vld [vmem:[%s9 + $0x1b8] sm:$0xf]
    %v4804 = vld [vmem:[%s9 + $0x1bc] sm:$0xf]
    %v4805 = vld [vmem:[%s9 + $0x1c0] sm:$0xf]
    %v4806 = vld [vmem:[%s9 + $0x1c4] sm:$0xf]
    %v4807 = vld [vmem:[%s9 + $0x1c8] sm:$0xf]
    %v4808 = vld [vmem:[%s9 + $0x1cc] sm:$0xf]
    %v4809 = vld [vmem:[%s9 + $0x1d0] sm:$0xf]
    %v4810 = vld [vmem:[%s9 + $0x1d4] sm:$0xf]
    %v4811 = vld [vmem:[%s9 + $0x1d8] sm:$0xf]
    %v4812 = vld [vmem:[%s9 + $0x1dc] sm:$0xf]
    %v4813 = vld [vmem:[%s9 + $0x1e0] sm:$0xf]
    %v4814 = vld [vmem:[%s9 + $0x1e4] sm:$0xf]
    %v4815 = vld [vmem:[%s9 + $0x1e8] sm:$0xf]
    %v4816 = vld [vmem:[%s9 + $0x1ec] sm:$0xf]
    %v4817 = vld [vmem:[%s9 + $0x1f0] sm:$0xf]
    %v4818 = vld [vmem:[%s9 + $0x1f4] sm:$0xf]
    %v4819 = vld [vmem:[%s9 + $0x1f8] sm:$0xf]
    %v4820 = vld [vmem:[%s9 + $0x1fc] sm:$0xf]
    %v4821 = vld [vmem:[%s9 + $0x200] sm:$0xf]
    %v4822 = vld [vmem:[%s9 + $0x204] sm:$0xf]
    %v4823 = vld [vmem:[%s9 + $0x208] sm:$0xf]
    %v4824 = vld [vmem:[%s9 + $0x20c] sm:$0xf]
    %v4825 = vld [vmem:[%s9 + $0x210] sm:$0xf]
    %v4826 = vld [vmem:[%s9 + $0x214] sm:$0xf]
    %v4827 = vld [vmem:[%s9 + $0x218] sm:$0xf]
    %v4828 = vld [vmem:[%s9 + $0x21c] sm:$0xf]
    %v4829 = vld [vmem:[%s9 + $0x220] sm:$0xf]
    %v4830 = vld [vmem:[%s9 + $0x224] sm:$0xf]
    %v4831 = vld [vmem:[%s9 + $0x228] sm:$0xf]
    %v4832 = vld [vmem:[%s9 + $0x22c] sm:$0xf]
    %v4833 = vld [vmem:[%s9 + $0x230] sm:$0xf]
    %v4834 = vld [vmem:[%s9 + $0x234] sm:$0xf]
    %v4835 = vld [vmem:[%s9 + $0x238] sm:$0xf]
    %v4836 = vld [vmem:[%s9 + $0x23c] sm:$0xf]
    %v4837 = vld [vmem:[%s9 + $0x240] sm:$0xf]
    %v4838 = vld [vmem:[%s9 + $0x244] sm:$0xf]
    %v4839 = vld [vmem:[%s9 + $0x248] sm:$0xf]
    %v4840 = vld [vmem:[%s9 + $0x24c] sm:$0xf]
    %v4841 = vld [vmem:[%s9 + $0x250] sm:$0xf]
    %v4842 = vld [vmem:[%s9 + $0x254] sm:$0xf]
    %v4843 = vld [vmem:[%s9 + $0x258] sm:$0xf]
    %v4844 = vld [vmem:[%s9 + $0x25c] sm:$0xf]
    %v4845 = vld [vmem:[%s9 + $0x260] sm:$0xf]
    %v4846 = vld [vmem:[%s9 + $0x264] sm:$0xf]
    %v4847 = vld [vmem:[%s9 + $0x268] sm:$0xf]
    %v4848 = vld [vmem:[%s9 + $0x26c] sm:$0xf]
    %v4849 = vld [vmem:[%s9 + $0x270] sm:$0xf]
    %v4850 = vld [vmem:[%s9 + $0x274] sm:$0xf]
    %v4851 = vld [vmem:[%s9 + $0x278] sm:$0xf]
    %v4852 = vld [vmem:[%s9 + $0x27c] sm:$0xf]
    %v4853 = vld [vmem:[%s9 + $0x280] sm:$0xf]
    %v4854 = vld [vmem:[%s9 + $0x284] sm:$0xf]
    %v4855 = vld [vmem:[%s9 + $0x288] sm:$0xf]
    %v4856 = vld [vmem:[%s9 + $0x28c] sm:$0xf]
    %v4857 = vld [vmem:[%s9 + $0x290] sm:$0xf]
    %v4858 = vld [vmem:[%s9 + $0x294] sm:$0xf]
    %v4859 = vld [vmem:[%s9 + $0x298] sm:$0xf]
    %v4860 = vld [vmem:[%s9 + $0x29c] sm:$0xf]
    %v4861 = vld [vmem:[%s9 + $0x2a0] sm:$0xf]
    %v4862 = vld [vmem:[%s9 + $0x2a4] sm:$0xf]
    %v4863 = vld [vmem:[%s9 + $0x2a8] sm:$0xf]
    %v4864 = vld [vmem:[%s9 + $0x2ac] sm:$0xf]
    %v4865 = vld [vmem:[%s9 + $0x2b0] sm:$0xf]
    %v4866 = vld [vmem:[%s9 + $0x2b4] sm:$0xf]
    %v4867 = vld [vmem:[%s9 + $0x2b8] sm:$0xf]
    %v4868 = vld [vmem:[%s9 + $0x2bc] sm:$0xf]
    %v4869 = vld [vmem:[%s9 + $0x2c0] sm:$0xf]
    %v4870 = vld [vmem:[%s9 + $0x2c4] sm:$0xf]
    %v4871 = vld [vmem:[%s9 + $0x2c8] sm:$0xf]
    %v4872 = vld [vmem:[%s9 + $0x2cc] sm:$0xf]
    %v4873 = vld [vmem:[%s9 + $0x2d0] sm:$0xf]
    %v4874 = vld [vmem:[%s9 + $0x2d4] sm:$0xf]
    %v4875 = vld [vmem:[%s9 + $0x2d8] sm:$0xf]
    %v4876 = vld [vmem:[%s9 + $0x2dc] sm:$0xf]
    %v4877 = vld [vmem:[%s9 + $0x2e0] sm:$0xf]
    %v4878 = vld [vmem:[%s9 + $0x2e4] sm:$0xf]
    %v4879 = vld [vmem:[%s9 + $0x2e8] sm:$0xf]
    %v4880 = vld [vmem:[%s9 + $0x2ec] sm:$0xf]
    %v4881 = vld [vmem:[%s9 + $0x2f0] sm:$0xf]
    %v4882 = vld [vmem:[%s9 + $0x2f4] sm:$0xf]
    %v4883 = vld [vmem:[%s9 + $0x2f8] sm:$0xf]
    %v4884 = vld [vmem:[%s9 + $0x2fc] sm:$0xf]
    %v4885 = vld [vmem:[%s9 + $0x300] sm:$0xf]
    %v4886 = vld [vmem:[%s9 + $0x304] sm:$0xf]
    %v4887 = vld [vmem:[%s9 + $0x308] sm:$0xf]
    %v4888 = vld [vmem:[%s9 + $0x30c] sm:$0xf]
    %v4889 = vld [vmem:[%s9 + $0x310] sm:$0xf]
    %v4890 = vld [vmem:[%s9 + $0x314] sm:$0xf]
    %v4891 = vld [vmem:[%s9 + $0x318] sm:$0xf]
    %v4892 = vld [vmem:[%s9 + $0x31c] sm:$0xf]
    %v4893 = vld [vmem:[%s9 + $0x320] sm:$0xf]
    %v4894 = vld [vmem:[%s9 + $0x324] sm:$0xf]
    %v4895 = vld [vmem:[%s9 + $0x328] sm:$0xf]
    %v4896 = vld [vmem:[%s9 + $0x32c] sm:$0xf]
    %v4897 = vld [vmem:[%s9 + $0x330] sm:$0xf]
    %v4898 = vld [vmem:[%s9 + $0x334] sm:$0xf]
    %v4899 = vld [vmem:[%s9 + $0x338] sm:$0xf]
    %v4900 = vld [vmem:[%s9 + $0x33c] sm:$0xf]
    %v4901 = vld [vmem:[%s9 + $0x340] sm:$0xf]
    %v4902 = vld [vmem:[%s9 + $0x344] sm:$0xf]
    %v4903 = vld [vmem:[%s9 + $0x348] sm:$0xf]
    %v4904 = vld [vmem:[%s9 + $0x34c] sm:$0xf]
    %v4905 = vld [vmem:[%s9 + $0x350] sm:$0xf]
    %v4906 = vld [vmem:[%s9 + $0x354] sm:$0xf]
    %v4907 = vld [vmem:[%s9 + $0x358] sm:$0xf]
    %v4908 = vld [vmem:[%s9 + $0x35c] sm:$0xf]
    %v4909 = vld [vmem:[%s9 + $0x360] sm:$0xf]
    %v4910 = vld [vmem:[%s9 + $0x364] sm:$0xf]
    %v4911 = vld [vmem:[%s9 + $0x368] sm:$0xf]
    %v4912 = vld [vmem:[%s9 + $0x36c] sm:$0xf]
    %v4913 = vld [vmem:[%s9 + $0x370] sm:$0xf]
    %v4914 = vld [vmem:[%s9 + $0x374] sm:$0xf]
    %v4915 = vld [vmem:[%s9 + $0x378] sm:$0xf]
    %v4916 = vld [vmem:[%s9 + $0x37c] sm:$0xf]
    %v4917 = vld [vmem:[%s9 + $0x380] sm:$0xf]
    %v4918 = vld [vmem:[%s9 + $0x384] sm:$0xf]
    %v4919 = vld [vmem:[%s9 + $0x388] sm:$0xf]
    %v4920 = vld [vmem:[%s9 + $0x38c] sm:$0xf]
    %v4921 = vld [vmem:[%s9 + $0x390] sm:$0xf]
    %v4922 = vld [vmem:[%s9 + $0x394] sm:$0xf]
    %v4923 = vld [vmem:[%s9 + $0x398] sm:$0xf]
    %v4924 = vld [vmem:[%s9 + $0x39c] sm:$0xf]
    %v4925 = vld [vmem:[%s9 + $0x3a0] sm:$0xf]
    %v4926 = vld [vmem:[%s9 + $0x3a4] sm:$0xf]
    %v4927 = vld [vmem:[%s9 + $0x3a8] sm:$0xf]
    %v4928 = vld [vmem:[%s9 + $0x3ac] sm:$0xf]
    %v4929 = vld [vmem:[%s9 + $0x3b0] sm:$0xf]
    %v4930 = vld [vmem:[%s9 + $0x3b4] sm:$0xf]
    %v4931 = vld [vmem:[%s9 + $0x3b8] sm:$0xf]
    %v4932 = vld [vmem:[%s9 + $0x3bc] sm:$0xf]
    %v4933 = vld [vmem:[%s9 + $0x3c0] sm:$0xf]
    %v4934 = vld [vmem:[%s9 + $0x3c4] sm:$0xf]
    %v4935 = vld [vmem:[%s9 + $0x3c8] sm:$0xf]
    %v4936 = vld [vmem:[%s9 + $0x3cc] sm:$0xf]
    %v4937 = vld [vmem:[%s9 + $0x3d0] sm:$0xf]
    %v4938 = vld [vmem:[%s9 + $0x3d4] sm:$0xf]
    %v4939 = vld [vmem:[%s9 + $0x3d8] sm:$0xf]
    %v4940 = vld [vmem:[%s9 + $0x3dc] sm:$0xf]
    %v4941 = vld [vmem:[%s9 + $0x3e0] sm:$0xf]
    %v4942 = vld [vmem:[%s9 + $0x3e4] sm:$0xf]
    %v4943 = vld [vmem:[%s9 + $0x3e8] sm:$0xf]
    %v4944 = vld [vmem:[%s9 + $0x3ec] sm:$0xf]
    %v4945 = vld [vmem:[%s9 + $0x3f0] sm:$0xf]
    %v4946 = vld [vmem:[%s9 + $0x3f4] sm:$0xf]
    %v4947 = vld [vmem:[%s9 + $0x3f8] sm:$0xf]
    %v4948 = vld [vmem:[%s9 + $0x3fc] sm:$0xf]
    %v4949 = vld [vmem:[%s9 + $0x400] sm:$0xf]
    %v4950 = vld [vmem:[%s9 + $0x404] sm:$0xf]
    %v4951 = vld [vmem:[%s9 + $0x408] sm:$0xf]
    %v4952 = vld [vmem:[%s9 + $0x40c] sm:$0xf]
    %v4953 = vld [vmem:[%s9 + $0x410] sm:$0xf]
    %v4954 = vld [vmem:[%s9 + $0x414] sm:$0xf]
    %v4955 = vld [vmem:[%s9 + $0x418] sm:$0xf]
    %v4956 = vld [vmem:[%s9 + $0x41c] sm:$0xf]
    %v4957 = vld [vmem:[%s9 + $0x420] sm:$0xf]
    %v4958 = vld [vmem:[%s9 + $0x424] sm:$0xf]
    %v4959 = vld [vmem:[%s9 + $0x428] sm:$0xf]
    %v4960 = vld [vmem:[%s9 + $0x42c] sm:$0xf]
    %v4961 = vld [vmem:[%s9 + $0x430] sm:$0xf]
    %v4962 = vld [vmem:[%s9 + $0x434] sm:$0xf]
    %v4963 = vld [vmem:[%s9 + $0x438] sm:$0xf]
    %v4964 = vld [vmem:[%s9 + $0x43c] sm:$0xf]
    %v4965 = vld [vmem:[%s9 + $0x440] sm:$0xf]
    %v4966 = vld [vmem:[%s9 + $0x444] sm:$0xf]
    %v4967 = vld [vmem:[%s9 + $0x448] sm:$0xf]
    %v4968 = vld [vmem:[%s9 + $0x44c] sm:$0xf]
    %v4969 = vld [vmem:[%s9 + $0x450] sm:$0xf]
    %v4970 = vld [vmem:[%s9 + $0x454] sm:$0xf]
    %v4971 = vld [vmem:[%s9 + $0x458] sm:$0xf]
    %v4972 = vld [vmem:[%s9 + $0x45c] sm:$0xf]
    %v4973 = vld [vmem:[%s9 + $0x460] sm:$0xf]
    %v4974 = vld [vmem:[%s9 + $0x464] sm:$0xf]
    %v4975 = vld [vmem:[%s9 + $0x468] sm:$0xf]
    %v4976 = vld [vmem:[%s9 + $0x46c] sm:$0xf]
    %v4977 = vld [vmem:[%s9 + $0x470] sm:$0xf]
    %v4978 = vld [vmem:[%s9 + $0x474] sm:$0xf]
    %v4979 = vld [vmem:[%s9 + $0x478] sm:$0xf]
    %v4980 = vld [vmem:[%s9 + $0x47c] sm:$0xf]
    %v4981 = vld [vmem:[%s9 + $0x480] sm:$0xf]
    %v4982 = vld [vmem:[%s9 + $0x484] sm:$0xf]
    %v4983 = vld [vmem:[%s9 + $0x488] sm:$0xf]
    %v4984 = vld [vmem:[%s9 + $0x48c] sm:$0xf]
    %v4985 = vld [vmem:[%s9 + $0x490] sm:$0xf]
    %v4986 = vld [vmem:[%s9 + $0x494] sm:$0xf]
    %v4987 = vld [vmem:[%s9 + $0x498] sm:$0xf]
    %v4988 = vld [vmem:[%s9 + $0x49c] sm:$0xf]
    %v4989 = vld [vmem:[%s9 + $0x4a0] sm:$0xf]
    %v4990 = vld [vmem:[%s9 + $0x4a4] sm:$0xf]
    %v4991 = vld [vmem:[%s9 + $0x4a8] sm:$0xf]
    %v4992 = vld [vmem:[%s9 + $0x4ac] sm:$0xf]
    %v4993 = vld [vmem:[%s9 + $0x4b0] sm:$0xf]
    %v4994 = vld [vmem:[%s9 + $0x4b4] sm:$0xf]
    %v4995 = vld [vmem:[%s9 + $0x4b8] sm:$0xf]
    %v4996 = vld [vmem:[%s9 + $0x4bc] sm:$0xf]
    %v4997 = vld [vmem:[%s9 + $0x4c0] sm:$0xf]
    %v4998 = vld [vmem:[%s9 + $0x4c4] sm:$0xf]
    %v4999 = vld [vmem:[%s9 + $0x4c8] sm:$0xf]
    %v5000 = vld [vmem:[%s9 + $0x4cc] sm:$0xf]
    %v5001 = vld [vmem:[%s9 + $0x4d0] sm:$0xf]
    %v5002 = vld [vmem:[%s9 + $0x4d4] sm:$0xf]
    %v5003 = vld [vmem:[%s9 + $0x4d8] sm:$0xf]
    %v5004 = vld [vmem:[%s9 + $0x4dc] sm:$0xf]
    %v5005 = vld [vmem:[%s9 + $0x4e0] sm:$0xf]
    %v5006 = vld [vmem:[%s9 + $0x4e4] sm:$0xf]
    %v5007 = vld [vmem:[%s9 + $0x4e8] sm:$0xf]
    %v5008 = vld [vmem:[%s9 + $0x4ec] sm:$0xf]
    %v5009 = vld [vmem:[%s9 + $0x4f0] sm:$0xf]
    %v5010 = vld [vmem:[%s9 + $0x4f4] sm:$0xf]
    %v5011 = vld [vmem:[%s9 + $0x4f8] sm:$0xf]
    %v5012 = vld [vmem:[%s9 + $0x4fc] sm:$0xf]
    %v5013 = vld [vmem:[%s9 + $0x500] sm:$0xf]
    %v5014 = vld [vmem:[%s9 + $0x504] sm:$0xf]
    %v5015 = vld [vmem:[%s9 + $0x508] sm:$0xf]
    %v5016 = vld [vmem:[%s9 + $0x50c] sm:$0xf]
    %v5017 = vld [vmem:[%s9 + $0x510] sm:$0xf]
    %v5018 = vld [vmem:[%s9 + $0x514] sm:$0xf]
    %v5019 = vld [vmem:[%s9 + $0x518] sm:$0xf]
    %v5020 = vld [vmem:[%s9 + $0x51c] sm:$0xf]
    %v5021 = vld [vmem:[%s9 + $0x520] sm:$0xf]
    %v5022 = vld [vmem:[%s9 + $0x524] sm:$0xf]
    %v5023 = vld [vmem:[%s9 + $0x528] sm:$0xf]
    %v5024 = vld [vmem:[%s9 + $0x52c] sm:$0xf]
    %v5025 = vld [vmem:[%s9 + $0x530] sm:$0xf]
    %v5026 = vld [vmem:[%s9 + $0x534] sm:$0xf]
    %v5027 = vld [vmem:[%s9 + $0x538] sm:$0xf]
    %v5028 = vld [vmem:[%s9 + $0x53c] sm:$0xf]
    %v5029 = vld [vmem:[%s9 + $0x540] sm:$0xf]
    %v5030 = vld [vmem:[%s9 + $0x544] sm:$0xf]
    %v5031 = vld [vmem:[%s9 + $0x548] sm:$0xf]
    %v5032 = vld [vmem:[%s9 + $0x54c] sm:$0xf]
    %v5033 = vld [vmem:[%s9 + $0x550] sm:$0xf]
    %v5034 = vld [vmem:[%s9 + $0x554] sm:$0xf]
    %v5035 = vld [vmem:[%s9 + $0x558] sm:$0xf]
    %v5036 = vld [vmem:[%s9 + $0x55c] sm:$0xf]
    %v5037 = vld [vmem:[%s9 + $0x560] sm:$0xf]
    %v5038 = vld [vmem:[%s9 + $0x564] sm:$0xf]
    %v5039 = vld [vmem:[%s9 + $0x568] sm:$0xf]
    %v5040 = vld [vmem:[%s9 + $0x56c] sm:$0xf]
    %v5041 = vld [vmem:[%s9 + $0x570] sm:$0xf]
    %v5042 = vld [vmem:[%s9 + $0x574] sm:$0xf]
    %v5043 = vld [vmem:[%s9 + $0x578] sm:$0xf]
    %v5044 = vld [vmem:[%s9 + $0x57c] sm:$0xf]
    %v5045 = vld [vmem:[%s9 + $0x580] sm:$0xf]
    %v5046 = vld [vmem:[%s9 + $0x584] sm:$0xf]
    %v5047 = vld [vmem:[%s9 + $0x588] sm:$0xf]
    %v5048 = vld [vmem:[%s9 + $0x58c] sm:$0xf]
    %v5049 = vld [vmem:[%s9 + $0x590] sm:$0xf]
    %v5050 = vld [vmem:[%s9 + $0x594] sm:$0xf]
    %v5051 = vld [vmem:[%s9 + $0x598] sm:$0xf]
    %v5052 = vld [vmem:[%s9 + $0x59c] sm:$0xf]
    %v5053 = vld [vmem:[%s9 + $0x5a0] sm:$0xf]
    %v5054 = vld [vmem:[%s9 + $0x5a4] sm:$0xf]
    %v5055 = vld [vmem:[%s9 + $0x5a8] sm:$0xf]
    %v5056 = vld [vmem:[%s9 + $0x5ac] sm:$0xf]
    %v5057 = vld [vmem:[%s9 + $0x5b0] sm:$0xf]
    %v5058 = vld [vmem:[%s9 + $0x5b4] sm:$0xf]
    %v5059 = vld [vmem:[%s9 + $0x5b8] sm:$0xf]
    %v5060 = vld [vmem:[%s9 + $0x5bc] sm:$0xf]
    %v5061 = vld [vmem:[%s9 + $0x5c0] sm:$0xf]
    %v5062 = vld [vmem:[%s9 + $0x5c4] sm:$0xf]
    %v5063 = vld [vmem:[%s9 + $0x5c8] sm:$0xf]
    %v5064 = vld [vmem:[%s9 + $0x5cc] sm:$0xf]
    %v5065 = vld [vmem:[%s9 + $0x5d0] sm:$0xf]
    %v5066 = vld [vmem:[%s9 + $0x5d4] sm:$0xf]
    %v5067 = vld [vmem:[%s9 + $0x5d8] sm:$0xf]
    %v5068 = vld [vmem:[%s9 + $0x5dc] sm:$0xf]
    %v5069 = vld [vmem:[%s9 + $0x5e0] sm:$0xf]
    %v5070 = vld [vmem:[%s9 + $0x5e4] sm:$0xf]
    %v5071 = vld [vmem:[%s9 + $0x5e8] sm:$0xf]
    %v5072 = vld [vmem:[%s9 + $0x5ec] sm:$0xf]
    %v5073 = vld [vmem:[%s9 + $0x5f0] sm:$0xf]
    %v5074 = vld [vmem:[%s9 + $0x5f4] sm:$0xf]
    %v5075 = vld [vmem:[%s9 + $0x5f8] sm:$0xf]
    %v5076 = vld [vmem:[%s9 + $0x5fc] sm:$0xf]
    %v5461 = vunpack.c.l.b16 %v4693
    %v5462 = vunpack.c.l.b16 %v4694
    %v5463 = vunpack.c.l.b16 %v4695
    %v5464 = vunpack.c.l.b16 %v4696
    %v5465 = vunpack.c.l.b16 %v4697
    %v5466 = vunpack.c.l.b16 %v4698
    %v5467 = vunpack.c.l.b16 %v4699
    %v5468 = vunpack.c.l.b16 %v4700
    %v5469 = vunpack.c.l.b16 %v4701
    %v5470 = vunpack.c.l.b16 %v4702
    %v5471 = vunpack.c.l.b16 %v4703
    %v5472 = vunpack.c.l.b16 %v4704
    %v5473 = vunpack.c.l.b16 %v4705
    %v5474 = vunpack.c.l.b16 %v4706
    %v5475 = vunpack.c.l.b16 %v4707
    %v5476 = vunpack.c.l.b16 %v4708
    %v5477 = vunpack.c.l.b16 %v4709
    %v5478 = vunpack.c.l.b16 %v4710
    %v5479 = vunpack.c.l.b16 %v4711
    %v5480 = vunpack.c.l.b16 %v4712
    %v5481 = vunpack.c.l.b16 %v4713
    %v5482 = vunpack.c.l.b16 %v4714
    %v5483 = vunpack.c.l.b16 %v4715
    %v5484 = vunpack.c.l.b16 %v4716
    %v5485 = vunpack.c.l.b16 %v4717
    %v5486 = vunpack.c.l.b16 %v4718
    %v5487 = vunpack.c.l.b16 %v4719
    %v5488 = vunpack.c.l.b16 %v4720
    %v5489 = vunpack.c.l.b16 %v4721
    %v5490 = vunpack.c.l.b16 %v4722
    %v5491 = vunpack.c.l.b16 %v4723
    %v5492 = vunpack.c.l.b16 %v4724
    %v5493 = vunpack.c.l.b16 %v4725
    %v5494 = vunpack.c.l.b16 %v4726
    %v5495 = vunpack.c.l.b16 %v4727
    %v5496 = vunpack.c.l.b16 %v4728
    %v5497 = vunpack.c.l.b16 %v4729
    %v5498 = vunpack.c.l.b16 %v4730
    %v5499 = vunpack.c.l.b16 %v4731
    %v5500 = vunpack.c.l.b16 %v4732
    %v5501 = vunpack.c.l.b16 %v4733
    %v5502 = vunpack.c.l.b16 %v4734
    %v5503 = vunpack.c.l.b16 %v4735
    %v5504 = vunpack.c.l.b16 %v4736
    %v5505 = vunpack.c.l.b16 %v4737
    %v5506 = vunpack.c.l.b16 %v4738
    %v5507 = vunpack.c.l.b16 %v4739
    %v5508 = vunpack.c.l.b16 %v4740
    %v5509 = vunpack.c.l.b16 %v4741
    %v5510 = vunpack.c.l.b16 %v4742
    %v5511 = vunpack.c.l.b16 %v4743
    %v5512 = vunpack.c.l.b16 %v4744
    %v5513 = vunpack.c.l.b16 %v4745
    %v5514 = vunpack.c.l.b16 %v4746
    %v5515 = vunpack.c.l.b16 %v4747
    %v5516 = vunpack.c.l.b16 %v4748
    %v5517 = vunpack.c.l.b16 %v4749
    %v5518 = vunpack.c.l.b16 %v4750
    %v5519 = vunpack.c.l.b16 %v4751
    %v5520 = vunpack.c.l.b16 %v4752
    %v5521 = vunpack.c.l.b16 %v4753
    %v5522 = vunpack.c.l.b16 %v4754
    %v5523 = vunpack.c.l.b16 %v4755
    %v5524 = vunpack.c.l.b16 %v4756
    %v5525 = vunpack.c.l.b16 %v4757
    %v5526 = vunpack.c.l.b16 %v4758
    %v5527 = vunpack.c.l.b16 %v4759
    %v5528 = vunpack.c.l.b16 %v4760
    %v5529 = vunpack.c.l.b16 %v4761
    %v5530 = vunpack.c.l.b16 %v4762
    %v5531 = vunpack.c.l.b16 %v4763
    %v5532 = vunpack.c.l.b16 %v4764
    %v5533 = vunpack.c.l.b16 %v4765
    %v5534 = vunpack.c.l.b16 %v4766
    %v5535 = vunpack.c.l.b16 %v4767
    %v5536 = vunpack.c.l.b16 %v4768
    %v5537 = vunpack.c.l.b16 %v4769
    %v5538 = vunpack.c.l.b16 %v4770
    %v5539 = vunpack.c.l.b16 %v4771
    %v5540 = vunpack.c.l.b16 %v4772
    %v5541 = vunpack.c.l.b16 %v4773
    %v5542 = vunpack.c.l.b16 %v4774
    %v5543 = vunpack.c.l.b16 %v4775
    %v5544 = vunpack.c.l.b16 %v4776
    %v5545 = vunpack.c.l.b16 %v4777
    %v5546 = vunpack.c.l.b16 %v4778
    %v5547 = vunpack.c.l.b16 %v4779
    %v5548 = vunpack.c.l.b16 %v4780
    %v5549 = vunpack.c.l.b16 %v4781
    %v5550 = vunpack.c.l.b16 %v4782
    %v5551 = vunpack.c.l.b16 %v4783
    %v5552 = vunpack.c.l.b16 %v4784
    %v5553 = vunpack.c.l.b16 %v4785
    %v5554 = vunpack.c.l.b16 %v4786
    %v5555 = vunpack.c.l.b16 %v4787
    %v5556 = vunpack.c.l.b16 %v4788
    %v5557 = vunpack.c.l.b16 %v4789
    %v5558 = vunpack.c.l.b16 %v4790
    %v5559 = vunpack.c.l.b16 %v4791
    %v5560 = vunpack.c.l.b16 %v4792
    %v5561 = vunpack.c.l.b16 %v4793
    %v5562 = vunpack.c.l.b16 %v4794
    %v5563 = vunpack.c.l.b16 %v4795
    %v5564 = vunpack.c.l.b16 %v4796
    %v5565 = vunpack.c.l.b16 %v4797
    %v5566 = vunpack.c.l.b16 %v4798
    %v5567 = vunpack.c.l.b16 %v4799
    %v5568 = vunpack.c.l.b16 %v4800
    %v5569 = vunpack.c.l.b16 %v4801
    %v5570 = vunpack.c.l.b16 %v4802
    %v5571 = vunpack.c.l.b16 %v4803
    %v5572 = vunpack.c.l.b16 %v4804
    %v5573 = vunpack.c.l.b16 %v4805
    %v5574 = vunpack.c.l.b16 %v4806
    %v5575 = vunpack.c.l.b16 %v4807
    %v5576 = vunpack.c.l.b16 %v4808
    %v5577 = vunpack.c.l.b16 %v4809
    %v5578 = vunpack.c.l.b16 %v4810
    %v5579 = vunpack.c.l.b16 %v4811
    %v5580 = vunpack.c.l.b16 %v4812
    %v5581 = vunpack.c.l.b16 %v4813
    %v5582 = vunpack.c.l.b16 %v4814
    %v5583 = vunpack.c.l.b16 %v4815
    %v5584 = vunpack.c.l.b16 %v4816
    %v5585 = vunpack.c.l.b16 %v4817
    %v5586 = vunpack.c.l.b16 %v4818
    %v5587 = vunpack.c.l.b16 %v4819
    %v5588 = vunpack.c.l.b16 %v4820
    %v5589 = vunpack.c.l.b16 %v4821
    %v5590 = vunpack.c.l.b16 %v4822
    %v5591 = vunpack.c.l.b16 %v4823
    %v5592 = vunpack.c.l.b16 %v4824
    %v5593 = vunpack.c.l.b16 %v4825
    %v5594 = vunpack.c.l.b16 %v4826
    %v5595 = vunpack.c.l.b16 %v4827
    %v5596 = vunpack.c.l.b16 %v4828
    %v5597 = vunpack.c.l.b16 %v4829
    %v5598 = vunpack.c.l.b16 %v4830
    %v5599 = vunpack.c.l.b16 %v4831
    %v5600 = vunpack.c.l.b16 %v4832
    %v5601 = vunpack.c.l.b16 %v4833
    %v5602 = vunpack.c.l.b16 %v4834
    %v5603 = vunpack.c.l.b16 %v4835
    %v5604 = vunpack.c.l.b16 %v4836
    %v5605 = vunpack.c.l.b16 %v4837
    %v5606 = vunpack.c.l.b16 %v4838
    %v5607 = vunpack.c.l.b16 %v4839
    %v5608 = vunpack.c.l.b16 %v4840
    %v5609 = vunpack.c.l.b16 %v4841
    %v5610 = vunpack.c.l.b16 %v4842
    %v5611 = vunpack.c.l.b16 %v4843
    %v5612 = vunpack.c.l.b16 %v4844
    %v5613 = vunpack.c.l.b16 %v4845
    %v5614 = vunpack.c.l.b16 %v4846
    %v5615 = vunpack.c.l.b16 %v4847
    %v5616 = vunpack.c.l.b16 %v4848
    %v5617 = vunpack.c.l.b16 %v4849
    %v5618 = vunpack.c.l.b16 %v4850
    %v5619 = vunpack.c.l.b16 %v4851
    %v5620 = vunpack.c.l.b16 %v4852
    %v5621 = vunpack.c.l.b16 %v4853
    %v5622 = vunpack.c.l.b16 %v4854
    %v5623 = vunpack.c.l.b16 %v4855
    %v5624 = vunpack.c.l.b16 %v4856
    %v5625 = vunpack.c.l.b16 %v4857
    %v5626 = vunpack.c.l.b16 %v4858
    %v5627 = vunpack.c.l.b16 %v4859
    %v5628 = vunpack.c.l.b16 %v4860
    %v5629 = vunpack.c.l.b16 %v4861
    %v5630 = vunpack.c.l.b16 %v4862
    %v5631 = vunpack.c.l.b16 %v4863
    %v5632 = vunpack.c.l.b16 %v4864
    %v5633 = vunpack.c.l.b16 %v4865
    %v5634 = vunpack.c.l.b16 %v4866
    %v5635 = vunpack.c.l.b16 %v4867
    %v5636 = vunpack.c.l.b16 %v4868
    %v5637 = vunpack.c.l.b16 %v4869
    %v5638 = vunpack.c.l.b16 %v4870
    %v5639 = vunpack.c.l.b16 %v4871
    %v5640 = vunpack.c.l.b16 %v4872
    %v5641 = vunpack.c.l.b16 %v4873
    %v5642 = vunpack.c.l.b16 %v4874
    %v5643 = vunpack.c.l.b16 %v4875
    %v5644 = vunpack.c.l.b16 %v4876
    %v5645 = vunpack.c.l.b16 %v4877
    %v5646 = vunpack.c.l.b16 %v4878
    %v5647 = vunpack.c.l.b16 %v4879
    %v5648 = vunpack.c.l.b16 %v4880
    %v5649 = vunpack.c.l.b16 %v4881
    %v5650 = vunpack.c.l.b16 %v4882
    %v5651 = vunpack.c.l.b16 %v4883
    %v5652 = vunpack.c.l.b16 %v4884
    %v5653 = vunpack.c.l.b16 %v4885
    %v5654 = vunpack.c.l.b16 %v4886
    %v5655 = vunpack.c.l.b16 %v4887
    %v5656 = vunpack.c.l.b16 %v4888
    %v5657 = vunpack.c.l.b16 %v4889
    %v5658 = vunpack.c.l.b16 %v4890
    %v5659 = vunpack.c.l.b16 %v4891
    %v5660 = vunpack.c.l.b16 %v4892
    %v5661 = vunpack.c.l.b16 %v4893
    %v5662 = vunpack.c.l.b16 %v4894
    %v5663 = vunpack.c.l.b16 %v4895
    %v5664 = vunpack.c.l.b16 %v4896
    %v5665 = vunpack.c.l.b16 %v4897
    %v5666 = vunpack.c.l.b16 %v4898
    %v5667 = vunpack.c.l.b16 %v4899
    %v5668 = vunpack.c.l.b16 %v4900
    %v5669 = vunpack.c.l.b16 %v4901
    %v5670 = vunpack.c.l.b16 %v4902
    %v5671 = vunpack.c.l.b16 %v4903
    %v5672 = vunpack.c.l.b16 %v4904
    %v5673 = vunpack.c.l.b16 %v4905
    %v5674 = vunpack.c.l.b16 %v4906
    %v5675 = vunpack.c.l.b16 %v4907
    %v5676 = vunpack.c.l.b16 %v4908
    %v5677 = vunpack.c.l.b16 %v4909
    %v5678 = vunpack.c.l.b16 %v4910
    %v5679 = vunpack.c.l.b16 %v4911
    %v5680 = vunpack.c.l.b16 %v4912
    %v5681 = vunpack.c.l.b16 %v4913
    %v5682 = vunpack.c.l.b16 %v4914
    %v5683 = vunpack.c.l.b16 %v4915
    %v5684 = vunpack.c.l.b16 %v4916
    %v5685 = vunpack.c.l.b16 %v4917
    %v5686 = vunpack.c.l.b16 %v4918
    %v5687 = vunpack.c.l.b16 %v4919
    %v5688 = vunpack.c.l.b16 %v4920
    %v5689 = vunpack.c.l.b16 %v4921
    %v5690 = vunpack.c.l.b16 %v4922
    %v5691 = vunpack.c.l.b16 %v4923
    %v5692 = vunpack.c.l.b16 %v4924
    %v5693 = vunpack.c.l.b16 %v4925
    %v5694 = vunpack.c.l.b16 %v4926
    %v5695 = vunpack.c.l.b16 %v4927
    %v5696 = vunpack.c.l.b16 %v4928
    %v5697 = vunpack.c.l.b16 %v4929
    %v5698 = vunpack.c.l.b16 %v4930
    %v5699 = vunpack.c.l.b16 %v4931
    %v5700 = vunpack.c.l.b16 %v4932
    %v5701 = vunpack.c.l.b16 %v4933
    %v5702 = vunpack.c.l.b16 %v4934
    %v5703 = vunpack.c.l.b16 %v4935
    %v5704 = vunpack.c.l.b16 %v4936
    %v5705 = vunpack.c.l.b16 %v4937
    %v5706 = vunpack.c.l.b16 %v4938
    %v5707 = vunpack.c.l.b16 %v4939
    %v5708 = vunpack.c.l.b16 %v4940
    %v5709 = vunpack.c.l.b16 %v4941
    %v5710 = vunpack.c.l.b16 %v4942
    %v5711 = vunpack.c.l.b16 %v4943
    %v5712 = vunpack.c.l.b16 %v4944
    %v5713 = vunpack.c.l.b16 %v4945
    %v5714 = vunpack.c.l.b16 %v4946
    %v5715 = vunpack.c.l.b16 %v4947
    %v5716 = vunpack.c.l.b16 %v4948
    %v5717 = vunpack.c.l.b16 %v4949
    %v5718 = vunpack.c.l.b16 %v4950
    %v5719 = vunpack.c.l.b16 %v4951
    %v5720 = vunpack.c.l.b16 %v4952
    %v5721 = vunpack.c.l.b16 %v4953
    %v5722 = vunpack.c.l.b16 %v4954
    %v5723 = vunpack.c.l.b16 %v4955
    %v5724 = vunpack.c.l.b16 %v4956
    %v5725 = vunpack.c.l.b16 %v4957
    %v5726 = vunpack.c.l.b16 %v4958
    %v5727 = vunpack.c.l.b16 %v4959
    %v5728 = vunpack.c.l.b16 %v4960
    %v5729 = vunpack.c.l.b16 %v4961
    %v5730 = vunpack.c.l.b16 %v4962
    %v5731 = vunpack.c.l.b16 %v4963
    %v5732 = vunpack.c.l.b16 %v4964
    %v5733 = vunpack.c.l.b16 %v4965
    %v5734 = vunpack.c.l.b16 %v4966
    %v5735 = vunpack.c.l.b16 %v4967
    %v5736 = vunpack.c.l.b16 %v4968
    %v5737 = vunpack.c.l.b16 %v4969
    %v5738 = vunpack.c.l.b16 %v4970
    %v5739 = vunpack.c.l.b16 %v4971
    %v5740 = vunpack.c.l.b16 %v4972
    %v5741 = vunpack.c.l.b16 %v4973
    %v5742 = vunpack.c.l.b16 %v4974
    %v5743 = vunpack.c.l.b16 %v4975
    %v5744 = vunpack.c.l.b16 %v4976
    %v5745 = vunpack.c.l.b16 %v4977
    %v5746 = vunpack.c.l.b16 %v4978
    %v5747 = vunpack.c.l.b16 %v4979
    %v5748 = vunpack.c.l.b16 %v4980
    %v5749 = vunpack.c.l.b16 %v4981
    %v5750 = vunpack.c.l.b16 %v4982
    %v5751 = vunpack.c.l.b16 %v4983
    %v5752 = vunpack.c.l.b16 %v4984
    %v5753 = vunpack.c.l.b16 %v4985
    %v5754 = vunpack.c.l.b16 %v4986
    %v5755 = vunpack.c.l.b16 %v4987
    %v5756 = vunpack.c.l.b16 %v4988
    %v5757 = vunpack.c.l.b16 %v4989
    %v5758 = vunpack.c.l.b16 %v4990
    %v5759 = vunpack.c.l.b16 %v4991
    %v5760 = vunpack.c.l.b16 %v4992
    %v5761 = vunpack.c.l.b16 %v4993
    %v5762 = vunpack.c.l.b16 %v4994
    %v5763 = vunpack.c.l.b16 %v4995
    %v5764 = vunpack.c.l.b16 %v4996
    %v5765 = vunpack.c.l.b16 %v4997
    %v5766 = vunpack.c.l.b16 %v4998
    %v5767 = vunpack.c.l.b16 %v4999
    %v5768 = vunpack.c.l.b16 %v5000
    %v5769 = vunpack.c.l.b16 %v5001
    %v5770 = vunpack.c.l.b16 %v5002
    %v5771 = vunpack.c.l.b16 %v5003
    %v5772 = vunpack.c.l.b16 %v5004
    %v5773 = vunpack.c.l.b16 %v5005
    %v5774 = vunpack.c.l.b16 %v5006
    %v5775 = vunpack.c.l.b16 %v5007
    %v5776 = vunpack.c.l.b16 %v5008
    %v5777 = vunpack.c.l.b16 %v5009
    %v5778 = vunpack.c.l.b16 %v5010
    %v5779 = vunpack.c.l.b16 %v5011
    %v5780 = vunpack.c.l.b16 %v5012
    %v5781 = vunpack.c.l.b16 %v5013
    %v5782 = vunpack.c.l.b16 %v5014
    %v5783 = vunpack.c.l.b16 %v5015
    %v5784 = vunpack.c.l.b16 %v5016
    %v5785 = vunpack.c.l.b16 %v5017
    %v5786 = vunpack.c.l.b16 %v5018
    %v5787 = vunpack.c.l.b16 %v5019
    %v5788 = vunpack.c.l.b16 %v5020
    %v5789 = vunpack.c.l.b16 %v5021
    %v5790 = vunpack.c.l.b16 %v5022
    %v5791 = vunpack.c.l.b16 %v5023
    %v5792 = vunpack.c.l.b16 %v5024
    %v5793 = vunpack.c.l.b16 %v5025
    %v5794 = vunpack.c.l.b16 %v5026
    %v5795 = vunpack.c.l.b16 %v5027
    %v5796 = vunpack.c.l.b16 %v5028
    %v5797 = vunpack.c.l.b16 %v5029
    %v5798 = vunpack.c.l.b16 %v5030
    %v5799 = vunpack.c.l.b16 %v5031
    %v5800 = vunpack.c.l.b16 %v5032
    %v5801 = vunpack.c.l.b16 %v5033
    %v5802 = vunpack.c.l.b16 %v5034
    %v5803 = vunpack.c.l.b16 %v5035
    %v5804 = vunpack.c.l.b16 %v5036
    %v5805 = vunpack.c.l.b16 %v5037
    %v5806 = vunpack.c.l.b16 %v5038
    %v5807 = vunpack.c.l.b16 %v5039
    %v5808 = vunpack.c.l.b16 %v5040
    %v5809 = vunpack.c.l.b16 %v5041
    %v5810 = vunpack.c.l.b16 %v5042
    %v5811 = vunpack.c.l.b16 %v5043
    %v5812 = vunpack.c.l.b16 %v5044
    %v5813 = vunpack.c.l.b16 %v5045
    %v5814 = vunpack.c.l.b16 %v5046
    %v5815 = vunpack.c.l.b16 %v5047
    %v5816 = vunpack.c.l.b16 %v5048
    %v5817 = vunpack.c.l.b16 %v5049
    %v5818 = vunpack.c.l.b16 %v5050
    %v5819 = vunpack.c.l.b16 %v5051
    %v5820 = vunpack.c.l.b16 %v5052
    %v5821 = vunpack.c.l.b16 %v5053
    %v5822 = vunpack.c.l.b16 %v5054
    %v5823 = vunpack.c.l.b16 %v5055
    %v5824 = vunpack.c.l.b16 %v5056
    %v5825 = vunpack.c.l.b16 %v5057
    %v5826 = vunpack.c.l.b16 %v5058
    %v5827 = vunpack.c.l.b16 %v5059
    %v5828 = vunpack.c.l.b16 %v5060
    %v5829 = vunpack.c.l.b16 %v5061
    %v5830 = vunpack.c.l.b16 %v5062
    %v5831 = vunpack.c.l.b16 %v5063
    %v5832 = vunpack.c.l.b16 %v5064
    %v5833 = vunpack.c.l.b16 %v5065
    %v5834 = vunpack.c.l.b16 %v5066
    %v5835 = vunpack.c.l.b16 %v5067
    %v5836 = vunpack.c.l.b16 %v5068
    %v5837 = vunpack.c.l.b16 %v5069
    %v5838 = vunpack.c.l.b16 %v5070
    %v5839 = vunpack.c.l.b16 %v5071
    %v5840 = vunpack.c.l.b16 %v5072
    %v5841 = vunpack.c.l.b16 %v5073
    %v5842 = vunpack.c.l.b16 %v5074
    %v5843 = vunpack.c.l.b16 %v5075
    %v5844 = vunpack.c.l.b16 %v5076
    %v5845 = vpack.c.b16 %v5462, %v5461
    %v5846 = vpack.c.b16 %v5464, %v5463
    %v5847 = vpack.c.b16 %v5466, %v5465
    %v5848 = vpack.c.b16 %v5468, %v5467
    %v5849 = vpack.c.b16 %v5470, %v5469
    %v5850 = vpack.c.b16 %v5472, %v5471
    %v5851 = vpack.c.b16 %v5474, %v5473
    %v5852 = vpack.c.b16 %v5476, %v5475
    %v5853 = vpack.c.b16 %v5478, %v5477
    %v5854 = vpack.c.b16 %v5480, %v5479
    %v5855 = vpack.c.b16 %v5482, %v5481
    %v5856 = vpack.c.b16 %v5484, %v5483
    %v5857 = vpack.c.b16 %v5486, %v5485
    %v5858 = vpack.c.b16 %v5488, %v5487
    %v5859 = vpack.c.b16 %v5490, %v5489
    %v5860 = vpack.c.b16 %v5492, %v5491
    %v5861 = vpack.c.b16 %v5494, %v5493
    %v5862 = vpack.c.b16 %v5496, %v5495
    %v5863 = vpack.c.b16 %v5498, %v5497
    %v5864 = vpack.c.b16 %v5500, %v5499
    %v5865 = vpack.c.b16 %v5502, %v5501
    %v5866 = vpack.c.b16 %v5504, %v5503
    %v5867 = vpack.c.b16 %v5506, %v5505
    %v5868 = vpack.c.b16 %v5508, %v5507
    %v5869 = vpack.c.b16 %v5510, %v5509
    %v5870 = vpack.c.b16 %v5512, %v5511
    %v5871 = vpack.c.b16 %v5514, %v5513
    %v5872 = vpack.c.b16 %v5516, %v5515
    %v5873 = vpack.c.b16 %v5518, %v5517
    %v5874 = vpack.c.b16 %v5520, %v5519
    %v5875 = vpack.c.b16 %v5522, %v5521
    %v5876 = vpack.c.b16 %v5524, %v5523
    %v5877 = vpack.c.b16 %v5526, %v5525
    %v5878 = vpack.c.b16 %v5528, %v5527
    %v5879 = vpack.c.b16 %v5530, %v5529
    %v5880 = vpack.c.b16 %v5532, %v5531
    %v5881 = vpack.c.b16 %v5534, %v5533
    %v5882 = vpack.c.b16 %v5536, %v5535
    %v5883 = vpack.c.b16 %v5538, %v5537
    %v5884 = vpack.c.b16 %v5540, %v5539
    %v5885 = vpack.c.b16 %v5542, %v5541
    %v5886 = vpack.c.b16 %v5544, %v5543
    %v5887 = vpack.c.b16 %v5546, %v5545
    %v5888 = vpack.c.b16 %v5548, %v5547
    %v5889 = vpack.c.b16 %v5550, %v5549
    %v5890 = vpack.c.b16 %v5552, %v5551
    %v5891 = vpack.c.b16 %v5554, %v5553
    %v5892 = vpack.c.b16 %v5556, %v5555
    %v5893 = vpack.c.b16 %v5558, %v5557
    %v5894 = vpack.c.b16 %v5560, %v5559
    %v5895 = vpack.c.b16 %v5562, %v5561
    %v5896 = vpack.c.b16 %v5564, %v5563
    %v5897 = vpack.c.b16 %v5566, %v5565
    %v5898 = vpack.c.b16 %v5568, %v5567
    %v5899 = vpack.c.b16 %v5570, %v5569
    %v5900 = vpack.c.b16 %v5572, %v5571
    %v5901 = vpack.c.b16 %v5574, %v5573
    %v5902 = vpack.c.b16 %v5576, %v5575
    %v5903 = vpack.c.b16 %v5578, %v5577
    %v5904 = vpack.c.b16 %v5580, %v5579
    %v5905 = vpack.c.b16 %v5582, %v5581
    %v5906 = vpack.c.b16 %v5584, %v5583
    %v5907 = vpack.c.b16 %v5586, %v5585
    %v5908 = vpack.c.b16 %v5588, %v5587
    %v5909 = vpack.c.b16 %v5590, %v5589
    %v5910 = vpack.c.b16 %v5592, %v5591
    %v5911 = vpack.c.b16 %v5594, %v5593
    %v5912 = vpack.c.b16 %v5596, %v5595
    %v5913 = vpack.c.b16 %v5598, %v5597
    %v5914 = vpack.c.b16 %v5600, %v5599
    %v5915 = vpack.c.b16 %v5602, %v5601
    %v5916 = vpack.c.b16 %v5604, %v5603
    %v5917 = vpack.c.b16 %v5606, %v5605
    %v5918 = vpack.c.b16 %v5608, %v5607
    %v5919 = vpack.c.b16 %v5610, %v5609
    %v5920 = vpack.c.b16 %v5612, %v5611
    %v5921 = vpack.c.b16 %v5614, %v5613
    %v5922 = vpack.c.b16 %v5616, %v5615
    %v5923 = vpack.c.b16 %v5618, %v5617
    %v5924 = vpack.c.b16 %v5620, %v5619
    %v5925 = vpack.c.b16 %v5622, %v5621
    %v5926 = vpack.c.b16 %v5624, %v5623
    %v5927 = vpack.c.b16 %v5626, %v5625
    %v5928 = vpack.c.b16 %v5628, %v5627
    %v5929 = vpack.c.b16 %v5630, %v5629
    %v5930 = vpack.c.b16 %v5632, %v5631
    %v5931 = vpack.c.b16 %v5634, %v5633
    %v5932 = vpack.c.b16 %v5636, %v5635
    %v5933 = vpack.c.b16 %v5638, %v5637
    %v5934 = vpack.c.b16 %v5640, %v5639
    %v5935 = vpack.c.b16 %v5642, %v5641
    %v5936 = vpack.c.b16 %v5644, %v5643
    %v5937 = vpack.c.b16 %v5646, %v5645
    %v5938 = vpack.c.b16 %v5648, %v5647
    %v5939 = vpack.c.b16 %v5650, %v5649
    %v5940 = vpack.c.b16 %v5652, %v5651
    %v5941 = vpack.c.b16 %v5654, %v5653
    %v5942 = vpack.c.b16 %v5656, %v5655
    %v5943 = vpack.c.b16 %v5658, %v5657
    %v5944 = vpack.c.b16 %v5660, %v5659
    %v5945 = vpack.c.b16 %v5662, %v5661
    %v5946 = vpack.c.b16 %v5664, %v5663
    %v5947 = vpack.c.b16 %v5666, %v5665
    %v5948 = vpack.c.b16 %v5668, %v5667
    %v5949 = vpack.c.b16 %v5670, %v5669
    %v5950 = vpack.c.b16 %v5672, %v5671
    %v5951 = vpack.c.b16 %v5674, %v5673
    %v5952 = vpack.c.b16 %v5676, %v5675
    %v5953 = vpack.c.b16 %v5678, %v5677
    %v5954 = vpack.c.b16 %v5680, %v5679
    %v5955 = vpack.c.b16 %v5682, %v5681
    %v5956 = vpack.c.b16 %v5684, %v5683
    %v5957 = vpack.c.b16 %v5686, %v5685
    %v5958 = vpack.c.b16 %v5688, %v5687
    %v5959 = vpack.c.b16 %v5690, %v5689
    %v5960 = vpack.c.b16 %v5692, %v5691
    %v5961 = vpack.c.b16 %v5694, %v5693
    %v5962 = vpack.c.b16 %v5696, %v5695
    %v5963 = vpack.c.b16 %v5698, %v5697
    %v5964 = vpack.c.b16 %v5700, %v5699
    %v5965 = vpack.c.b16 %v5702, %v5701
    %v5966 = vpack.c.b16 %v5704, %v5703
    %v5967 = vpack.c.b16 %v5706, %v5705
    %v5968 = vpack.c.b16 %v5708, %v5707
    %v5969 = vpack.c.b16 %v5710, %v5709
    %v5970 = vpack.c.b16 %v5712, %v5711
    %v5971 = vpack.c.b16 %v5714, %v5713
    %v5972 = vpack.c.b16 %v5716, %v5715
    %v5973 = vpack.c.b16 %v5718, %v5717
    %v5974 = vpack.c.b16 %v5720, %v5719
    %v5975 = vpack.c.b16 %v5722, %v5721
    %v5976 = vpack.c.b16 %v5724, %v5723
    %v5977 = vpack.c.b16 %v5726, %v5725
    %v5978 = vpack.c.b16 %v5728, %v5727
    %v5979 = vpack.c.b16 %v5730, %v5729
    %v5980 = vpack.c.b16 %v5732, %v5731
    %v5981 = vpack.c.b16 %v5734, %v5733
    %v5982 = vpack.c.b16 %v5736, %v5735
    %v5983 = vpack.c.b16 %v5738, %v5737
    %v5984 = vpack.c.b16 %v5740, %v5739
    %v5985 = vpack.c.b16 %v5742, %v5741
    %v5986 = vpack.c.b16 %v5744, %v5743
    %v5987 = vpack.c.b16 %v5746, %v5745
    %v5988 = vpack.c.b16 %v5748, %v5747
    %v5989 = vpack.c.b16 %v5750, %v5749
    %v5990 = vpack.c.b16 %v5752, %v5751
    %v5991 = vpack.c.b16 %v5754, %v5753
    %v5992 = vpack.c.b16 %v5756, %v5755
    %v5993 = vpack.c.b16 %v5758, %v5757
    %v5994 = vpack.c.b16 %v5760, %v5759
    %v5995 = vpack.c.b16 %v5762, %v5761
    %v5996 = vpack.c.b16 %v5764, %v5763
    %v5997 = vpack.c.b16 %v5766, %v5765
    %v5998 = vpack.c.b16 %v5768, %v5767
    %v5999 = vpack.c.b16 %v5770, %v5769
    %v6000 = vpack.c.b16 %v5772, %v5771
    %v6001 = vpack.c.b16 %v5774, %v5773
    %v6002 = vpack.c.b16 %v5776, %v5775
    %v6003 = vpack.c.b16 %v5778, %v5777
    %v6004 = vpack.c.b16 %v5780, %v5779
    %v6005 = vpack.c.b16 %v5782, %v5781
    %v6006 = vpack.c.b16 %v5784, %v5783
    %v6007 = vpack.c.b16 %v5786, %v5785
    %v6008 = vpack.c.b16 %v5788, %v5787
    %v6009 = vpack.c.b16 %v5790, %v5789
    %v6010 = vpack.c.b16 %v5792, %v5791
    %v6011 = vpack.c.b16 %v5794, %v5793
    %v6012 = vpack.c.b16 %v5796, %v5795
    %v6013 = vpack.c.b16 %v5798, %v5797
    %v6014 = vpack.c.b16 %v5800, %v5799
    %v6015 = vpack.c.b16 %v5802, %v5801
    %v6016 = vpack.c.b16 %v5804, %v5803
    %v6017 = vpack.c.b16 %v5806, %v5805
    %v6018 = vpack.c.b16 %v5808, %v5807
    %v6019 = vpack.c.b16 %v5810, %v5809
    %v6020 = vpack.c.b16 %v5812, %v5811
    %v6021 = vpack.c.b16 %v5814, %v5813
    %v6022 = vpack.c.b16 %v5816, %v5815
    %v6023 = vpack.c.b16 %v5818, %v5817
    %v6024 = vpack.c.b16 %v5820, %v5819
    %v6025 = vpack.c.b16 %v5822, %v5821
    %v6026 = vpack.c.b16 %v5824, %v5823
    %v6027 = vpack.c.b16 %v5826, %v5825
    %v6028 = vpack.c.b16 %v5828, %v5827
    %v6029 = vpack.c.b16 %v5830, %v5829
    %v6030 = vpack.c.b16 %v5832, %v5831
    %v6031 = vpack.c.b16 %v5834, %v5833
    %v6032 = vpack.c.b16 %v5836, %v5835
    %v6033 = vpack.c.b16 %v5838, %v5837
    %v6034 = vpack.c.b16 %v5840, %v5839
    %v6035 = vpack.c.b16 %v5842, %v5841
    %v6036 = vpack.c.b16 %v5844, %v5843
    %6230 = vmatpush.bf16.msra.mxu0 %v5852
    %6231 = vmatpush.bf16.msra.mxu0 %v5851
    %6232 = vmatpush.bf16.msra.mxu0 %v5850
    %6233 = vmatpush.bf16.msra.mxu0 %v5849
    %6234 = vmatpush.bf16.msra.mxu0 %v5848
    %6235 = vmatpush.bf16.msra.mxu0 %v5847
    %6236 = vmatpush.bf16.msra.mxu0 %v5846
    %6237 = vmatpush.bf16.msra.mxu0 %v5845
    %6238 = vmatmul.bf16.gmra.mxu0 %v4669
    %v6239 = vpop.f32.mrf.mxu0
    %v6240 = vadd.f32 %v2168, %v6239
    %v6241 = vpop.f32.mrf.mxu0
    %v6242 = vadd.f32 %v2168, %v6241
    %6243 = vdwg.mxu0
    %6244 = vmatpush.bf16.msra.mxu0 %v5860
    %6245 = vmatpush.bf16.msra.mxu0 %v5859
    %6246 = vmatpush.bf16.msra.mxu0 %v5858
    %6247 = vmatpush.bf16.msra.mxu0 %v5857
    %6248 = vmatpush.bf16.msra.mxu0 %v5856
    %6249 = vmatpush.bf16.msra.mxu0 %v5855
    %6250 = vmatpush.bf16.msra.mxu0 %v5854
    %6251 = vmatpush.bf16.msra.mxu0 %v5853
    %6252 = vmatmul.bf16.gmra.mxu0 %v4670
    %v6253 = vpop.f32.mrf.mxu0
    %v6254 = vadd.f32 %v6240, %v6253
    %v6255 = vpop.f32.mrf.mxu0
    %v6256 = vadd.f32 %v6242, %v6255
    %6257 = vdwg.mxu0
    %6258 = vmatpush.bf16.msra.mxu0 %v5868
    %6259 = vmatpush.bf16.msra.mxu0 %v5867
    %6260 = vmatpush.bf16.msra.mxu0 %v5866
    %6261 = vmatpush.bf16.msra.mxu0 %v5865
    %6262 = vmatpush.bf16.msra.mxu0 %v5864
    %6263 = vmatpush.bf16.msra.mxu0 %v5863
    %6264 = vmatpush.bf16.msra.mxu0 %v5862
    %6265 = vmatpush.bf16.msra.mxu0 %v5861
    %6266 = vmatmul.bf16.gmra.mxu0 %v4671
    %v6267 = vpop.f32.mrf.mxu0
    %v6268 = vadd.f32 %v6254, %v6267
    %v6269 = vpop.f32.mrf.mxu0
    %v6270 = vadd.f32 %v6256, %v6269
    %6271 = vdwg.mxu0
    %6272 = vmatpush.bf16.msra.mxu0 %v5876
    %6273 = vmatpush.bf16.msra.mxu0 %v5875
    %6274 = vmatpush.bf16.msra.mxu0 %v5874
    %6275 = vmatpush.bf16.msra.mxu0 %v5873
    %6276 = vmatpush.bf16.msra.mxu0 %v5872
    %6277 = vmatpush.bf16.msra.mxu0 %v5871
    %6278 = vmatpush.bf16.msra.mxu0 %v5870
    %6279 = vmatpush.bf16.msra.mxu0 %v5869
    %6280 = vmatmul.bf16.gmra.mxu0 %v4672
    %v6281 = vpop.f32.mrf.mxu0
    %v6282 = vadd.f32 %v6268, %v6281
    %v6283 = vpop.f32.mrf.mxu0
    %v6284 = vadd.f32 %v6270, %v6283
    %6285 = vdwg.mxu0
    %6286 = vmatpush.bf16.msra.mxu0 %v5884
    %6287 = vmatpush.bf16.msra.mxu0 %v5883
    %6288 = vmatpush.bf16.msra.mxu0 %v5882
    %6289 = vmatpush.bf16.msra.mxu0 %v5881
    %6290 = vmatpush.bf16.msra.mxu0 %v5880
    %6291 = vmatpush.bf16.msra.mxu0 %v5879
    %6292 = vmatpush.bf16.msra.mxu0 %v5878
    %6293 = vmatpush.bf16.msra.mxu0 %v5877
    %6294 = vmatmul.bf16.gmra.mxu0 %v4673
    %v6295 = vpop.f32.mrf.mxu0
    %v6296 = vadd.f32 %v6282, %v6295
    %v6297 = vpop.f32.mrf.mxu0
    %v6298 = vadd.f32 %v6284, %v6297
    %6299 = vdwg.mxu0
    %6300 = vmatpush.bf16.msra.mxu0 %v5892
    %6301 = vmatpush.bf16.msra.mxu0 %v5891
    %6302 = vmatpush.bf16.msra.mxu0 %v5890
    %6303 = vmatpush.bf16.msra.mxu0 %v5889
    %6304 = vmatpush.bf16.msra.mxu0 %v5888
    %6305 = vmatpush.bf16.msra.mxu0 %v5887
    %6306 = vmatpush.bf16.msra.mxu0 %v5886
    %6307 = vmatpush.bf16.msra.mxu0 %v5885
    %6308 = vmatmul.bf16.gmra.mxu0 %v4674
    %v6309 = vpop.f32.mrf.mxu0
    %v6310 = vadd.f32 %v6296, %v6309
    %v6311 = vpop.f32.mrf.mxu0
    %v6312 = vadd.f32 %v6298, %v6311
    %6313 = vdwg.mxu0
    %6314 = vmatpush.bf16.msra.mxu0 %v5900
    %6315 = vmatpush.bf16.msra.mxu0 %v5899
    %6316 = vmatpush.bf16.msra.mxu0 %v5898
    %6317 = vmatpush.bf16.msra.mxu0 %v5897
    %6318 = vmatpush.bf16.msra.mxu0 %v5896
    %6319 = vmatpush.bf16.msra.mxu0 %v5895
    %6320 = vmatpush.bf16.msra.mxu0 %v5894
    %6321 = vmatpush.bf16.msra.mxu0 %v5893
    %6322 = vmatmul.bf16.gmra.mxu0 %v4675
    %v6323 = vpop.f32.mrf.mxu0
    %v6324 = vadd.f32 %v6310, %v6323
    %v6325 = vpop.f32.mrf.mxu0
    %v6326 = vadd.f32 %v6312, %v6325
    %6327 = vdwg.mxu0
    %6328 = vmatpush.bf16.msra.mxu0 %v5908
    %6329 = vmatpush.bf16.msra.mxu0 %v5907
    %6330 = vmatpush.bf16.msra.mxu0 %v5906
    %6331 = vmatpush.bf16.msra.mxu0 %v5905
    %6332 = vmatpush.bf16.msra.mxu0 %v5904
    %6333 = vmatpush.bf16.msra.mxu0 %v5903
    %6334 = vmatpush.bf16.msra.mxu0 %v5902
    %6335 = vmatpush.bf16.msra.mxu0 %v5901
    %6336 = vmatmul.bf16.gmra.mxu0 %v4676
    %v6337 = vpop.f32.mrf.mxu0
    %v6338 = vadd.f32 %v6324, %v6337
    %v6339 = vpop.f32.mrf.mxu0
    %v6340 = vadd.f32 %v6326, %v6339
    %6341 = vdwg.mxu0
    %6342 = vmatpush.bf16.msra.mxu0 %v5916
    %6343 = vmatpush.bf16.msra.mxu0 %v5915
    %6344 = vmatpush.bf16.msra.mxu0 %v5914
    %6345 = vmatpush.bf16.msra.mxu0 %v5913
    %6346 = vmatpush.bf16.msra.mxu0 %v5912
    %6347 = vmatpush.bf16.msra.mxu0 %v5911
    %6348 = vmatpush.bf16.msra.mxu0 %v5910
    %6349 = vmatpush.bf16.msra.mxu0 %v5909
    %6350 = vmatmul.bf16.gmra.mxu0 %v4677
    %v6351 = vpop.f32.mrf.mxu0
    %v6352 = vadd.f32 %v6338, %v6351
    %v6353 = vpop.f32.mrf.mxu0
    %v6354 = vadd.f32 %v6340, %v6353
    %6355 = vdwg.mxu0
    %6356 = vmatpush.bf16.msra.mxu0 %v5924
    %6357 = vmatpush.bf16.msra.mxu0 %v5923
    %6358 = vmatpush.bf16.msra.mxu0 %v5922
    %6359 = vmatpush.bf16.msra.mxu0 %v5921
    %6360 = vmatpush.bf16.msra.mxu0 %v5920
    %6361 = vmatpush.bf16.msra.mxu0 %v5919
    %6362 = vmatpush.bf16.msra.mxu0 %v5918
    %6363 = vmatpush.bf16.msra.mxu0 %v5917
    %6364 = vmatmul.bf16.gmra.mxu0 %v4678
    %v6365 = vpop.f32.mrf.mxu0
    %v6366 = vadd.f32 %v6352, %v6365
    %v6367 = vpop.f32.mrf.mxu0
    %v6368 = vadd.f32 %v6354, %v6367
    %6369 = vdwg.mxu0
    %6370 = vmatpush.bf16.msra.mxu0 %v5932
    %6371 = vmatpush.bf16.msra.mxu0 %v5931
    %6372 = vmatpush.bf16.msra.mxu0 %v5930
    %6373 = vmatpush.bf16.msra.mxu0 %v5929
    %6374 = vmatpush.bf16.msra.mxu0 %v5928
    %6375 = vmatpush.bf16.msra.mxu0 %v5927
    %6376 = vmatpush.bf16.msra.mxu0 %v5926
    %6377 = vmatpush.bf16.msra.mxu0 %v5925
    %6378 = vmatmul.bf16.gmra.mxu0 %v4679
    %v6379 = vpop.f32.mrf.mxu0
    %v6380 = vadd.f32 %v6366, %v6379
    %v6381 = vpop.f32.mrf.mxu0
    %v6382 = vadd.f32 %v6368, %v6381
    %6383 = vdwg.mxu0
    %6384 = vmatpush.bf16.msra.mxu0 %v5940
    %6385 = vmatpush.bf16.msra.mxu0 %v5939
    %6386 = vmatpush.bf16.msra.mxu0 %v5938
    %6387 = vmatpush.bf16.msra.mxu0 %v5937
    %6388 = vmatpush.bf16.msra.mxu0 %v5936
    %6389 = vmatpush.bf16.msra.mxu0 %v5935
    %6390 = vmatpush.bf16.msra.mxu0 %v5934
    %6391 = vmatpush.bf16.msra.mxu0 %v5933
    %6392 = vmatmul.bf16.gmra.mxu0 %v4680
    %v6393 = vpop.f32.mrf.mxu0
    %v6394 = vadd.f32 %v6380, %v6393
    %v6395 = vpop.f32.mrf.mxu0
    %v6396 = vadd.f32 %v6382, %v6395
    %6397 = vdwg.mxu0
    %6398 = vmatpush.bf16.msra.mxu0 %v5948
    %6399 = vmatpush.bf16.msra.mxu0 %v5947
    %6400 = vmatpush.bf16.msra.mxu0 %v5946
    %6401 = vmatpush.bf16.msra.mxu0 %v5945
    %6402 = vmatpush.bf16.msra.mxu0 %v5944
    %6403 = vmatpush.bf16.msra.mxu0 %v5943
    %6404 = vmatpush.bf16.msra.mxu0 %v5942
    %6405 = vmatpush.bf16.msra.mxu0 %v5941
    %6406 = vmatmul.bf16.gmra.mxu0 %v4681
    %v6407 = vpop.f32.mrf.mxu0
    %v6408 = vadd.f32 %v6394, %v6407
    %v6409 = vpop.f32.mrf.mxu0
    %v6410 = vadd.f32 %v6396, %v6409
    %6411 = vdwg.mxu0
    %6412 = vmatpush.bf16.msra.mxu0 %v5956
    %6413 = vmatpush.bf16.msra.mxu0 %v5955
    %6414 = vmatpush.bf16.msra.mxu0 %v5954
    %6415 = vmatpush.bf16.msra.mxu0 %v5953
    %6416 = vmatpush.bf16.msra.mxu0 %v5952
    %6417 = vmatpush.bf16.msra.mxu0 %v5951
    %6418 = vmatpush.bf16.msra.mxu0 %v5950
    %6419 = vmatpush.bf16.msra.mxu0 %v5949
    %6420 = vmatmul.bf16.gmra.mxu0 %v4682
    %v6421 = vpop.f32.mrf.mxu0
    %v6422 = vadd.f32 %v6408, %v6421
    %v6423 = vpop.f32.mrf.mxu0
    %v6424 = vadd.f32 %v6410, %v6423
    %6425 = vdwg.mxu0
    %6426 = vmatpush.bf16.msra.mxu0 %v5964
    %6427 = vmatpush.bf16.msra.mxu0 %v5963
    %6428 = vmatpush.bf16.msra.mxu0 %v5962
    %6429 = vmatpush.bf16.msra.mxu0 %v5961
    %6430 = vmatpush.bf16.msra.mxu0 %v5960
    %6431 = vmatpush.bf16.msra.mxu0 %v5959
    %6432 = vmatpush.bf16.msra.mxu0 %v5958
    %6433 = vmatpush.bf16.msra.mxu0 %v5957
    %6434 = vmatmul.bf16.gmra.mxu0 %v4683
    %v6435 = vpop.f32.mrf.mxu0
    %v6436 = vadd.f32 %v6422, %v6435
    %v6437 = vpop.f32.mrf.mxu0
    %v6438 = vadd.f32 %v6424, %v6437
    %6439 = vdwg.mxu0
    %6440 = vmatpush.bf16.msra.mxu0 %v5972
    %6441 = vmatpush.bf16.msra.mxu0 %v5971
    %6442 = vmatpush.bf16.msra.mxu0 %v5970
    %6443 = vmatpush.bf16.msra.mxu0 %v5969
    %6444 = vmatpush.bf16.msra.mxu0 %v5968
    %6445 = vmatpush.bf16.msra.mxu0 %v5967
    %6446 = vmatpush.bf16.msra.mxu0 %v5966
    %6447 = vmatpush.bf16.msra.mxu0 %v5965
    %6448 = vmatmul.bf16.gmra.mxu0 %v4684
    %v6449 = vpop.f32.mrf.mxu0
    %v6450 = vadd.f32 %v6436, %v6449
    %v6451 = vpop.f32.mrf.mxu0
    %v6452 = vadd.f32 %v6438, %v6451
    %6453 = vdwg.mxu0
    %6454 = vmatpush.bf16.msra.mxu0 %v5980
    %6455 = vmatpush.bf16.msra.mxu0 %v5979
    %6456 = vmatpush.bf16.msra.mxu0 %v5978
    %6457 = vmatpush.bf16.msra.mxu0 %v5977
    %6458 = vmatpush.bf16.msra.mxu0 %v5976
    %6459 = vmatpush.bf16.msra.mxu0 %v5975
    %6460 = vmatpush.bf16.msra.mxu0 %v5974
    %6461 = vmatpush.bf16.msra.mxu0 %v5973
    %6462 = vmatmul.bf16.gmra.mxu0 %v4685
    %v6463 = vpop.f32.mrf.mxu0
    %v6464 = vadd.f32 %v6450, %v6463
    %v6465 = vpop.f32.mrf.mxu0
    %v6466 = vadd.f32 %v6452, %v6465
    %6467 = vdwg.mxu0
    %6468 = vmatpush.bf16.msra.mxu0 %v5988
    %6469 = vmatpush.bf16.msra.mxu0 %v5987
    %6470 = vmatpush.bf16.msra.mxu0 %v5986
    %6471 = vmatpush.bf16.msra.mxu0 %v5985
    %6472 = vmatpush.bf16.msra.mxu0 %v5984
    %6473 = vmatpush.bf16.msra.mxu0 %v5983
    %6474 = vmatpush.bf16.msra.mxu0 %v5982
    %6475 = vmatpush.bf16.msra.mxu0 %v5981
    %6476 = vmatmul.bf16.gmra.mxu0 %v4686
    %v6477 = vpop.f32.mrf.mxu0
    %v6478 = vadd.f32 %v6464, %v6477
    %v6479 = vpop.f32.mrf.mxu0
    %v6480 = vadd.f32 %v6466, %v6479
    %6481 = vdwg.mxu0
    %6482 = vmatpush.bf16.msra.mxu0 %v5996
    %6483 = vmatpush.bf16.msra.mxu0 %v5995
    %6484 = vmatpush.bf16.msra.mxu0 %v5994
    %6485 = vmatpush.bf16.msra.mxu0 %v5993
    %6486 = vmatpush.bf16.msra.mxu0 %v5992
    %6487 = vmatpush.bf16.msra.mxu0 %v5991
    %6488 = vmatpush.bf16.msra.mxu0 %v5990
    %6489 = vmatpush.bf16.msra.mxu0 %v5989
    %6490 = vmatmul.bf16.gmra.mxu0 %v4687
    %v6491 = vpop.f32.mrf.mxu0
    %v6492 = vadd.f32 %v6478, %v6491
    %v6493 = vpop.f32.mrf.mxu0
    %v6494 = vadd.f32 %v6480, %v6493
    %6495 = vdwg.mxu0
    %6496 = vmatpush.bf16.msra.mxu0 %v6004
    %6497 = vmatpush.bf16.msra.mxu0 %v6003
    %6498 = vmatpush.bf16.msra.mxu0 %v6002
    %6499 = vmatpush.bf16.msra.mxu0 %v6001
    %6500 = vmatpush.bf16.msra.mxu0 %v6000
    %6501 = vmatpush.bf16.msra.mxu0 %v5999
    %6502 = vmatpush.bf16.msra.mxu0 %v5998
    %6503 = vmatpush.bf16.msra.mxu0 %v5997
    %6504 = vmatmul.bf16.gmra.mxu0 %v4688
    %v6505 = vpop.f32.mrf.mxu0
    %v6506 = vadd.f32 %v6492, %v6505
    %v6507 = vpop.f32.mrf.mxu0
    %v6508 = vadd.f32 %v6494, %v6507
    %6509 = vdwg.mxu0
    %6510 = vmatpush.bf16.msra.mxu0 %v6012
    %6511 = vmatpush.bf16.msra.mxu0 %v6011
    %6512 = vmatpush.bf16.msra.mxu0 %v6010
    %6513 = vmatpush.bf16.msra.mxu0 %v6009
    %6514 = vmatpush.bf16.msra.mxu0 %v6008
    %6515 = vmatpush.bf16.msra.mxu0 %v6007
    %6516 = vmatpush.bf16.msra.mxu0 %v6006
    %6517 = vmatpush.bf16.msra.mxu0 %v6005
    %6518 = vmatmul.bf16.gmra.mxu0 %v4689
    %v6519 = vpop.f32.mrf.mxu0
    %v6520 = vadd.f32 %v6506, %v6519
    %v6521 = vpop.f32.mrf.mxu0
    %v6522 = vadd.f32 %v6508, %v6521
    %6523 = vdwg.mxu0
    %6524 = vmatpush.bf16.msra.mxu0 %v6020
    %6525 = vmatpush.bf16.msra.mxu0 %v6019
    %6526 = vmatpush.bf16.msra.mxu0 %v6018
    %6527 = vmatpush.bf16.msra.mxu0 %v6017
    %6528 = vmatpush.bf16.msra.mxu0 %v6016
    %6529 = vmatpush.bf16.msra.mxu0 %v6015
    %6530 = vmatpush.bf16.msra.mxu0 %v6014
    %6531 = vmatpush.bf16.msra.mxu0 %v6013
    %6532 = vmatmul.bf16.gmra.mxu0 %v4690
    %v6533 = vpop.f32.mrf.mxu0
    %v6534 = vadd.f32 %v6520, %v6533
    %v6535 = vpop.f32.mrf.mxu0
    %v6536 = vadd.f32 %v6522, %v6535
    %6537 = vdwg.mxu0
    %6538 = vmatpush.bf16.msra.mxu0 %v6028
    %6539 = vmatpush.bf16.msra.mxu0 %v6027
    %6540 = vmatpush.bf16.msra.mxu0 %v6026
    %6541 = vmatpush.bf16.msra.mxu0 %v6025
    %6542 = vmatpush.bf16.msra.mxu0 %v6024
    %6543 = vmatpush.bf16.msra.mxu0 %v6023
    %6544 = vmatpush.bf16.msra.mxu0 %v6022
    %6545 = vmatpush.bf16.msra.mxu0 %v6021
    %6546 = vmatmul.bf16.gmra.mxu0 %v4691
    %v6547 = vpop.f32.mrf.mxu0
    %v6548 = vadd.f32 %v6534, %v6547
    %v6549 = vpop.f32.mrf.mxu0
    %v6550 = vadd.f32 %v6536, %v6549
    %6551 = vdwg.mxu0
    %6552 = vmatpush.bf16.msra.mxu0 %v6036
    %6553 = vmatpush.bf16.msra.mxu0 %v6035
    %6554 = vmatpush.bf16.msra.mxu0 %v6034
    %6555 = vmatpush.bf16.msra.mxu0 %v6033
    %6556 = vmatpush.bf16.msra.mxu0 %v6032
    %6557 = vmatpush.bf16.msra.mxu0 %v6031
    %6558 = vmatpush.bf16.msra.mxu0 %v6030
    %6559 = vmatpush.bf16.msra.mxu0 %v6029
    %6560 = vmatmul.bf16.gmra.mxu0 %v4692
    %v6561 = vpop.f32.mrf.mxu0
    %v6562 = vadd.f32 %v6548, %v6561
    %v6563 = vpop.f32.mrf.mxu0
    %v6564 = vadd.f32 %v6550, %v6563
    %6565 = vdwg.mxu0
    %v6566 = vadd.f32 %v1795, %v6562
    %v6567 = vadd.f32 %v1796, %v6564
    %v6568 = vsel %vm67, %v6566, 0.0
    %6569 = vadd.xlane.f32.xlu0 %v6568
    %v6570 = vpop.xlane.xlu0 %6569
    %v6571 = vsel %vm67, %v6567, 0.0
    %6572 = vadd.xlane.f32.xlu0 %v6571
    %v6573 = vpop.xlane.xlu0 %6572
    %v6574 = vmul.f32 %v6570, %v789
    %v6575 = vmul.f32 %v6573, %v789
    %v6576 = vsub.f32 %v6566, %v6574
    %v6577 = vsub.f32 %v6567, %v6575
    %v6578 = vmul.f32 %v6576, %v6576
    %v6579 = vmul.f32 %v6577, %v6577
    %v6580 = vsel %vm67, %v6578, 0.0
    %6581 = vadd.xlane.f32.xlu0 %v6580
    %v6582 = vpop.xlane.xlu0 %6581
    %v6583 = vsel %vm67, %v6579, 0.0
    %6584 = vadd.xlane.f32.xlu0 %v6583
    %v6585 = vpop.xlane.xlu0 %6584
    %v6586 = vmul.f32 %v6582, %v789
    %v6587 = vmul.f32 %v6585, %v789
    %v6588 = vadd.f32 %v6586, 1e-05
    %v6589 = vadd.f32 %v6587, 1e-05
    %v6590 = vrsqrt.pop %v6588
    %v6591 = vmul.f32 %v6590, %v6588
    %v6592 = vmul.f32 %v6591, %v6590
    %v6593 = vmul.f32 0.5, %v6592
    %v6594 = vsub.f32 1.5, %v6593
    %v6595 = vmul.f32 %v6590, %v6594
    %vm6596 = vweird.f32 %v6588
    %vm6597 = vweird.f32 %v6590
    %vm6598 = vmor %vm6596, %vm6597
    %v6599 = vsel %vm6598, %v6590, %v6595
    %v6600 = vrsqrt.pop %v6589
    %v6601 = vmul.f32 %v6600, %v6589
    %v6602 = vmul.f32 %v6601, %v6600
    %v6603 = vmul.f32 0.5, %v6602
    %v6604 = vsub.f32 1.5, %v6603
    %v6605 = vmul.f32 %v6600, %v6604
    %vm6606 = vweird.f32 %v6589
    %vm6607 = vweird.f32 %v6600
    %vm6608 = vmor %vm6606, %vm6607
    %v6609 = vsel %vm6608, %v6600, %v6605
    %v6610 = vmul.f32 %v6576, %v6599
    %v6611 = vmul.f32 %v6577, %v6609
    %6612 = vrot.lane.b32.xlu0 %v1878, 64
    %v6613 = vpop.permute.xlu0 %6612
    %v6615 = vmul.f32 %v6610, %v6613
    %v6616 = vmul.f32 %v6611, %v6613
    %6617 = vrot.lane.b32.xlu0 %v1878, 32
    %v6618 = vpop.permute.xlu0 %6617
    %v6620 = vadd.f32 %v6615, %v6618
    %v6621 = vadd.f32 %v6616, %v6618
    %6622 = vst.msk [vmem:[#allocation2] sm:$0xff] %vm67, %v6620
    %6623 = vst.msk [vmem:[#allocation2 + $0x8] sm:$0xff] %vm67, %v6621
    // Predicated region
    $region46: #{tpu_custom_call.1} parent=1 // pred_check
      _
    $region47: #{tpu_custom_call.1} parent=1 // pred_check_branch
      %6625 = sbr.rel (0) target = $region49
    $region48: #{tpu_custom_call.1} parent=1 // pred_region
      %6627 = vsyncadd [#allocation3], 0
      %s6628 = sshll.u32 [#allocation2], 4
      %s6629 = int_to_ptr.vmem [resolvable:$true] %s6628
      %s6630 = sshll.u32 %s11, 4
      %s6631 = int_to_ptr.hbm [resolvable:$true] %s6630
      %6636 = dma.vmem_to_hbm [thread:$0]  %s6629, 256, %s6631, [#allocation3], 128, 128, 8
    $region49: #{tpu_custom_call.1} parent=1 // pred_fallthru
      _
    // Predicated region
    $region50: #{tpu_custom_call.1} parent=1 // pred_check
      _
    $region51: #{tpu_custom_call.1} parent=1 // pred_check_branch
      %6638 = sbr.rel (0) target = $region53
    $region52: #{tpu_custom_call.1} parent=1 // pred_region
      %6640 = dma.done [#allocation3], 256
    $region53: #{tpu_custom_call.1} parent=1 // pred_fallthru
      _
    %6641 = vsyncpa [#allocation3], 1

</llo_original>
